<compile_context>
chip_gen: v5e
topology: v5e:2x2
jax: 0.10.0
libtpu: 0.0.40
codegen_flags: <defaults>
</compile_context>

<pallas_src>
import functools
import math

import jax
import jax.numpy as jnp
from jax.experimental import pallas as pl
from jax.experimental.pallas import tpu as pltpu


def _make_wire_kernel(num_layers: int, in_features: int, hidden: int):
    """Kernel processing one tile of rows through the whole WIRE net."""

    def kernel(x_ref, *args):
        *p_refs, o_ref = args
        assert len(p_refs) == 2 * num_layers  # (Wcat = [Wf^T | Ws^T], bcat) per layer
        H = hidden

        # ---- layer 0: K = in_features is tiny -> VPU broadcast-FMA, no MXU.
        w_r, b_r = p_refs[0], p_refs[1]
        x = x_ref[...]                           # (tn, in_features)
        w_cat = w_r[...]                         # (in_features, 2H), w0/s0 folded
        z = b_r[...]                             # (1, 2H), w0/s0 folded
        for k in range(in_features):             # unrolled at trace time
            z = z + x[:, k:k + 1] * w_cat[k:k + 1, :]
        zf = z[:, :H]                            # freq path  (lane 0..H-1)
        zs = z[:, H:]                            # scale path (lane H..2H-1)
        h = jnp.sin(zf) * jnp.exp2(-(zs * zs))   # Gabor activation (log2e folded)

        # ---- hidden layers: single fused (K=H, N=2H) MXU matmul per layer.
        for l in range(1, num_layers):
            w_r, b_r = p_refs[2 * l], p_refs[2 * l + 1]
            z = jnp.dot(h, w_r[...], preferred_element_type=jnp.float32) + b_r[...]
            zf = z[:, :H]
            zs = z[:, H:]
            h = jnp.sin(zf) * jnp.exp2(-(zs * zs))

        o_ref[...] = h.astype(o_ref.dtype)

    return kernel


@functools.partial(jax.jit, static_argnames=("tn",))
def wire_forward(x, params, *, tn=512):
    """x: (N, in_features). params: flat tuple, 2 arrays per layer:
    Wcat = [w0*Wf^T | s0*sqrt(log2 e)*Ws^T]  of shape (K, 2H)
    bcat = [w0*bf   | s0*sqrt(log2 e)*bs]    of shape (1, 2H)."""
    n, in_features = x.shape
    two_h = params[0].shape[1]
    hidden = two_h // 2
    num_layers = len(params) // 2

    # No pad / slice: Pallas handles the non-divisible last block (OOB reads are
    # garbage but rows are independent; OOB writes are dropped).
    grid = (pl.cdiv(n, tn),)

    x_spec = pl.BlockSpec((tn, in_features), lambda i: (i, 0))
    # Weight / bias blocks are grid-invariant (index_map always (0, 0)), so the
    # pipeline keeps them resident in VMEM and does not re-copy per grid step.
    p_specs = []
    for l in range(num_layers):
        k = in_features if l == 0 else hidden
        p_specs += [
            pl.BlockSpec((k, two_h), lambda i: (0, 0)),   # Wcat (folded w0/s0/log2e)
            pl.BlockSpec((1, two_h), lambda i: (0, 0)),   # bcat (folded w0/s0/log2e)
        ]

    out = pl.pallas_call(
        _make_wire_kernel(num_layers, in_features, hidden),
        out_shape=jax.ShapeDtypeStruct((n, hidden), jnp.float32),
        grid_spec=pltpu.PrefetchScalarGridSpec(
            num_scalar_prefetch=0,
            grid=grid,
            in_specs=[x_spec] + p_specs,
            out_specs=pl.BlockSpec((tn, hidden), lambda i: (i, 0)),
        ),
        compiler_params=pltpu.CompilerParams(
            dimension_semantics=("parallel",),
        ),
    )(x, *params)
    return out


def init_params(key, in_features, hidden_features, num_hidden,
                first_w0=10.0, w0=10.0, first_s0=10.0, s0=10.0):
    """Mirror RealGaborLayer.__init__ with siren_init=True, use_bias=True.

    Returns (raw_params, kernel_params):
      raw_params    : per-layer dicts with untouched PyTorch-style weights for
                      the pure-JAX reference.
      kernel_params : flat tuple of fused, pre-transposed arrays with
                      w0 / s0 / sqrt(log2 e) folded in, fed to the Pallas kernel.
    """
    sqrt_log2e = math.sqrt(math.log2(math.e))   # exp(-v^2) == exp2(-(sqrt(log2e)*v)^2)
    raw = []
    flat = []
    num_layers = num_hidden + 1
    for idx in range(num_layers):
        fan_in = in_features if idx == 0 else hidden_features
        lw0 = first_w0 if idx == 0 else w0
        ls0 = first_s0 if idx == 0 else s0
        key, kwf, kbf, kws, kbs = jax.random.split(key, 5)

        if idx == 0:
            # is_first: siren_init uses w_std = 1/in_features for both linears;
            # biases keep nn.Linear's default U(-1/sqrt(fan_in), 1/sqrt(fan_in)).
            w_std_f = w_std_s = 1.0 / fan_in
            b_bound = 1.0 / math.sqrt(float(fan_in))
            bf = jax.random.uniform(kbf, (1, hidden_features),
                                    minval=-b_bound, maxval=b_bound)
            bs = jax.random.uniform(kbs, (1, hidden_features),
                                    minval=-b_bound, maxval=b_bound)
        else:
            # not is_first: siren_init fills biases with 0.
            w_std_f = math.sqrt(6.0 / fan_in) / lw0
            w_std_s = math.sqrt(6.0 / fan_in) / ls0
            bf = jnp.zeros((1, hidden_features), jnp.float32)
            bs = jnp.zeros((1, hidden_features), jnp.float32)

        wf = jax.random.uniform(kwf, (hidden_features, fan_in),
                                minval=-w_std_f, maxval=w_std_f)
        ws = jax.random.uniform(kws, (hidden_features, fan_in),
                                minval=-w_std_s, maxval=w_std_s)

        raw.append(dict(wf=wf, bf=bf, ws=ws, bs=bs, w0=lw0, s0=ls0))

        # Fold constants and pre-transpose to (in, out), then fuse freq|scale.
        wf_k = (lw0 * wf.T).astype(jnp.float32)
        bf_k = (lw0 * bf).astype(jnp.float32)
        ws_k = (ls0 * sqrt_log2e * ws.T).astype(jnp.float32)
        bs_k = (ls0 * sqrt_log2e * bs).astype(jnp.float32)
        w_cat = jnp.concatenate([wf_k, ws_k], axis=1)    # (fan_in, 2H)
        b_cat = jnp.concatenate([bf_k, bs_k], axis=1)    # (1, 2H)
        flat += [w_cat, b_cat]
    return raw, tuple(flat)


def reference_forward(x, raw_params):
    """Literal JAX transcription of the PyTorch WIRE forward (unfolded params)."""
    h = x
    for p in raw_params:
        zf = h @ p["wf"].T + p["bf"]
        zs = h @ p["ws"].T + p["bs"]
        h = jnp.sin(p["w0"] * zf) * jnp.exp(-(p["s0"] * zs) ** 2)
    return h


if __name__ == "__main__":
    # Small, deterministic example consistent with a WIREConfig:
    #   in_features=2 coordinates, hidden_features=128, num_hidden=2
    #   (-> 3 RealGaborLayers), w0=s0=10, sin freq activation, siren_init.
    in_features = 2
    hidden_features = 128   # lane-dense activations/output (full 128-lane vregs)
    num_hidden = 2
    n = 1000                # not a multiple of tn: exercises the partial last block
    tn = 128                # grid = (8,): even, splits cleanly on v7x's 2 TCs
                            # (production wrapper default is tn=512)

    key = jax.random.PRNGKey(0)
    kx, kp = jax.random.split(key)
    x = jax.random.uniform(kx, (n, in_features), minval=-1.0, maxval=1.0,
                           dtype=jnp.float32)
    raw_params, kernel_params = init_params(kp, in_features, hidden_features,
                                            num_hidden)

    out = wire_forward(x, kernel_params, tn=tn)
    out = jax.block_until_ready(out)

    ref = reference_forward(x, raw_params)
    assert out.shape == (n, hidden_features)
    assert jnp.allclose(out, ref, atol=1e-4, rtol=1e-4), (
        float(jnp.max(jnp.abs(out - ref))))

    print("KERNEL_OK")
</pallas_src>

<mosaic_0001>
module attributes {stable_mosaic.version = 11 : i64} {
  func.func @kernel(%arg0: i32, %arg1: memref<128x2xf32, #tpu.memory_space<vmem>>, %arg2: memref<2x256xf32, #tpu.memory_space<vmem>>, %arg3: memref<1x256xf32, #tpu.memory_space<vmem>>, %arg4: memref<128x256xf32, #tpu.memory_space<vmem>>, %arg5: memref<1x256xf32, #tpu.memory_space<vmem>>, %arg6: memref<128x256xf32, #tpu.memory_space<vmem>>, %arg7: memref<1x256xf32, #tpu.memory_space<vmem>>, %arg8: memref<128x128xf32, #tpu.memory_space<vmem>>) attributes {dimension_semantics = [#tpu.dimension_semantics<parallel>], iteration_bounds = array<i64: 8>, scalar_prefetch = 0 : i64, scratch_operands = 0 : i64, tpu.core_type = #tpu.core_type<tc>, window_params = [{transform_indices = @transform_0, window_bounds = array<i64: 128, 2>}, {pipeline_mode = #tpu.pipeline_mode<synchronous>, transform_indices = @transform_1, window_bounds = array<i64: 2, 256>}, {pipeline_mode = #tpu.pipeline_mode<synchronous>, transform_indices = @transform_2, window_bounds = array<i64: 1, 256>}, {pipeline_mode = #tpu.pipeline_mode<synchronous>, transform_indices = @transform_3, window_bounds = array<i64: 128, 256>}, {pipeline_mode = #tpu.pipeline_mode<synchronous>, transform_indices = @transform_4, window_bounds = array<i64: 1, 256>}, {pipeline_mode = #tpu.pipeline_mode<synchronous>, transform_indices = @transform_5, window_bounds = array<i64: 128, 256>}, {pipeline_mode = #tpu.pipeline_mode<synchronous>, transform_indices = @transform_6, window_bounds = array<i64: 1, 256>}, {transform_indices = @transform_7, window_bounds = array<i64: 128, 128>}]} {
    %c0 = arith.constant 0 : index
    %c0_0 = arith.constant 0 : index
    %0 = vector.load %arg1[%c0, %c0_0] : memref<128x2xf32, #tpu.memory_space<vmem>>, vector<128x2xf32>
    %c0_1 = arith.constant 0 : index
    %c0_2 = arith.constant 0 : index
    %1 = vector.load %arg2[%c0_1, %c0_2] : memref<2x256xf32, #tpu.memory_space<vmem>>, vector<2x256xf32>
    %c0_3 = arith.constant 0 : index
    %c0_4 = arith.constant 0 : index
    %2 = vector.load %arg3[%c0_3, %c0_4] : memref<1x256xf32, #tpu.memory_space<vmem>>, vector<1x256xf32>
    %3 = vector.extract_strided_slice %0 {offsets = [0, 0], sizes = [128, 1], strides = [1, 1]} : vector<128x2xf32> to vector<128x1xf32>
    %4 = vector.extract_strided_slice %1 {offsets = [0, 0], sizes = [1, 256], strides = [1, 1]} : vector<2x256xf32> to vector<1x256xf32>
    %5 = vector.broadcast %3 : vector<128x1xf32> to vector<128x256xf32>
    %6 = vector.broadcast %4 : vector<1x256xf32> to vector<128x256xf32>
    %7 = arith.mulf %5, %6 : vector<128x256xf32>
    %8 = vector.broadcast %2 : vector<1x256xf32> to vector<128x256xf32>
    %9 = arith.addf %8, %7 : vector<128x256xf32>
    %10 = vector.extract_strided_slice %0 {offsets = [0, 1], sizes = [128, 1], strides = [1, 1]} : vector<128x2xf32> to vector<128x1xf32>
    %11 = vector.extract_strided_slice %1 {offsets = [1, 0], sizes = [1, 256], strides = [1, 1]} : vector<2x256xf32> to vector<1x256xf32>
    %12 = vector.broadcast %10 : vector<128x1xf32> to vector<128x256xf32>
    %13 = vector.broadcast %11 : vector<1x256xf32> to vector<128x256xf32>
    %14 = arith.mulf %12, %13 : vector<128x256xf32>
    %15 = arith.addf %9, %14 : vector<128x256xf32>
    %16 = vector.extract_strided_slice %15 {offsets = [0, 0], sizes = [128, 128], strides = [1, 1]} : vector<128x256xf32> to vector<128x128xf32>
    %17 = vector.extract_strided_slice %15 {offsets = [0, 128], sizes = [128, 128], strides = [1, 1]} : vector<128x256xf32> to vector<128x128xf32>
    %18 = math.sin %16 : vector<128x128xf32>
    %19 = arith.mulf %17, %17 : vector<128x128xf32>
    %cst = arith.constant 0.000000e+00 : f32
    %20 = vector.broadcast %cst : f32 to vector<128x128xf32>
    %21 = arith.subf %20, %19 : vector<128x128xf32>
    %22 = math.exp2 %21 : vector<128x128xf32>
    %23 = arith.mulf %18, %22 : vector<128x128xf32>
    %c0_5 = arith.constant 0 : index
    %c0_6 = arith.constant 0 : index
    %24 = vector.load %arg4[%c0_5, %c0_6] : memref<128x256xf32, #tpu.memory_space<vmem>>, vector<128x256xf32>
    %cst_7 = arith.constant dense<0.000000e+00> : vector<128x256xf32>
    %25 = tpu.matmul %23, %24, %cst_7 {dimension_numbers = #tpu.dot_dimension_numbers<[1], [0], [0], [1], [0, 0, 1, 1], [], []>} : vector<128x128xf32>, vector<128x256xf32>, vector<128x256xf32> -> vector<128x256xf32>
    %c0_8 = arith.constant 0 : index
    %c0_9 = arith.constant 0 : index
    %26 = vector.load %arg5[%c0_8, %c0_9] : memref<1x256xf32, #tpu.memory_space<vmem>>, vector<1x256xf32>
    %27 = vector.broadcast %26 : vector<1x256xf32> to vector<128x256xf32>
    %28 = arith.addf %25, %27 : vector<128x256xf32>
    %29 = vector.extract_strided_slice %28 {offsets = [0, 0], sizes = [128, 128], strides = [1, 1]} : vector<128x256xf32> to vector<128x128xf32>
    %30 = vector.extract_strided_slice %28 {offsets = [0, 128], sizes = [128, 128], strides = [1, 1]} : vector<128x256xf32> to vector<128x128xf32>
    %31 = math.sin %29 : vector<128x128xf32>
    %32 = arith.mulf %30, %30 : vector<128x128xf32>
    %cst_10 = arith.constant 0.000000e+00 : f32
    %33 = vector.broadcast %cst_10 : f32 to vector<128x128xf32>
    %34 = arith.subf %33, %32 : vector<128x128xf32>
    %35 = math.exp2 %34 : vector<128x128xf32>
    %36 = arith.mulf %31, %35 : vector<128x128xf32>
    %c0_11 = arith.constant 0 : index
    %c0_12 = arith.constant 0 : index
    %37 = vector.load %arg6[%c0_11, %c0_12] : memref<128x256xf32, #tpu.memory_space<vmem>>, vector<128x256xf32>
    %cst_13 = arith.constant dense<0.000000e+00> : vector<128x256xf32>
    %38 = tpu.matmul %36, %37, %cst_13 {dimension_numbers = #tpu.dot_dimension_numbers<[1], [0], [0], [1], [0, 0, 1, 1], [], []>} : vector<128x128xf32>, vector<128x256xf32>, vector<128x256xf32> -> vector<128x256xf32>
    %c0_14 = arith.constant 0 : index
    %c0_15 = arith.constant 0 : index
    %39 = vector.load %arg7[%c0_14, %c0_15] : memref<1x256xf32, #tpu.memory_space<vmem>>, vector<1x256xf32>
    %40 = vector.broadcast %39 : vector<1x256xf32> to vector<128x256xf32>
    %41 = arith.addf %38, %40 : vector<128x256xf32>
    %42 = vector.extract_strided_slice %41 {offsets = [0, 0], sizes = [128, 128], strides = [1, 1]} : vector<128x256xf32> to vector<128x128xf32>
    %43 = vector.extract_strided_slice %41 {offsets = [0, 128], sizes = [128, 128], strides = [1, 1]} : vector<128x256xf32> to vector<128x128xf32>
    %44 = math.sin %42 : vector<128x128xf32>
    %45 = arith.mulf %43, %43 : vector<128x128xf32>
    %cst_16 = arith.constant 0.000000e+00 : f32
    %46 = vector.broadcast %cst_16 : f32 to vector<128x128xf32>
    %47 = arith.subf %46, %45 : vector<128x128xf32>
    %48 = math.exp2 %47 : vector<128x128xf32>
    %49 = arith.mulf %44, %48 : vector<128x128xf32>
    %c0_17 = arith.constant 0 : index
    %c0_18 = arith.constant 0 : index
    %50 = vector.load %arg8[%c0_17, %c0_18] : memref<128x128xf32, #tpu.memory_space<vmem>>, vector<128x128xf32>
    tpu.vector_store %arg8[%c0_17, %c0_18], %49 {strides = array<i32>} : memref<128x128xf32, #tpu.memory_space<vmem>>, vector<128x128xf32>,
    return
  }
  func.func @transform_0(%arg0: i32) -> (i32, i32) {
    %c0_i32 = arith.constant 0 : i32
    %c0_i32_0 = arith.constant 0 : i32
    return %arg0, %c0_i32 : i32, i32
  }
  func.func @transform_1(%arg0: i32) -> (i32, i32) {
    %c0_i32 = arith.constant 0 : i32
    %c0_i32_0 = arith.constant 0 : i32
    %c0_i32_1 = arith.constant 0 : i32
    return %c0_i32, %c0_i32_0 : i32, i32
  }
  func.func @transform_2(%arg0: i32) -> (i32, i32) {
    %c0_i32 = arith.constant 0 : i32
    %c0_i32_0 = arith.constant 0 : i32
    %c0_i32_1 = arith.constant 0 : i32
    return %c0_i32, %c0_i32_0 : i32, i32
  }
  func.func @transform_3(%arg0: i32) -> (i32, i32) {
    %c0_i32 = arith.constant 0 : i32
    %c0_i32_0 = arith.constant 0 : i32
    %c0_i32_1 = arith.constant 0 : i32
    return %c0_i32, %c0_i32_0 : i32, i32
  }
  func.func @transform_4(%arg0: i32) -> (i32, i32) {
    %c0_i32 = arith.constant 0 : i32
    %c0_i32_0 = arith.constant 0 : i32
    %c0_i32_1 = arith.constant 0 : i32
    return %c0_i32, %c0_i32_0 : i32, i32
  }
  func.func @transform_5(%arg0: i32) -> (i32, i32) {
    %c0_i32 = arith.constant 0 : i32
    %c0_i32_0 = arith.constant 0 : i32
    %c0_i32_1 = arith.constant 0 : i32
    return %c0_i32, %c0_i32_0 : i32, i32
  }
  func.func @transform_6(%arg0: i32) -> (i32, i32) {
    %c0_i32 = arith.constant 0 : i32
    %c0_i32_0 = arith.constant 0 : i32
    %c0_i32_1 = arith.constant 0 : i32
    return %c0_i32, %c0_i32_0 : i32, i32
  }
  func.func @transform_7(%arg0: i32) -> (i32, i32) {
    %c0_i32 = arith.constant 0 : i32
    %c0_i32_0 = arith.constant 0 : i32
    return %arg0, %c0_i32 : i32, i32
  }
}

</mosaic_0001>

<llo_original>
// kernel: wire_forward.1
$region0: #{wire_forward.1}
  #allocation0 [shape = 'u32[]', space=smem, size = 0x4, offset = 0x4, fixed_abs, tag = 'smem constant byte address 0x4 - core index']
  #allocation1 [shape = 'u32[72,128]{1,0:T(1,128)}', space=vmem, size = 0x9000, scoped, tag = 'internal scratch']
  %s0 = inlined_call_operand.vmem [shape: f32[1000,2], index: 0, kind: input, shape index: {}]
  %s1 = inlined_call_operand.vmem [shape: f32[2,256], index: 1, kind: input, shape index: {}]
  %s2 = inlined_call_operand.vmem [shape: f32[1,256], index: 2, kind: input, shape index: {}]
  %s3 = inlined_call_operand.vmem [shape: f32[128,256], index: 3, kind: input, shape index: {}]
  %s4 = inlined_call_operand.vmem [shape: f32[1,256], index: 4, kind: input, shape index: {}]
  %s5 = inlined_call_operand.vmem [shape: f32[128,256], index: 5, kind: input, shape index: {}]
  %s6 = inlined_call_operand.vmem [shape: f32[1,256], index: 6, kind: input, shape index: {}]
  %s7 = inlined_call_operand.hbm [shape: f32[1000,128], index: 7, kind: output, shape index: {}]
  %s8 = sld [smem:[#allocation0]]
  $region61: #{wire_forward.1} parent=0
    _
  %s10 = ssub.s32 1, %s8
  %s11 = scalar_select 0, %s10, %s8
  $region1: #{wire_forward.1} parent=0
    #allocation2 [shape = 'u8[131072]{0}', space=vmem, size = 0x20000, scoped, tag = 'output window, operand 0']
    #allocation3 [shape = 's32[2]{0}', space=sflag, size = 0x8, scoped, tag = 'scoped memory for wire_forward.1']
    %12 = vsyncpa [#allocation3], 0
    %s13 = scalar_lea.sflag [#allocation3], 1
    %14 = vsyncpa %s13, 0
    loop: start=0, step=1, limit=10
    $region2: #{wire_forward.1} parent=1 // loop_pre_header
      _
    $region3: #{wire_forward.1} parent=1 // loop_header
      %s16 = sphi 0, %s20
      %p17 = scmp.ge.s32.totalorder %s16, 10
      %s26 = sphi 0, %s28
      %s29 = sphi 0, %s26
      %s30 = sphi 0, %s29
      %s46 = sphi 0, %s30
      %s50 = sphi 0, %s50
      %s52 = sphi 0, %s50
      %s53 = sphi 0, %s52
      %s67 = sphi 0, %s53
      %s71 = sphi 0, %s71
      %s73 = sphi 0, %s71
      %s74 = sphi 0, %s73
      %s88 = sphi 0, %s74
      %s92 = sphi 0, %s92
      %s94 = sphi 0, %s92
      %s95 = sphi 0, %s94
      %s109 = sphi 0, %s95
      %s113 = sphi 0, %s113
      %s115 = sphi 0, %s113
      %s116 = sphi 0, %s115
      %s130 = sphi 0, %s116
      %s134 = sphi 0, %s134
      %s136 = sphi 0, %s134
      %s137 = sphi 0, %s136
      %s151 = sphi 0, %s137
      %s155 = sphi 0, %s155
      %s157 = sphi 0, %s155
      %s158 = sphi 0, %s157
      %s172 = sphi 0, %s158
      %s178 = sphi 0, %s180
      %s181 = sphi 0, %s178
      %s182 = sphi 0, %s181
      %s198 = sphi 0, %s182
    $region4: #{wire_forward.1} parent=1 // loop_header_branch
      %19 = sbr.rel (%p17) target = $region8
    $region5: #{wire_forward.1} parent=1 // loop_body
      %s21 = ssub.s32 %s16, 1
      %s22 = ssub.s32 %s16, 2
      %s23 = sadd.s32 %s16, 1
      %s24 = ssub.s32 %s16, %s23
      %p25 = scmp.eq.s32.totalorder %s24, 0
      %s27 = sadd.s32 %s26, 1
      %s28 = scalar_select %p25, %s26, %s27
      %p31 = pneg %p25
      %p32 = scmp.eq.s32.totalorder %s16, 7
      %p33 = por %p31, %p32
      %p34 = scmp.ne.s32.totalorder %s26, %s29
      %p35 = scmp.eq.s32.totalorder %s16, 0
      %p36 = por %p34, %p35
      %p37 = scmp.ne.s32.totalorder %s26, %s29
      %p38 = scmp.eq.s32.totalorder %s21, 7
      %p39 = por %p37, %p38
      %p40 = scmp.ne.s32.totalorder %s29, %s30
      %p41 = scmp.eq.s32.totalorder %s21, 0
      %p42 = por %p40, %p41
      %p43 = scmp.ne.s32.totalorder %s29, %s30
      %p44 = scmp.eq.s32.totalorder %s22, 7
      %p45 = por %p43, %p44
      %p47 = scmp.ne.s32.totalorder %s30, %s46
      %p48 = scmp.eq.s32.totalorder %s22, 0
      %p49 = por %p47, %p48
      %s51 = sadd.s32 %s50, 1
      %p54 = scmp.eq.s32.totalorder %s16, 7
      %p55 = scmp.ne.s32.totalorder %s50, %s52
      %p56 = scmp.eq.s32.totalorder %s16, 0
      %p57 = por %p55, %p56
      %p58 = scmp.ne.s32.totalorder %s50, %s52
      %p59 = scmp.eq.s32.totalorder %s21, 7
      %p60 = por %p58, %p59
      %p61 = scmp.ne.s32.totalorder %s52, %s53
      %p62 = scmp.eq.s32.totalorder %s21, 0
      %p63 = por %p61, %p62
      %p64 = scmp.ne.s32.totalorder %s52, %s53
      %p65 = scmp.eq.s32.totalorder %s22, 7
      %p66 = por %p64, %p65
      %p68 = scmp.ne.s32.totalorder %s53, %s67
      %p69 = scmp.eq.s32.totalorder %s22, 0
      %p70 = por %p68, %p69
      %s72 = sadd.s32 %s71, 1
      %p75 = scmp.eq.s32.totalorder %s16, 7
      %p76 = scmp.ne.s32.totalorder %s71, %s73
      %p77 = scmp.eq.s32.totalorder %s16, 0
      %p78 = por %p76, %p77
      %p79 = scmp.ne.s32.totalorder %s71, %s73
      %p80 = scmp.eq.s32.totalorder %s21, 7
      %p81 = por %p79, %p80
      %p82 = scmp.ne.s32.totalorder %s73, %s74
      %p83 = scmp.eq.s32.totalorder %s21, 0
      %p84 = por %p82, %p83
      %p85 = scmp.ne.s32.totalorder %s73, %s74
      %p86 = scmp.eq.s32.totalorder %s22, 7
      %p87 = por %p85, %p86
      %p89 = scmp.ne.s32.totalorder %s74, %s88
      %p90 = scmp.eq.s32.totalorder %s22, 0
      %p91 = por %p89, %p90
      %s93 = sadd.s32 %s92, 1
      %p96 = scmp.eq.s32.totalorder %s16, 7
      %p97 = scmp.ne.s32.totalorder %s92, %s94
      %p98 = scmp.eq.s32.totalorder %s16, 0
      %p99 = por %p97, %p98
      %p100 = scmp.ne.s32.totalorder %s92, %s94
      %p101 = scmp.eq.s32.totalorder %s21, 7
      %p102 = por %p100, %p101
      %p103 = scmp.ne.s32.totalorder %s94, %s95
      %p104 = scmp.eq.s32.totalorder %s21, 0
      %p105 = por %p103, %p104
      %p106 = scmp.ne.s32.totalorder %s94, %s95
      %p107 = scmp.eq.s32.totalorder %s22, 7
      %p108 = por %p106, %p107
      %p110 = scmp.ne.s32.totalorder %s95, %s109
      %p111 = scmp.eq.s32.totalorder %s22, 0
      %p112 = por %p110, %p111
      %s114 = sadd.s32 %s113, 1
      %p117 = scmp.eq.s32.totalorder %s16, 7
      %p118 = scmp.ne.s32.totalorder %s113, %s115
      %p119 = scmp.eq.s32.totalorder %s16, 0
      %p120 = por %p118, %p119
      %p121 = scmp.ne.s32.totalorder %s113, %s115
      %p122 = scmp.eq.s32.totalorder %s21, 7
      %p123 = por %p121, %p122
      %p124 = scmp.ne.s32.totalorder %s115, %s116
      %p125 = scmp.eq.s32.totalorder %s21, 0
      %p126 = por %p124, %p125
      %p127 = scmp.ne.s32.totalorder %s115, %s116
      %p128 = scmp.eq.s32.totalorder %s22, 7
      %p129 = por %p127, %p128
      %p131 = scmp.ne.s32.totalorder %s116, %s130
      %p132 = scmp.eq.s32.totalorder %s22, 0
      %p133 = por %p131, %p132
      %s135 = sadd.s32 %s134, 1
      %p138 = scmp.eq.s32.totalorder %s16, 7
      %p139 = scmp.ne.s32.totalorder %s134, %s136
      %p140 = scmp.eq.s32.totalorder %s16, 0
      %p141 = por %p139, %p140
      %p142 = scmp.ne.s32.totalorder %s134, %s136
      %p143 = scmp.eq.s32.totalorder %s21, 7
      %p144 = por %p142, %p143
      %p145 = scmp.ne.s32.totalorder %s136, %s137
      %p146 = scmp.eq.s32.totalorder %s21, 0
      %p147 = por %p145, %p146
      %p148 = scmp.ne.s32.totalorder %s136, %s137
      %p149 = scmp.eq.s32.totalorder %s22, 7
      %p150 = por %p148, %p149
      %p152 = scmp.ne.s32.totalorder %s137, %s151
      %p153 = scmp.eq.s32.totalorder %s22, 0
      %p154 = por %p152, %p153
      %s156 = sadd.s32 %s155, 1
      %p159 = scmp.eq.s32.totalorder %s16, 7
      %p160 = scmp.ne.s32.totalorder %s155, %s157
      %p161 = scmp.eq.s32.totalorder %s16, 0
      %p162 = por %p160, %p161
      %p163 = scmp.ne.s32.totalorder %s155, %s157
      %p164 = scmp.eq.s32.totalorder %s21, 7
      %p165 = por %p163, %p164
      %p166 = scmp.ne.s32.totalorder %s157, %s158
      %p167 = scmp.eq.s32.totalorder %s21, 0
      %p168 = por %p166, %p167
      %p169 = scmp.ne.s32.totalorder %s157, %s158
      %p170 = scmp.eq.s32.totalorder %s22, 7
      %p171 = por %p169, %p170
      %p173 = scmp.ne.s32.totalorder %s158, %s172
      %p174 = scmp.eq.s32.totalorder %s22, 0
      %p175 = por %p173, %p174
      %s176 = ssub.s32 %s16, %s23
      %p177 = scmp.eq.s32.totalorder %s176, 0
      %s179 = sadd.s32 %s178, 1
      %s180 = scalar_select %p177, %s178, %s179
      %p183 = pneg %p177
      %p184 = scmp.eq.s32.totalorder %s16, 7
      %p185 = por %p183, %p184
      %p186 = scmp.ne.s32.totalorder %s178, %s181
      %p187 = scmp.eq.s32.totalorder %s16, 0
      %p188 = por %p186, %p187
      %p189 = scmp.ne.s32.totalorder %s178, %s181
      %p190 = scmp.eq.s32.totalorder %s21, 7
      %p191 = por %p189, %p190
      %p192 = scmp.ne.s32.totalorder %s181, %s182
      %p193 = scmp.eq.s32.totalorder %s21, 0
      %p194 = por %p192, %p193
      %p195 = scmp.ne.s32.totalorder %s181, %s182
      %p196 = scmp.eq.s32.totalorder %s22, 7
      %p197 = por %p195, %p196
      %p199 = scmp.ne.s32.totalorder %s182, %s198
      %p200 = scmp.eq.s32.totalorder %s22, 0
      %p201 = por %p199, %p200
      %p202 = scmp.le.s32.totalorder 1, %s16
      %p203 = scmp.lt.s32.totalorder %s16, 9
      %p204 = pnand %p202, %p203
      %p205 = pneg %p204
      // Predicated region
      $region9: #{wire_forward.1} parent=5 // pred_check
        _
      $region10: #{wire_forward.1} parent=5 // pred_check_branch
        %207 = sbr.rel (%p204) target = $region12
      $region11: #{wire_forward.1} parent=5 // pred_region
        %s208 = ssub.s32 %s16, 1
        // Predicated region
        $region13: #{wire_forward.1} parent=11 // pred_check
          %p209 = pneg %p63
        $region14: #{wire_forward.1} parent=11 // pred_check_branch
          %211 = sbr.rel (%p209) target = $region16
        $region15: #{wire_forward.1} parent=11 // pred_region
          _
        $region16: #{wire_forward.1} parent=11 // pred_fallthru
          _
        // Predicated region
        $region17: #{wire_forward.1} parent=11 // pred_check
          %p212 = pneg %p84
        $region18: #{wire_forward.1} parent=11 // pred_check_branch
          %214 = sbr.rel (%p212) target = $region20
        $region19: #{wire_forward.1} parent=11 // pred_region
          _
        $region20: #{wire_forward.1} parent=11 // pred_fallthru
          _
        // Predicated region
        $region21: #{wire_forward.1} parent=11 // pred_check
          %p215 = pneg %p105
        $region22: #{wire_forward.1} parent=11 // pred_check_branch
          %217 = sbr.rel (%p215) target = $region24
        $region23: #{wire_forward.1} parent=11 // pred_region
          _
        $region24: #{wire_forward.1} parent=11 // pred_fallthru
          _
        // Predicated region
        $region25: #{wire_forward.1} parent=11 // pred_check
          %p218 = pneg %p126
        $region26: #{wire_forward.1} parent=11 // pred_check_branch
          %220 = sbr.rel (%p218) target = $region28
        $region27: #{wire_forward.1} parent=11 // pred_region
          _
        $region28: #{wire_forward.1} parent=11 // pred_fallthru
          _
        // Predicated region
        $region29: #{wire_forward.1} parent=11 // pred_check
          %p221 = pneg %p147
        $region30: #{wire_forward.1} parent=11 // pred_check_branch
          %223 = sbr.rel (%p221) target = $region32
        $region31: #{wire_forward.1} parent=11 // pred_region
          _
        $region32: #{wire_forward.1} parent=11 // pred_fallthru
          _
        // Predicated region
        $region33: #{wire_forward.1} parent=11 // pred_check
          %p224 = pneg %p168
        $region34: #{wire_forward.1} parent=11 // pred_check_branch
          %226 = sbr.rel (%p224) target = $region36
        $region35: #{wire_forward.1} parent=11 // pred_region
          _
        $region36: #{wire_forward.1} parent=11 // pred_fallthru
          _
      $region12: #{wire_forward.1} parent=5 // pred_fallthru
        _
      %p227 = scmp.lt.s32.totalorder %s16, 8
      // Predicated region
      $region37: #{wire_forward.1} parent=5 // pred_check
        %p228 = pneg %p227
      $region38: #{wire_forward.1} parent=5 // pred_check_branch
        %230 = sbr.rel (%p228) target = $region40
      $region39: #{wire_forward.1} parent=5 // pred_region
        // Predicated region
        $region41: #{wire_forward.1} parent=39 // pred_check
          %p231 = pneg %p36
        $region42: #{wire_forward.1} parent=39 // pred_check_branch
          %233 = sbr.rel (%p231) target = $region44
        $region43: #{wire_forward.1} parent=39 // pred_region
          %s234 = smul.u32 16, %s16
          %s235 = ssub.s32 125, %s234
          %p236 = scmp.lt.s32.totalorder %s235, 16
          %s237 = scalar_select %p236, %s235, 16
          %s238 = smul.u32 8, %s237
          %p239 = scmp.lt.s32.totalorder %s234, 124
          %s240 = scalar_select %p239, %s234, 124
          %s241 = smul.addr %s240, 8
          %s242 = scalar_lea.vmem %s0, %s241
          %s243 = smul.u32 16, %s16
          %s244 = ssub.s32 125, %s243
          %p245 = scmp.lt.s32.totalorder %s244, 16
          %s246 = scalar_select %p245, %s244, 16
          %s247 = smul.u32 8, %s246
        $region44: #{wire_forward.1} parent=39 // pred_fallthru
          _
      $region40: #{wire_forward.1} parent=5 // pred_fallthru
        _
      %p248 = scmp.le.s32.totalorder 1, %s16
      %p249 = scmp.lt.s32.totalorder %s16, 9
      %p250 = pnand %p248, %p249
      %p251 = pneg %p250
      // Predicated region
      $region45: #{wire_forward.1} parent=5 // pred_check
        _
      $region46: #{wire_forward.1} parent=5 // pred_check_branch
        %253 = sbr.rel (%p250) target = $region48
      $region47: #{wire_forward.1} parent=5 // pred_region
        %s254 = ssub.s32 %s16, 1
        %s255 = smul.u32 16, %s21
        %s256 = ssub.s32 125, %s255
        %p257 = scmp.lt.s32.totalorder %s256, 16
        %s258 = scalar_select %p257, %s256, 16
        %s259 = smul.u32 8, %s258
        %p260 = scmp.lt.s32.totalorder %s255, 124
        %s261 = scalar_select %p260, %s255, 124
        %s262 = smul.addr %s261, 8
        %s263 = scalar_lea.vmem %s0, %s262
        %p264 = pneg %p42
        %p265 = pneg %p39
        %p266 = pneg %p63
        %p267 = pneg %p60
        %p268 = pneg %p84
        %p269 = pneg %p81
        %p270 = pneg %p105
        %p271 = pneg %p102
        %p272 = pneg %p126
        %p273 = pneg %p123
        %p274 = pneg %p147
        %p275 = pneg %p144
        %p276 = pneg %p168
        %p277 = pneg %p165
        %p278 = pneg %p194
        %p279 = pneg %p191
        %s280 = sand.u32 %s181, 1
        %s281 = scalar_lea.sflag [#allocation3], %s280
        %s282 = sand.u32 %s181, 1
        %s283 = smul.addr %s282, 128
        %s284 = scalar_lea.vmem [#allocation2], %s283
        %s285 = smul.u32 16, %s21
        %s286 = ssub.s32 125, %s285
        %p287 = scmp.lt.s32.totalorder %s286, 16
        %s288 = scalar_select %p287, %s286, 16
        %s289 = smul.u32 8, %s288
        %p290 = scmp.lt.s32.totalorder %s285, 124
        %s291 = scalar_select %p290, %s285, 124
        %s292 = smul.addr %s291, 8
        %s293 = scalar_lea.vmem %s0, %s292
        %s294 = smul.u32 16, %s21
        %s295 = ssub.s32 125, %s294
        %p296 = scmp.lt.s32.totalorder %s295, 16
        %s297 = scalar_select %p296, %s295, 16
        %s298 = smul.u32 8, %s297
        %s299 = smul.u32 16, %s21
        %s300 = ssub.s32 125, %s299
        %p301 = scmp.lt.s32.totalorder %s300, 16
        %s302 = scalar_select %p301, %s300, 16
        %s303 = smul.u32 8, %s302
        %v304 = vld [vmem:[%s293] sm:$0xff]
        %v305 = vld [vmem:[%s293 + $0x8] sm:$0xff]
        %v306 = vld [vmem:[%s293 + $0x10] sm:$0xff]
        %v307 = vld [vmem:[%s293 + $0x18] sm:$0xff]
        %v308 = vld [vmem:[%s293 + $0x20] sm:$0xff]
        %v309 = vld [vmem:[%s293 + $0x28] sm:$0xff]
        %v310 = vld [vmem:[%s293 + $0x30] sm:$0xff]
        %v311 = vld [vmem:[%s293 + $0x38] sm:$0xff]
        %v312 = vld [vmem:[%s293 + $0x40] sm:$0xff]
        %v313 = vld [vmem:[%s293 + $0x48] sm:$0xff]
        %v314 = vld [vmem:[%s293 + $0x50] sm:$0xff]
        %v315 = vld [vmem:[%s293 + $0x58] sm:$0xff]
        %v316 = vld [vmem:[%s293 + $0x60] sm:$0xff]
        %v317 = vld [vmem:[%s293 + $0x68] sm:$0xff]
        %v318 = vld [vmem:[%s293 + $0x70] sm:$0xff]
        %v319 = vld [vmem:[%s293 + $0x78] sm:$0xff]
        %v320 = vld [vmem:[%s1] sm:$0xf]
        %v321 = vld [vmem:[%s2] sm:$0x3]
        %323 = vset.pattern.permute.xlu0 0
        %324 = vperm.xlu0 %323, %v304
        %v325 = vpop.permute.xlu0 %324
        %328 = vset.pattern.permute.xlu0 0
        %329 = vperm.xlu0 %328, %v305
        %v330 = vpop.permute.xlu0 %329
        %333 = vset.pattern.permute.xlu0 0
        %334 = vperm.xlu0 %333, %v306
        %v335 = vpop.permute.xlu0 %334
        %338 = vset.pattern.permute.xlu0 0
        %339 = vperm.xlu0 %338, %v307
        %v340 = vpop.permute.xlu0 %339
        %343 = vset.pattern.permute.xlu0 0
        %344 = vperm.xlu0 %343, %v308
        %v345 = vpop.permute.xlu0 %344
        %348 = vset.pattern.permute.xlu0 0
        %349 = vperm.xlu0 %348, %v309
        %v350 = vpop.permute.xlu0 %349
        %353 = vset.pattern.permute.xlu0 0
        %354 = vperm.xlu0 %353, %v310
        %v355 = vpop.permute.xlu0 %354
        %358 = vset.pattern.permute.xlu0 0
        %359 = vperm.xlu0 %358, %v311
        %v360 = vpop.permute.xlu0 %359
        %363 = vset.pattern.permute.xlu0 0
        %364 = vperm.xlu0 %363, %v312
        %v365 = vpop.permute.xlu0 %364
        %368 = vset.pattern.permute.xlu0 0
        %369 = vperm.xlu0 %368, %v313
        %v370 = vpop.permute.xlu0 %369
        %373 = vset.pattern.permute.xlu0 0
        %374 = vperm.xlu0 %373, %v314
        %v375 = vpop.permute.xlu0 %374
        %378 = vset.pattern.permute.xlu0 0
        %379 = vperm.xlu0 %378, %v315
        %v380 = vpop.permute.xlu0 %379
        %383 = vset.pattern.permute.xlu0 0
        %384 = vperm.xlu0 %383, %v316
        %v385 = vpop.permute.xlu0 %384
        %388 = vset.pattern.permute.xlu0 0
        %389 = vperm.xlu0 %388, %v317
        %v390 = vpop.permute.xlu0 %389
        %393 = vset.pattern.permute.xlu0 0
        %394 = vperm.xlu0 %393, %v318
        %v395 = vpop.permute.xlu0 %394
        %398 = vset.pattern.permute.xlu0 0
        %399 = vperm.xlu0 %398, %v319
        %v400 = vpop.permute.xlu0 %399
        %v403 = vperm.slane %v320, 0
        %v404 = vperm.slane %v320, 2
        %v407 = vperm.slane %v403, 0
        %v408 = vperm.slane %v404, 0
        %v409 = vmul.f32 %v325, %v407
        %v410 = vmul.f32 %v325, %v408
        %v411 = vmul.f32 %v330, %v407
        %v412 = vmul.f32 %v330, %v408
        %v413 = vmul.f32 %v335, %v407
        %v414 = vmul.f32 %v335, %v408
        %v415 = vmul.f32 %v340, %v407
        %v416 = vmul.f32 %v340, %v408
        %v417 = vmul.f32 %v345, %v407
        %v418 = vmul.f32 %v345, %v408
        %v419 = vmul.f32 %v350, %v407
        %v420 = vmul.f32 %v350, %v408
        %v421 = vmul.f32 %v355, %v407
        %v422 = vmul.f32 %v355, %v408
        %v423 = vmul.f32 %v360, %v407
        %v424 = vmul.f32 %v360, %v408
        %v425 = vmul.f32 %v365, %v407
        %v426 = vmul.f32 %v365, %v408
        %v427 = vmul.f32 %v370, %v407
        %v428 = vmul.f32 %v370, %v408
        %v429 = vmul.f32 %v375, %v407
        %v430 = vmul.f32 %v375, %v408
        %v431 = vmul.f32 %v380, %v407
        %v432 = vmul.f32 %v380, %v408
        %v433 = vmul.f32 %v385, %v407
        %v434 = vmul.f32 %v385, %v408
        %v435 = vmul.f32 %v390, %v407
        %v436 = vmul.f32 %v390, %v408
        %v437 = vmul.f32 %v395, %v407
        %v438 = vmul.f32 %v395, %v408
        %v439 = vmul.f32 %v400, %v407
        %v440 = vmul.f32 %v400, %v408
        %v442 = vperm.slane %v321, 0
        %v443 = vperm.slane %v321, 1
        %v446 = vadd.f32 %v442, %v409
        %v447 = vadd.f32 %v443, %v410
        %v448 = vadd.f32 %v442, %v411
        %v449 = vadd.f32 %v443, %v412
        %v450 = vadd.f32 %v442, %v413
        %v451 = vadd.f32 %v443, %v414
        %v452 = vadd.f32 %v442, %v415
        %v453 = vadd.f32 %v443, %v416
        %v454 = vadd.f32 %v442, %v417
        %v455 = vadd.f32 %v443, %v418
        %v456 = vadd.f32 %v442, %v419
        %v457 = vadd.f32 %v443, %v420
        %v458 = vadd.f32 %v442, %v421
        %v459 = vadd.f32 %v443, %v422
        %v460 = vadd.f32 %v442, %v423
        %v461 = vadd.f32 %v443, %v424
        %v462 = vadd.f32 %v442, %v425
        %v463 = vadd.f32 %v443, %v426
        %v464 = vadd.f32 %v442, %v427
        %v465 = vadd.f32 %v443, %v428
        %v466 = vadd.f32 %v442, %v429
        %v467 = vadd.f32 %v443, %v430
        %v468 = vadd.f32 %v442, %v431
        %v469 = vadd.f32 %v443, %v432
        %v470 = vadd.f32 %v442, %v433
        %v471 = vadd.f32 %v443, %v434
        %v472 = vadd.f32 %v442, %v435
        %v473 = vadd.f32 %v443, %v436
        %v474 = vadd.f32 %v442, %v437
        %v475 = vadd.f32 %v443, %v438
        %v476 = vadd.f32 %v442, %v439
        %v477 = vadd.f32 %v443, %v440
        %478 = vset.pattern.permute.xlu0 1
        %479 = vperm.xlu0 %478, %v304
        %v480 = vpop.permute.xlu0 %479
        %482 = vset.pattern.permute.xlu0 1
        %483 = vperm.xlu0 %482, %v305
        %v484 = vpop.permute.xlu0 %483
        %486 = vset.pattern.permute.xlu0 1
        %487 = vperm.xlu0 %486, %v306
        %v488 = vpop.permute.xlu0 %487
        %490 = vset.pattern.permute.xlu0 1
        %491 = vperm.xlu0 %490, %v307
        %v492 = vpop.permute.xlu0 %491
        %494 = vset.pattern.permute.xlu0 1
        %495 = vperm.xlu0 %494, %v308
        %v496 = vpop.permute.xlu0 %495
        %498 = vset.pattern.permute.xlu0 1
        %499 = vperm.xlu0 %498, %v309
        %v500 = vpop.permute.xlu0 %499
        %502 = vset.pattern.permute.xlu0 1
        %503 = vperm.xlu0 %502, %v310
        %v504 = vpop.permute.xlu0 %503
        %506 = vset.pattern.permute.xlu0 1
        %507 = vperm.xlu0 %506, %v311
        %v508 = vpop.permute.xlu0 %507
        %510 = vset.pattern.permute.xlu0 1
        %511 = vperm.xlu0 %510, %v312
        %v512 = vpop.permute.xlu0 %511
        %514 = vset.pattern.permute.xlu0 1
        %515 = vperm.xlu0 %514, %v313
        %v516 = vpop.permute.xlu0 %515
        %518 = vset.pattern.permute.xlu0 1
        %519 = vperm.xlu0 %518, %v314
        %v520 = vpop.permute.xlu0 %519
        %522 = vset.pattern.permute.xlu0 1
        %523 = vperm.xlu0 %522, %v315
        %v524 = vpop.permute.xlu0 %523
        %526 = vset.pattern.permute.xlu0 1
        %527 = vperm.xlu0 %526, %v316
        %v528 = vpop.permute.xlu0 %527
        %530 = vset.pattern.permute.xlu0 1
        %531 = vperm.xlu0 %530, %v317
        %v532 = vpop.permute.xlu0 %531
        %534 = vset.pattern.permute.xlu0 1
        %535 = vperm.xlu0 %534, %v318
        %v536 = vpop.permute.xlu0 %535
        %538 = vset.pattern.permute.xlu0 1
        %539 = vperm.xlu0 %538, %v319
        %v540 = vpop.permute.xlu0 %539
        %v542 = vperm.slane %v320, 1
        %v543 = vperm.slane %v320, 3
        %v546 = vperm.slane %v542, 1
        %v547 = vperm.slane %v543, 1
        %v548 = vmul.f32 %v480, %v546
        %v549 = vmul.f32 %v480, %v547
        %v550 = vmul.f32 %v484, %v546
        %v551 = vmul.f32 %v484, %v547
        %v552 = vmul.f32 %v488, %v546
        %v553 = vmul.f32 %v488, %v547
        %v554 = vmul.f32 %v492, %v546
        %v555 = vmul.f32 %v492, %v547
        %v556 = vmul.f32 %v496, %v546
        %v557 = vmul.f32 %v496, %v547
        %v558 = vmul.f32 %v500, %v546
        %v559 = vmul.f32 %v500, %v547
        %v560 = vmul.f32 %v504, %v546
        %v561 = vmul.f32 %v504, %v547
        %v562 = vmul.f32 %v508, %v546
        %v563 = vmul.f32 %v508, %v547
        %v564 = vmul.f32 %v512, %v546
        %v565 = vmul.f32 %v512, %v547
        %v566 = vmul.f32 %v516, %v546
        %v567 = vmul.f32 %v516, %v547
        %v568 = vmul.f32 %v520, %v546
        %v569 = vmul.f32 %v520, %v547
        %v570 = vmul.f32 %v524, %v546
        %v571 = vmul.f32 %v524, %v547
        %v572 = vmul.f32 %v528, %v546
        %v573 = vmul.f32 %v528, %v547
        %v574 = vmul.f32 %v532, %v546
        %v575 = vmul.f32 %v532, %v547
        %v576 = vmul.f32 %v536, %v546
        %v577 = vmul.f32 %v536, %v547
        %v578 = vmul.f32 %v540, %v546
        %v579 = vmul.f32 %v540, %v547
        %v580 = vadd.f32 %v446, %v548
        %v581 = vadd.f32 %v447, %v549
        %v582 = vadd.f32 %v448, %v550
        %v583 = vadd.f32 %v449, %v551
        %v584 = vadd.f32 %v450, %v552
        %v585 = vadd.f32 %v451, %v553
        %v586 = vadd.f32 %v452, %v554
        %v587 = vadd.f32 %v453, %v555
        %v588 = vadd.f32 %v454, %v556
        %v589 = vadd.f32 %v455, %v557
        %v590 = vadd.f32 %v456, %v558
        %v591 = vadd.f32 %v457, %v559
        %v592 = vadd.f32 %v458, %v560
        %v593 = vadd.f32 %v459, %v561
        %v594 = vadd.f32 %v460, %v562
        %v595 = vadd.f32 %v461, %v563
        %v596 = vadd.f32 %v462, %v564
        %v597 = vadd.f32 %v463, %v565
        %v598 = vadd.f32 %v464, %v566
        %v599 = vadd.f32 %v465, %v567
        %v600 = vadd.f32 %v466, %v568
        %v601 = vadd.f32 %v467, %v569
        %v602 = vadd.f32 %v468, %v570
        %v603 = vadd.f32 %v469, %v571
        %v604 = vadd.f32 %v470, %v572
        %v605 = vadd.f32 %v471, %v573
        %v606 = vadd.f32 %v472, %v574
        %v607 = vadd.f32 %v473, %v575
        %v608 = vadd.f32 %v474, %v576
        %v609 = vadd.f32 %v475, %v577
        %v610 = vadd.f32 %v476, %v578
        %v611 = vadd.f32 %v477, %v579
        %v612 = vand.u32 2147483647, %v580
        %vm613 = vcmp.le.f32.partialorder %v612, 0.7853982
        %vm614 = vcmp.lt.s32.totalorder %v580, 0
        %v615 = vand.u32 %v580, 2139095040
        %v616 = vshrl.u32 %v615, 23
        %v617 = vsub.s32 %v616, 127
        %v618 = vand.u32 2147483647, %v580
        %v619 = vand.u32 %v618, 8388607
        %v620 = vor.u32 %v619, 8388608
        %v621 = vsub.s32 0, %v620
        %v622 = vadd.s32 %v617, 1
        %vm623 = vcmp.gt.s32.totalorder %v622, 0
        %v624 = vsel %vm623, %v622, 0
        %v625 = vshrl.u32 %v624, 5
        %v626 = vand.u32 %v624, 31
        %v627 = vsub.s32 32, %v626
        %v628 = vshrl.u32 683565275, %v627
        %v629 = vshll.u32 683565275, %v626
        %v630 = vshrl.u32 2475754826, %v627
        %v631 = vor.u32 %v629, %v630
        %v632 = vshll.u32 2475754826, %v626
        %v633 = vshrl.u32 2131351028, %v627
        %v634 = vor.u32 %v632, %v633
        %v635 = vshll.u32 2131351028, %v626
        %v636 = vshrl.u32 2102212464, %v627
        %v637 = vor.u32 %v635, %v636
        %v638 = vshll.u32 2102212464, %v626
        %v639 = vshrl.u32 920167782, %v627
        %v640 = vor.u32 %v638, %v639
        %v641 = vshll.u32 920167782, %v626
        %v642 = vshrl.u32 1326507024, %v627
        %v643 = vor.u32 %v641, %v642
        %vm644 = vcmp.lt.s32.totalorder %v625, 1
        %vm645 = vcmp.lt.s32.totalorder %v625, 2
        %vm646 = vcmp.lt.s32.totalorder %v625, 3
        %vm647 = vcmp.lt.s32.totalorder %v625, 4
        %v648 = vsel %vm644, %v628, %v631
        %v649 = vsel %vm647, %v637, 2102212464
        %v650 = vsel %vm646, %v634, %v649
        %v651 = vsel %vm645, %v648, %v650
        %v652 = vsel %vm644, %v631, %v634
        %v653 = vsel %vm647, %v640, 920167782
        %v654 = vsel %vm646, %v637, %v653
        %v655 = vsel %vm645, %v652, %v654
        %v656 = vsel %vm644, %v634, %v637
        %v657 = vsel %vm647, %v643, 1326507024
        %v658 = vsel %vm646, %v640, %v657
        %v659 = vsel %vm645, %v656, %v658
        %v660 = vshll.u32 %v620, 8
        %v661 = vand.u32 %v660, 65535
        %v662 = vshrl.u32 %v660, 16
        %v663 = vand.u32 %v659, 65535
        %v664 = vshrl.u32 %v659, 16
        %v665 = vmul.u32 %v661, %v663
        %v666 = vmul.u32 %v661, %v664
        %v667 = vmul.u32 %v662, %v663
        %v668 = vmul.u32 %v662, %v664
        %v669 = vshll.u32 %v666, 16
        %v670 = vshrl.u32 %v666, 16
        %v671 = vshll.u32 %v667, 16
        %v672 = vshrl.u32 %v667, 16
        %vm673 = vc.u32 %v665, %v669
        %v674 = vsel %vm673, 1, 0
        %v675 = vadd.s32 %v665, %v669
        %v676 = vadd.s32 %v668, %v674
        %vm677 = vc.u32 %v675, %v671
        %v678 = vsel %vm677, 1, 0
        %v679 = vadd.s32 %v675, %v671
        %v680 = vadd.s32 %v676, %v678
        %v681 = vadd.s32 %v680, %v670
        %v682 = vadd.s32 %v681, %v672
        %v683 = vand.u32 %v660, 65535
        %v684 = vshrl.u32 %v660, 16
        %v685 = vand.u32 %v655, 65535
        %v686 = vshrl.u32 %v655, 16
        %v687 = vmul.u32 %v683, %v685
        %v688 = vmul.u32 %v683, %v686
        %v689 = vmul.u32 %v684, %v685
        %v690 = vmul.u32 %v684, %v686
        %v691 = vshll.u32 %v688, 16
        %v692 = vshrl.u32 %v688, 16
        %v693 = vshll.u32 %v689, 16
        %v694 = vshrl.u32 %v689, 16
        %vm695 = vc.u32 %v687, %v691
        %v696 = vsel %vm695, 1, 0
        %v697 = vadd.s32 %v687, %v691
        %v698 = vadd.s32 %v690, %v696
        %vm699 = vc.u32 %v697, %v693
        %v700 = vsel %vm699, 1, 0
        %v701 = vadd.s32 %v697, %v693
        %v702 = vadd.s32 %v698, %v700
        %v703 = vadd.s32 %v702, %v692
        %v704 = vadd.s32 %v703, %v694
        %v705 = vmul.u32 %v660, %v651
        %v706 = vadd.s32 %v682, %v701
        %vm707 = vc.u32 %v682, %v701
        %v708 = vadd.s32 %v704, 1
        %v709 = vsel %vm707, %v708, %v704
        %v710 = vadd.s32 %v705, %v709
        %v711 = vadd.s32 %v710, 536870912
        %v712 = vshrl.u32 %v711, 30
        %v713 = vshll.u32 %v712, 30
        %v714 = vsub.s32 %v710, %v713
        %vm715 = vcmp.lt.s32.totalorder %v714, 0
        %v716 = vsub.s32 0, %v714
        %v717 = vsel %vm715, %v716, %v714
        %v718 = vclz %v717
        %v719 = vsub.s32 %v718, 2
        %vm720 = vcmp.gt.s32.totalorder 0, %v719
        %v721 = vsel %vm720, 0, %v719
        %v722 = vsub.s32 32, %v721
        %v723 = vshll.u32 %v714, %v721
        %v724 = vshrl.u32 %v706, %v722
        %v725 = vor.u32 %v723, %v724
        %v726 = vsub.s32 4294967266, %v721
        %v727 = vadd.s32 %v726, 127
        %v728 = vshll.u32 %v727, 23
        %v729 = vor.u32 4788187, %v728
        %v730 = vand.u32 2147483647, %v729
        %v732 = vcvt.s32.f32 %v725
        %v733 = vmul.f32 %v732, %v730
        %v734 = vxor.u32 %v733, 2147483648
        %v735 = vsel %vm614, %v734, %v733
        %v736 = vsub.s32 4, %v712
        %v737 = vsel %vm614, %v736, %v712
        %v738 = vsel %vm613, %v580, %v735
        %v739 = vsel %vm613, 0, %v737
        %v740 = vmul.f32 %v738, %v738
        %v741 = vmul.f32 %v740, -0.001358992
        %v742 = vadd.f32 %v741, 0.041655596
        %v743 = vmul.f32 %v740, %v742
        %v744 = vadd.f32 %v743, -0.4999988
        %v745 = vmul.f32 %v740, %v744
        %v746 = vadd.f32 1.0, %v745
        %v747 = vmul.f32 %v738, %v738
        %v748 = vmul.f32 %v747, -0.00019511016
        %v749 = vadd.f32 %v748, 0.008332121
        %v750 = vmul.f32 %v747, %v749
        %v751 = vadd.f32 %v750, -0.16666654
        %v752 = vmul.f32 %v747, %v751
        %v753 = vadd.f32 %v752, 1.0
        %v754 = vmul.f32 %v753, %v738
        %vm755 = vweird.f32 %v580
        %v756 = vadd.s32 %v739, 3
        %v757 = vand.u32 %v756, 3
        %vm758 = vcmp.lt.s32.totalorder %v757, 2
        %vm759 = vcmp.eq.s32.totalorder %v757, 0
        %v760 = vxor.u32 %v754, 2147483648
        %v761 = vsel %vm759, %v746, %v760
        %vm762 = vcmp.eq.s32.totalorder %v757, 2
        %v763 = vxor.u32 %v746, 2147483648
        %v764 = vsel %vm762, %v763, %v754
        %v765 = vsel %vm758, %v761, %v764
        %v766 = vsel %vm755, nan, %v765
        %v767 = vand.u32 2147483647, %v582
        %vm768 = vcmp.le.f32.partialorder %v767, 0.7853982
        %vm769 = vcmp.lt.s32.totalorder %v582, 0
        %v770 = vand.u32 %v582, 2139095040
        %v771 = vshrl.u32 %v770, 23
        %v772 = vsub.s32 %v771, 127
        %v773 = vand.u32 2147483647, %v582
        %v774 = vand.u32 %v773, 8388607
        %v775 = vor.u32 %v774, 8388608
        %v776 = vsub.s32 0, %v775
        %v777 = vadd.s32 %v772, 1
        %vm778 = vcmp.gt.s32.totalorder %v777, 0
        %v779 = vsel %vm778, %v777, 0
        %v780 = vshrl.u32 %v779, 5
        %v781 = vand.u32 %v779, 31
        %v782 = vsub.s32 32, %v781
        %v783 = vshrl.u32 683565275, %v782
        %v784 = vshll.u32 683565275, %v781
        %v785 = vshrl.u32 2475754826, %v782
        %v786 = vor.u32 %v784, %v785
        %v787 = vshll.u32 2475754826, %v781
        %v788 = vshrl.u32 2131351028, %v782
        %v789 = vor.u32 %v787, %v788
        %v790 = vshll.u32 2131351028, %v781
        %v791 = vshrl.u32 2102212464, %v782
        %v792 = vor.u32 %v790, %v791
        %v793 = vshll.u32 2102212464, %v781
        %v794 = vshrl.u32 920167782, %v782
        %v795 = vor.u32 %v793, %v794
        %v796 = vshll.u32 920167782, %v781
        %v797 = vshrl.u32 1326507024, %v782
        %v798 = vor.u32 %v796, %v797
        %vm799 = vcmp.lt.s32.totalorder %v780, 1
        %vm800 = vcmp.lt.s32.totalorder %v780, 2
        %vm801 = vcmp.lt.s32.totalorder %v780, 3
        %vm802 = vcmp.lt.s32.totalorder %v780, 4
        %v803 = vsel %vm799, %v783, %v786
        %v804 = vsel %vm802, %v792, 2102212464
        %v805 = vsel %vm801, %v789, %v804
        %v806 = vsel %vm800, %v803, %v805
        %v807 = vsel %vm799, %v786, %v789
        %v808 = vsel %vm802, %v795, 920167782
        %v809 = vsel %vm801, %v792, %v808
        %v810 = vsel %vm800, %v807, %v809
        %v811 = vsel %vm799, %v789, %v792
        %v812 = vsel %vm802, %v798, 1326507024
        %v813 = vsel %vm801, %v795, %v812
        %v814 = vsel %vm800, %v811, %v813
        %v815 = vshll.u32 %v775, 8
        %v816 = vand.u32 %v815, 65535
        %v817 = vshrl.u32 %v815, 16
        %v818 = vand.u32 %v814, 65535
        %v819 = vshrl.u32 %v814, 16
        %v820 = vmul.u32 %v816, %v818
        %v821 = vmul.u32 %v816, %v819
        %v822 = vmul.u32 %v817, %v818
        %v823 = vmul.u32 %v817, %v819
        %v824 = vshll.u32 %v821, 16
        %v825 = vshrl.u32 %v821, 16
        %v826 = vshll.u32 %v822, 16
        %v827 = vshrl.u32 %v822, 16
        %vm828 = vc.u32 %v820, %v824
        %v829 = vsel %vm828, 1, 0
        %v830 = vadd.s32 %v820, %v824
        %v831 = vadd.s32 %v823, %v829
        %vm832 = vc.u32 %v830, %v826
        %v833 = vsel %vm832, 1, 0
        %v834 = vadd.s32 %v830, %v826
        %v835 = vadd.s32 %v831, %v833
        %v836 = vadd.s32 %v835, %v825
        %v837 = vadd.s32 %v836, %v827
        %v838 = vand.u32 %v815, 65535
        %v839 = vshrl.u32 %v815, 16
        %v840 = vand.u32 %v810, 65535
        %v841 = vshrl.u32 %v810, 16
        %v842 = vmul.u32 %v838, %v840
        %v843 = vmul.u32 %v838, %v841
        %v844 = vmul.u32 %v839, %v840
        %v845 = vmul.u32 %v839, %v841
        %v846 = vshll.u32 %v843, 16
        %v847 = vshrl.u32 %v843, 16
        %v848 = vshll.u32 %v844, 16
        %v849 = vshrl.u32 %v844, 16
        %vm850 = vc.u32 %v842, %v846
        %v851 = vsel %vm850, 1, 0
        %v852 = vadd.s32 %v842, %v846
        %v853 = vadd.s32 %v845, %v851
        %vm854 = vc.u32 %v852, %v848
        %v855 = vsel %vm854, 1, 0
        %v856 = vadd.s32 %v852, %v848
        %v857 = vadd.s32 %v853, %v855
        %v858 = vadd.s32 %v857, %v847
        %v859 = vadd.s32 %v858, %v849
        %v860 = vmul.u32 %v815, %v806
        %v861 = vadd.s32 %v837, %v856
        %vm862 = vc.u32 %v837, %v856
        %v863 = vadd.s32 %v859, 1
        %v864 = vsel %vm862, %v863, %v859
        %v865 = vadd.s32 %v860, %v864
        %v866 = vadd.s32 %v865, 536870912
        %v867 = vshrl.u32 %v866, 30
        %v868 = vshll.u32 %v867, 30
        %v869 = vsub.s32 %v865, %v868
        %vm870 = vcmp.lt.s32.totalorder %v869, 0
        %v871 = vsub.s32 0, %v869
        %v872 = vsel %vm870, %v871, %v869
        %v873 = vclz %v872
        %v874 = vsub.s32 %v873, 2
        %vm875 = vcmp.gt.s32.totalorder 0, %v874
        %v876 = vsel %vm875, 0, %v874
        %v877 = vsub.s32 32, %v876
        %v878 = vshll.u32 %v869, %v876
        %v879 = vshrl.u32 %v861, %v877
        %v880 = vor.u32 %v878, %v879
        %v881 = vsub.s32 4294967266, %v876
        %v882 = vadd.s32 %v881, 127
        %v883 = vshll.u32 %v882, 23
        %v884 = vor.u32 4788187, %v883
        %v885 = vand.u32 2147483647, %v884
        %v887 = vcvt.s32.f32 %v880
        %v888 = vmul.f32 %v887, %v885
        %v889 = vxor.u32 %v888, 2147483648
        %v890 = vsel %vm769, %v889, %v888
        %v891 = vsub.s32 4, %v867
        %v892 = vsel %vm769, %v891, %v867
        %v893 = vsel %vm768, %v582, %v890
        %v894 = vsel %vm768, 0, %v892
        %v895 = vmul.f32 %v893, %v893
        %v896 = vmul.f32 %v895, -0.001358992
        %v897 = vadd.f32 %v896, 0.041655596
        %v898 = vmul.f32 %v895, %v897
        %v899 = vadd.f32 %v898, -0.4999988
        %v900 = vmul.f32 %v895, %v899
        %v901 = vadd.f32 1.0, %v900
        %v902 = vmul.f32 %v893, %v893
        %v903 = vmul.f32 %v902, -0.00019511016
        %v904 = vadd.f32 %v903, 0.008332121
        %v905 = vmul.f32 %v902, %v904
        %v906 = vadd.f32 %v905, -0.16666654
        %v907 = vmul.f32 %v902, %v906
        %v908 = vadd.f32 %v907, 1.0
        %v909 = vmul.f32 %v908, %v893
        %vm910 = vweird.f32 %v582
        %v911 = vadd.s32 %v894, 3
        %v912 = vand.u32 %v911, 3
        %vm913 = vcmp.lt.s32.totalorder %v912, 2
        %vm914 = vcmp.eq.s32.totalorder %v912, 0
        %v915 = vxor.u32 %v909, 2147483648
        %v916 = vsel %vm914, %v901, %v915
        %vm917 = vcmp.eq.s32.totalorder %v912, 2
        %v918 = vxor.u32 %v901, 2147483648
        %v919 = vsel %vm917, %v918, %v909
        %v920 = vsel %vm913, %v916, %v919
        %v921 = vsel %vm910, nan, %v920
        %v922 = vand.u32 2147483647, %v584
        %vm923 = vcmp.le.f32.partialorder %v922, 0.7853982
        %vm924 = vcmp.lt.s32.totalorder %v584, 0
        %v925 = vand.u32 %v584, 2139095040
        %v926 = vshrl.u32 %v925, 23
        %v927 = vsub.s32 %v926, 127
        %v928 = vand.u32 2147483647, %v584
        %v929 = vand.u32 %v928, 8388607
        %v930 = vor.u32 %v929, 8388608
        %v931 = vsub.s32 0, %v930
        %v932 = vadd.s32 %v927, 1
        %vm933 = vcmp.gt.s32.totalorder %v932, 0
        %v934 = vsel %vm933, %v932, 0
        %v935 = vshrl.u32 %v934, 5
        %v936 = vand.u32 %v934, 31
        %v937 = vsub.s32 32, %v936
        %v938 = vshrl.u32 683565275, %v937
        %v939 = vshll.u32 683565275, %v936
        %v940 = vshrl.u32 2475754826, %v937
        %v941 = vor.u32 %v939, %v940
        %v942 = vshll.u32 2475754826, %v936
        %v943 = vshrl.u32 2131351028, %v937
        %v944 = vor.u32 %v942, %v943
        %v945 = vshll.u32 2131351028, %v936
        %v946 = vshrl.u32 2102212464, %v937
        %v947 = vor.u32 %v945, %v946
        %v948 = vshll.u32 2102212464, %v936
        %v949 = vshrl.u32 920167782, %v937
        %v950 = vor.u32 %v948, %v949
        %v951 = vshll.u32 920167782, %v936
        %v952 = vshrl.u32 1326507024, %v937
        %v953 = vor.u32 %v951, %v952
        %vm954 = vcmp.lt.s32.totalorder %v935, 1
        %vm955 = vcmp.lt.s32.totalorder %v935, 2
        %vm956 = vcmp.lt.s32.totalorder %v935, 3
        %vm957 = vcmp.lt.s32.totalorder %v935, 4
        %v958 = vsel %vm954, %v938, %v941
        %v959 = vsel %vm957, %v947, 2102212464
        %v960 = vsel %vm956, %v944, %v959
        %v961 = vsel %vm955, %v958, %v960
        %v962 = vsel %vm954, %v941, %v944
        %v963 = vsel %vm957, %v950, 920167782
        %v964 = vsel %vm956, %v947, %v963
        %v965 = vsel %vm955, %v962, %v964
        %v966 = vsel %vm954, %v944, %v947
        %v967 = vsel %vm957, %v953, 1326507024
        %v968 = vsel %vm956, %v950, %v967
        %v969 = vsel %vm955, %v966, %v968
        %v970 = vshll.u32 %v930, 8
        %v971 = vand.u32 %v970, 65535
        %v972 = vshrl.u32 %v970, 16
        %v973 = vand.u32 %v969, 65535
        %v974 = vshrl.u32 %v969, 16
        %v975 = vmul.u32 %v971, %v973
        %v976 = vmul.u32 %v971, %v974
        %v977 = vmul.u32 %v972, %v973
        %v978 = vmul.u32 %v972, %v974
        %v979 = vshll.u32 %v976, 16
        %v980 = vshrl.u32 %v976, 16
        %v981 = vshll.u32 %v977, 16
        %v982 = vshrl.u32 %v977, 16
        %vm983 = vc.u32 %v975, %v979
        %v984 = vsel %vm983, 1, 0
        %v985 = vadd.s32 %v975, %v979
        %v986 = vadd.s32 %v978, %v984
        %vm987 = vc.u32 %v985, %v981
        %v988 = vsel %vm987, 1, 0
        %v989 = vadd.s32 %v985, %v981
        %v990 = vadd.s32 %v986, %v988
        %v991 = vadd.s32 %v990, %v980
        %v992 = vadd.s32 %v991, %v982
        %v993 = vand.u32 %v970, 65535
        %v994 = vshrl.u32 %v970, 16
        %v995 = vand.u32 %v965, 65535
        %v996 = vshrl.u32 %v965, 16
        %v997 = vmul.u32 %v993, %v995
        %v998 = vmul.u32 %v993, %v996
        %v999 = vmul.u32 %v994, %v995
        %v1000 = vmul.u32 %v994, %v996
        %v1001 = vshll.u32 %v998, 16
        %v1002 = vshrl.u32 %v998, 16
        %v1003 = vshll.u32 %v999, 16
        %v1004 = vshrl.u32 %v999, 16
        %vm1005 = vc.u32 %v997, %v1001
        %v1006 = vsel %vm1005, 1, 0
        %v1007 = vadd.s32 %v997, %v1001
        %v1008 = vadd.s32 %v1000, %v1006
        %vm1009 = vc.u32 %v1007, %v1003
        %v1010 = vsel %vm1009, 1, 0
        %v1011 = vadd.s32 %v1007, %v1003
        %v1012 = vadd.s32 %v1008, %v1010
        %v1013 = vadd.s32 %v1012, %v1002
        %v1014 = vadd.s32 %v1013, %v1004
        %v1015 = vmul.u32 %v970, %v961
        %v1016 = vadd.s32 %v992, %v1011
        %vm1017 = vc.u32 %v992, %v1011
        %v1018 = vadd.s32 %v1014, 1
        %v1019 = vsel %vm1017, %v1018, %v1014
        %v1020 = vadd.s32 %v1015, %v1019
        %v1021 = vadd.s32 %v1020, 536870912
        %v1022 = vshrl.u32 %v1021, 30
        %v1023 = vshll.u32 %v1022, 30
        %v1024 = vsub.s32 %v1020, %v1023
        %vm1025 = vcmp.lt.s32.totalorder %v1024, 0
        %v1026 = vsub.s32 0, %v1024
        %v1027 = vsel %vm1025, %v1026, %v1024
        %v1028 = vclz %v1027
        %v1029 = vsub.s32 %v1028, 2
        %vm1030 = vcmp.gt.s32.totalorder 0, %v1029
        %v1031 = vsel %vm1030, 0, %v1029
        %v1032 = vsub.s32 32, %v1031
        %v1033 = vshll.u32 %v1024, %v1031
        %v1034 = vshrl.u32 %v1016, %v1032
        %v1035 = vor.u32 %v1033, %v1034
        %v1036 = vsub.s32 4294967266, %v1031
        %v1037 = vadd.s32 %v1036, 127
        %v1038 = vshll.u32 %v1037, 23
        %v1039 = vor.u32 4788187, %v1038
        %v1040 = vand.u32 2147483647, %v1039
        %v1042 = vcvt.s32.f32 %v1035
        %v1043 = vmul.f32 %v1042, %v1040
        %v1044 = vxor.u32 %v1043, 2147483648
        %v1045 = vsel %vm924, %v1044, %v1043
        %v1046 = vsub.s32 4, %v1022
        %v1047 = vsel %vm924, %v1046, %v1022
        %v1048 = vsel %vm923, %v584, %v1045
        %v1049 = vsel %vm923, 0, %v1047
        %v1050 = vmul.f32 %v1048, %v1048
        %v1051 = vmul.f32 %v1050, -0.001358992
        %v1052 = vadd.f32 %v1051, 0.041655596
        %v1053 = vmul.f32 %v1050, %v1052
        %v1054 = vadd.f32 %v1053, -0.4999988
        %v1055 = vmul.f32 %v1050, %v1054
        %v1056 = vadd.f32 1.0, %v1055
        %v1057 = vmul.f32 %v1048, %v1048
        %v1058 = vmul.f32 %v1057, -0.00019511016
        %v1059 = vadd.f32 %v1058, 0.008332121
        %v1060 = vmul.f32 %v1057, %v1059
        %v1061 = vadd.f32 %v1060, -0.16666654
        %v1062 = vmul.f32 %v1057, %v1061
        %v1063 = vadd.f32 %v1062, 1.0
        %v1064 = vmul.f32 %v1063, %v1048
        %vm1065 = vweird.f32 %v584
        %v1066 = vadd.s32 %v1049, 3
        %v1067 = vand.u32 %v1066, 3
        %vm1068 = vcmp.lt.s32.totalorder %v1067, 2
        %vm1069 = vcmp.eq.s32.totalorder %v1067, 0
        %v1070 = vxor.u32 %v1064, 2147483648
        %v1071 = vsel %vm1069, %v1056, %v1070
        %vm1072 = vcmp.eq.s32.totalorder %v1067, 2
        %v1073 = vxor.u32 %v1056, 2147483648
        %v1074 = vsel %vm1072, %v1073, %v1064
        %v1075 = vsel %vm1068, %v1071, %v1074
        %v1076 = vsel %vm1065, nan, %v1075
        %v1077 = vand.u32 2147483647, %v586
        %vm1078 = vcmp.le.f32.partialorder %v1077, 0.7853982
        %vm1079 = vcmp.lt.s32.totalorder %v586, 0
        %v1080 = vand.u32 %v586, 2139095040
        %v1081 = vshrl.u32 %v1080, 23
        %v1082 = vsub.s32 %v1081, 127
        %v1083 = vand.u32 2147483647, %v586
        %v1084 = vand.u32 %v1083, 8388607
        %v1085 = vor.u32 %v1084, 8388608
        %v1086 = vsub.s32 0, %v1085
        %v1087 = vadd.s32 %v1082, 1
        %vm1088 = vcmp.gt.s32.totalorder %v1087, 0
        %v1089 = vsel %vm1088, %v1087, 0
        %v1090 = vshrl.u32 %v1089, 5
        %v1091 = vand.u32 %v1089, 31
        %v1092 = vsub.s32 32, %v1091
        %v1093 = vshrl.u32 683565275, %v1092
        %v1094 = vshll.u32 683565275, %v1091
        %v1095 = vshrl.u32 2475754826, %v1092
        %v1096 = vor.u32 %v1094, %v1095
        %v1097 = vshll.u32 2475754826, %v1091
        %v1098 = vshrl.u32 2131351028, %v1092
        %v1099 = vor.u32 %v1097, %v1098
        %v1100 = vshll.u32 2131351028, %v1091
        %v1101 = vshrl.u32 2102212464, %v1092
        %v1102 = vor.u32 %v1100, %v1101
        %v1103 = vshll.u32 2102212464, %v1091
        %v1104 = vshrl.u32 920167782, %v1092
        %v1105 = vor.u32 %v1103, %v1104
        %v1106 = vshll.u32 920167782, %v1091
        %v1107 = vshrl.u32 1326507024, %v1092
        %v1108 = vor.u32 %v1106, %v1107
        %vm1109 = vcmp.lt.s32.totalorder %v1090, 1
        %vm1110 = vcmp.lt.s32.totalorder %v1090, 2
        %vm1111 = vcmp.lt.s32.totalorder %v1090, 3
        %vm1112 = vcmp.lt.s32.totalorder %v1090, 4
        %v1113 = vsel %vm1109, %v1093, %v1096
        %v1114 = vsel %vm1112, %v1102, 2102212464
        %v1115 = vsel %vm1111, %v1099, %v1114
        %v1116 = vsel %vm1110, %v1113, %v1115
        %v1117 = vsel %vm1109, %v1096, %v1099
        %v1118 = vsel %vm1112, %v1105, 920167782
        %v1119 = vsel %vm1111, %v1102, %v1118
        %v1120 = vsel %vm1110, %v1117, %v1119
        %v1121 = vsel %vm1109, %v1099, %v1102
        %v1122 = vsel %vm1112, %v1108, 1326507024
        %v1123 = vsel %vm1111, %v1105, %v1122
        %v1124 = vsel %vm1110, %v1121, %v1123
        %v1125 = vshll.u32 %v1085, 8
        %v1126 = vand.u32 %v1125, 65535
        %v1127 = vshrl.u32 %v1125, 16
        %v1128 = vand.u32 %v1124, 65535
        %v1129 = vshrl.u32 %v1124, 16
        %v1130 = vmul.u32 %v1126, %v1128
        %v1131 = vmul.u32 %v1126, %v1129
        %v1132 = vmul.u32 %v1127, %v1128
        %v1133 = vmul.u32 %v1127, %v1129
        %v1134 = vshll.u32 %v1131, 16
        %v1135 = vshrl.u32 %v1131, 16
        %v1136 = vshll.u32 %v1132, 16
        %v1137 = vshrl.u32 %v1132, 16
        %vm1138 = vc.u32 %v1130, %v1134
        %v1139 = vsel %vm1138, 1, 0
        %v1140 = vadd.s32 %v1130, %v1134
        %v1141 = vadd.s32 %v1133, %v1139
        %vm1142 = vc.u32 %v1140, %v1136
        %v1143 = vsel %vm1142, 1, 0
        %v1144 = vadd.s32 %v1140, %v1136
        %v1145 = vadd.s32 %v1141, %v1143
        %v1146 = vadd.s32 %v1145, %v1135
        %v1147 = vadd.s32 %v1146, %v1137
        %v1148 = vand.u32 %v1125, 65535
        %v1149 = vshrl.u32 %v1125, 16
        %v1150 = vand.u32 %v1120, 65535
        %v1151 = vshrl.u32 %v1120, 16
        %v1152 = vmul.u32 %v1148, %v1150
        %v1153 = vmul.u32 %v1148, %v1151
        %v1154 = vmul.u32 %v1149, %v1150
        %v1155 = vmul.u32 %v1149, %v1151
        %v1156 = vshll.u32 %v1153, 16
        %v1157 = vshrl.u32 %v1153, 16
        %v1158 = vshll.u32 %v1154, 16
        %v1159 = vshrl.u32 %v1154, 16
        %vm1160 = vc.u32 %v1152, %v1156
        %v1161 = vsel %vm1160, 1, 0
        %v1162 = vadd.s32 %v1152, %v1156
        %v1163 = vadd.s32 %v1155, %v1161
        %vm1164 = vc.u32 %v1162, %v1158
        %v1165 = vsel %vm1164, 1, 0
        %v1166 = vadd.s32 %v1162, %v1158
        %v1167 = vadd.s32 %v1163, %v1165
        %v1168 = vadd.s32 %v1167, %v1157
        %v1169 = vadd.s32 %v1168, %v1159
        %v1170 = vmul.u32 %v1125, %v1116
        %v1171 = vadd.s32 %v1147, %v1166
        %vm1172 = vc.u32 %v1147, %v1166
        %v1173 = vadd.s32 %v1169, 1
        %v1174 = vsel %vm1172, %v1173, %v1169
        %v1175 = vadd.s32 %v1170, %v1174
        %v1176 = vadd.s32 %v1175, 536870912
        %v1177 = vshrl.u32 %v1176, 30
        %v1178 = vshll.u32 %v1177, 30
        %v1179 = vsub.s32 %v1175, %v1178
        %vm1180 = vcmp.lt.s32.totalorder %v1179, 0
        %v1181 = vsub.s32 0, %v1179
        %v1182 = vsel %vm1180, %v1181, %v1179
        %v1183 = vclz %v1182
        %v1184 = vsub.s32 %v1183, 2
        %vm1185 = vcmp.gt.s32.totalorder 0, %v1184
        %v1186 = vsel %vm1185, 0, %v1184
        %v1187 = vsub.s32 32, %v1186
        %v1188 = vshll.u32 %v1179, %v1186
        %v1189 = vshrl.u32 %v1171, %v1187
        %v1190 = vor.u32 %v1188, %v1189
        %v1191 = vsub.s32 4294967266, %v1186
        %v1192 = vadd.s32 %v1191, 127
        %v1193 = vshll.u32 %v1192, 23
        %v1194 = vor.u32 4788187, %v1193
        %v1195 = vand.u32 2147483647, %v1194
        %v1197 = vcvt.s32.f32 %v1190
        %v1198 = vmul.f32 %v1197, %v1195
        %v1199 = vxor.u32 %v1198, 2147483648
        %v1200 = vsel %vm1079, %v1199, %v1198
        %v1201 = vsub.s32 4, %v1177
        %v1202 = vsel %vm1079, %v1201, %v1177
        %v1203 = vsel %vm1078, %v586, %v1200
        %v1204 = vsel %vm1078, 0, %v1202
        %v1205 = vmul.f32 %v1203, %v1203
        %v1206 = vmul.f32 %v1205, -0.001358992
        %v1207 = vadd.f32 %v1206, 0.041655596
        %v1208 = vmul.f32 %v1205, %v1207
        %v1209 = vadd.f32 %v1208, -0.4999988
        %v1210 = vmul.f32 %v1205, %v1209
        %v1211 = vadd.f32 1.0, %v1210
        %v1212 = vmul.f32 %v1203, %v1203
        %v1213 = vmul.f32 %v1212, -0.00019511016
        %v1214 = vadd.f32 %v1213, 0.008332121
        %v1215 = vmul.f32 %v1212, %v1214
        %v1216 = vadd.f32 %v1215, -0.16666654
        %v1217 = vmul.f32 %v1212, %v1216
        %v1218 = vadd.f32 %v1217, 1.0
        %v1219 = vmul.f32 %v1218, %v1203
        %vm1220 = vweird.f32 %v586
        %v1221 = vadd.s32 %v1204, 3
        %v1222 = vand.u32 %v1221, 3
        %vm1223 = vcmp.lt.s32.totalorder %v1222, 2
        %vm1224 = vcmp.eq.s32.totalorder %v1222, 0
        %v1225 = vxor.u32 %v1219, 2147483648
        %v1226 = vsel %vm1224, %v1211, %v1225
        %vm1227 = vcmp.eq.s32.totalorder %v1222, 2
        %v1228 = vxor.u32 %v1211, 2147483648
        %v1229 = vsel %vm1227, %v1228, %v1219
        %v1230 = vsel %vm1223, %v1226, %v1229
        %v1231 = vsel %vm1220, nan, %v1230
        %v1232 = vand.u32 2147483647, %v588
        %vm1233 = vcmp.le.f32.partialorder %v1232, 0.7853982
        %vm1234 = vcmp.lt.s32.totalorder %v588, 0
        %v1235 = vand.u32 %v588, 2139095040
        %v1236 = vshrl.u32 %v1235, 23
        %v1237 = vsub.s32 %v1236, 127
        %v1238 = vand.u32 2147483647, %v588
        %v1239 = vand.u32 %v1238, 8388607
        %v1240 = vor.u32 %v1239, 8388608
        %v1241 = vsub.s32 0, %v1240
        %v1242 = vadd.s32 %v1237, 1
        %vm1243 = vcmp.gt.s32.totalorder %v1242, 0
        %v1244 = vsel %vm1243, %v1242, 0
        %v1245 = vshrl.u32 %v1244, 5
        %v1246 = vand.u32 %v1244, 31
        %v1247 = vsub.s32 32, %v1246
        %v1248 = vshrl.u32 683565275, %v1247
        %v1249 = vshll.u32 683565275, %v1246
        %v1250 = vshrl.u32 2475754826, %v1247
        %v1251 = vor.u32 %v1249, %v1250
        %v1252 = vshll.u32 2475754826, %v1246
        %v1253 = vshrl.u32 2131351028, %v1247
        %v1254 = vor.u32 %v1252, %v1253
        %v1255 = vshll.u32 2131351028, %v1246
        %v1256 = vshrl.u32 2102212464, %v1247
        %v1257 = vor.u32 %v1255, %v1256
        %v1258 = vshll.u32 2102212464, %v1246
        %v1259 = vshrl.u32 920167782, %v1247
        %v1260 = vor.u32 %v1258, %v1259
        %v1261 = vshll.u32 920167782, %v1246
        %v1262 = vshrl.u32 1326507024, %v1247
        %v1263 = vor.u32 %v1261, %v1262
        %vm1264 = vcmp.lt.s32.totalorder %v1245, 1
        %vm1265 = vcmp.lt.s32.totalorder %v1245, 2
        %vm1266 = vcmp.lt.s32.totalorder %v1245, 3
        %vm1267 = vcmp.lt.s32.totalorder %v1245, 4
        %v1268 = vsel %vm1264, %v1248, %v1251
        %v1269 = vsel %vm1267, %v1257, 2102212464
        %v1270 = vsel %vm1266, %v1254, %v1269
        %v1271 = vsel %vm1265, %v1268, %v1270
        %v1272 = vsel %vm1264, %v1251, %v1254
        %v1273 = vsel %vm1267, %v1260, 920167782
        %v1274 = vsel %vm1266, %v1257, %v1273
        %v1275 = vsel %vm1265, %v1272, %v1274
        %v1276 = vsel %vm1264, %v1254, %v1257
        %v1277 = vsel %vm1267, %v1263, 1326507024
        %v1278 = vsel %vm1266, %v1260, %v1277
        %v1279 = vsel %vm1265, %v1276, %v1278
        %v1280 = vshll.u32 %v1240, 8
        %v1281 = vand.u32 %v1280, 65535
        %v1282 = vshrl.u32 %v1280, 16
        %v1283 = vand.u32 %v1279, 65535
        %v1284 = vshrl.u32 %v1279, 16
        %v1285 = vmul.u32 %v1281, %v1283
        %v1286 = vmul.u32 %v1281, %v1284
        %v1287 = vmul.u32 %v1282, %v1283
        %v1288 = vmul.u32 %v1282, %v1284
        %v1289 = vshll.u32 %v1286, 16
        %v1290 = vshrl.u32 %v1286, 16
        %v1291 = vshll.u32 %v1287, 16
        %v1292 = vshrl.u32 %v1287, 16
        %vm1293 = vc.u32 %v1285, %v1289
        %v1294 = vsel %vm1293, 1, 0
        %v1295 = vadd.s32 %v1285, %v1289
        %v1296 = vadd.s32 %v1288, %v1294
        %vm1297 = vc.u32 %v1295, %v1291
        %v1298 = vsel %vm1297, 1, 0
        %v1299 = vadd.s32 %v1295, %v1291
        %v1300 = vadd.s32 %v1296, %v1298
        %v1301 = vadd.s32 %v1300, %v1290
        %v1302 = vadd.s32 %v1301, %v1292
        %v1303 = vand.u32 %v1280, 65535
        %v1304 = vshrl.u32 %v1280, 16
        %v1305 = vand.u32 %v1275, 65535
        %v1306 = vshrl.u32 %v1275, 16
        %v1307 = vmul.u32 %v1303, %v1305
        %v1308 = vmul.u32 %v1303, %v1306
        %v1309 = vmul.u32 %v1304, %v1305
        %v1310 = vmul.u32 %v1304, %v1306
        %v1311 = vshll.u32 %v1308, 16
        %v1312 = vshrl.u32 %v1308, 16
        %v1313 = vshll.u32 %v1309, 16
        %v1314 = vshrl.u32 %v1309, 16
        %vm1315 = vc.u32 %v1307, %v1311
        %v1316 = vsel %vm1315, 1, 0
        %v1317 = vadd.s32 %v1307, %v1311
        %v1318 = vadd.s32 %v1310, %v1316
        %vm1319 = vc.u32 %v1317, %v1313
        %v1320 = vsel %vm1319, 1, 0
        %v1321 = vadd.s32 %v1317, %v1313
        %v1322 = vadd.s32 %v1318, %v1320
        %v1323 = vadd.s32 %v1322, %v1312
        %v1324 = vadd.s32 %v1323, %v1314
        %v1325 = vmul.u32 %v1280, %v1271
        %v1326 = vadd.s32 %v1302, %v1321
        %vm1327 = vc.u32 %v1302, %v1321
        %v1328 = vadd.s32 %v1324, 1
        %v1329 = vsel %vm1327, %v1328, %v1324
        %v1330 = vadd.s32 %v1325, %v1329
        %v1331 = vadd.s32 %v1330, 536870912
        %v1332 = vshrl.u32 %v1331, 30
        %v1333 = vshll.u32 %v1332, 30
        %v1334 = vsub.s32 %v1330, %v1333
        %vm1335 = vcmp.lt.s32.totalorder %v1334, 0
        %v1336 = vsub.s32 0, %v1334
        %v1337 = vsel %vm1335, %v1336, %v1334
        %v1338 = vclz %v1337
        %v1339 = vsub.s32 %v1338, 2
        %vm1340 = vcmp.gt.s32.totalorder 0, %v1339
        %v1341 = vsel %vm1340, 0, %v1339
        %v1342 = vsub.s32 32, %v1341
        %v1343 = vshll.u32 %v1334, %v1341
        %v1344 = vshrl.u32 %v1326, %v1342
        %v1345 = vor.u32 %v1343, %v1344
        %v1346 = vsub.s32 4294967266, %v1341
        %v1347 = vadd.s32 %v1346, 127
        %v1348 = vshll.u32 %v1347, 23
        %v1349 = vor.u32 4788187, %v1348
        %v1350 = vand.u32 2147483647, %v1349
        %v1352 = vcvt.s32.f32 %v1345
        %v1353 = vmul.f32 %v1352, %v1350
        %v1354 = vxor.u32 %v1353, 2147483648
        %v1355 = vsel %vm1234, %v1354, %v1353
        %v1356 = vsub.s32 4, %v1332
        %v1357 = vsel %vm1234, %v1356, %v1332
        %v1358 = vsel %vm1233, %v588, %v1355
        %v1359 = vsel %vm1233, 0, %v1357
        %v1360 = vmul.f32 %v1358, %v1358
        %v1361 = vmul.f32 %v1360, -0.001358992
        %v1362 = vadd.f32 %v1361, 0.041655596
        %v1363 = vmul.f32 %v1360, %v1362
        %v1364 = vadd.f32 %v1363, -0.4999988
        %v1365 = vmul.f32 %v1360, %v1364
        %v1366 = vadd.f32 1.0, %v1365
        %v1367 = vmul.f32 %v1358, %v1358
        %v1368 = vmul.f32 %v1367, -0.00019511016
        %v1369 = vadd.f32 %v1368, 0.008332121
        %v1370 = vmul.f32 %v1367, %v1369
        %v1371 = vadd.f32 %v1370, -0.16666654
        %v1372 = vmul.f32 %v1367, %v1371
        %v1373 = vadd.f32 %v1372, 1.0
        %v1374 = vmul.f32 %v1373, %v1358
        %vm1375 = vweird.f32 %v588
        %v1376 = vadd.s32 %v1359, 3
        %v1377 = vand.u32 %v1376, 3
        %vm1378 = vcmp.lt.s32.totalorder %v1377, 2
        %vm1379 = vcmp.eq.s32.totalorder %v1377, 0
        %v1380 = vxor.u32 %v1374, 2147483648
        %v1381 = vsel %vm1379, %v1366, %v1380
        %vm1382 = vcmp.eq.s32.totalorder %v1377, 2
        %v1383 = vxor.u32 %v1366, 2147483648
        %v1384 = vsel %vm1382, %v1383, %v1374
        %v1385 = vsel %vm1378, %v1381, %v1384
        %v1386 = vsel %vm1375, nan, %v1385
        %v1387 = vand.u32 2147483647, %v590
        %vm1388 = vcmp.le.f32.partialorder %v1387, 0.7853982
        %vm1389 = vcmp.lt.s32.totalorder %v590, 0
        %v1390 = vand.u32 %v590, 2139095040
        %v1391 = vshrl.u32 %v1390, 23
        %v1392 = vsub.s32 %v1391, 127
        %v1393 = vand.u32 2147483647, %v590
        %v1394 = vand.u32 %v1393, 8388607
        %v1395 = vor.u32 %v1394, 8388608
        %v1396 = vsub.s32 0, %v1395
        %v1397 = vadd.s32 %v1392, 1
        %vm1398 = vcmp.gt.s32.totalorder %v1397, 0
        %v1399 = vsel %vm1398, %v1397, 0
        %v1400 = vshrl.u32 %v1399, 5
        %v1401 = vand.u32 %v1399, 31
        %v1402 = vsub.s32 32, %v1401
        %v1403 = vshrl.u32 683565275, %v1402
        %v1404 = vshll.u32 683565275, %v1401
        %v1405 = vshrl.u32 2475754826, %v1402
        %v1406 = vor.u32 %v1404, %v1405
        %v1407 = vshll.u32 2475754826, %v1401
        %v1408 = vshrl.u32 2131351028, %v1402
        %v1409 = vor.u32 %v1407, %v1408
        %v1410 = vshll.u32 2131351028, %v1401
        %v1411 = vshrl.u32 2102212464, %v1402
        %v1412 = vor.u32 %v1410, %v1411
        %v1413 = vshll.u32 2102212464, %v1401
        %v1414 = vshrl.u32 920167782, %v1402
        %v1415 = vor.u32 %v1413, %v1414
        %v1416 = vshll.u32 920167782, %v1401
        %v1417 = vshrl.u32 1326507024, %v1402
        %v1418 = vor.u32 %v1416, %v1417
        %vm1419 = vcmp.lt.s32.totalorder %v1400, 1
        %vm1420 = vcmp.lt.s32.totalorder %v1400, 2
        %vm1421 = vcmp.lt.s32.totalorder %v1400, 3
        %vm1422 = vcmp.lt.s32.totalorder %v1400, 4
        %v1423 = vsel %vm1419, %v1403, %v1406
        %v1424 = vsel %vm1422, %v1412, 2102212464
        %v1425 = vsel %vm1421, %v1409, %v1424
        %v1426 = vsel %vm1420, %v1423, %v1425
        %v1427 = vsel %vm1419, %v1406, %v1409
        %v1428 = vsel %vm1422, %v1415, 920167782
        %v1429 = vsel %vm1421, %v1412, %v1428
        %v1430 = vsel %vm1420, %v1427, %v1429
        %v1431 = vsel %vm1419, %v1409, %v1412
        %v1432 = vsel %vm1422, %v1418, 1326507024
        %v1433 = vsel %vm1421, %v1415, %v1432
        %v1434 = vsel %vm1420, %v1431, %v1433
        %v1435 = vshll.u32 %v1395, 8
        %v1436 = vand.u32 %v1435, 65535
        %v1437 = vshrl.u32 %v1435, 16
        %v1438 = vand.u32 %v1434, 65535
        %v1439 = vshrl.u32 %v1434, 16
        %v1440 = vmul.u32 %v1436, %v1438
        %v1441 = vmul.u32 %v1436, %v1439
        %v1442 = vmul.u32 %v1437, %v1438
        %v1443 = vmul.u32 %v1437, %v1439
        %v1444 = vshll.u32 %v1441, 16
        %v1445 = vshrl.u32 %v1441, 16
        %v1446 = vshll.u32 %v1442, 16
        %v1447 = vshrl.u32 %v1442, 16
        %vm1448 = vc.u32 %v1440, %v1444
        %v1449 = vsel %vm1448, 1, 0
        %v1450 = vadd.s32 %v1440, %v1444
        %v1451 = vadd.s32 %v1443, %v1449
        %vm1452 = vc.u32 %v1450, %v1446
        %v1453 = vsel %vm1452, 1, 0
        %v1454 = vadd.s32 %v1450, %v1446
        %v1455 = vadd.s32 %v1451, %v1453
        %v1456 = vadd.s32 %v1455, %v1445
        %v1457 = vadd.s32 %v1456, %v1447
        %v1458 = vand.u32 %v1435, 65535
        %v1459 = vshrl.u32 %v1435, 16
        %v1460 = vand.u32 %v1430, 65535
        %v1461 = vshrl.u32 %v1430, 16
        %v1462 = vmul.u32 %v1458, %v1460
        %v1463 = vmul.u32 %v1458, %v1461
        %v1464 = vmul.u32 %v1459, %v1460
        %v1465 = vmul.u32 %v1459, %v1461
        %v1466 = vshll.u32 %v1463, 16
        %v1467 = vshrl.u32 %v1463, 16
        %v1468 = vshll.u32 %v1464, 16
        %v1469 = vshrl.u32 %v1464, 16
        %vm1470 = vc.u32 %v1462, %v1466
        %v1471 = vsel %vm1470, 1, 0
        %v1472 = vadd.s32 %v1462, %v1466
        %v1473 = vadd.s32 %v1465, %v1471
        %vm1474 = vc.u32 %v1472, %v1468
        %v1475 = vsel %vm1474, 1, 0
        %v1476 = vadd.s32 %v1472, %v1468
        %v1477 = vadd.s32 %v1473, %v1475
        %v1478 = vadd.s32 %v1477, %v1467
        %v1479 = vadd.s32 %v1478, %v1469
        %v1480 = vmul.u32 %v1435, %v1426
        %v1481 = vadd.s32 %v1457, %v1476
        %vm1482 = vc.u32 %v1457, %v1476
        %v1483 = vadd.s32 %v1479, 1
        %v1484 = vsel %vm1482, %v1483, %v1479
        %v1485 = vadd.s32 %v1480, %v1484
        %v1486 = vadd.s32 %v1485, 536870912
        %v1487 = vshrl.u32 %v1486, 30
        %v1488 = vshll.u32 %v1487, 30
        %v1489 = vsub.s32 %v1485, %v1488
        %vm1490 = vcmp.lt.s32.totalorder %v1489, 0
        %v1491 = vsub.s32 0, %v1489
        %v1492 = vsel %vm1490, %v1491, %v1489
        %v1493 = vclz %v1492
        %v1494 = vsub.s32 %v1493, 2
        %vm1495 = vcmp.gt.s32.totalorder 0, %v1494
        %v1496 = vsel %vm1495, 0, %v1494
        %v1497 = vsub.s32 32, %v1496
        %v1498 = vshll.u32 %v1489, %v1496
        %v1499 = vshrl.u32 %v1481, %v1497
        %v1500 = vor.u32 %v1498, %v1499
        %v1501 = vsub.s32 4294967266, %v1496
        %v1502 = vadd.s32 %v1501, 127
        %v1503 = vshll.u32 %v1502, 23
        %v1504 = vor.u32 4788187, %v1503
        %v1505 = vand.u32 2147483647, %v1504
        %v1507 = vcvt.s32.f32 %v1500
        %v1508 = vmul.f32 %v1507, %v1505
        %v1509 = vxor.u32 %v1508, 2147483648
        %v1510 = vsel %vm1389, %v1509, %v1508
        %v1511 = vsub.s32 4, %v1487
        %v1512 = vsel %vm1389, %v1511, %v1487
        %v1513 = vsel %vm1388, %v590, %v1510
        %v1514 = vsel %vm1388, 0, %v1512
        %v1515 = vmul.f32 %v1513, %v1513
        %v1516 = vmul.f32 %v1515, -0.001358992
        %v1517 = vadd.f32 %v1516, 0.041655596
        %v1518 = vmul.f32 %v1515, %v1517
        %v1519 = vadd.f32 %v1518, -0.4999988
        %v1520 = vmul.f32 %v1515, %v1519
        %v1521 = vadd.f32 1.0, %v1520
        %v1522 = vmul.f32 %v1513, %v1513
        %v1523 = vmul.f32 %v1522, -0.00019511016
        %v1524 = vadd.f32 %v1523, 0.008332121
        %v1525 = vmul.f32 %v1522, %v1524
        %v1526 = vadd.f32 %v1525, -0.16666654
        %v1527 = vmul.f32 %v1522, %v1526
        %v1528 = vadd.f32 %v1527, 1.0
        %v1529 = vmul.f32 %v1528, %v1513
        %vm1530 = vweird.f32 %v590
        %v1531 = vadd.s32 %v1514, 3
        %v1532 = vand.u32 %v1531, 3
        %vm1533 = vcmp.lt.s32.totalorder %v1532, 2
        %vm1534 = vcmp.eq.s32.totalorder %v1532, 0
        %v1535 = vxor.u32 %v1529, 2147483648
        %v1536 = vsel %vm1534, %v1521, %v1535
        %vm1537 = vcmp.eq.s32.totalorder %v1532, 2
        %v1538 = vxor.u32 %v1521, 2147483648
        %v1539 = vsel %vm1537, %v1538, %v1529
        %v1540 = vsel %vm1533, %v1536, %v1539
        %v1541 = vsel %vm1530, nan, %v1540
        %v1542 = vand.u32 2147483647, %v592
        %vm1543 = vcmp.le.f32.partialorder %v1542, 0.7853982
        %vm1544 = vcmp.lt.s32.totalorder %v592, 0
        %v1545 = vand.u32 %v592, 2139095040
        %v1546 = vshrl.u32 %v1545, 23
        %v1547 = vsub.s32 %v1546, 127
        %v1548 = vand.u32 2147483647, %v592
        %v1549 = vand.u32 %v1548, 8388607
        %v1550 = vor.u32 %v1549, 8388608
        %v1551 = vsub.s32 0, %v1550
        %v1552 = vadd.s32 %v1547, 1
        %vm1553 = vcmp.gt.s32.totalorder %v1552, 0
        %v1554 = vsel %vm1553, %v1552, 0
        %v1555 = vshrl.u32 %v1554, 5
        %v1556 = vand.u32 %v1554, 31
        %v1557 = vsub.s32 32, %v1556
        %v1558 = vshrl.u32 683565275, %v1557
        %v1559 = vshll.u32 683565275, %v1556
        %v1560 = vshrl.u32 2475754826, %v1557
        %v1561 = vor.u32 %v1559, %v1560
        %v1562 = vshll.u32 2475754826, %v1556
        %v1563 = vshrl.u32 2131351028, %v1557
        %v1564 = vor.u32 %v1562, %v1563
        %v1565 = vshll.u32 2131351028, %v1556
        %v1566 = vshrl.u32 2102212464, %v1557
        %v1567 = vor.u32 %v1565, %v1566
        %v1568 = vshll.u32 2102212464, %v1556
        %v1569 = vshrl.u32 920167782, %v1557
        %v1570 = vor.u32 %v1568, %v1569
        %v1571 = vshll.u32 920167782, %v1556
        %v1572 = vshrl.u32 1326507024, %v1557
        %v1573 = vor.u32 %v1571, %v1572
        %vm1574 = vcmp.lt.s32.totalorder %v1555, 1
        %vm1575 = vcmp.lt.s32.totalorder %v1555, 2
        %vm1576 = vcmp.lt.s32.totalorder %v1555, 3
        %vm1577 = vcmp.lt.s32.totalorder %v1555, 4
        %v1578 = vsel %vm1574, %v1558, %v1561
        %v1579 = vsel %vm1577, %v1567, 2102212464
        %v1580 = vsel %vm1576, %v1564, %v1579
        %v1581 = vsel %vm1575, %v1578, %v1580
        %v1582 = vsel %vm1574, %v1561, %v1564
        %v1583 = vsel %vm1577, %v1570, 920167782
        %v1584 = vsel %vm1576, %v1567, %v1583
        %v1585 = vsel %vm1575, %v1582, %v1584
        %v1586 = vsel %vm1574, %v1564, %v1567
        %v1587 = vsel %vm1577, %v1573, 1326507024
        %v1588 = vsel %vm1576, %v1570, %v1587
        %v1589 = vsel %vm1575, %v1586, %v1588
        %v1590 = vshll.u32 %v1550, 8
        %v1591 = vand.u32 %v1590, 65535
        %v1592 = vshrl.u32 %v1590, 16
        %v1593 = vand.u32 %v1589, 65535
        %v1594 = vshrl.u32 %v1589, 16
        %v1595 = vmul.u32 %v1591, %v1593
        %v1596 = vmul.u32 %v1591, %v1594
        %v1597 = vmul.u32 %v1592, %v1593
        %v1598 = vmul.u32 %v1592, %v1594
        %v1599 = vshll.u32 %v1596, 16
        %v1600 = vshrl.u32 %v1596, 16
        %v1601 = vshll.u32 %v1597, 16
        %v1602 = vshrl.u32 %v1597, 16
        %vm1603 = vc.u32 %v1595, %v1599
        %v1604 = vsel %vm1603, 1, 0
        %v1605 = vadd.s32 %v1595, %v1599
        %v1606 = vadd.s32 %v1598, %v1604
        %vm1607 = vc.u32 %v1605, %v1601
        %v1608 = vsel %vm1607, 1, 0
        %v1609 = vadd.s32 %v1605, %v1601
        %v1610 = vadd.s32 %v1606, %v1608
        %v1611 = vadd.s32 %v1610, %v1600
        %v1612 = vadd.s32 %v1611, %v1602
        %v1613 = vand.u32 %v1590, 65535
        %v1614 = vshrl.u32 %v1590, 16
        %v1615 = vand.u32 %v1585, 65535
        %v1616 = vshrl.u32 %v1585, 16
        %v1617 = vmul.u32 %v1613, %v1615
        %v1618 = vmul.u32 %v1613, %v1616
        %v1619 = vmul.u32 %v1614, %v1615
        %v1620 = vmul.u32 %v1614, %v1616
        %v1621 = vshll.u32 %v1618, 16
        %v1622 = vshrl.u32 %v1618, 16
        %v1623 = vshll.u32 %v1619, 16
        %v1624 = vshrl.u32 %v1619, 16
        %vm1625 = vc.u32 %v1617, %v1621
        %v1626 = vsel %vm1625, 1, 0
        %v1627 = vadd.s32 %v1617, %v1621
        %v1628 = vadd.s32 %v1620, %v1626
        %vm1629 = vc.u32 %v1627, %v1623
        %v1630 = vsel %vm1629, 1, 0
        %v1631 = vadd.s32 %v1627, %v1623
        %v1632 = vadd.s32 %v1628, %v1630
        %v1633 = vadd.s32 %v1632, %v1622
        %v1634 = vadd.s32 %v1633, %v1624
        %v1635 = vmul.u32 %v1590, %v1581
        %v1636 = vadd.s32 %v1612, %v1631
        %vm1637 = vc.u32 %v1612, %v1631
        %v1638 = vadd.s32 %v1634, 1
        %v1639 = vsel %vm1637, %v1638, %v1634
        %v1640 = vadd.s32 %v1635, %v1639
        %v1641 = vadd.s32 %v1640, 536870912
        %v1642 = vshrl.u32 %v1641, 30
        %v1643 = vshll.u32 %v1642, 30
        %v1644 = vsub.s32 %v1640, %v1643
        %vm1645 = vcmp.lt.s32.totalorder %v1644, 0
        %v1646 = vsub.s32 0, %v1644
        %v1647 = vsel %vm1645, %v1646, %v1644
        %v1648 = vclz %v1647
        %v1649 = vsub.s32 %v1648, 2
        %vm1650 = vcmp.gt.s32.totalorder 0, %v1649
        %v1651 = vsel %vm1650, 0, %v1649
        %v1652 = vsub.s32 32, %v1651
        %v1653 = vshll.u32 %v1644, %v1651
        %v1654 = vshrl.u32 %v1636, %v1652
        %v1655 = vor.u32 %v1653, %v1654
        %v1656 = vsub.s32 4294967266, %v1651
        %v1657 = vadd.s32 %v1656, 127
        %v1658 = vshll.u32 %v1657, 23
        %v1659 = vor.u32 4788187, %v1658
        %v1660 = vand.u32 2147483647, %v1659
        %v1662 = vcvt.s32.f32 %v1655
        %v1663 = vmul.f32 %v1662, %v1660
        %v1664 = vxor.u32 %v1663, 2147483648
        %v1665 = vsel %vm1544, %v1664, %v1663
        %v1666 = vsub.s32 4, %v1642
        %v1667 = vsel %vm1544, %v1666, %v1642
        %v1668 = vsel %vm1543, %v592, %v1665
        %v1669 = vsel %vm1543, 0, %v1667
        %v1670 = vmul.f32 %v1668, %v1668
        %v1671 = vmul.f32 %v1670, -0.001358992
        %v1672 = vadd.f32 %v1671, 0.041655596
        %v1673 = vmul.f32 %v1670, %v1672
        %v1674 = vadd.f32 %v1673, -0.4999988
        %v1675 = vmul.f32 %v1670, %v1674
        %v1676 = vadd.f32 1.0, %v1675
        %v1677 = vmul.f32 %v1668, %v1668
        %v1678 = vmul.f32 %v1677, -0.00019511016
        %v1679 = vadd.f32 %v1678, 0.008332121
        %v1680 = vmul.f32 %v1677, %v1679
        %v1681 = vadd.f32 %v1680, -0.16666654
        %v1682 = vmul.f32 %v1677, %v1681
        %v1683 = vadd.f32 %v1682, 1.0
        %v1684 = vmul.f32 %v1683, %v1668
        %vm1685 = vweird.f32 %v592
        %v1686 = vadd.s32 %v1669, 3
        %v1687 = vand.u32 %v1686, 3
        %vm1688 = vcmp.lt.s32.totalorder %v1687, 2
        %vm1689 = vcmp.eq.s32.totalorder %v1687, 0
        %v1690 = vxor.u32 %v1684, 2147483648
        %v1691 = vsel %vm1689, %v1676, %v1690
        %vm1692 = vcmp.eq.s32.totalorder %v1687, 2
        %v1693 = vxor.u32 %v1676, 2147483648
        %v1694 = vsel %vm1692, %v1693, %v1684
        %v1695 = vsel %vm1688, %v1691, %v1694
        %v1696 = vsel %vm1685, nan, %v1695
        %v1697 = vand.u32 2147483647, %v594
        %vm1698 = vcmp.le.f32.partialorder %v1697, 0.7853982
        %vm1699 = vcmp.lt.s32.totalorder %v594, 0
        %v1700 = vand.u32 %v594, 2139095040
        %v1701 = vshrl.u32 %v1700, 23
        %v1702 = vsub.s32 %v1701, 127
        %v1703 = vand.u32 2147483647, %v594
        %v1704 = vand.u32 %v1703, 8388607
        %v1705 = vor.u32 %v1704, 8388608
        %v1706 = vsub.s32 0, %v1705
        %v1707 = vadd.s32 %v1702, 1
        %vm1708 = vcmp.gt.s32.totalorder %v1707, 0
        %v1709 = vsel %vm1708, %v1707, 0
        %v1710 = vshrl.u32 %v1709, 5
        %v1711 = vand.u32 %v1709, 31
        %v1712 = vsub.s32 32, %v1711
        %v1713 = vshrl.u32 683565275, %v1712
        %v1714 = vshll.u32 683565275, %v1711
        %v1715 = vshrl.u32 2475754826, %v1712
        %v1716 = vor.u32 %v1714, %v1715
        %v1717 = vshll.u32 2475754826, %v1711
        %v1718 = vshrl.u32 2131351028, %v1712
        %v1719 = vor.u32 %v1717, %v1718
        %v1720 = vshll.u32 2131351028, %v1711
        %v1721 = vshrl.u32 2102212464, %v1712
        %v1722 = vor.u32 %v1720, %v1721
        %v1723 = vshll.u32 2102212464, %v1711
        %v1724 = vshrl.u32 920167782, %v1712
        %v1725 = vor.u32 %v1723, %v1724
        %v1726 = vshll.u32 920167782, %v1711
        %v1727 = vshrl.u32 1326507024, %v1712
        %v1728 = vor.u32 %v1726, %v1727
        %vm1729 = vcmp.lt.s32.totalorder %v1710, 1
        %vm1730 = vcmp.lt.s32.totalorder %v1710, 2
        %vm1731 = vcmp.lt.s32.totalorder %v1710, 3
        %vm1732 = vcmp.lt.s32.totalorder %v1710, 4
        %v1733 = vsel %vm1729, %v1713, %v1716
        %v1734 = vsel %vm1732, %v1722, 2102212464
        %v1735 = vsel %vm1731, %v1719, %v1734
        %v1736 = vsel %vm1730, %v1733, %v1735
        %v1737 = vsel %vm1729, %v1716, %v1719
        %v1738 = vsel %vm1732, %v1725, 920167782
        %v1739 = vsel %vm1731, %v1722, %v1738
        %v1740 = vsel %vm1730, %v1737, %v1739
        %v1741 = vsel %vm1729, %v1719, %v1722
        %v1742 = vsel %vm1732, %v1728, 1326507024
        %v1743 = vsel %vm1731, %v1725, %v1742
        %v1744 = vsel %vm1730, %v1741, %v1743
        %v1745 = vshll.u32 %v1705, 8
        %v1746 = vand.u32 %v1745, 65535
        %v1747 = vshrl.u32 %v1745, 16
        %v1748 = vand.u32 %v1744, 65535
        %v1749 = vshrl.u32 %v1744, 16
        %v1750 = vmul.u32 %v1746, %v1748
        %v1751 = vmul.u32 %v1746, %v1749
        %v1752 = vmul.u32 %v1747, %v1748
        %v1753 = vmul.u32 %v1747, %v1749
        %v1754 = vshll.u32 %v1751, 16
        %v1755 = vshrl.u32 %v1751, 16
        %v1756 = vshll.u32 %v1752, 16
        %v1757 = vshrl.u32 %v1752, 16
        %vm1758 = vc.u32 %v1750, %v1754
        %v1759 = vsel %vm1758, 1, 0
        %v1760 = vadd.s32 %v1750, %v1754
        %v1761 = vadd.s32 %v1753, %v1759
        %vm1762 = vc.u32 %v1760, %v1756
        %v1763 = vsel %vm1762, 1, 0
        %v1764 = vadd.s32 %v1760, %v1756
        %v1765 = vadd.s32 %v1761, %v1763
        %v1766 = vadd.s32 %v1765, %v1755
        %v1767 = vadd.s32 %v1766, %v1757
        %v1768 = vand.u32 %v1745, 65535
        %v1769 = vshrl.u32 %v1745, 16
        %v1770 = vand.u32 %v1740, 65535
        %v1771 = vshrl.u32 %v1740, 16
        %v1772 = vmul.u32 %v1768, %v1770
        %v1773 = vmul.u32 %v1768, %v1771
        %v1774 = vmul.u32 %v1769, %v1770
        %v1775 = vmul.u32 %v1769, %v1771
        %v1776 = vshll.u32 %v1773, 16
        %v1777 = vshrl.u32 %v1773, 16
        %v1778 = vshll.u32 %v1774, 16
        %v1779 = vshrl.u32 %v1774, 16
        %vm1780 = vc.u32 %v1772, %v1776
        %v1781 = vsel %vm1780, 1, 0
        %v1782 = vadd.s32 %v1772, %v1776
        %v1783 = vadd.s32 %v1775, %v1781
        %vm1784 = vc.u32 %v1782, %v1778
        %v1785 = vsel %vm1784, 1, 0
        %v1786 = vadd.s32 %v1782, %v1778
        %v1787 = vadd.s32 %v1783, %v1785
        %v1788 = vadd.s32 %v1787, %v1777
        %v1789 = vadd.s32 %v1788, %v1779
        %v1790 = vmul.u32 %v1745, %v1736
        %v1791 = vadd.s32 %v1767, %v1786
        %vm1792 = vc.u32 %v1767, %v1786
        %v1793 = vadd.s32 %v1789, 1
        %v1794 = vsel %vm1792, %v1793, %v1789
        %v1795 = vadd.s32 %v1790, %v1794
        %v1796 = vadd.s32 %v1795, 536870912
        %v1797 = vshrl.u32 %v1796, 30
        %v1798 = vshll.u32 %v1797, 30
        %v1799 = vsub.s32 %v1795, %v1798
        %vm1800 = vcmp.lt.s32.totalorder %v1799, 0
        %v1801 = vsub.s32 0, %v1799
        %v1802 = vsel %vm1800, %v1801, %v1799
        %v1803 = vclz %v1802
        %v1804 = vsub.s32 %v1803, 2
        %vm1805 = vcmp.gt.s32.totalorder 0, %v1804
        %v1806 = vsel %vm1805, 0, %v1804
        %v1807 = vsub.s32 32, %v1806
        %v1808 = vshll.u32 %v1799, %v1806
        %v1809 = vshrl.u32 %v1791, %v1807
        %v1810 = vor.u32 %v1808, %v1809
        %v1811 = vsub.s32 4294967266, %v1806
        %v1812 = vadd.s32 %v1811, 127
        %v1813 = vshll.u32 %v1812, 23
        %v1814 = vor.u32 4788187, %v1813
        %v1815 = vand.u32 2147483647, %v1814
        %v1817 = vcvt.s32.f32 %v1810
        %v1818 = vmul.f32 %v1817, %v1815
        %v1819 = vxor.u32 %v1818, 2147483648
        %v1820 = vsel %vm1699, %v1819, %v1818
        %v1821 = vsub.s32 4, %v1797
        %v1822 = vsel %vm1699, %v1821, %v1797
        %v1823 = vsel %vm1698, %v594, %v1820
        %v1824 = vsel %vm1698, 0, %v1822
        %v1825 = vmul.f32 %v1823, %v1823
        %v1826 = vmul.f32 %v1825, -0.001358992
        %v1827 = vadd.f32 %v1826, 0.041655596
        %v1828 = vmul.f32 %v1825, %v1827
        %v1829 = vadd.f32 %v1828, -0.4999988
        %v1830 = vmul.f32 %v1825, %v1829
        %v1831 = vadd.f32 1.0, %v1830
        %v1832 = vmul.f32 %v1823, %v1823
        %v1833 = vmul.f32 %v1832, -0.00019511016
        %v1834 = vadd.f32 %v1833, 0.008332121
        %v1835 = vmul.f32 %v1832, %v1834
        %v1836 = vadd.f32 %v1835, -0.16666654
        %v1837 = vmul.f32 %v1832, %v1836
        %v1838 = vadd.f32 %v1837, 1.0
        %v1839 = vmul.f32 %v1838, %v1823
        %vm1840 = vweird.f32 %v594
        %v1841 = vadd.s32 %v1824, 3
        %v1842 = vand.u32 %v1841, 3
        %vm1843 = vcmp.lt.s32.totalorder %v1842, 2
        %vm1844 = vcmp.eq.s32.totalorder %v1842, 0
        %v1845 = vxor.u32 %v1839, 2147483648
        %v1846 = vsel %vm1844, %v1831, %v1845
        %vm1847 = vcmp.eq.s32.totalorder %v1842, 2
        %v1848 = vxor.u32 %v1831, 2147483648
        %v1849 = vsel %vm1847, %v1848, %v1839
        %v1850 = vsel %vm1843, %v1846, %v1849
        %v1851 = vsel %vm1840, nan, %v1850
        %v1852 = vand.u32 2147483647, %v596
        %vm1853 = vcmp.le.f32.partialorder %v1852, 0.7853982
        %vm1854 = vcmp.lt.s32.totalorder %v596, 0
        %v1855 = vand.u32 %v596, 2139095040
        %v1856 = vshrl.u32 %v1855, 23
        %v1857 = vsub.s32 %v1856, 127
        %v1858 = vand.u32 2147483647, %v596
        %v1859 = vand.u32 %v1858, 8388607
        %v1860 = vor.u32 %v1859, 8388608
        %v1861 = vsub.s32 0, %v1860
        %v1862 = vadd.s32 %v1857, 1
        %vm1863 = vcmp.gt.s32.totalorder %v1862, 0
        %v1864 = vsel %vm1863, %v1862, 0
        %v1865 = vshrl.u32 %v1864, 5
        %v1866 = vand.u32 %v1864, 31
        %v1867 = vsub.s32 32, %v1866
        %v1868 = vshrl.u32 683565275, %v1867
        %v1869 = vshll.u32 683565275, %v1866
        %v1870 = vshrl.u32 2475754826, %v1867
        %v1871 = vor.u32 %v1869, %v1870
        %v1872 = vshll.u32 2475754826, %v1866
        %v1873 = vshrl.u32 2131351028, %v1867
        %v1874 = vor.u32 %v1872, %v1873
        %v1875 = vshll.u32 2131351028, %v1866
        %v1876 = vshrl.u32 2102212464, %v1867
        %v1877 = vor.u32 %v1875, %v1876
        %v1878 = vshll.u32 2102212464, %v1866
        %v1879 = vshrl.u32 920167782, %v1867
        %v1880 = vor.u32 %v1878, %v1879
        %v1881 = vshll.u32 920167782, %v1866
        %v1882 = vshrl.u32 1326507024, %v1867
        %v1883 = vor.u32 %v1881, %v1882
        %vm1884 = vcmp.lt.s32.totalorder %v1865, 1
        %vm1885 = vcmp.lt.s32.totalorder %v1865, 2
        %vm1886 = vcmp.lt.s32.totalorder %v1865, 3
        %vm1887 = vcmp.lt.s32.totalorder %v1865, 4
        %v1888 = vsel %vm1884, %v1868, %v1871
        %v1889 = vsel %vm1887, %v1877, 2102212464
        %v1890 = vsel %vm1886, %v1874, %v1889
        %v1891 = vsel %vm1885, %v1888, %v1890
        %v1892 = vsel %vm1884, %v1871, %v1874
        %v1893 = vsel %vm1887, %v1880, 920167782
        %v1894 = vsel %vm1886, %v1877, %v1893
        %v1895 = vsel %vm1885, %v1892, %v1894
        %v1896 = vsel %vm1884, %v1874, %v1877
        %v1897 = vsel %vm1887, %v1883, 1326507024
        %v1898 = vsel %vm1886, %v1880, %v1897
        %v1899 = vsel %vm1885, %v1896, %v1898
        %v1900 = vshll.u32 %v1860, 8
        %v1901 = vand.u32 %v1900, 65535
        %v1902 = vshrl.u32 %v1900, 16
        %v1903 = vand.u32 %v1899, 65535
        %v1904 = vshrl.u32 %v1899, 16
        %v1905 = vmul.u32 %v1901, %v1903
        %v1906 = vmul.u32 %v1901, %v1904
        %v1907 = vmul.u32 %v1902, %v1903
        %v1908 = vmul.u32 %v1902, %v1904
        %v1909 = vshll.u32 %v1906, 16
        %v1910 = vshrl.u32 %v1906, 16
        %v1911 = vshll.u32 %v1907, 16
        %v1912 = vshrl.u32 %v1907, 16
        %vm1913 = vc.u32 %v1905, %v1909
        %v1914 = vsel %vm1913, 1, 0
        %v1915 = vadd.s32 %v1905, %v1909
        %v1916 = vadd.s32 %v1908, %v1914
        %vm1917 = vc.u32 %v1915, %v1911
        %v1918 = vsel %vm1917, 1, 0
        %v1919 = vadd.s32 %v1915, %v1911
        %v1920 = vadd.s32 %v1916, %v1918
        %v1921 = vadd.s32 %v1920, %v1910
        %v1922 = vadd.s32 %v1921, %v1912
        %v1923 = vand.u32 %v1900, 65535
        %v1924 = vshrl.u32 %v1900, 16
        %v1925 = vand.u32 %v1895, 65535
        %v1926 = vshrl.u32 %v1895, 16
        %v1927 = vmul.u32 %v1923, %v1925
        %v1928 = vmul.u32 %v1923, %v1926
        %v1929 = vmul.u32 %v1924, %v1925
        %v1930 = vmul.u32 %v1924, %v1926
        %v1931 = vshll.u32 %v1928, 16
        %v1932 = vshrl.u32 %v1928, 16
        %v1933 = vshll.u32 %v1929, 16
        %v1934 = vshrl.u32 %v1929, 16
        %vm1935 = vc.u32 %v1927, %v1931
        %v1936 = vsel %vm1935, 1, 0
        %v1937 = vadd.s32 %v1927, %v1931
        %v1938 = vadd.s32 %v1930, %v1936
        %vm1939 = vc.u32 %v1937, %v1933
        %v1940 = vsel %vm1939, 1, 0
        %v1941 = vadd.s32 %v1937, %v1933
        %v1942 = vadd.s32 %v1938, %v1940
        %v1943 = vadd.s32 %v1942, %v1932
        %v1944 = vadd.s32 %v1943, %v1934
        %v1945 = vmul.u32 %v1900, %v1891
        %v1946 = vadd.s32 %v1922, %v1941
        %vm1947 = vc.u32 %v1922, %v1941
        %v1948 = vadd.s32 %v1944, 1
        %v1949 = vsel %vm1947, %v1948, %v1944
        %v1950 = vadd.s32 %v1945, %v1949
        %v1951 = vadd.s32 %v1950, 536870912
        %v1952 = vshrl.u32 %v1951, 30
        %v1953 = vshll.u32 %v1952, 30
        %v1954 = vsub.s32 %v1950, %v1953
        %vm1955 = vcmp.lt.s32.totalorder %v1954, 0
        %v1956 = vsub.s32 0, %v1954
        %v1957 = vsel %vm1955, %v1956, %v1954
        %v1958 = vclz %v1957
        %v1959 = vsub.s32 %v1958, 2
        %vm1960 = vcmp.gt.s32.totalorder 0, %v1959
        %v1961 = vsel %vm1960, 0, %v1959
        %v1962 = vsub.s32 32, %v1961
        %v1963 = vshll.u32 %v1954, %v1961
        %v1964 = vshrl.u32 %v1946, %v1962
        %v1965 = vor.u32 %v1963, %v1964
        %v1966 = vsub.s32 4294967266, %v1961
        %v1967 = vadd.s32 %v1966, 127
        %v1968 = vshll.u32 %v1967, 23
        %v1969 = vor.u32 4788187, %v1968
        %v1970 = vand.u32 2147483647, %v1969
        %v1972 = vcvt.s32.f32 %v1965
        %v1973 = vmul.f32 %v1972, %v1970
        %v1974 = vxor.u32 %v1973, 2147483648
        %v1975 = vsel %vm1854, %v1974, %v1973
        %v1976 = vsub.s32 4, %v1952
        %v1977 = vsel %vm1854, %v1976, %v1952
        %v1978 = vsel %vm1853, %v596, %v1975
        %v1979 = vsel %vm1853, 0, %v1977
        %v1980 = vmul.f32 %v1978, %v1978
        %v1981 = vmul.f32 %v1980, -0.001358992
        %v1982 = vadd.f32 %v1981, 0.041655596
        %v1983 = vmul.f32 %v1980, %v1982
        %v1984 = vadd.f32 %v1983, -0.4999988
        %v1985 = vmul.f32 %v1980, %v1984
        %v1986 = vadd.f32 1.0, %v1985
        %v1987 = vmul.f32 %v1978, %v1978
        %v1988 = vmul.f32 %v1987, -0.00019511016
        %v1989 = vadd.f32 %v1988, 0.008332121
        %v1990 = vmul.f32 %v1987, %v1989
        %v1991 = vadd.f32 %v1990, -0.16666654
        %v1992 = vmul.f32 %v1987, %v1991
        %v1993 = vadd.f32 %v1992, 1.0
        %v1994 = vmul.f32 %v1993, %v1978
        %vm1995 = vweird.f32 %v596
        %v1996 = vadd.s32 %v1979, 3
        %v1997 = vand.u32 %v1996, 3
        %vm1998 = vcmp.lt.s32.totalorder %v1997, 2
        %vm1999 = vcmp.eq.s32.totalorder %v1997, 0
        %v2000 = vxor.u32 %v1994, 2147483648
        %v2001 = vsel %vm1999, %v1986, %v2000
        %vm2002 = vcmp.eq.s32.totalorder %v1997, 2
        %v2003 = vxor.u32 %v1986, 2147483648
        %v2004 = vsel %vm2002, %v2003, %v1994
        %v2005 = vsel %vm1998, %v2001, %v2004
        %v2006 = vsel %vm1995, nan, %v2005
        %v2007 = vand.u32 2147483647, %v598
        %vm2008 = vcmp.le.f32.partialorder %v2007, 0.7853982
        %vm2009 = vcmp.lt.s32.totalorder %v598, 0
        %v2010 = vand.u32 %v598, 2139095040
        %v2011 = vshrl.u32 %v2010, 23
        %v2012 = vsub.s32 %v2011, 127
        %v2013 = vand.u32 2147483647, %v598
        %v2014 = vand.u32 %v2013, 8388607
        %v2015 = vor.u32 %v2014, 8388608
        %v2016 = vsub.s32 0, %v2015
        %v2017 = vadd.s32 %v2012, 1
        %vm2018 = vcmp.gt.s32.totalorder %v2017, 0
        %v2019 = vsel %vm2018, %v2017, 0
        %v2020 = vshrl.u32 %v2019, 5
        %v2021 = vand.u32 %v2019, 31
        %v2022 = vsub.s32 32, %v2021
        %v2023 = vshrl.u32 683565275, %v2022
        %v2024 = vshll.u32 683565275, %v2021
        %v2025 = vshrl.u32 2475754826, %v2022
        %v2026 = vor.u32 %v2024, %v2025
        %v2027 = vshll.u32 2475754826, %v2021
        %v2028 = vshrl.u32 2131351028, %v2022
        %v2029 = vor.u32 %v2027, %v2028
        %v2030 = vshll.u32 2131351028, %v2021
        %v2031 = vshrl.u32 2102212464, %v2022
        %v2032 = vor.u32 %v2030, %v2031
        %v2033 = vshll.u32 2102212464, %v2021
        %v2034 = vshrl.u32 920167782, %v2022
        %v2035 = vor.u32 %v2033, %v2034
        %v2036 = vshll.u32 920167782, %v2021
        %v2037 = vshrl.u32 1326507024, %v2022
        %v2038 = vor.u32 %v2036, %v2037
        %vm2039 = vcmp.lt.s32.totalorder %v2020, 1
        %vm2040 = vcmp.lt.s32.totalorder %v2020, 2
        %vm2041 = vcmp.lt.s32.totalorder %v2020, 3
        %vm2042 = vcmp.lt.s32.totalorder %v2020, 4
        %v2043 = vsel %vm2039, %v2023, %v2026
        %v2044 = vsel %vm2042, %v2032, 2102212464
        %v2045 = vsel %vm2041, %v2029, %v2044
        %v2046 = vsel %vm2040, %v2043, %v2045
        %v2047 = vsel %vm2039, %v2026, %v2029
        %v2048 = vsel %vm2042, %v2035, 920167782
        %v2049 = vsel %vm2041, %v2032, %v2048
        %v2050 = vsel %vm2040, %v2047, %v2049
        %v2051 = vsel %vm2039, %v2029, %v2032
        %v2052 = vsel %vm2042, %v2038, 1326507024
        %v2053 = vsel %vm2041, %v2035, %v2052
        %v2054 = vsel %vm2040, %v2051, %v2053
        %v2055 = vshll.u32 %v2015, 8
        %v2056 = vand.u32 %v2055, 65535
        %v2057 = vshrl.u32 %v2055, 16
        %v2058 = vand.u32 %v2054, 65535
        %v2059 = vshrl.u32 %v2054, 16
        %v2060 = vmul.u32 %v2056, %v2058
        %v2061 = vmul.u32 %v2056, %v2059
        %v2062 = vmul.u32 %v2057, %v2058
        %v2063 = vmul.u32 %v2057, %v2059
        %v2064 = vshll.u32 %v2061, 16
        %v2065 = vshrl.u32 %v2061, 16
        %v2066 = vshll.u32 %v2062, 16
        %v2067 = vshrl.u32 %v2062, 16
        %vm2068 = vc.u32 %v2060, %v2064
        %v2069 = vsel %vm2068, 1, 0
        %v2070 = vadd.s32 %v2060, %v2064
        %v2071 = vadd.s32 %v2063, %v2069
        %vm2072 = vc.u32 %v2070, %v2066
        %v2073 = vsel %vm2072, 1, 0
        %v2074 = vadd.s32 %v2070, %v2066
        %v2075 = vadd.s32 %v2071, %v2073
        %v2076 = vadd.s32 %v2075, %v2065
        %v2077 = vadd.s32 %v2076, %v2067
        %v2078 = vand.u32 %v2055, 65535
        %v2079 = vshrl.u32 %v2055, 16
        %v2080 = vand.u32 %v2050, 65535
        %v2081 = vshrl.u32 %v2050, 16
        %v2082 = vmul.u32 %v2078, %v2080
        %v2083 = vmul.u32 %v2078, %v2081
        %v2084 = vmul.u32 %v2079, %v2080
        %v2085 = vmul.u32 %v2079, %v2081
        %v2086 = vshll.u32 %v2083, 16
        %v2087 = vshrl.u32 %v2083, 16
        %v2088 = vshll.u32 %v2084, 16
        %v2089 = vshrl.u32 %v2084, 16
        %vm2090 = vc.u32 %v2082, %v2086
        %v2091 = vsel %vm2090, 1, 0
        %v2092 = vadd.s32 %v2082, %v2086
        %v2093 = vadd.s32 %v2085, %v2091
        %vm2094 = vc.u32 %v2092, %v2088
        %v2095 = vsel %vm2094, 1, 0
        %v2096 = vadd.s32 %v2092, %v2088
        %v2097 = vadd.s32 %v2093, %v2095
        %v2098 = vadd.s32 %v2097, %v2087
        %v2099 = vadd.s32 %v2098, %v2089
        %v2100 = vmul.u32 %v2055, %v2046
        %v2101 = vadd.s32 %v2077, %v2096
        %vm2102 = vc.u32 %v2077, %v2096
        %v2103 = vadd.s32 %v2099, 1
        %v2104 = vsel %vm2102, %v2103, %v2099
        %v2105 = vadd.s32 %v2100, %v2104
        %v2106 = vadd.s32 %v2105, 536870912
        %v2107 = vshrl.u32 %v2106, 30
        %v2108 = vshll.u32 %v2107, 30
        %v2109 = vsub.s32 %v2105, %v2108
        %vm2110 = vcmp.lt.s32.totalorder %v2109, 0
        %v2111 = vsub.s32 0, %v2109
        %v2112 = vsel %vm2110, %v2111, %v2109
        %v2113 = vclz %v2112
        %v2114 = vsub.s32 %v2113, 2
        %vm2115 = vcmp.gt.s32.totalorder 0, %v2114
        %v2116 = vsel %vm2115, 0, %v2114
        %v2117 = vsub.s32 32, %v2116
        %v2118 = vshll.u32 %v2109, %v2116
        %v2119 = vshrl.u32 %v2101, %v2117
        %v2120 = vor.u32 %v2118, %v2119
        %v2121 = vsub.s32 4294967266, %v2116
        %v2122 = vadd.s32 %v2121, 127
        %v2123 = vshll.u32 %v2122, 23
        %v2124 = vor.u32 4788187, %v2123
        %v2125 = vand.u32 2147483647, %v2124
        %v2127 = vcvt.s32.f32 %v2120
        %v2128 = vmul.f32 %v2127, %v2125
        %v2129 = vxor.u32 %v2128, 2147483648
        %v2130 = vsel %vm2009, %v2129, %v2128
        %v2131 = vsub.s32 4, %v2107
        %v2132 = vsel %vm2009, %v2131, %v2107
        %v2133 = vsel %vm2008, %v598, %v2130
        %v2134 = vsel %vm2008, 0, %v2132
        %v2135 = vmul.f32 %v2133, %v2133
        %v2136 = vmul.f32 %v2135, -0.001358992
        %v2137 = vadd.f32 %v2136, 0.041655596
        %v2138 = vmul.f32 %v2135, %v2137
        %v2139 = vadd.f32 %v2138, -0.4999988
        %v2140 = vmul.f32 %v2135, %v2139
        %v2141 = vadd.f32 1.0, %v2140
        %v2142 = vmul.f32 %v2133, %v2133
        %v2143 = vmul.f32 %v2142, -0.00019511016
        %v2144 = vadd.f32 %v2143, 0.008332121
        %v2145 = vmul.f32 %v2142, %v2144
        %v2146 = vadd.f32 %v2145, -0.16666654
        %v2147 = vmul.f32 %v2142, %v2146
        %v2148 = vadd.f32 %v2147, 1.0
        %v2149 = vmul.f32 %v2148, %v2133
        %vm2150 = vweird.f32 %v598
        %v2151 = vadd.s32 %v2134, 3
        %v2152 = vand.u32 %v2151, 3
        %vm2153 = vcmp.lt.s32.totalorder %v2152, 2
        %vm2154 = vcmp.eq.s32.totalorder %v2152, 0
        %v2155 = vxor.u32 %v2149, 2147483648
        %v2156 = vsel %vm2154, %v2141, %v2155
        %vm2157 = vcmp.eq.s32.totalorder %v2152, 2
        %v2158 = vxor.u32 %v2141, 2147483648
        %v2159 = vsel %vm2157, %v2158, %v2149
        %v2160 = vsel %vm2153, %v2156, %v2159
        %v2161 = vsel %vm2150, nan, %v2160
        %v2162 = vand.u32 2147483647, %v600
        %vm2163 = vcmp.le.f32.partialorder %v2162, 0.7853982
        %vm2164 = vcmp.lt.s32.totalorder %v600, 0
        %v2165 = vand.u32 %v600, 2139095040
        %v2166 = vshrl.u32 %v2165, 23
        %v2167 = vsub.s32 %v2166, 127
        %v2168 = vand.u32 2147483647, %v600
        %v2169 = vand.u32 %v2168, 8388607
        %v2170 = vor.u32 %v2169, 8388608
        %v2171 = vsub.s32 0, %v2170
        %v2172 = vadd.s32 %v2167, 1
        %vm2173 = vcmp.gt.s32.totalorder %v2172, 0
        %v2174 = vsel %vm2173, %v2172, 0
        %v2175 = vshrl.u32 %v2174, 5
        %v2176 = vand.u32 %v2174, 31
        %v2177 = vsub.s32 32, %v2176
        %v2178 = vshrl.u32 683565275, %v2177
        %v2179 = vshll.u32 683565275, %v2176
        %v2180 = vshrl.u32 2475754826, %v2177
        %v2181 = vor.u32 %v2179, %v2180
        %v2182 = vshll.u32 2475754826, %v2176
        %v2183 = vshrl.u32 2131351028, %v2177
        %v2184 = vor.u32 %v2182, %v2183
        %v2185 = vshll.u32 2131351028, %v2176
        %v2186 = vshrl.u32 2102212464, %v2177
        %v2187 = vor.u32 %v2185, %v2186
        %v2188 = vshll.u32 2102212464, %v2176
        %v2189 = vshrl.u32 920167782, %v2177
        %v2190 = vor.u32 %v2188, %v2189
        %v2191 = vshll.u32 920167782, %v2176
        %v2192 = vshrl.u32 1326507024, %v2177
        %v2193 = vor.u32 %v2191, %v2192
        %vm2194 = vcmp.lt.s32.totalorder %v2175, 1
        %vm2195 = vcmp.lt.s32.totalorder %v2175, 2
        %vm2196 = vcmp.lt.s32.totalorder %v2175, 3
        %vm2197 = vcmp.lt.s32.totalorder %v2175, 4
        %v2198 = vsel %vm2194, %v2178, %v2181
        %v2199 = vsel %vm2197, %v2187, 2102212464
        %v2200 = vsel %vm2196, %v2184, %v2199
        %v2201 = vsel %vm2195, %v2198, %v2200
        %v2202 = vsel %vm2194, %v2181, %v2184
        %v2203 = vsel %vm2197, %v2190, 920167782
        %v2204 = vsel %vm2196, %v2187, %v2203
        %v2205 = vsel %vm2195, %v2202, %v2204
        %v2206 = vsel %vm2194, %v2184, %v2187
        %v2207 = vsel %vm2197, %v2193, 1326507024
        %v2208 = vsel %vm2196, %v2190, %v2207
        %v2209 = vsel %vm2195, %v2206, %v2208
        %v2210 = vshll.u32 %v2170, 8
        %v2211 = vand.u32 %v2210, 65535
        %v2212 = vshrl.u32 %v2210, 16
        %v2213 = vand.u32 %v2209, 65535
        %v2214 = vshrl.u32 %v2209, 16
        %v2215 = vmul.u32 %v2211, %v2213
        %v2216 = vmul.u32 %v2211, %v2214
        %v2217 = vmul.u32 %v2212, %v2213
        %v2218 = vmul.u32 %v2212, %v2214
        %v2219 = vshll.u32 %v2216, 16
        %v2220 = vshrl.u32 %v2216, 16
        %v2221 = vshll.u32 %v2217, 16
        %v2222 = vshrl.u32 %v2217, 16
        %vm2223 = vc.u32 %v2215, %v2219
        %v2224 = vsel %vm2223, 1, 0
        %v2225 = vadd.s32 %v2215, %v2219
        %v2226 = vadd.s32 %v2218, %v2224
        %vm2227 = vc.u32 %v2225, %v2221
        %v2228 = vsel %vm2227, 1, 0
        %v2229 = vadd.s32 %v2225, %v2221
        %v2230 = vadd.s32 %v2226, %v2228
        %v2231 = vadd.s32 %v2230, %v2220
        %v2232 = vadd.s32 %v2231, %v2222
        %v2233 = vand.u32 %v2210, 65535
        %v2234 = vshrl.u32 %v2210, 16
        %v2235 = vand.u32 %v2205, 65535
        %v2236 = vshrl.u32 %v2205, 16
        %v2237 = vmul.u32 %v2233, %v2235
        %v2238 = vmul.u32 %v2233, %v2236
        %v2239 = vmul.u32 %v2234, %v2235
        %v2240 = vmul.u32 %v2234, %v2236
        %v2241 = vshll.u32 %v2238, 16
        %v2242 = vshrl.u32 %v2238, 16
        %v2243 = vshll.u32 %v2239, 16
        %v2244 = vshrl.u32 %v2239, 16
        %vm2245 = vc.u32 %v2237, %v2241
        %v2246 = vsel %vm2245, 1, 0
        %v2247 = vadd.s32 %v2237, %v2241
        %v2248 = vadd.s32 %v2240, %v2246
        %vm2249 = vc.u32 %v2247, %v2243
        %v2250 = vsel %vm2249, 1, 0
        %v2251 = vadd.s32 %v2247, %v2243
        %v2252 = vadd.s32 %v2248, %v2250
        %v2253 = vadd.s32 %v2252, %v2242
        %v2254 = vadd.s32 %v2253, %v2244
        %v2255 = vmul.u32 %v2210, %v2201
        %v2256 = vadd.s32 %v2232, %v2251
        %vm2257 = vc.u32 %v2232, %v2251
        %v2258 = vadd.s32 %v2254, 1
        %v2259 = vsel %vm2257, %v2258, %v2254
        %v2260 = vadd.s32 %v2255, %v2259
        %v2261 = vadd.s32 %v2260, 536870912
        %v2262 = vshrl.u32 %v2261, 30
        %v2263 = vshll.u32 %v2262, 30
        %v2264 = vsub.s32 %v2260, %v2263
        %vm2265 = vcmp.lt.s32.totalorder %v2264, 0
        %v2266 = vsub.s32 0, %v2264
        %v2267 = vsel %vm2265, %v2266, %v2264
        %v2268 = vclz %v2267
        %v2269 = vsub.s32 %v2268, 2
        %vm2270 = vcmp.gt.s32.totalorder 0, %v2269
        %v2271 = vsel %vm2270, 0, %v2269
        %v2272 = vsub.s32 32, %v2271
        %v2273 = vshll.u32 %v2264, %v2271
        %v2274 = vshrl.u32 %v2256, %v2272
        %v2275 = vor.u32 %v2273, %v2274
        %v2276 = vsub.s32 4294967266, %v2271
        %v2277 = vadd.s32 %v2276, 127
        %v2278 = vshll.u32 %v2277, 23
        %v2279 = vor.u32 4788187, %v2278
        %v2280 = vand.u32 2147483647, %v2279
        %v2282 = vcvt.s32.f32 %v2275
        %v2283 = vmul.f32 %v2282, %v2280
        %v2284 = vxor.u32 %v2283, 2147483648
        %v2285 = vsel %vm2164, %v2284, %v2283
        %v2286 = vsub.s32 4, %v2262
        %v2287 = vsel %vm2164, %v2286, %v2262
        %v2288 = vsel %vm2163, %v600, %v2285
        %v2289 = vsel %vm2163, 0, %v2287
        %v2290 = vmul.f32 %v2288, %v2288
        %v2291 = vmul.f32 %v2290, -0.001358992
        %v2292 = vadd.f32 %v2291, 0.041655596
        %v2293 = vmul.f32 %v2290, %v2292
        %v2294 = vadd.f32 %v2293, -0.4999988
        %v2295 = vmul.f32 %v2290, %v2294
        %v2296 = vadd.f32 1.0, %v2295
        %v2297 = vmul.f32 %v2288, %v2288
        %v2298 = vmul.f32 %v2297, -0.00019511016
        %v2299 = vadd.f32 %v2298, 0.008332121
        %v2300 = vmul.f32 %v2297, %v2299
        %v2301 = vadd.f32 %v2300, -0.16666654
        %v2302 = vmul.f32 %v2297, %v2301
        %v2303 = vadd.f32 %v2302, 1.0
        %v2304 = vmul.f32 %v2303, %v2288
        %vm2305 = vweird.f32 %v600
        %v2306 = vadd.s32 %v2289, 3
        %v2307 = vand.u32 %v2306, 3
        %vm2308 = vcmp.lt.s32.totalorder %v2307, 2
        %vm2309 = vcmp.eq.s32.totalorder %v2307, 0
        %v2310 = vxor.u32 %v2304, 2147483648
        %v2311 = vsel %vm2309, %v2296, %v2310
        %vm2312 = vcmp.eq.s32.totalorder %v2307, 2
        %v2313 = vxor.u32 %v2296, 2147483648
        %v2314 = vsel %vm2312, %v2313, %v2304
        %v2315 = vsel %vm2308, %v2311, %v2314
        %v2316 = vsel %vm2305, nan, %v2315
        %v2317 = vand.u32 2147483647, %v602
        %vm2318 = vcmp.le.f32.partialorder %v2317, 0.7853982
        %vm2319 = vcmp.lt.s32.totalorder %v602, 0
        %v2320 = vand.u32 %v602, 2139095040
        %v2321 = vshrl.u32 %v2320, 23
        %v2322 = vsub.s32 %v2321, 127
        %v2323 = vand.u32 2147483647, %v602
        %v2324 = vand.u32 %v2323, 8388607
        %v2325 = vor.u32 %v2324, 8388608
        %v2326 = vsub.s32 0, %v2325
        %v2327 = vadd.s32 %v2322, 1
        %vm2328 = vcmp.gt.s32.totalorder %v2327, 0
        %v2329 = vsel %vm2328, %v2327, 0
        %v2330 = vshrl.u32 %v2329, 5
        %v2331 = vand.u32 %v2329, 31
        %v2332 = vsub.s32 32, %v2331
        %v2333 = vshrl.u32 683565275, %v2332
        %v2334 = vshll.u32 683565275, %v2331
        %v2335 = vshrl.u32 2475754826, %v2332
        %v2336 = vor.u32 %v2334, %v2335
        %v2337 = vshll.u32 2475754826, %v2331
        %v2338 = vshrl.u32 2131351028, %v2332
        %v2339 = vor.u32 %v2337, %v2338
        %v2340 = vshll.u32 2131351028, %v2331
        %v2341 = vshrl.u32 2102212464, %v2332
        %v2342 = vor.u32 %v2340, %v2341
        %v2343 = vshll.u32 2102212464, %v2331
        %v2344 = vshrl.u32 920167782, %v2332
        %v2345 = vor.u32 %v2343, %v2344
        %v2346 = vshll.u32 920167782, %v2331
        %v2347 = vshrl.u32 1326507024, %v2332
        %v2348 = vor.u32 %v2346, %v2347
        %vm2349 = vcmp.lt.s32.totalorder %v2330, 1
        %vm2350 = vcmp.lt.s32.totalorder %v2330, 2
        %vm2351 = vcmp.lt.s32.totalorder %v2330, 3
        %vm2352 = vcmp.lt.s32.totalorder %v2330, 4
        %v2353 = vsel %vm2349, %v2333, %v2336
        %v2354 = vsel %vm2352, %v2342, 2102212464
        %v2355 = vsel %vm2351, %v2339, %v2354
        %v2356 = vsel %vm2350, %v2353, %v2355
        %v2357 = vsel %vm2349, %v2336, %v2339
        %v2358 = vsel %vm2352, %v2345, 920167782
        %v2359 = vsel %vm2351, %v2342, %v2358
        %v2360 = vsel %vm2350, %v2357, %v2359
        %v2361 = vsel %vm2349, %v2339, %v2342
        %v2362 = vsel %vm2352, %v2348, 1326507024
        %v2363 = vsel %vm2351, %v2345, %v2362
        %v2364 = vsel %vm2350, %v2361, %v2363
        %v2365 = vshll.u32 %v2325, 8
        %v2366 = vand.u32 %v2365, 65535
        %v2367 = vshrl.u32 %v2365, 16
        %v2368 = vand.u32 %v2364, 65535
        %v2369 = vshrl.u32 %v2364, 16
        %v2370 = vmul.u32 %v2366, %v2368
        %v2371 = vmul.u32 %v2366, %v2369
        %v2372 = vmul.u32 %v2367, %v2368
        %v2373 = vmul.u32 %v2367, %v2369
        %v2374 = vshll.u32 %v2371, 16
        %v2375 = vshrl.u32 %v2371, 16
        %v2376 = vshll.u32 %v2372, 16
        %v2377 = vshrl.u32 %v2372, 16
        %vm2378 = vc.u32 %v2370, %v2374
        %v2379 = vsel %vm2378, 1, 0
        %v2380 = vadd.s32 %v2370, %v2374
        %v2381 = vadd.s32 %v2373, %v2379
        %vm2382 = vc.u32 %v2380, %v2376
        %v2383 = vsel %vm2382, 1, 0
        %v2384 = vadd.s32 %v2380, %v2376
        %v2385 = vadd.s32 %v2381, %v2383
        %v2386 = vadd.s32 %v2385, %v2375
        %v2387 = vadd.s32 %v2386, %v2377
        %v2388 = vand.u32 %v2365, 65535
        %v2389 = vshrl.u32 %v2365, 16
        %v2390 = vand.u32 %v2360, 65535
        %v2391 = vshrl.u32 %v2360, 16
        %v2392 = vmul.u32 %v2388, %v2390
        %v2393 = vmul.u32 %v2388, %v2391
        %v2394 = vmul.u32 %v2389, %v2390
        %v2395 = vmul.u32 %v2389, %v2391
        %v2396 = vshll.u32 %v2393, 16
        %v2397 = vshrl.u32 %v2393, 16
        %v2398 = vshll.u32 %v2394, 16
        %v2399 = vshrl.u32 %v2394, 16
        %vm2400 = vc.u32 %v2392, %v2396
        %v2401 = vsel %vm2400, 1, 0
        %v2402 = vadd.s32 %v2392, %v2396
        %v2403 = vadd.s32 %v2395, %v2401
        %vm2404 = vc.u32 %v2402, %v2398
        %v2405 = vsel %vm2404, 1, 0
        %v2406 = vadd.s32 %v2402, %v2398
        %v2407 = vadd.s32 %v2403, %v2405
        %v2408 = vadd.s32 %v2407, %v2397
        %v2409 = vadd.s32 %v2408, %v2399
        %v2410 = vmul.u32 %v2365, %v2356
        %v2411 = vadd.s32 %v2387, %v2406
        %vm2412 = vc.u32 %v2387, %v2406
        %v2413 = vadd.s32 %v2409, 1
        %v2414 = vsel %vm2412, %v2413, %v2409
        %v2415 = vadd.s32 %v2410, %v2414
        %v2416 = vadd.s32 %v2415, 536870912
        %v2417 = vshrl.u32 %v2416, 30
        %v2418 = vshll.u32 %v2417, 30
        %v2419 = vsub.s32 %v2415, %v2418
        %vm2420 = vcmp.lt.s32.totalorder %v2419, 0
        %v2421 = vsub.s32 0, %v2419
        %v2422 = vsel %vm2420, %v2421, %v2419
        %v2423 = vclz %v2422
        %v2424 = vsub.s32 %v2423, 2
        %vm2425 = vcmp.gt.s32.totalorder 0, %v2424
        %v2426 = vsel %vm2425, 0, %v2424
        %v2427 = vsub.s32 32, %v2426
        %v2428 = vshll.u32 %v2419, %v2426
        %v2429 = vshrl.u32 %v2411, %v2427
        %v2430 = vor.u32 %v2428, %v2429
        %v2431 = vsub.s32 4294967266, %v2426
        %v2432 = vadd.s32 %v2431, 127
        %v2433 = vshll.u32 %v2432, 23
        %v2434 = vor.u32 4788187, %v2433
        %v2435 = vand.u32 2147483647, %v2434
        %v2437 = vcvt.s32.f32 %v2430
        %v2438 = vmul.f32 %v2437, %v2435
        %v2439 = vxor.u32 %v2438, 2147483648
        %v2440 = vsel %vm2319, %v2439, %v2438
        %v2441 = vsub.s32 4, %v2417
        %v2442 = vsel %vm2319, %v2441, %v2417
        %v2443 = vsel %vm2318, %v602, %v2440
        %v2444 = vsel %vm2318, 0, %v2442
        %v2445 = vmul.f32 %v2443, %v2443
        %v2446 = vmul.f32 %v2445, -0.001358992
        %v2447 = vadd.f32 %v2446, 0.041655596
        %v2448 = vmul.f32 %v2445, %v2447
        %v2449 = vadd.f32 %v2448, -0.4999988
        %v2450 = vmul.f32 %v2445, %v2449
        %v2451 = vadd.f32 1.0, %v2450
        %v2452 = vmul.f32 %v2443, %v2443
        %v2453 = vmul.f32 %v2452, -0.00019511016
        %v2454 = vadd.f32 %v2453, 0.008332121
        %v2455 = vmul.f32 %v2452, %v2454
        %v2456 = vadd.f32 %v2455, -0.16666654
        %v2457 = vmul.f32 %v2452, %v2456
        %v2458 = vadd.f32 %v2457, 1.0
        %v2459 = vmul.f32 %v2458, %v2443
        %vm2460 = vweird.f32 %v602
        %v2461 = vadd.s32 %v2444, 3
        %v2462 = vand.u32 %v2461, 3
        %vm2463 = vcmp.lt.s32.totalorder %v2462, 2
        %vm2464 = vcmp.eq.s32.totalorder %v2462, 0
        %v2465 = vxor.u32 %v2459, 2147483648
        %v2466 = vsel %vm2464, %v2451, %v2465
        %vm2467 = vcmp.eq.s32.totalorder %v2462, 2
        %v2468 = vxor.u32 %v2451, 2147483648
        %v2469 = vsel %vm2467, %v2468, %v2459
        %v2470 = vsel %vm2463, %v2466, %v2469
        %v2471 = vsel %vm2460, nan, %v2470
        %v2472 = vand.u32 2147483647, %v604
        %vm2473 = vcmp.le.f32.partialorder %v2472, 0.7853982
        %vm2474 = vcmp.lt.s32.totalorder %v604, 0
        %v2475 = vand.u32 %v604, 2139095040
        %v2476 = vshrl.u32 %v2475, 23
        %v2477 = vsub.s32 %v2476, 127
        %v2478 = vand.u32 2147483647, %v604
        %v2479 = vand.u32 %v2478, 8388607
        %v2480 = vor.u32 %v2479, 8388608
        %v2481 = vsub.s32 0, %v2480
        %v2482 = vadd.s32 %v2477, 1
        %vm2483 = vcmp.gt.s32.totalorder %v2482, 0
        %v2484 = vsel %vm2483, %v2482, 0
        %v2485 = vshrl.u32 %v2484, 5
        %v2486 = vand.u32 %v2484, 31
        %v2487 = vsub.s32 32, %v2486
        %v2488 = vshrl.u32 683565275, %v2487
        %v2489 = vshll.u32 683565275, %v2486
        %v2490 = vshrl.u32 2475754826, %v2487
        %v2491 = vor.u32 %v2489, %v2490
        %v2492 = vshll.u32 2475754826, %v2486
        %v2493 = vshrl.u32 2131351028, %v2487
        %v2494 = vor.u32 %v2492, %v2493
        %v2495 = vshll.u32 2131351028, %v2486
        %v2496 = vshrl.u32 2102212464, %v2487
        %v2497 = vor.u32 %v2495, %v2496
        %v2498 = vshll.u32 2102212464, %v2486
        %v2499 = vshrl.u32 920167782, %v2487
        %v2500 = vor.u32 %v2498, %v2499
        %v2501 = vshll.u32 920167782, %v2486
        %v2502 = vshrl.u32 1326507024, %v2487
        %v2503 = vor.u32 %v2501, %v2502
        %vm2504 = vcmp.lt.s32.totalorder %v2485, 1
        %vm2505 = vcmp.lt.s32.totalorder %v2485, 2
        %vm2506 = vcmp.lt.s32.totalorder %v2485, 3
        %vm2507 = vcmp.lt.s32.totalorder %v2485, 4
        %v2508 = vsel %vm2504, %v2488, %v2491
        %v2509 = vsel %vm2507, %v2497, 2102212464
        %v2510 = vsel %vm2506, %v2494, %v2509
        %v2511 = vsel %vm2505, %v2508, %v2510
        %v2512 = vsel %vm2504, %v2491, %v2494
        %v2513 = vsel %vm2507, %v2500, 920167782
        %v2514 = vsel %vm2506, %v2497, %v2513
        %v2515 = vsel %vm2505, %v2512, %v2514
        %v2516 = vsel %vm2504, %v2494, %v2497
        %v2517 = vsel %vm2507, %v2503, 1326507024
        %v2518 = vsel %vm2506, %v2500, %v2517
        %v2519 = vsel %vm2505, %v2516, %v2518
        %v2520 = vshll.u32 %v2480, 8
        %v2521 = vand.u32 %v2520, 65535
        %v2522 = vshrl.u32 %v2520, 16
        %v2523 = vand.u32 %v2519, 65535
        %v2524 = vshrl.u32 %v2519, 16
        %v2525 = vmul.u32 %v2521, %v2523
        %v2526 = vmul.u32 %v2521, %v2524
        %v2527 = vmul.u32 %v2522, %v2523
        %v2528 = vmul.u32 %v2522, %v2524
        %v2529 = vshll.u32 %v2526, 16
        %v2530 = vshrl.u32 %v2526, 16
        %v2531 = vshll.u32 %v2527, 16
        %v2532 = vshrl.u32 %v2527, 16
        %vm2533 = vc.u32 %v2525, %v2529
        %v2534 = vsel %vm2533, 1, 0
        %v2535 = vadd.s32 %v2525, %v2529
        %v2536 = vadd.s32 %v2528, %v2534
        %vm2537 = vc.u32 %v2535, %v2531
        %v2538 = vsel %vm2537, 1, 0
        %v2539 = vadd.s32 %v2535, %v2531
        %v2540 = vadd.s32 %v2536, %v2538
        %v2541 = vadd.s32 %v2540, %v2530
        %v2542 = vadd.s32 %v2541, %v2532
        %v2543 = vand.u32 %v2520, 65535
        %v2544 = vshrl.u32 %v2520, 16
        %v2545 = vand.u32 %v2515, 65535
        %v2546 = vshrl.u32 %v2515, 16
        %v2547 = vmul.u32 %v2543, %v2545
        %v2548 = vmul.u32 %v2543, %v2546
        %v2549 = vmul.u32 %v2544, %v2545
        %v2550 = vmul.u32 %v2544, %v2546
        %v2551 = vshll.u32 %v2548, 16
        %v2552 = vshrl.u32 %v2548, 16
        %v2553 = vshll.u32 %v2549, 16
        %v2554 = vshrl.u32 %v2549, 16
        %vm2555 = vc.u32 %v2547, %v2551
        %v2556 = vsel %vm2555, 1, 0
        %v2557 = vadd.s32 %v2547, %v2551
        %v2558 = vadd.s32 %v2550, %v2556
        %vm2559 = vc.u32 %v2557, %v2553
        %v2560 = vsel %vm2559, 1, 0
        %v2561 = vadd.s32 %v2557, %v2553
        %v2562 = vadd.s32 %v2558, %v2560
        %v2563 = vadd.s32 %v2562, %v2552
        %v2564 = vadd.s32 %v2563, %v2554
        %v2565 = vmul.u32 %v2520, %v2511
        %v2566 = vadd.s32 %v2542, %v2561
        %vm2567 = vc.u32 %v2542, %v2561
        %v2568 = vadd.s32 %v2564, 1
        %v2569 = vsel %vm2567, %v2568, %v2564
        %v2570 = vadd.s32 %v2565, %v2569
        %v2571 = vadd.s32 %v2570, 536870912
        %v2572 = vshrl.u32 %v2571, 30
        %v2573 = vshll.u32 %v2572, 30
        %v2574 = vsub.s32 %v2570, %v2573
        %vm2575 = vcmp.lt.s32.totalorder %v2574, 0
        %v2576 = vsub.s32 0, %v2574
        %v2577 = vsel %vm2575, %v2576, %v2574
        %v2578 = vclz %v2577
        %v2579 = vsub.s32 %v2578, 2
        %vm2580 = vcmp.gt.s32.totalorder 0, %v2579
        %v2581 = vsel %vm2580, 0, %v2579
        %v2582 = vsub.s32 32, %v2581
        %v2583 = vshll.u32 %v2574, %v2581
        %v2584 = vshrl.u32 %v2566, %v2582
        %v2585 = vor.u32 %v2583, %v2584
        %v2586 = vsub.s32 4294967266, %v2581
        %v2587 = vadd.s32 %v2586, 127
        %v2588 = vshll.u32 %v2587, 23
        %v2589 = vor.u32 4788187, %v2588
        %v2590 = vand.u32 2147483647, %v2589
        %v2592 = vcvt.s32.f32 %v2585
        %v2593 = vmul.f32 %v2592, %v2590
        %v2594 = vxor.u32 %v2593, 2147483648
        %v2595 = vsel %vm2474, %v2594, %v2593
        %v2596 = vsub.s32 4, %v2572
        %v2597 = vsel %vm2474, %v2596, %v2572
        %v2598 = vsel %vm2473, %v604, %v2595
        %v2599 = vsel %vm2473, 0, %v2597
        %v2600 = vmul.f32 %v2598, %v2598
        %v2601 = vmul.f32 %v2600, -0.001358992
        %v2602 = vadd.f32 %v2601, 0.041655596
        %v2603 = vmul.f32 %v2600, %v2602
        %v2604 = vadd.f32 %v2603, -0.4999988
        %v2605 = vmul.f32 %v2600, %v2604
        %v2606 = vadd.f32 1.0, %v2605
        %v2607 = vmul.f32 %v2598, %v2598
        %v2608 = vmul.f32 %v2607, -0.00019511016
        %v2609 = vadd.f32 %v2608, 0.008332121
        %v2610 = vmul.f32 %v2607, %v2609
        %v2611 = vadd.f32 %v2610, -0.16666654
        %v2612 = vmul.f32 %v2607, %v2611
        %v2613 = vadd.f32 %v2612, 1.0
        %v2614 = vmul.f32 %v2613, %v2598
        %vm2615 = vweird.f32 %v604
        %v2616 = vadd.s32 %v2599, 3
        %v2617 = vand.u32 %v2616, 3
        %vm2618 = vcmp.lt.s32.totalorder %v2617, 2
        %vm2619 = vcmp.eq.s32.totalorder %v2617, 0
        %v2620 = vxor.u32 %v2614, 2147483648
        %v2621 = vsel %vm2619, %v2606, %v2620
        %vm2622 = vcmp.eq.s32.totalorder %v2617, 2
        %v2623 = vxor.u32 %v2606, 2147483648
        %v2624 = vsel %vm2622, %v2623, %v2614
        %v2625 = vsel %vm2618, %v2621, %v2624
        %v2626 = vsel %vm2615, nan, %v2625
        %v2627 = vand.u32 2147483647, %v606
        %vm2628 = vcmp.le.f32.partialorder %v2627, 0.7853982
        %vm2629 = vcmp.lt.s32.totalorder %v606, 0
        %v2630 = vand.u32 %v606, 2139095040
        %v2631 = vshrl.u32 %v2630, 23
        %v2632 = vsub.s32 %v2631, 127
        %v2633 = vand.u32 2147483647, %v606
        %v2634 = vand.u32 %v2633, 8388607
        %v2635 = vor.u32 %v2634, 8388608
        %v2636 = vsub.s32 0, %v2635
        %v2637 = vadd.s32 %v2632, 1
        %vm2638 = vcmp.gt.s32.totalorder %v2637, 0
        %v2639 = vsel %vm2638, %v2637, 0
        %v2640 = vshrl.u32 %v2639, 5
        %v2641 = vand.u32 %v2639, 31
        %v2642 = vsub.s32 32, %v2641
        %v2643 = vshrl.u32 683565275, %v2642
        %v2644 = vshll.u32 683565275, %v2641
        %v2645 = vshrl.u32 2475754826, %v2642
        %v2646 = vor.u32 %v2644, %v2645
        %v2647 = vshll.u32 2475754826, %v2641
        %v2648 = vshrl.u32 2131351028, %v2642
        %v2649 = vor.u32 %v2647, %v2648
        %v2650 = vshll.u32 2131351028, %v2641
        %v2651 = vshrl.u32 2102212464, %v2642
        %v2652 = vor.u32 %v2650, %v2651
        %v2653 = vshll.u32 2102212464, %v2641
        %v2654 = vshrl.u32 920167782, %v2642
        %v2655 = vor.u32 %v2653, %v2654
        %v2656 = vshll.u32 920167782, %v2641
        %v2657 = vshrl.u32 1326507024, %v2642
        %v2658 = vor.u32 %v2656, %v2657
        %vm2659 = vcmp.lt.s32.totalorder %v2640, 1
        %vm2660 = vcmp.lt.s32.totalorder %v2640, 2
        %vm2661 = vcmp.lt.s32.totalorder %v2640, 3
        %vm2662 = vcmp.lt.s32.totalorder %v2640, 4
        %v2663 = vsel %vm2659, %v2643, %v2646
        %v2664 = vsel %vm2662, %v2652, 2102212464
        %v2665 = vsel %vm2661, %v2649, %v2664
        %v2666 = vsel %vm2660, %v2663, %v2665
        %v2667 = vsel %vm2659, %v2646, %v2649
        %v2668 = vsel %vm2662, %v2655, 920167782
        %v2669 = vsel %vm2661, %v2652, %v2668
        %v2670 = vsel %vm2660, %v2667, %v2669
        %v2671 = vsel %vm2659, %v2649, %v2652
        %v2672 = vsel %vm2662, %v2658, 1326507024
        %v2673 = vsel %vm2661, %v2655, %v2672
        %v2674 = vsel %vm2660, %v2671, %v2673
        %v2675 = vshll.u32 %v2635, 8
        %v2676 = vand.u32 %v2675, 65535
        %v2677 = vshrl.u32 %v2675, 16
        %v2678 = vand.u32 %v2674, 65535
        %v2679 = vshrl.u32 %v2674, 16
        %v2680 = vmul.u32 %v2676, %v2678
        %v2681 = vmul.u32 %v2676, %v2679
        %v2682 = vmul.u32 %v2677, %v2678
        %v2683 = vmul.u32 %v2677, %v2679
        %v2684 = vshll.u32 %v2681, 16
        %v2685 = vshrl.u32 %v2681, 16
        %v2686 = vshll.u32 %v2682, 16
        %v2687 = vshrl.u32 %v2682, 16
        %vm2688 = vc.u32 %v2680, %v2684
        %v2689 = vsel %vm2688, 1, 0
        %v2690 = vadd.s32 %v2680, %v2684
        %v2691 = vadd.s32 %v2683, %v2689
        %vm2692 = vc.u32 %v2690, %v2686
        %v2693 = vsel %vm2692, 1, 0
        %v2694 = vadd.s32 %v2690, %v2686
        %v2695 = vadd.s32 %v2691, %v2693
        %v2696 = vadd.s32 %v2695, %v2685
        %v2697 = vadd.s32 %v2696, %v2687
        %v2698 = vand.u32 %v2675, 65535
        %v2699 = vshrl.u32 %v2675, 16
        %v2700 = vand.u32 %v2670, 65535
        %v2701 = vshrl.u32 %v2670, 16
        %v2702 = vmul.u32 %v2698, %v2700
        %v2703 = vmul.u32 %v2698, %v2701
        %v2704 = vmul.u32 %v2699, %v2700
        %v2705 = vmul.u32 %v2699, %v2701
        %v2706 = vshll.u32 %v2703, 16
        %v2707 = vshrl.u32 %v2703, 16
        %v2708 = vshll.u32 %v2704, 16
        %v2709 = vshrl.u32 %v2704, 16
        %vm2710 = vc.u32 %v2702, %v2706
        %v2711 = vsel %vm2710, 1, 0
        %v2712 = vadd.s32 %v2702, %v2706
        %v2713 = vadd.s32 %v2705, %v2711
        %vm2714 = vc.u32 %v2712, %v2708
        %v2715 = vsel %vm2714, 1, 0
        %v2716 = vadd.s32 %v2712, %v2708
        %v2717 = vadd.s32 %v2713, %v2715
        %v2718 = vadd.s32 %v2717, %v2707
        %v2719 = vadd.s32 %v2718, %v2709
        %v2720 = vmul.u32 %v2675, %v2666
        %v2721 = vadd.s32 %v2697, %v2716
        %vm2722 = vc.u32 %v2697, %v2716
        %v2723 = vadd.s32 %v2719, 1
        %v2724 = vsel %vm2722, %v2723, %v2719
        %v2725 = vadd.s32 %v2720, %v2724
        %v2726 = vadd.s32 %v2725, 536870912
        %v2727 = vshrl.u32 %v2726, 30
        %v2728 = vshll.u32 %v2727, 30
        %v2729 = vsub.s32 %v2725, %v2728
        %vm2730 = vcmp.lt.s32.totalorder %v2729, 0
        %v2731 = vsub.s32 0, %v2729
        %v2732 = vsel %vm2730, %v2731, %v2729
        %v2733 = vclz %v2732
        %v2734 = vsub.s32 %v2733, 2
        %vm2735 = vcmp.gt.s32.totalorder 0, %v2734
        %v2736 = vsel %vm2735, 0, %v2734
        %v2737 = vsub.s32 32, %v2736
        %v2738 = vshll.u32 %v2729, %v2736
        %v2739 = vshrl.u32 %v2721, %v2737
        %v2740 = vor.u32 %v2738, %v2739
        %v2741 = vsub.s32 4294967266, %v2736
        %v2742 = vadd.s32 %v2741, 127
        %v2743 = vshll.u32 %v2742, 23
        %v2744 = vor.u32 4788187, %v2743
        %v2745 = vand.u32 2147483647, %v2744
        %v2747 = vcvt.s32.f32 %v2740
        %v2748 = vmul.f32 %v2747, %v2745
        %v2749 = vxor.u32 %v2748, 2147483648
        %v2750 = vsel %vm2629, %v2749, %v2748
        %v2751 = vsub.s32 4, %v2727
        %v2752 = vsel %vm2629, %v2751, %v2727
        %v2753 = vsel %vm2628, %v606, %v2750
        %v2754 = vsel %vm2628, 0, %v2752
        %v2755 = vmul.f32 %v2753, %v2753
        %v2756 = vmul.f32 %v2755, -0.001358992
        %v2757 = vadd.f32 %v2756, 0.041655596
        %v2758 = vmul.f32 %v2755, %v2757
        %v2759 = vadd.f32 %v2758, -0.4999988
        %v2760 = vmul.f32 %v2755, %v2759
        %v2761 = vadd.f32 1.0, %v2760
        %v2762 = vmul.f32 %v2753, %v2753
        %v2763 = vmul.f32 %v2762, -0.00019511016
        %v2764 = vadd.f32 %v2763, 0.008332121
        %v2765 = vmul.f32 %v2762, %v2764
        %v2766 = vadd.f32 %v2765, -0.16666654
        %v2767 = vmul.f32 %v2762, %v2766
        %v2768 = vadd.f32 %v2767, 1.0
        %v2769 = vmul.f32 %v2768, %v2753
        %vm2770 = vweird.f32 %v606
        %v2771 = vadd.s32 %v2754, 3
        %v2772 = vand.u32 %v2771, 3
        %vm2773 = vcmp.lt.s32.totalorder %v2772, 2
        %vm2774 = vcmp.eq.s32.totalorder %v2772, 0
        %v2775 = vxor.u32 %v2769, 2147483648
        %v2776 = vsel %vm2774, %v2761, %v2775
        %vm2777 = vcmp.eq.s32.totalorder %v2772, 2
        %v2778 = vxor.u32 %v2761, 2147483648
        %v2779 = vsel %vm2777, %v2778, %v2769
        %v2780 = vsel %vm2773, %v2776, %v2779
        %v2781 = vsel %vm2770, nan, %v2780
        %v2782 = vand.u32 2147483647, %v608
        %vm2783 = vcmp.le.f32.partialorder %v2782, 0.7853982
        %vm2784 = vcmp.lt.s32.totalorder %v608, 0
        %v2785 = vand.u32 %v608, 2139095040
        %v2786 = vshrl.u32 %v2785, 23
        %v2787 = vsub.s32 %v2786, 127
        %v2788 = vand.u32 2147483647, %v608
        %v2789 = vand.u32 %v2788, 8388607
        %v2790 = vor.u32 %v2789, 8388608
        %v2791 = vsub.s32 0, %v2790
        %v2792 = vadd.s32 %v2787, 1
        %vm2793 = vcmp.gt.s32.totalorder %v2792, 0
        %v2794 = vsel %vm2793, %v2792, 0
        %v2795 = vshrl.u32 %v2794, 5
        %v2796 = vand.u32 %v2794, 31
        %v2797 = vsub.s32 32, %v2796
        %v2798 = vshrl.u32 683565275, %v2797
        %v2799 = vshll.u32 683565275, %v2796
        %v2800 = vshrl.u32 2475754826, %v2797
        %v2801 = vor.u32 %v2799, %v2800
        %v2802 = vshll.u32 2475754826, %v2796
        %v2803 = vshrl.u32 2131351028, %v2797
        %v2804 = vor.u32 %v2802, %v2803
        %v2805 = vshll.u32 2131351028, %v2796
        %v2806 = vshrl.u32 2102212464, %v2797
        %v2807 = vor.u32 %v2805, %v2806
        %v2808 = vshll.u32 2102212464, %v2796
        %v2809 = vshrl.u32 920167782, %v2797
        %v2810 = vor.u32 %v2808, %v2809
        %v2811 = vshll.u32 920167782, %v2796
        %v2812 = vshrl.u32 1326507024, %v2797
        %v2813 = vor.u32 %v2811, %v2812
        %vm2814 = vcmp.lt.s32.totalorder %v2795, 1
        %vm2815 = vcmp.lt.s32.totalorder %v2795, 2
        %vm2816 = vcmp.lt.s32.totalorder %v2795, 3
        %vm2817 = vcmp.lt.s32.totalorder %v2795, 4
        %v2818 = vsel %vm2814, %v2798, %v2801
        %v2819 = vsel %vm2817, %v2807, 2102212464
        %v2820 = vsel %vm2816, %v2804, %v2819
        %v2821 = vsel %vm2815, %v2818, %v2820
        %v2822 = vsel %vm2814, %v2801, %v2804
        %v2823 = vsel %vm2817, %v2810, 920167782
        %v2824 = vsel %vm2816, %v2807, %v2823
        %v2825 = vsel %vm2815, %v2822, %v2824
        %v2826 = vsel %vm2814, %v2804, %v2807
        %v2827 = vsel %vm2817, %v2813, 1326507024
        %v2828 = vsel %vm2816, %v2810, %v2827
        %v2829 = vsel %vm2815, %v2826, %v2828
        %v2830 = vshll.u32 %v2790, 8
        %v2831 = vand.u32 %v2830, 65535
        %v2832 = vshrl.u32 %v2830, 16
        %v2833 = vand.u32 %v2829, 65535
        %v2834 = vshrl.u32 %v2829, 16
        %v2835 = vmul.u32 %v2831, %v2833
        %v2836 = vmul.u32 %v2831, %v2834
        %v2837 = vmul.u32 %v2832, %v2833
        %v2838 = vmul.u32 %v2832, %v2834
        %v2839 = vshll.u32 %v2836, 16
        %v2840 = vshrl.u32 %v2836, 16
        %v2841 = vshll.u32 %v2837, 16
        %v2842 = vshrl.u32 %v2837, 16
        %vm2843 = vc.u32 %v2835, %v2839
        %v2844 = vsel %vm2843, 1, 0
        %v2845 = vadd.s32 %v2835, %v2839
        %v2846 = vadd.s32 %v2838, %v2844
        %vm2847 = vc.u32 %v2845, %v2841
        %v2848 = vsel %vm2847, 1, 0
        %v2849 = vadd.s32 %v2845, %v2841
        %v2850 = vadd.s32 %v2846, %v2848
        %v2851 = vadd.s32 %v2850, %v2840
        %v2852 = vadd.s32 %v2851, %v2842
        %v2853 = vand.u32 %v2830, 65535
        %v2854 = vshrl.u32 %v2830, 16
        %v2855 = vand.u32 %v2825, 65535
        %v2856 = vshrl.u32 %v2825, 16
        %v2857 = vmul.u32 %v2853, %v2855
        %v2858 = vmul.u32 %v2853, %v2856
        %v2859 = vmul.u32 %v2854, %v2855
        %v2860 = vmul.u32 %v2854, %v2856
        %v2861 = vshll.u32 %v2858, 16
        %v2862 = vshrl.u32 %v2858, 16
        %v2863 = vshll.u32 %v2859, 16
        %v2864 = vshrl.u32 %v2859, 16
        %vm2865 = vc.u32 %v2857, %v2861
        %v2866 = vsel %vm2865, 1, 0
        %v2867 = vadd.s32 %v2857, %v2861
        %v2868 = vadd.s32 %v2860, %v2866
        %vm2869 = vc.u32 %v2867, %v2863
        %v2870 = vsel %vm2869, 1, 0
        %v2871 = vadd.s32 %v2867, %v2863
        %v2872 = vadd.s32 %v2868, %v2870
        %v2873 = vadd.s32 %v2872, %v2862
        %v2874 = vadd.s32 %v2873, %v2864
        %v2875 = vmul.u32 %v2830, %v2821
        %v2876 = vadd.s32 %v2852, %v2871
        %vm2877 = vc.u32 %v2852, %v2871
        %v2878 = vadd.s32 %v2874, 1
        %v2879 = vsel %vm2877, %v2878, %v2874
        %v2880 = vadd.s32 %v2875, %v2879
        %v2881 = vadd.s32 %v2880, 536870912
        %v2882 = vshrl.u32 %v2881, 30
        %v2883 = vshll.u32 %v2882, 30
        %v2884 = vsub.s32 %v2880, %v2883
        %vm2885 = vcmp.lt.s32.totalorder %v2884, 0
        %v2886 = vsub.s32 0, %v2884
        %v2887 = vsel %vm2885, %v2886, %v2884
        %v2888 = vclz %v2887
        %v2889 = vsub.s32 %v2888, 2
        %vm2890 = vcmp.gt.s32.totalorder 0, %v2889
        %v2891 = vsel %vm2890, 0, %v2889
        %v2892 = vsub.s32 32, %v2891
        %v2893 = vshll.u32 %v2884, %v2891
        %v2894 = vshrl.u32 %v2876, %v2892
        %v2895 = vor.u32 %v2893, %v2894
        %v2896 = vsub.s32 4294967266, %v2891
        %v2897 = vadd.s32 %v2896, 127
        %v2898 = vshll.u32 %v2897, 23
        %v2899 = vor.u32 4788187, %v2898
        %v2900 = vand.u32 2147483647, %v2899
        %v2902 = vcvt.s32.f32 %v2895
        %v2903 = vmul.f32 %v2902, %v2900
        %v2904 = vxor.u32 %v2903, 2147483648
        %v2905 = vsel %vm2784, %v2904, %v2903
        %v2906 = vsub.s32 4, %v2882
        %v2907 = vsel %vm2784, %v2906, %v2882
        %v2908 = vsel %vm2783, %v608, %v2905
        %v2909 = vsel %vm2783, 0, %v2907
        %v2910 = vmul.f32 %v2908, %v2908
        %v2911 = vmul.f32 %v2910, -0.001358992
        %v2912 = vadd.f32 %v2911, 0.041655596
        %v2913 = vmul.f32 %v2910, %v2912
        %v2914 = vadd.f32 %v2913, -0.4999988
        %v2915 = vmul.f32 %v2910, %v2914
        %v2916 = vadd.f32 1.0, %v2915
        %v2917 = vmul.f32 %v2908, %v2908
        %v2918 = vmul.f32 %v2917, -0.00019511016
        %v2919 = vadd.f32 %v2918, 0.008332121
        %v2920 = vmul.f32 %v2917, %v2919
        %v2921 = vadd.f32 %v2920, -0.16666654
        %v2922 = vmul.f32 %v2917, %v2921
        %v2923 = vadd.f32 %v2922, 1.0
        %v2924 = vmul.f32 %v2923, %v2908
        %vm2925 = vweird.f32 %v608
        %v2926 = vadd.s32 %v2909, 3
        %v2927 = vand.u32 %v2926, 3
        %vm2928 = vcmp.lt.s32.totalorder %v2927, 2
        %vm2929 = vcmp.eq.s32.totalorder %v2927, 0
        %v2930 = vxor.u32 %v2924, 2147483648
        %v2931 = vsel %vm2929, %v2916, %v2930
        %vm2932 = vcmp.eq.s32.totalorder %v2927, 2
        %v2933 = vxor.u32 %v2916, 2147483648
        %v2934 = vsel %vm2932, %v2933, %v2924
        %v2935 = vsel %vm2928, %v2931, %v2934
        %v2936 = vsel %vm2925, nan, %v2935
        %v2937 = vand.u32 2147483647, %v610
        %vm2938 = vcmp.le.f32.partialorder %v2937, 0.7853982
        %vm2939 = vcmp.lt.s32.totalorder %v610, 0
        %v2940 = vand.u32 %v610, 2139095040
        %v2941 = vshrl.u32 %v2940, 23
        %v2942 = vsub.s32 %v2941, 127
        %v2943 = vand.u32 2147483647, %v610
        %v2944 = vand.u32 %v2943, 8388607
        %v2945 = vor.u32 %v2944, 8388608
        %v2946 = vsub.s32 0, %v2945
        %v2947 = vadd.s32 %v2942, 1
        %vm2948 = vcmp.gt.s32.totalorder %v2947, 0
        %v2949 = vsel %vm2948, %v2947, 0
        %v2950 = vshrl.u32 %v2949, 5
        %v2951 = vand.u32 %v2949, 31
        %v2952 = vsub.s32 32, %v2951
        %v2953 = vshrl.u32 683565275, %v2952
        %v2954 = vshll.u32 683565275, %v2951
        %v2955 = vshrl.u32 2475754826, %v2952
        %v2956 = vor.u32 %v2954, %v2955
        %v2957 = vshll.u32 2475754826, %v2951
        %v2958 = vshrl.u32 2131351028, %v2952
        %v2959 = vor.u32 %v2957, %v2958
        %v2960 = vshll.u32 2131351028, %v2951
        %v2961 = vshrl.u32 2102212464, %v2952
        %v2962 = vor.u32 %v2960, %v2961
        %v2963 = vshll.u32 2102212464, %v2951
        %v2964 = vshrl.u32 920167782, %v2952
        %v2965 = vor.u32 %v2963, %v2964
        %v2966 = vshll.u32 920167782, %v2951
        %v2967 = vshrl.u32 1326507024, %v2952
        %v2968 = vor.u32 %v2966, %v2967
        %vm2969 = vcmp.lt.s32.totalorder %v2950, 1
        %vm2970 = vcmp.lt.s32.totalorder %v2950, 2
        %vm2971 = vcmp.lt.s32.totalorder %v2950, 3
        %vm2972 = vcmp.lt.s32.totalorder %v2950, 4
        %v2973 = vsel %vm2969, %v2953, %v2956
        %v2974 = vsel %vm2972, %v2962, 2102212464
        %v2975 = vsel %vm2971, %v2959, %v2974
        %v2976 = vsel %vm2970, %v2973, %v2975
        %v2977 = vsel %vm2969, %v2956, %v2959
        %v2978 = vsel %vm2972, %v2965, 920167782
        %v2979 = vsel %vm2971, %v2962, %v2978
        %v2980 = vsel %vm2970, %v2977, %v2979
        %v2981 = vsel %vm2969, %v2959, %v2962
        %v2982 = vsel %vm2972, %v2968, 1326507024
        %v2983 = vsel %vm2971, %v2965, %v2982
        %v2984 = vsel %vm2970, %v2981, %v2983
        %v2985 = vshll.u32 %v2945, 8
        %v2986 = vand.u32 %v2985, 65535
        %v2987 = vshrl.u32 %v2985, 16
        %v2988 = vand.u32 %v2984, 65535
        %v2989 = vshrl.u32 %v2984, 16
        %v2990 = vmul.u32 %v2986, %v2988
        %v2991 = vmul.u32 %v2986, %v2989
        %v2992 = vmul.u32 %v2987, %v2988
        %v2993 = vmul.u32 %v2987, %v2989
        %v2994 = vshll.u32 %v2991, 16
        %v2995 = vshrl.u32 %v2991, 16
        %v2996 = vshll.u32 %v2992, 16
        %v2997 = vshrl.u32 %v2992, 16
        %vm2998 = vc.u32 %v2990, %v2994
        %v2999 = vsel %vm2998, 1, 0
        %v3000 = vadd.s32 %v2990, %v2994
        %v3001 = vadd.s32 %v2993, %v2999
        %vm3002 = vc.u32 %v3000, %v2996
        %v3003 = vsel %vm3002, 1, 0
        %v3004 = vadd.s32 %v3000, %v2996
        %v3005 = vadd.s32 %v3001, %v3003
        %v3006 = vadd.s32 %v3005, %v2995
        %v3007 = vadd.s32 %v3006, %v2997
        %v3008 = vand.u32 %v2985, 65535
        %v3009 = vshrl.u32 %v2985, 16
        %v3010 = vand.u32 %v2980, 65535
        %v3011 = vshrl.u32 %v2980, 16
        %v3012 = vmul.u32 %v3008, %v3010
        %v3013 = vmul.u32 %v3008, %v3011
        %v3014 = vmul.u32 %v3009, %v3010
        %v3015 = vmul.u32 %v3009, %v3011
        %v3016 = vshll.u32 %v3013, 16
        %v3017 = vshrl.u32 %v3013, 16
        %v3018 = vshll.u32 %v3014, 16
        %v3019 = vshrl.u32 %v3014, 16
        %vm3020 = vc.u32 %v3012, %v3016
        %v3021 = vsel %vm3020, 1, 0
        %v3022 = vadd.s32 %v3012, %v3016
        %v3023 = vadd.s32 %v3015, %v3021
        %vm3024 = vc.u32 %v3022, %v3018
        %v3025 = vsel %vm3024, 1, 0
        %v3026 = vadd.s32 %v3022, %v3018
        %v3027 = vadd.s32 %v3023, %v3025
        %v3028 = vadd.s32 %v3027, %v3017
        %v3029 = vadd.s32 %v3028, %v3019
        %v3030 = vmul.u32 %v2985, %v2976
        %v3031 = vadd.s32 %v3007, %v3026
        %vm3032 = vc.u32 %v3007, %v3026
        %v3033 = vadd.s32 %v3029, 1
        %v3034 = vsel %vm3032, %v3033, %v3029
        %v3035 = vadd.s32 %v3030, %v3034
        %v3036 = vadd.s32 %v3035, 536870912
        %v3037 = vshrl.u32 %v3036, 30
        %v3038 = vshll.u32 %v3037, 30
        %v3039 = vsub.s32 %v3035, %v3038
        %vm3040 = vcmp.lt.s32.totalorder %v3039, 0
        %v3041 = vsub.s32 0, %v3039
        %v3042 = vsel %vm3040, %v3041, %v3039
        %v3043 = vclz %v3042
        %v3044 = vsub.s32 %v3043, 2
        %vm3045 = vcmp.gt.s32.totalorder 0, %v3044
        %v3046 = vsel %vm3045, 0, %v3044
        %v3047 = vsub.s32 32, %v3046
        %v3048 = vshll.u32 %v3039, %v3046
        %v3049 = vshrl.u32 %v3031, %v3047
        %v3050 = vor.u32 %v3048, %v3049
        %v3051 = vsub.s32 4294967266, %v3046
        %v3052 = vadd.s32 %v3051, 127
        %v3053 = vshll.u32 %v3052, 23
        %v3054 = vor.u32 4788187, %v3053
        %v3055 = vand.u32 2147483647, %v3054
        %v3057 = vcvt.s32.f32 %v3050
        %v3058 = vmul.f32 %v3057, %v3055
        %v3059 = vxor.u32 %v3058, 2147483648
        %v3060 = vsel %vm2939, %v3059, %v3058
        %v3061 = vsub.s32 4, %v3037
        %v3062 = vsel %vm2939, %v3061, %v3037
        %v3063 = vsel %vm2938, %v610, %v3060
        %v3064 = vsel %vm2938, 0, %v3062
        %v3065 = vmul.f32 %v3063, %v3063
        %v3066 = vmul.f32 %v3065, -0.001358992
        %v3067 = vadd.f32 %v3066, 0.041655596
        %v3068 = vmul.f32 %v3065, %v3067
        %v3069 = vadd.f32 %v3068, -0.4999988
        %v3070 = vmul.f32 %v3065, %v3069
        %v3071 = vadd.f32 1.0, %v3070
        %v3072 = vmul.f32 %v3063, %v3063
        %v3073 = vmul.f32 %v3072, -0.00019511016
        %v3074 = vadd.f32 %v3073, 0.008332121
        %v3075 = vmul.f32 %v3072, %v3074
        %v3076 = vadd.f32 %v3075, -0.16666654
        %v3077 = vmul.f32 %v3072, %v3076
        %v3078 = vadd.f32 %v3077, 1.0
        %v3079 = vmul.f32 %v3078, %v3063
        %vm3080 = vweird.f32 %v610
        %v3081 = vadd.s32 %v3064, 3
        %v3082 = vand.u32 %v3081, 3
        %vm3083 = vcmp.lt.s32.totalorder %v3082, 2
        %vm3084 = vcmp.eq.s32.totalorder %v3082, 0
        %v3085 = vxor.u32 %v3079, 2147483648
        %v3086 = vsel %vm3084, %v3071, %v3085
        %vm3087 = vcmp.eq.s32.totalorder %v3082, 2
        %v3088 = vxor.u32 %v3071, 2147483648
        %v3089 = vsel %vm3087, %v3088, %v3079
        %v3090 = vsel %vm3083, %v3086, %v3089
        %v3091 = vsel %vm3080, nan, %v3090
        %v3092 = vmul.f32 %v581, %v581
        %v3093 = vmul.f32 %v583, %v583
        %v3094 = vmul.f32 %v585, %v585
        %v3095 = vmul.f32 %v587, %v587
        %v3096 = vmul.f32 %v589, %v589
        %v3097 = vmul.f32 %v591, %v591
        %v3098 = vmul.f32 %v593, %v593
        %v3099 = vmul.f32 %v595, %v595
        %v3100 = vmul.f32 %v597, %v597
        %v3101 = vmul.f32 %v599, %v599
        %v3102 = vmul.f32 %v601, %v601
        %v3103 = vmul.f32 %v603, %v603
        %v3104 = vmul.f32 %v605, %v605
        %v3105 = vmul.f32 %v607, %v607
        %v3106 = vmul.f32 %v609, %v609
        %v3107 = vmul.f32 %v611, %v611
        %v3108 = vsub.f32 0.0, %v3092
        %v3109 = vsub.f32 0.0, %v3093
        %v3110 = vsub.f32 0.0, %v3094
        %v3111 = vsub.f32 0.0, %v3095
        %v3112 = vsub.f32 0.0, %v3096
        %v3113 = vsub.f32 0.0, %v3097
        %v3114 = vsub.f32 0.0, %v3098
        %v3115 = vsub.f32 0.0, %v3099
        %v3116 = vsub.f32 0.0, %v3100
        %v3117 = vsub.f32 0.0, %v3101
        %v3118 = vsub.f32 0.0, %v3102
        %v3119 = vsub.f32 0.0, %v3103
        %v3120 = vsub.f32 0.0, %v3104
        %v3121 = vsub.f32 0.0, %v3105
        %v3122 = vsub.f32 0.0, %v3106
        %v3123 = vsub.f32 0.0, %v3107
        %v3124 = vpow.pop %v3108
        %v3125 = vpow.pop %v3109
        %v3126 = vpow.pop %v3110
        %v3127 = vpow.pop %v3111
        %v3128 = vpow.pop %v3112
        %v3129 = vpow.pop %v3113
        %v3130 = vpow.pop %v3114
        %v3131 = vpow.pop %v3115
        %v3132 = vpow.pop %v3116
        %v3133 = vpow.pop %v3117
        %v3134 = vpow.pop %v3118
        %v3135 = vpow.pop %v3119
        %v3136 = vpow.pop %v3120
        %v3137 = vpow.pop %v3121
        %v3138 = vpow.pop %v3122
        %v3139 = vpow.pop %v3123
        %v3140 = vmul.f32 %v766, %v3124
        %v3141 = vmul.f32 %v921, %v3125
        %v3142 = vmul.f32 %v1076, %v3126
        %v3143 = vmul.f32 %v1231, %v3127
        %v3144 = vmul.f32 %v1386, %v3128
        %v3145 = vmul.f32 %v1541, %v3129
        %v3146 = vmul.f32 %v1696, %v3130
        %v3147 = vmul.f32 %v1851, %v3131
        %v3148 = vmul.f32 %v2006, %v3132
        %v3149 = vmul.f32 %v2161, %v3133
        %v3150 = vmul.f32 %v2316, %v3134
        %v3151 = vmul.f32 %v2471, %v3135
        %v3152 = vmul.f32 %v2626, %v3136
        %v3153 = vmul.f32 %v2781, %v3137
        %v3154 = vmul.f32 %v2936, %v3138
        %v3155 = vmul.f32 %v3091, %v3139
        %v3156 = vld [vmem:[%s3] sm:$0xff]
        %v3157 = vld [vmem:[%s3 + $0x8] sm:$0xff]
        %v3158 = vld [vmem:[%s3 + $0x10] sm:$0xff]
        %v3159 = vld [vmem:[%s3 + $0x18] sm:$0xff]
        %v3160 = vld [vmem:[%s3 + $0x20] sm:$0xff]
        %v3161 = vld [vmem:[%s3 + $0x28] sm:$0xff]
        %v3162 = vld [vmem:[%s3 + $0x30] sm:$0xff]
        %v3163 = vld [vmem:[%s3 + $0x38] sm:$0xff]
        %v3164 = vld [vmem:[%s3 + $0x40] sm:$0xff]
        %v3165 = vld [vmem:[%s3 + $0x48] sm:$0xff]
        %v3166 = vld [vmem:[%s3 + $0x50] sm:$0xff]
        %v3167 = vld [vmem:[%s3 + $0x58] sm:$0xff]
        %v3168 = vld [vmem:[%s3 + $0x60] sm:$0xff]
        %v3169 = vld [vmem:[%s3 + $0x68] sm:$0xff]
        %v3170 = vld [vmem:[%s3 + $0x70] sm:$0xff]
        %v3171 = vld [vmem:[%s3 + $0x78] sm:$0xff]
        %v3172 = vld [vmem:[%s3 + $0x80] sm:$0xff]
        %v3173 = vld [vmem:[%s3 + $0x88] sm:$0xff]
        %v3174 = vld [vmem:[%s3 + $0x90] sm:$0xff]
        %v3175 = vld [vmem:[%s3 + $0x98] sm:$0xff]
        %v3176 = vld [vmem:[%s3 + $0xa0] sm:$0xff]
        %v3177 = vld [vmem:[%s3 + $0xa8] sm:$0xff]
        %v3178 = vld [vmem:[%s3 + $0xb0] sm:$0xff]
        %v3179 = vld [vmem:[%s3 + $0xb8] sm:$0xff]
        %v3180 = vld [vmem:[%s3 + $0xc0] sm:$0xff]
        %v3181 = vld [vmem:[%s3 + $0xc8] sm:$0xff]
        %v3182 = vld [vmem:[%s3 + $0xd0] sm:$0xff]
        %v3183 = vld [vmem:[%s3 + $0xd8] sm:$0xff]
        %v3184 = vld [vmem:[%s3 + $0xe0] sm:$0xff]
        %v3185 = vld [vmem:[%s3 + $0xe8] sm:$0xff]
        %v3186 = vld [vmem:[%s3 + $0xf0] sm:$0xff]
        %v3187 = vld [vmem:[%s3 + $0xf8] sm:$0xff]
        %v3188 = vld [vmem:[%s4] sm:$0x3]
        %v3190 = vperm.slane %v3188, 0
        %v3191 = vperm.slane %v3188, 1
        %3194 = vmatpush.msra.mxu0 %v3186
        %3195 = vmatpush.msra.mxu0 %v3184
        %3196 = vmatpush.msra.mxu0 %v3182
        %3197 = vmatpush.msra.mxu0 %v3180
        %3198 = vmatpush.msra.mxu0 %v3178
        %3199 = vmatpush.msra.mxu0 %v3176
        %3200 = vmatpush.msra.mxu0 %v3174
        %3201 = vmatpush.msra.mxu0 %v3172
        %3202 = vmatpush.msra.mxu0 %v3170
        %3203 = vmatpush.msra.mxu0 %v3168
        %3204 = vmatpush.msra.mxu0 %v3166
        %3205 = vmatpush.msra.mxu0 %v3164
        %3206 = vmatpush.msra.mxu0 %v3162
        %3207 = vmatpush.msra.mxu0 %v3160
        %3208 = vmatpush.msra.mxu0 %v3158
        %3209 = vmatpush.msra.mxu0 %v3156
        %3210 = vmatmul.f32.gmra.mxu0 %v3140
        %v3211 = vpop.f32.mrf.mxu0
        %v3212 = vadd.f32 %v3190, %v3211
        %3213 = vmatmul.f32.gmra.mxu0 %v3141
        %v3214 = vpop.f32.mrf.mxu0
        %v3215 = vadd.f32 %v3190, %v3214
        %3216 = vmatmul.f32.gmra.mxu0 %v3142
        %v3217 = vpop.f32.mrf.mxu0
        %v3218 = vadd.f32 %v3190, %v3217
        %3219 = vmatmul.f32.gmra.mxu0 %v3143
        %v3220 = vpop.f32.mrf.mxu0
        %v3221 = vadd.f32 %v3190, %v3220
        %3222 = vmatmul.f32.gmra.mxu0 %v3144
        %v3223 = vpop.f32.mrf.mxu0
        %v3224 = vadd.f32 %v3190, %v3223
        %3225 = vmatmul.f32.gmra.mxu0 %v3145
        %v3226 = vpop.f32.mrf.mxu0
        %v3227 = vadd.f32 %v3190, %v3226
        %3228 = vmatmul.f32.gmra.mxu0 %v3146
        %v3229 = vpop.f32.mrf.mxu0
        %v3230 = vadd.f32 %v3190, %v3229
        %3231 = vmatmul.f32.gmra.mxu0 %v3147
        %v3232 = vpop.f32.mrf.mxu0
        %v3233 = vadd.f32 %v3190, %v3232
        %3234 = vmatmul.f32.gmra.mxu0 %v3148
        %v3235 = vpop.f32.mrf.mxu0
        %v3236 = vadd.f32 %v3190, %v3235
        %3237 = vmatmul.f32.gmra.mxu0 %v3149
        %v3238 = vpop.f32.mrf.mxu0
        %v3239 = vadd.f32 %v3190, %v3238
        %3240 = vmatmul.f32.gmra.mxu0 %v3150
        %v3241 = vpop.f32.mrf.mxu0
        %v3242 = vadd.f32 %v3190, %v3241
        %3243 = vmatmul.f32.gmra.mxu0 %v3151
        %v3244 = vpop.f32.mrf.mxu0
        %v3245 = vadd.f32 %v3190, %v3244
        %3246 = vmatmul.f32.gmra.mxu0 %v3152
        %v3247 = vpop.f32.mrf.mxu0
        %v3248 = vadd.f32 %v3190, %v3247
        %3249 = vmatmul.f32.gmra.mxu0 %v3153
        %v3250 = vpop.f32.mrf.mxu0
        %v3251 = vadd.f32 %v3190, %v3250
        %3252 = vmatmul.f32.gmra.mxu0 %v3154
        %v3253 = vpop.f32.mrf.mxu0
        %v3254 = vadd.f32 %v3190, %v3253
        %3255 = vmatmul.f32.gmra.mxu0 %v3155
        %v3256 = vpop.f32.mrf.mxu0
        %v3257 = vadd.f32 %v3190, %v3256
        %3258 = vdwg.mxu0
        %3259 = vmatpush.msra.mxu0 %v3187
        %3260 = vmatpush.msra.mxu0 %v3185
        %3261 = vmatpush.msra.mxu0 %v3183
        %3262 = vmatpush.msra.mxu0 %v3181
        %3263 = vmatpush.msra.mxu0 %v3179
        %3264 = vmatpush.msra.mxu0 %v3177
        %3265 = vmatpush.msra.mxu0 %v3175
        %3266 = vmatpush.msra.mxu0 %v3173
        %3267 = vmatpush.msra.mxu0 %v3171
        %3268 = vmatpush.msra.mxu0 %v3169
        %3269 = vmatpush.msra.mxu0 %v3167
        %3270 = vmatpush.msra.mxu0 %v3165
        %3271 = vmatpush.msra.mxu0 %v3163
        %3272 = vmatpush.msra.mxu0 %v3161
        %3273 = vmatpush.msra.mxu0 %v3159
        %3274 = vmatpush.msra.mxu0 %v3157
        %3275 = vmatmul.f32.gmra.mxu0 %v3140
        %v3276 = vpop.f32.mrf.mxu0
        %v3277 = vadd.f32 %v3191, %v3276
        %3278 = vmatmul.f32.gmra.mxu0 %v3141
        %v3279 = vpop.f32.mrf.mxu0
        %v3280 = vadd.f32 %v3191, %v3279
        %3281 = vmatmul.f32.gmra.mxu0 %v3142
        %v3282 = vpop.f32.mrf.mxu0
        %v3283 = vadd.f32 %v3191, %v3282
        %3284 = vmatmul.f32.gmra.mxu0 %v3143
        %v3285 = vpop.f32.mrf.mxu0
        %v3286 = vadd.f32 %v3191, %v3285
        %3287 = vmatmul.f32.gmra.mxu0 %v3144
        %v3288 = vpop.f32.mrf.mxu0
        %v3289 = vadd.f32 %v3191, %v3288
        %3290 = vmatmul.f32.gmra.mxu0 %v3145
        %v3291 = vpop.f32.mrf.mxu0
        %v3292 = vadd.f32 %v3191, %v3291
        %3293 = vmatmul.f32.gmra.mxu0 %v3146
        %v3294 = vpop.f32.mrf.mxu0
        %v3295 = vadd.f32 %v3191, %v3294
        %3296 = vmatmul.f32.gmra.mxu0 %v3147
        %v3297 = vpop.f32.mrf.mxu0
        %v3298 = vadd.f32 %v3191, %v3297
        %3299 = vmatmul.f32.gmra.mxu0 %v3148
        %v3300 = vpop.f32.mrf.mxu0
        %v3301 = vadd.f32 %v3191, %v3300
        %3302 = vmatmul.f32.gmra.mxu0 %v3149
        %v3303 = vpop.f32.mrf.mxu0
        %v3304 = vadd.f32 %v3191, %v3303
        %3305 = vmatmul.f32.gmra.mxu0 %v3150
        %v3306 = vpop.f32.mrf.mxu0
        %v3307 = vadd.f32 %v3191, %v3306
        %3308 = vmatmul.f32.gmra.mxu0 %v3151
        %v3309 = vpop.f32.mrf.mxu0
        %v3310 = vadd.f32 %v3191, %v3309
        %3311 = vmatmul.f32.gmra.mxu0 %v3152
        %v3312 = vpop.f32.mrf.mxu0
        %v3313 = vadd.f32 %v3191, %v3312
        %3314 = vmatmul.f32.gmra.mxu0 %v3153
        %v3315 = vpop.f32.mrf.mxu0
        %v3316 = vadd.f32 %v3191, %v3315
        %3317 = vmatmul.f32.gmra.mxu0 %v3154
        %v3318 = vpop.f32.mrf.mxu0
        %v3319 = vadd.f32 %v3191, %v3318
        %3320 = vmatmul.f32.gmra.mxu0 %v3155
        %v3321 = vpop.f32.mrf.mxu0
        %v3322 = vadd.f32 %v3191, %v3321
        %3323 = vdwg.mxu0
        %v3324 = vand.u32 2147483647, %v3212
        %vm3325 = vcmp.le.f32.partialorder %v3324, 0.7853982
        %vm3326 = vcmp.lt.s32.totalorder %v3212, 0
        %v3327 = vand.u32 %v3212, 2139095040
        %v3328 = vshrl.u32 %v3327, 23
        %v3329 = vsub.s32 %v3328, 127
        %v3330 = vand.u32 2147483647, %v3212
        %v3331 = vand.u32 %v3330, 8388607
        %v3332 = vor.u32 %v3331, 8388608
        %v3333 = vsub.s32 0, %v3332
        %v3334 = vadd.s32 %v3329, 1
        %vm3335 = vcmp.gt.s32.totalorder %v3334, 0
        %v3336 = vsel %vm3335, %v3334, 0
        %v3337 = vshrl.u32 %v3336, 5
        %v3338 = vand.u32 %v3336, 31
        %v3339 = vsub.s32 32, %v3338
        %v3340 = vshrl.u32 683565275, %v3339
        %v3341 = vshll.u32 683565275, %v3338
        %v3342 = vshrl.u32 2475754826, %v3339
        %v3343 = vor.u32 %v3341, %v3342
        %v3344 = vshll.u32 2475754826, %v3338
        %v3345 = vshrl.u32 2131351028, %v3339
        %v3346 = vor.u32 %v3344, %v3345
        %v3347 = vshll.u32 2131351028, %v3338
        %v3348 = vshrl.u32 2102212464, %v3339
        %v3349 = vor.u32 %v3347, %v3348
        %v3350 = vshll.u32 2102212464, %v3338
        %v3351 = vshrl.u32 920167782, %v3339
        %v3352 = vor.u32 %v3350, %v3351
        %v3353 = vshll.u32 920167782, %v3338
        %v3354 = vshrl.u32 1326507024, %v3339
        %v3355 = vor.u32 %v3353, %v3354
        %vm3356 = vcmp.lt.s32.totalorder %v3337, 1
        %vm3357 = vcmp.lt.s32.totalorder %v3337, 2
        %vm3358 = vcmp.lt.s32.totalorder %v3337, 3
        %vm3359 = vcmp.lt.s32.totalorder %v3337, 4
        %v3360 = vsel %vm3356, %v3340, %v3343
        %v3361 = vsel %vm3359, %v3349, 2102212464
        %v3362 = vsel %vm3358, %v3346, %v3361
        %v3363 = vsel %vm3357, %v3360, %v3362
        %v3364 = vsel %vm3356, %v3343, %v3346
        %v3365 = vsel %vm3359, %v3352, 920167782
        %v3366 = vsel %vm3358, %v3349, %v3365
        %v3367 = vsel %vm3357, %v3364, %v3366
        %v3368 = vsel %vm3356, %v3346, %v3349
        %v3369 = vsel %vm3359, %v3355, 1326507024
        %v3370 = vsel %vm3358, %v3352, %v3369
        %v3371 = vsel %vm3357, %v3368, %v3370
        %v3372 = vshll.u32 %v3332, 8
        %v3373 = vand.u32 %v3372, 65535
        %v3374 = vshrl.u32 %v3372, 16
        %v3375 = vand.u32 %v3371, 65535
        %v3376 = vshrl.u32 %v3371, 16
        %v3377 = vmul.u32 %v3373, %v3375
        %v3378 = vmul.u32 %v3373, %v3376
        %v3379 = vmul.u32 %v3374, %v3375
        %v3380 = vmul.u32 %v3374, %v3376
        %v3381 = vshll.u32 %v3378, 16
        %v3382 = vshrl.u32 %v3378, 16
        %v3383 = vshll.u32 %v3379, 16
        %v3384 = vshrl.u32 %v3379, 16
        %vm3385 = vc.u32 %v3377, %v3381
        %v3386 = vsel %vm3385, 1, 0
        %v3387 = vadd.s32 %v3377, %v3381
        %v3388 = vadd.s32 %v3380, %v3386
        %vm3389 = vc.u32 %v3387, %v3383
        %v3390 = vsel %vm3389, 1, 0
        %v3391 = vadd.s32 %v3387, %v3383
        %v3392 = vadd.s32 %v3388, %v3390
        %v3393 = vadd.s32 %v3392, %v3382
        %v3394 = vadd.s32 %v3393, %v3384
        %v3395 = vand.u32 %v3372, 65535
        %v3396 = vshrl.u32 %v3372, 16
        %v3397 = vand.u32 %v3367, 65535
        %v3398 = vshrl.u32 %v3367, 16
        %v3399 = vmul.u32 %v3395, %v3397
        %v3400 = vmul.u32 %v3395, %v3398
        %v3401 = vmul.u32 %v3396, %v3397
        %v3402 = vmul.u32 %v3396, %v3398
        %v3403 = vshll.u32 %v3400, 16
        %v3404 = vshrl.u32 %v3400, 16
        %v3405 = vshll.u32 %v3401, 16
        %v3406 = vshrl.u32 %v3401, 16
        %vm3407 = vc.u32 %v3399, %v3403
        %v3408 = vsel %vm3407, 1, 0
        %v3409 = vadd.s32 %v3399, %v3403
        %v3410 = vadd.s32 %v3402, %v3408
        %vm3411 = vc.u32 %v3409, %v3405
        %v3412 = vsel %vm3411, 1, 0
        %v3413 = vadd.s32 %v3409, %v3405
        %v3414 = vadd.s32 %v3410, %v3412
        %v3415 = vadd.s32 %v3414, %v3404
        %v3416 = vadd.s32 %v3415, %v3406
        %v3417 = vmul.u32 %v3372, %v3363
        %v3418 = vadd.s32 %v3394, %v3413
        %vm3419 = vc.u32 %v3394, %v3413
        %v3420 = vadd.s32 %v3416, 1
        %v3421 = vsel %vm3419, %v3420, %v3416
        %v3422 = vadd.s32 %v3417, %v3421
        %v3423 = vadd.s32 %v3422, 536870912
        %v3424 = vshrl.u32 %v3423, 30
        %v3425 = vshll.u32 %v3424, 30
        %v3426 = vsub.s32 %v3422, %v3425
        %vm3427 = vcmp.lt.s32.totalorder %v3426, 0
        %v3428 = vsub.s32 0, %v3426
        %v3429 = vsel %vm3427, %v3428, %v3426
        %v3430 = vclz %v3429
        %v3431 = vsub.s32 %v3430, 2
        %vm3432 = vcmp.gt.s32.totalorder 0, %v3431
        %v3433 = vsel %vm3432, 0, %v3431
        %v3434 = vsub.s32 32, %v3433
        %v3435 = vshll.u32 %v3426, %v3433
        %v3436 = vshrl.u32 %v3418, %v3434
        %v3437 = vor.u32 %v3435, %v3436
        %v3438 = vsub.s32 4294967266, %v3433
        %v3439 = vadd.s32 %v3438, 127
        %v3440 = vshll.u32 %v3439, 23
        %v3441 = vor.u32 4788187, %v3440
        %v3442 = vand.u32 2147483647, %v3441
        %v3444 = vcvt.s32.f32 %v3437
        %v3445 = vmul.f32 %v3444, %v3442
        %v3446 = vxor.u32 %v3445, 2147483648
        %v3447 = vsel %vm3326, %v3446, %v3445
        %v3448 = vsub.s32 4, %v3424
        %v3449 = vsel %vm3326, %v3448, %v3424
        %v3450 = vsel %vm3325, %v3212, %v3447
        %v3451 = vsel %vm3325, 0, %v3449
        %v3452 = vmul.f32 %v3450, %v3450
        %v3453 = vmul.f32 %v3452, -0.001358992
        %v3454 = vadd.f32 %v3453, 0.041655596
        %v3455 = vmul.f32 %v3452, %v3454
        %v3456 = vadd.f32 %v3455, -0.4999988
        %v3457 = vmul.f32 %v3452, %v3456
        %v3458 = vadd.f32 1.0, %v3457
        %v3459 = vmul.f32 %v3450, %v3450
        %v3460 = vmul.f32 %v3459, -0.00019511016
        %v3461 = vadd.f32 %v3460, 0.008332121
        %v3462 = vmul.f32 %v3459, %v3461
        %v3463 = vadd.f32 %v3462, -0.16666654
        %v3464 = vmul.f32 %v3459, %v3463
        %v3465 = vadd.f32 %v3464, 1.0
        %v3466 = vmul.f32 %v3465, %v3450
        %vm3467 = vweird.f32 %v3212
        %v3468 = vadd.s32 %v3451, 3
        %v3469 = vand.u32 %v3468, 3
        %vm3470 = vcmp.lt.s32.totalorder %v3469, 2
        %vm3471 = vcmp.eq.s32.totalorder %v3469, 0
        %v3472 = vxor.u32 %v3466, 2147483648
        %v3473 = vsel %vm3471, %v3458, %v3472
        %vm3474 = vcmp.eq.s32.totalorder %v3469, 2
        %v3475 = vxor.u32 %v3458, 2147483648
        %v3476 = vsel %vm3474, %v3475, %v3466
        %v3477 = vsel %vm3470, %v3473, %v3476
        %v3478 = vsel %vm3467, nan, %v3477
        %v3479 = vand.u32 2147483647, %v3215
        %vm3480 = vcmp.le.f32.partialorder %v3479, 0.7853982
        %vm3481 = vcmp.lt.s32.totalorder %v3215, 0
        %v3482 = vand.u32 %v3215, 2139095040
        %v3483 = vshrl.u32 %v3482, 23
        %v3484 = vsub.s32 %v3483, 127
        %v3485 = vand.u32 2147483647, %v3215
        %v3486 = vand.u32 %v3485, 8388607
        %v3487 = vor.u32 %v3486, 8388608
        %v3488 = vsub.s32 0, %v3487
        %v3489 = vadd.s32 %v3484, 1
        %vm3490 = vcmp.gt.s32.totalorder %v3489, 0
        %v3491 = vsel %vm3490, %v3489, 0
        %v3492 = vshrl.u32 %v3491, 5
        %v3493 = vand.u32 %v3491, 31
        %v3494 = vsub.s32 32, %v3493
        %v3495 = vshrl.u32 683565275, %v3494
        %v3496 = vshll.u32 683565275, %v3493
        %v3497 = vshrl.u32 2475754826, %v3494
        %v3498 = vor.u32 %v3496, %v3497
        %v3499 = vshll.u32 2475754826, %v3493
        %v3500 = vshrl.u32 2131351028, %v3494
        %v3501 = vor.u32 %v3499, %v3500
        %v3502 = vshll.u32 2131351028, %v3493
        %v3503 = vshrl.u32 2102212464, %v3494
        %v3504 = vor.u32 %v3502, %v3503
        %v3505 = vshll.u32 2102212464, %v3493
        %v3506 = vshrl.u32 920167782, %v3494
        %v3507 = vor.u32 %v3505, %v3506
        %v3508 = vshll.u32 920167782, %v3493
        %v3509 = vshrl.u32 1326507024, %v3494
        %v3510 = vor.u32 %v3508, %v3509
        %vm3511 = vcmp.lt.s32.totalorder %v3492, 1
        %vm3512 = vcmp.lt.s32.totalorder %v3492, 2
        %vm3513 = vcmp.lt.s32.totalorder %v3492, 3
        %vm3514 = vcmp.lt.s32.totalorder %v3492, 4
        %v3515 = vsel %vm3511, %v3495, %v3498
        %v3516 = vsel %vm3514, %v3504, 2102212464
        %v3517 = vsel %vm3513, %v3501, %v3516
        %v3518 = vsel %vm3512, %v3515, %v3517
        %v3519 = vsel %vm3511, %v3498, %v3501
        %v3520 = vsel %vm3514, %v3507, 920167782
        %v3521 = vsel %vm3513, %v3504, %v3520
        %v3522 = vsel %vm3512, %v3519, %v3521
        %v3523 = vsel %vm3511, %v3501, %v3504
        %v3524 = vsel %vm3514, %v3510, 1326507024
        %v3525 = vsel %vm3513, %v3507, %v3524
        %v3526 = vsel %vm3512, %v3523, %v3525
        %v3527 = vshll.u32 %v3487, 8
        %v3528 = vand.u32 %v3527, 65535
        %v3529 = vshrl.u32 %v3527, 16
        %v3530 = vand.u32 %v3526, 65535
        %v3531 = vshrl.u32 %v3526, 16
        %v3532 = vmul.u32 %v3528, %v3530
        %v3533 = vmul.u32 %v3528, %v3531
        %v3534 = vmul.u32 %v3529, %v3530
        %v3535 = vmul.u32 %v3529, %v3531
        %v3536 = vshll.u32 %v3533, 16
        %v3537 = vshrl.u32 %v3533, 16
        %v3538 = vshll.u32 %v3534, 16
        %v3539 = vshrl.u32 %v3534, 16
        %vm3540 = vc.u32 %v3532, %v3536
        %v3541 = vsel %vm3540, 1, 0
        %v3542 = vadd.s32 %v3532, %v3536
        %v3543 = vadd.s32 %v3535, %v3541
        %vm3544 = vc.u32 %v3542, %v3538
        %v3545 = vsel %vm3544, 1, 0
        %v3546 = vadd.s32 %v3542, %v3538
        %v3547 = vadd.s32 %v3543, %v3545
        %v3548 = vadd.s32 %v3547, %v3537
        %v3549 = vadd.s32 %v3548, %v3539
        %v3550 = vand.u32 %v3527, 65535
        %v3551 = vshrl.u32 %v3527, 16
        %v3552 = vand.u32 %v3522, 65535
        %v3553 = vshrl.u32 %v3522, 16
        %v3554 = vmul.u32 %v3550, %v3552
        %v3555 = vmul.u32 %v3550, %v3553
        %v3556 = vmul.u32 %v3551, %v3552
        %v3557 = vmul.u32 %v3551, %v3553
        %v3558 = vshll.u32 %v3555, 16
        %v3559 = vshrl.u32 %v3555, 16
        %v3560 = vshll.u32 %v3556, 16
        %v3561 = vshrl.u32 %v3556, 16
        %vm3562 = vc.u32 %v3554, %v3558
        %v3563 = vsel %vm3562, 1, 0
        %v3564 = vadd.s32 %v3554, %v3558
        %v3565 = vadd.s32 %v3557, %v3563
        %vm3566 = vc.u32 %v3564, %v3560
        %v3567 = vsel %vm3566, 1, 0
        %v3568 = vadd.s32 %v3564, %v3560
        %v3569 = vadd.s32 %v3565, %v3567
        %v3570 = vadd.s32 %v3569, %v3559
        %v3571 = vadd.s32 %v3570, %v3561
        %v3572 = vmul.u32 %v3527, %v3518
        %v3573 = vadd.s32 %v3549, %v3568
        %vm3574 = vc.u32 %v3549, %v3568
        %v3575 = vadd.s32 %v3571, 1
        %v3576 = vsel %vm3574, %v3575, %v3571
        %v3577 = vadd.s32 %v3572, %v3576
        %v3578 = vadd.s32 %v3577, 536870912
        %v3579 = vshrl.u32 %v3578, 30
        %v3580 = vshll.u32 %v3579, 30
        %v3581 = vsub.s32 %v3577, %v3580
        %vm3582 = vcmp.lt.s32.totalorder %v3581, 0
        %v3583 = vsub.s32 0, %v3581
        %v3584 = vsel %vm3582, %v3583, %v3581
        %v3585 = vclz %v3584
        %v3586 = vsub.s32 %v3585, 2
        %vm3587 = vcmp.gt.s32.totalorder 0, %v3586
        %v3588 = vsel %vm3587, 0, %v3586
        %v3589 = vsub.s32 32, %v3588
        %v3590 = vshll.u32 %v3581, %v3588
        %v3591 = vshrl.u32 %v3573, %v3589
        %v3592 = vor.u32 %v3590, %v3591
        %v3593 = vsub.s32 4294967266, %v3588
        %v3594 = vadd.s32 %v3593, 127
        %v3595 = vshll.u32 %v3594, 23
        %v3596 = vor.u32 4788187, %v3595
        %v3597 = vand.u32 2147483647, %v3596
        %v3599 = vcvt.s32.f32 %v3592
        %v3600 = vmul.f32 %v3599, %v3597
        %v3601 = vxor.u32 %v3600, 2147483648
        %v3602 = vsel %vm3481, %v3601, %v3600
        %v3603 = vsub.s32 4, %v3579
        %v3604 = vsel %vm3481, %v3603, %v3579
        %v3605 = vsel %vm3480, %v3215, %v3602
        %v3606 = vsel %vm3480, 0, %v3604
        %v3607 = vmul.f32 %v3605, %v3605
        %v3608 = vmul.f32 %v3607, -0.001358992
        %v3609 = vadd.f32 %v3608, 0.041655596
        %v3610 = vmul.f32 %v3607, %v3609
        %v3611 = vadd.f32 %v3610, -0.4999988
        %v3612 = vmul.f32 %v3607, %v3611
        %v3613 = vadd.f32 1.0, %v3612
        %v3614 = vmul.f32 %v3605, %v3605
        %v3615 = vmul.f32 %v3614, -0.00019511016
        %v3616 = vadd.f32 %v3615, 0.008332121
        %v3617 = vmul.f32 %v3614, %v3616
        %v3618 = vadd.f32 %v3617, -0.16666654
        %v3619 = vmul.f32 %v3614, %v3618
        %v3620 = vadd.f32 %v3619, 1.0
        %v3621 = vmul.f32 %v3620, %v3605
        %vm3622 = vweird.f32 %v3215
        %v3623 = vadd.s32 %v3606, 3
        %v3624 = vand.u32 %v3623, 3
        %vm3625 = vcmp.lt.s32.totalorder %v3624, 2
        %vm3626 = vcmp.eq.s32.totalorder %v3624, 0
        %v3627 = vxor.u32 %v3621, 2147483648
        %v3628 = vsel %vm3626, %v3613, %v3627
        %vm3629 = vcmp.eq.s32.totalorder %v3624, 2
        %v3630 = vxor.u32 %v3613, 2147483648
        %v3631 = vsel %vm3629, %v3630, %v3621
        %v3632 = vsel %vm3625, %v3628, %v3631
        %v3633 = vsel %vm3622, nan, %v3632
        %v3634 = vand.u32 2147483647, %v3218
        %vm3635 = vcmp.le.f32.partialorder %v3634, 0.7853982
        %vm3636 = vcmp.lt.s32.totalorder %v3218, 0
        %v3637 = vand.u32 %v3218, 2139095040
        %v3638 = vshrl.u32 %v3637, 23
        %v3639 = vsub.s32 %v3638, 127
        %v3640 = vand.u32 2147483647, %v3218
        %v3641 = vand.u32 %v3640, 8388607
        %v3642 = vor.u32 %v3641, 8388608
        %v3643 = vsub.s32 0, %v3642
        %v3644 = vadd.s32 %v3639, 1
        %vm3645 = vcmp.gt.s32.totalorder %v3644, 0
        %v3646 = vsel %vm3645, %v3644, 0
        %v3647 = vshrl.u32 %v3646, 5
        %v3648 = vand.u32 %v3646, 31
        %v3649 = vsub.s32 32, %v3648
        %v3650 = vshrl.u32 683565275, %v3649
        %v3651 = vshll.u32 683565275, %v3648
        %v3652 = vshrl.u32 2475754826, %v3649
        %v3653 = vor.u32 %v3651, %v3652
        %v3654 = vshll.u32 2475754826, %v3648
        %v3655 = vshrl.u32 2131351028, %v3649
        %v3656 = vor.u32 %v3654, %v3655
        %v3657 = vshll.u32 2131351028, %v3648
        %v3658 = vshrl.u32 2102212464, %v3649
        %v3659 = vor.u32 %v3657, %v3658
        %v3660 = vshll.u32 2102212464, %v3648
        %v3661 = vshrl.u32 920167782, %v3649
        %v3662 = vor.u32 %v3660, %v3661
        %v3663 = vshll.u32 920167782, %v3648
        %v3664 = vshrl.u32 1326507024, %v3649
        %v3665 = vor.u32 %v3663, %v3664
        %vm3666 = vcmp.lt.s32.totalorder %v3647, 1
        %vm3667 = vcmp.lt.s32.totalorder %v3647, 2
        %vm3668 = vcmp.lt.s32.totalorder %v3647, 3
        %vm3669 = vcmp.lt.s32.totalorder %v3647, 4
        %v3670 = vsel %vm3666, %v3650, %v3653
        %v3671 = vsel %vm3669, %v3659, 2102212464
        %v3672 = vsel %vm3668, %v3656, %v3671
        %v3673 = vsel %vm3667, %v3670, %v3672
        %v3674 = vsel %vm3666, %v3653, %v3656
        %v3675 = vsel %vm3669, %v3662, 920167782
        %v3676 = vsel %vm3668, %v3659, %v3675
        %v3677 = vsel %vm3667, %v3674, %v3676
        %v3678 = vsel %vm3666, %v3656, %v3659
        %v3679 = vsel %vm3669, %v3665, 1326507024
        %v3680 = vsel %vm3668, %v3662, %v3679
        %v3681 = vsel %vm3667, %v3678, %v3680
        %v3682 = vshll.u32 %v3642, 8
        %v3683 = vand.u32 %v3682, 65535
        %v3684 = vshrl.u32 %v3682, 16
        %v3685 = vand.u32 %v3681, 65535
        %v3686 = vshrl.u32 %v3681, 16
        %v3687 = vmul.u32 %v3683, %v3685
        %v3688 = vmul.u32 %v3683, %v3686
        %v3689 = vmul.u32 %v3684, %v3685
        %v3690 = vmul.u32 %v3684, %v3686
        %v3691 = vshll.u32 %v3688, 16
        %v3692 = vshrl.u32 %v3688, 16
        %v3693 = vshll.u32 %v3689, 16
        %v3694 = vshrl.u32 %v3689, 16
        %vm3695 = vc.u32 %v3687, %v3691
        %v3696 = vsel %vm3695, 1, 0
        %v3697 = vadd.s32 %v3687, %v3691
        %v3698 = vadd.s32 %v3690, %v3696
        %vm3699 = vc.u32 %v3697, %v3693
        %v3700 = vsel %vm3699, 1, 0
        %v3701 = vadd.s32 %v3697, %v3693
        %v3702 = vadd.s32 %v3698, %v3700
        %v3703 = vadd.s32 %v3702, %v3692
        %v3704 = vadd.s32 %v3703, %v3694
        %v3705 = vand.u32 %v3682, 65535
        %v3706 = vshrl.u32 %v3682, 16
        %v3707 = vand.u32 %v3677, 65535
        %v3708 = vshrl.u32 %v3677, 16
        %v3709 = vmul.u32 %v3705, %v3707
        %v3710 = vmul.u32 %v3705, %v3708
        %v3711 = vmul.u32 %v3706, %v3707
        %v3712 = vmul.u32 %v3706, %v3708
        %v3713 = vshll.u32 %v3710, 16
        %v3714 = vshrl.u32 %v3710, 16
        %v3715 = vshll.u32 %v3711, 16
        %v3716 = vshrl.u32 %v3711, 16
        %vm3717 = vc.u32 %v3709, %v3713
        %v3718 = vsel %vm3717, 1, 0
        %v3719 = vadd.s32 %v3709, %v3713
        %v3720 = vadd.s32 %v3712, %v3718
        %vm3721 = vc.u32 %v3719, %v3715
        %v3722 = vsel %vm3721, 1, 0
        %v3723 = vadd.s32 %v3719, %v3715
        %v3724 = vadd.s32 %v3720, %v3722
        %v3725 = vadd.s32 %v3724, %v3714
        %v3726 = vadd.s32 %v3725, %v3716
        %v3727 = vmul.u32 %v3682, %v3673
        %v3728 = vadd.s32 %v3704, %v3723
        %vm3729 = vc.u32 %v3704, %v3723
        %v3730 = vadd.s32 %v3726, 1
        %v3731 = vsel %vm3729, %v3730, %v3726
        %v3732 = vadd.s32 %v3727, %v3731
        %v3733 = vadd.s32 %v3732, 536870912
        %v3734 = vshrl.u32 %v3733, 30
        %v3735 = vshll.u32 %v3734, 30
        %v3736 = vsub.s32 %v3732, %v3735
        %vm3737 = vcmp.lt.s32.totalorder %v3736, 0
        %v3738 = vsub.s32 0, %v3736
        %v3739 = vsel %vm3737, %v3738, %v3736
        %v3740 = vclz %v3739
        %v3741 = vsub.s32 %v3740, 2
        %vm3742 = vcmp.gt.s32.totalorder 0, %v3741
        %v3743 = vsel %vm3742, 0, %v3741
        %v3744 = vsub.s32 32, %v3743
        %v3745 = vshll.u32 %v3736, %v3743
        %v3746 = vshrl.u32 %v3728, %v3744
        %v3747 = vor.u32 %v3745, %v3746
        %v3748 = vsub.s32 4294967266, %v3743
        %v3749 = vadd.s32 %v3748, 127
        %v3750 = vshll.u32 %v3749, 23
        %v3751 = vor.u32 4788187, %v3750
        %v3752 = vand.u32 2147483647, %v3751
        %v3754 = vcvt.s32.f32 %v3747
        %v3755 = vmul.f32 %v3754, %v3752
        %v3756 = vxor.u32 %v3755, 2147483648
        %v3757 = vsel %vm3636, %v3756, %v3755
        %v3758 = vsub.s32 4, %v3734
        %v3759 = vsel %vm3636, %v3758, %v3734
        %v3760 = vsel %vm3635, %v3218, %v3757
        %v3761 = vsel %vm3635, 0, %v3759
        %v3762 = vmul.f32 %v3760, %v3760
        %v3763 = vmul.f32 %v3762, -0.001358992
        %v3764 = vadd.f32 %v3763, 0.041655596
        %v3765 = vmul.f32 %v3762, %v3764
        %v3766 = vadd.f32 %v3765, -0.4999988
        %v3767 = vmul.f32 %v3762, %v3766
        %v3768 = vadd.f32 1.0, %v3767
        %v3769 = vmul.f32 %v3760, %v3760
        %v3770 = vmul.f32 %v3769, -0.00019511016
        %v3771 = vadd.f32 %v3770, 0.008332121
        %v3772 = vmul.f32 %v3769, %v3771
        %v3773 = vadd.f32 %v3772, -0.16666654
        %v3774 = vmul.f32 %v3769, %v3773
        %v3775 = vadd.f32 %v3774, 1.0
        %v3776 = vmul.f32 %v3775, %v3760
        %vm3777 = vweird.f32 %v3218
        %v3778 = vadd.s32 %v3761, 3
        %v3779 = vand.u32 %v3778, 3
        %vm3780 = vcmp.lt.s32.totalorder %v3779, 2
        %vm3781 = vcmp.eq.s32.totalorder %v3779, 0
        %v3782 = vxor.u32 %v3776, 2147483648
        %v3783 = vsel %vm3781, %v3768, %v3782
        %vm3784 = vcmp.eq.s32.totalorder %v3779, 2
        %v3785 = vxor.u32 %v3768, 2147483648
        %v3786 = vsel %vm3784, %v3785, %v3776
        %v3787 = vsel %vm3780, %v3783, %v3786
        %v3788 = vsel %vm3777, nan, %v3787
        %v3789 = vand.u32 2147483647, %v3221
        %vm3790 = vcmp.le.f32.partialorder %v3789, 0.7853982
        %vm3791 = vcmp.lt.s32.totalorder %v3221, 0
        %v3792 = vand.u32 %v3221, 2139095040
        %v3793 = vshrl.u32 %v3792, 23
        %v3794 = vsub.s32 %v3793, 127
        %v3795 = vand.u32 2147483647, %v3221
        %v3796 = vand.u32 %v3795, 8388607
        %v3797 = vor.u32 %v3796, 8388608
        %v3798 = vsub.s32 0, %v3797
        %v3799 = vadd.s32 %v3794, 1
        %vm3800 = vcmp.gt.s32.totalorder %v3799, 0
        %v3801 = vsel %vm3800, %v3799, 0
        %v3802 = vshrl.u32 %v3801, 5
        %v3803 = vand.u32 %v3801, 31
        %v3804 = vsub.s32 32, %v3803
        %v3805 = vshrl.u32 683565275, %v3804
        %v3806 = vshll.u32 683565275, %v3803
        %v3807 = vshrl.u32 2475754826, %v3804
        %v3808 = vor.u32 %v3806, %v3807
        %v3809 = vshll.u32 2475754826, %v3803
        %v3810 = vshrl.u32 2131351028, %v3804
        %v3811 = vor.u32 %v3809, %v3810
        %v3812 = vshll.u32 2131351028, %v3803
        %v3813 = vshrl.u32 2102212464, %v3804
        %v3814 = vor.u32 %v3812, %v3813
        %v3815 = vshll.u32 2102212464, %v3803
        %v3816 = vshrl.u32 920167782, %v3804
        %v3817 = vor.u32 %v3815, %v3816
        %v3818 = vshll.u32 920167782, %v3803
        %v3819 = vshrl.u32 1326507024, %v3804
        %v3820 = vor.u32 %v3818, %v3819
        %vm3821 = vcmp.lt.s32.totalorder %v3802, 1
        %vm3822 = vcmp.lt.s32.totalorder %v3802, 2
        %vm3823 = vcmp.lt.s32.totalorder %v3802, 3
        %vm3824 = vcmp.lt.s32.totalorder %v3802, 4
        %v3825 = vsel %vm3821, %v3805, %v3808
        %v3826 = vsel %vm3824, %v3814, 2102212464
        %v3827 = vsel %vm3823, %v3811, %v3826
        %v3828 = vsel %vm3822, %v3825, %v3827
        %v3829 = vsel %vm3821, %v3808, %v3811
        %v3830 = vsel %vm3824, %v3817, 920167782
        %v3831 = vsel %vm3823, %v3814, %v3830
        %v3832 = vsel %vm3822, %v3829, %v3831
        %v3833 = vsel %vm3821, %v3811, %v3814
        %v3834 = vsel %vm3824, %v3820, 1326507024
        %v3835 = vsel %vm3823, %v3817, %v3834
        %v3836 = vsel %vm3822, %v3833, %v3835
        %v3837 = vshll.u32 %v3797, 8
        %v3838 = vand.u32 %v3837, 65535
        %v3839 = vshrl.u32 %v3837, 16
        %v3840 = vand.u32 %v3836, 65535
        %v3841 = vshrl.u32 %v3836, 16
        %v3842 = vmul.u32 %v3838, %v3840
        %v3843 = vmul.u32 %v3838, %v3841
        %v3844 = vmul.u32 %v3839, %v3840
        %v3845 = vmul.u32 %v3839, %v3841
        %v3846 = vshll.u32 %v3843, 16
        %v3847 = vshrl.u32 %v3843, 16
        %v3848 = vshll.u32 %v3844, 16
        %v3849 = vshrl.u32 %v3844, 16
        %vm3850 = vc.u32 %v3842, %v3846
        %v3851 = vsel %vm3850, 1, 0
        %v3852 = vadd.s32 %v3842, %v3846
        %v3853 = vadd.s32 %v3845, %v3851
        %vm3854 = vc.u32 %v3852, %v3848
        %v3855 = vsel %vm3854, 1, 0
        %v3856 = vadd.s32 %v3852, %v3848
        %v3857 = vadd.s32 %v3853, %v3855
        %v3858 = vadd.s32 %v3857, %v3847
        %v3859 = vadd.s32 %v3858, %v3849
        %v3860 = vand.u32 %v3837, 65535
        %v3861 = vshrl.u32 %v3837, 16
        %v3862 = vand.u32 %v3832, 65535
        %v3863 = vshrl.u32 %v3832, 16
        %v3864 = vmul.u32 %v3860, %v3862
        %v3865 = vmul.u32 %v3860, %v3863
        %v3866 = vmul.u32 %v3861, %v3862
        %v3867 = vmul.u32 %v3861, %v3863
        %v3868 = vshll.u32 %v3865, 16
        %v3869 = vshrl.u32 %v3865, 16
        %v3870 = vshll.u32 %v3866, 16
        %v3871 = vshrl.u32 %v3866, 16
        %vm3872 = vc.u32 %v3864, %v3868
        %v3873 = vsel %vm3872, 1, 0
        %v3874 = vadd.s32 %v3864, %v3868
        %v3875 = vadd.s32 %v3867, %v3873
        %vm3876 = vc.u32 %v3874, %v3870
        %v3877 = vsel %vm3876, 1, 0
        %v3878 = vadd.s32 %v3874, %v3870
        %v3879 = vadd.s32 %v3875, %v3877
        %v3880 = vadd.s32 %v3879, %v3869
        %v3881 = vadd.s32 %v3880, %v3871
        %v3882 = vmul.u32 %v3837, %v3828
        %v3883 = vadd.s32 %v3859, %v3878
        %vm3884 = vc.u32 %v3859, %v3878
        %v3885 = vadd.s32 %v3881, 1
        %v3886 = vsel %vm3884, %v3885, %v3881
        %v3887 = vadd.s32 %v3882, %v3886
        %v3888 = vadd.s32 %v3887, 536870912
        %v3889 = vshrl.u32 %v3888, 30
        %v3890 = vshll.u32 %v3889, 30
        %v3891 = vsub.s32 %v3887, %v3890
        %vm3892 = vcmp.lt.s32.totalorder %v3891, 0
        %v3893 = vsub.s32 0, %v3891
        %v3894 = vsel %vm3892, %v3893, %v3891
        %v3895 = vclz %v3894
        %v3896 = vsub.s32 %v3895, 2
        %vm3897 = vcmp.gt.s32.totalorder 0, %v3896
        %v3898 = vsel %vm3897, 0, %v3896
        %v3899 = vsub.s32 32, %v3898
        %v3900 = vshll.u32 %v3891, %v3898
        %v3901 = vshrl.u32 %v3883, %v3899
        %v3902 = vor.u32 %v3900, %v3901
        %v3903 = vsub.s32 4294967266, %v3898
        %v3904 = vadd.s32 %v3903, 127
        %v3905 = vshll.u32 %v3904, 23
        %v3906 = vor.u32 4788187, %v3905
        %v3907 = vand.u32 2147483647, %v3906
        %v3909 = vcvt.s32.f32 %v3902
        %v3910 = vmul.f32 %v3909, %v3907
        %v3911 = vxor.u32 %v3910, 2147483648
        %v3912 = vsel %vm3791, %v3911, %v3910
        %v3913 = vsub.s32 4, %v3889
        %v3914 = vsel %vm3791, %v3913, %v3889
        %v3915 = vsel %vm3790, %v3221, %v3912
        %v3916 = vsel %vm3790, 0, %v3914
        %v3917 = vmul.f32 %v3915, %v3915
        %v3918 = vmul.f32 %v3917, -0.001358992
        %v3919 = vadd.f32 %v3918, 0.041655596
        %v3920 = vmul.f32 %v3917, %v3919
        %v3921 = vadd.f32 %v3920, -0.4999988
        %v3922 = vmul.f32 %v3917, %v3921
        %v3923 = vadd.f32 1.0, %v3922
        %v3924 = vmul.f32 %v3915, %v3915
        %v3925 = vmul.f32 %v3924, -0.00019511016
        %v3926 = vadd.f32 %v3925, 0.008332121
        %v3927 = vmul.f32 %v3924, %v3926
        %v3928 = vadd.f32 %v3927, -0.16666654
        %v3929 = vmul.f32 %v3924, %v3928
        %v3930 = vadd.f32 %v3929, 1.0
        %v3931 = vmul.f32 %v3930, %v3915
        %vm3932 = vweird.f32 %v3221
        %v3933 = vadd.s32 %v3916, 3
        %v3934 = vand.u32 %v3933, 3
        %vm3935 = vcmp.lt.s32.totalorder %v3934, 2
        %vm3936 = vcmp.eq.s32.totalorder %v3934, 0
        %v3937 = vxor.u32 %v3931, 2147483648
        %v3938 = vsel %vm3936, %v3923, %v3937
        %vm3939 = vcmp.eq.s32.totalorder %v3934, 2
        %v3940 = vxor.u32 %v3923, 2147483648
        %v3941 = vsel %vm3939, %v3940, %v3931
        %v3942 = vsel %vm3935, %v3938, %v3941
        %v3943 = vsel %vm3932, nan, %v3942
        %v3944 = vand.u32 2147483647, %v3224
        %vm3945 = vcmp.le.f32.partialorder %v3944, 0.7853982
        %vm3946 = vcmp.lt.s32.totalorder %v3224, 0
        %v3947 = vand.u32 %v3224, 2139095040
        %v3948 = vshrl.u32 %v3947, 23
        %v3949 = vsub.s32 %v3948, 127
        %v3950 = vand.u32 2147483647, %v3224
        %v3951 = vand.u32 %v3950, 8388607
        %v3952 = vor.u32 %v3951, 8388608
        %v3953 = vsub.s32 0, %v3952
        %v3954 = vadd.s32 %v3949, 1
        %vm3955 = vcmp.gt.s32.totalorder %v3954, 0
        %v3956 = vsel %vm3955, %v3954, 0
        %v3957 = vshrl.u32 %v3956, 5
        %v3958 = vand.u32 %v3956, 31
        %v3959 = vsub.s32 32, %v3958
        %v3960 = vshrl.u32 683565275, %v3959
        %v3961 = vshll.u32 683565275, %v3958
        %v3962 = vshrl.u32 2475754826, %v3959
        %v3963 = vor.u32 %v3961, %v3962
        %v3964 = vshll.u32 2475754826, %v3958
        %v3965 = vshrl.u32 2131351028, %v3959
        %v3966 = vor.u32 %v3964, %v3965
        %v3967 = vshll.u32 2131351028, %v3958
        %v3968 = vshrl.u32 2102212464, %v3959
        %v3969 = vor.u32 %v3967, %v3968
        %v3970 = vshll.u32 2102212464, %v3958
        %v3971 = vshrl.u32 920167782, %v3959
        %v3972 = vor.u32 %v3970, %v3971
        %v3973 = vshll.u32 920167782, %v3958
        %v3974 = vshrl.u32 1326507024, %v3959
        %v3975 = vor.u32 %v3973, %v3974
        %vm3976 = vcmp.lt.s32.totalorder %v3957, 1
        %vm3977 = vcmp.lt.s32.totalorder %v3957, 2
        %vm3978 = vcmp.lt.s32.totalorder %v3957, 3
        %vm3979 = vcmp.lt.s32.totalorder %v3957, 4
        %v3980 = vsel %vm3976, %v3960, %v3963
        %v3981 = vsel %vm3979, %v3969, 2102212464
        %v3982 = vsel %vm3978, %v3966, %v3981
        %v3983 = vsel %vm3977, %v3980, %v3982
        %v3984 = vsel %vm3976, %v3963, %v3966
        %v3985 = vsel %vm3979, %v3972, 920167782
        %v3986 = vsel %vm3978, %v3969, %v3985
        %v3987 = vsel %vm3977, %v3984, %v3986
        %v3988 = vsel %vm3976, %v3966, %v3969
        %v3989 = vsel %vm3979, %v3975, 1326507024
        %v3990 = vsel %vm3978, %v3972, %v3989
        %v3991 = vsel %vm3977, %v3988, %v3990
        %v3992 = vshll.u32 %v3952, 8
        %v3993 = vand.u32 %v3992, 65535
        %v3994 = vshrl.u32 %v3992, 16
        %v3995 = vand.u32 %v3991, 65535
        %v3996 = vshrl.u32 %v3991, 16
        %v3997 = vmul.u32 %v3993, %v3995
        %v3998 = vmul.u32 %v3993, %v3996
        %v3999 = vmul.u32 %v3994, %v3995
        %v4000 = vmul.u32 %v3994, %v3996
        %v4001 = vshll.u32 %v3998, 16
        %v4002 = vshrl.u32 %v3998, 16
        %v4003 = vshll.u32 %v3999, 16
        %v4004 = vshrl.u32 %v3999, 16
        %vm4005 = vc.u32 %v3997, %v4001
        %v4006 = vsel %vm4005, 1, 0
        %v4007 = vadd.s32 %v3997, %v4001
        %v4008 = vadd.s32 %v4000, %v4006
        %vm4009 = vc.u32 %v4007, %v4003
        %v4010 = vsel %vm4009, 1, 0
        %v4011 = vadd.s32 %v4007, %v4003
        %v4012 = vadd.s32 %v4008, %v4010
        %v4013 = vadd.s32 %v4012, %v4002
        %v4014 = vadd.s32 %v4013, %v4004
        %v4015 = vand.u32 %v3992, 65535
        %v4016 = vshrl.u32 %v3992, 16
        %v4017 = vand.u32 %v3987, 65535
        %v4018 = vshrl.u32 %v3987, 16
        %v4019 = vmul.u32 %v4015, %v4017
        %v4020 = vmul.u32 %v4015, %v4018
        %v4021 = vmul.u32 %v4016, %v4017
        %v4022 = vmul.u32 %v4016, %v4018
        %v4023 = vshll.u32 %v4020, 16
        %v4024 = vshrl.u32 %v4020, 16
        %v4025 = vshll.u32 %v4021, 16
        %v4026 = vshrl.u32 %v4021, 16
        %vm4027 = vc.u32 %v4019, %v4023
        %v4028 = vsel %vm4027, 1, 0
        %v4029 = vadd.s32 %v4019, %v4023
        %v4030 = vadd.s32 %v4022, %v4028
        %vm4031 = vc.u32 %v4029, %v4025
        %v4032 = vsel %vm4031, 1, 0
        %v4033 = vadd.s32 %v4029, %v4025
        %v4034 = vadd.s32 %v4030, %v4032
        %v4035 = vadd.s32 %v4034, %v4024
        %v4036 = vadd.s32 %v4035, %v4026
        %v4037 = vmul.u32 %v3992, %v3983
        %v4038 = vadd.s32 %v4014, %v4033
        %vm4039 = vc.u32 %v4014, %v4033
        %v4040 = vadd.s32 %v4036, 1
        %v4041 = vsel %vm4039, %v4040, %v4036
        %v4042 = vadd.s32 %v4037, %v4041
        %v4043 = vadd.s32 %v4042, 536870912
        %v4044 = vshrl.u32 %v4043, 30
        %v4045 = vshll.u32 %v4044, 30
        %v4046 = vsub.s32 %v4042, %v4045
        %vm4047 = vcmp.lt.s32.totalorder %v4046, 0
        %v4048 = vsub.s32 0, %v4046
        %v4049 = vsel %vm4047, %v4048, %v4046
        %v4050 = vclz %v4049
        %v4051 = vsub.s32 %v4050, 2
        %vm4052 = vcmp.gt.s32.totalorder 0, %v4051
        %v4053 = vsel %vm4052, 0, %v4051
        %v4054 = vsub.s32 32, %v4053
        %v4055 = vshll.u32 %v4046, %v4053
        %v4056 = vshrl.u32 %v4038, %v4054
        %v4057 = vor.u32 %v4055, %v4056
        %v4058 = vsub.s32 4294967266, %v4053
        %v4059 = vadd.s32 %v4058, 127
        %v4060 = vshll.u32 %v4059, 23
        %v4061 = vor.u32 4788187, %v4060
        %v4062 = vand.u32 2147483647, %v4061
        %v4064 = vcvt.s32.f32 %v4057
        %v4065 = vmul.f32 %v4064, %v4062
        %v4066 = vxor.u32 %v4065, 2147483648
        %v4067 = vsel %vm3946, %v4066, %v4065
        %v4068 = vsub.s32 4, %v4044
        %v4069 = vsel %vm3946, %v4068, %v4044
        %v4070 = vsel %vm3945, %v3224, %v4067
        %v4071 = vsel %vm3945, 0, %v4069
        %v4072 = vmul.f32 %v4070, %v4070
        %v4073 = vmul.f32 %v4072, -0.001358992
        %v4074 = vadd.f32 %v4073, 0.041655596
        %v4075 = vmul.f32 %v4072, %v4074
        %v4076 = vadd.f32 %v4075, -0.4999988
        %v4077 = vmul.f32 %v4072, %v4076
        %v4078 = vadd.f32 1.0, %v4077
        %v4079 = vmul.f32 %v4070, %v4070
        %v4080 = vmul.f32 %v4079, -0.00019511016
        %v4081 = vadd.f32 %v4080, 0.008332121
        %v4082 = vmul.f32 %v4079, %v4081
        %v4083 = vadd.f32 %v4082, -0.16666654
        %v4084 = vmul.f32 %v4079, %v4083
        %v4085 = vadd.f32 %v4084, 1.0
        %v4086 = vmul.f32 %v4085, %v4070
        %vm4087 = vweird.f32 %v3224
        %v4088 = vadd.s32 %v4071, 3
        %v4089 = vand.u32 %v4088, 3
        %vm4090 = vcmp.lt.s32.totalorder %v4089, 2
        %vm4091 = vcmp.eq.s32.totalorder %v4089, 0
        %v4092 = vxor.u32 %v4086, 2147483648
        %v4093 = vsel %vm4091, %v4078, %v4092
        %vm4094 = vcmp.eq.s32.totalorder %v4089, 2
        %v4095 = vxor.u32 %v4078, 2147483648
        %v4096 = vsel %vm4094, %v4095, %v4086
        %v4097 = vsel %vm4090, %v4093, %v4096
        %v4098 = vsel %vm4087, nan, %v4097
        %v4099 = vand.u32 2147483647, %v3227
        %vm4100 = vcmp.le.f32.partialorder %v4099, 0.7853982
        %vm4101 = vcmp.lt.s32.totalorder %v3227, 0
        %v4102 = vand.u32 %v3227, 2139095040
        %v4103 = vshrl.u32 %v4102, 23
        %v4104 = vsub.s32 %v4103, 127
        %v4105 = vand.u32 2147483647, %v3227
        %v4106 = vand.u32 %v4105, 8388607
        %v4107 = vor.u32 %v4106, 8388608
        %v4108 = vsub.s32 0, %v4107
        %v4109 = vadd.s32 %v4104, 1
        %vm4110 = vcmp.gt.s32.totalorder %v4109, 0
        %v4111 = vsel %vm4110, %v4109, 0
        %v4112 = vshrl.u32 %v4111, 5
        %v4113 = vand.u32 %v4111, 31
        %v4114 = vsub.s32 32, %v4113
        %v4115 = vshrl.u32 683565275, %v4114
        %v4116 = vshll.u32 683565275, %v4113
        %v4117 = vshrl.u32 2475754826, %v4114
        %v4118 = vor.u32 %v4116, %v4117
        %v4119 = vshll.u32 2475754826, %v4113
        %v4120 = vshrl.u32 2131351028, %v4114
        %v4121 = vor.u32 %v4119, %v4120
        %v4122 = vshll.u32 2131351028, %v4113
        %v4123 = vshrl.u32 2102212464, %v4114
        %v4124 = vor.u32 %v4122, %v4123
        %v4125 = vshll.u32 2102212464, %v4113
        %v4126 = vshrl.u32 920167782, %v4114
        %v4127 = vor.u32 %v4125, %v4126
        %v4128 = vshll.u32 920167782, %v4113
        %v4129 = vshrl.u32 1326507024, %v4114
        %v4130 = vor.u32 %v4128, %v4129
        %vm4131 = vcmp.lt.s32.totalorder %v4112, 1
        %vm4132 = vcmp.lt.s32.totalorder %v4112, 2
        %vm4133 = vcmp.lt.s32.totalorder %v4112, 3
        %vm4134 = vcmp.lt.s32.totalorder %v4112, 4
        %v4135 = vsel %vm4131, %v4115, %v4118
        %v4136 = vsel %vm4134, %v4124, 2102212464
        %v4137 = vsel %vm4133, %v4121, %v4136
        %v4138 = vsel %vm4132, %v4135, %v4137
        %v4139 = vsel %vm4131, %v4118, %v4121
        %v4140 = vsel %vm4134, %v4127, 920167782
        %v4141 = vsel %vm4133, %v4124, %v4140
        %v4142 = vsel %vm4132, %v4139, %v4141
        %v4143 = vsel %vm4131, %v4121, %v4124
        %v4144 = vsel %vm4134, %v4130, 1326507024
        %v4145 = vsel %vm4133, %v4127, %v4144
        %v4146 = vsel %vm4132, %v4143, %v4145
        %v4147 = vshll.u32 %v4107, 8
        %v4148 = vand.u32 %v4147, 65535
        %v4149 = vshrl.u32 %v4147, 16
        %v4150 = vand.u32 %v4146, 65535
        %v4151 = vshrl.u32 %v4146, 16
        %v4152 = vmul.u32 %v4148, %v4150
        %v4153 = vmul.u32 %v4148, %v4151
        %v4154 = vmul.u32 %v4149, %v4150
        %v4155 = vmul.u32 %v4149, %v4151
        %v4156 = vshll.u32 %v4153, 16
        %v4157 = vshrl.u32 %v4153, 16
        %v4158 = vshll.u32 %v4154, 16
        %v4159 = vshrl.u32 %v4154, 16
        %vm4160 = vc.u32 %v4152, %v4156
        %v4161 = vsel %vm4160, 1, 0
        %v4162 = vadd.s32 %v4152, %v4156
        %v4163 = vadd.s32 %v4155, %v4161
        %vm4164 = vc.u32 %v4162, %v4158
        %v4165 = vsel %vm4164, 1, 0
        %v4166 = vadd.s32 %v4162, %v4158
        %v4167 = vadd.s32 %v4163, %v4165
        %v4168 = vadd.s32 %v4167, %v4157
        %v4169 = vadd.s32 %v4168, %v4159
        %v4170 = vand.u32 %v4147, 65535
        %v4171 = vshrl.u32 %v4147, 16
        %v4172 = vand.u32 %v4142, 65535
        %v4173 = vshrl.u32 %v4142, 16
        %v4174 = vmul.u32 %v4170, %v4172
        %v4175 = vmul.u32 %v4170, %v4173
        %v4176 = vmul.u32 %v4171, %v4172
        %v4177 = vmul.u32 %v4171, %v4173
        %v4178 = vshll.u32 %v4175, 16
        %v4179 = vshrl.u32 %v4175, 16
        %v4180 = vshll.u32 %v4176, 16
        %v4181 = vshrl.u32 %v4176, 16
        %vm4182 = vc.u32 %v4174, %v4178
        %v4183 = vsel %vm4182, 1, 0
        %v4184 = vadd.s32 %v4174, %v4178
        %v4185 = vadd.s32 %v4177, %v4183
        %vm4186 = vc.u32 %v4184, %v4180
        %v4187 = vsel %vm4186, 1, 0
        %v4188 = vadd.s32 %v4184, %v4180
        %v4189 = vadd.s32 %v4185, %v4187
        %v4190 = vadd.s32 %v4189, %v4179
        %v4191 = vadd.s32 %v4190, %v4181
        %v4192 = vmul.u32 %v4147, %v4138
        %v4193 = vadd.s32 %v4169, %v4188
        %vm4194 = vc.u32 %v4169, %v4188
        %v4195 = vadd.s32 %v4191, 1
        %v4196 = vsel %vm4194, %v4195, %v4191
        %v4197 = vadd.s32 %v4192, %v4196
        %v4198 = vadd.s32 %v4197, 536870912
        %v4199 = vshrl.u32 %v4198, 30
        %v4200 = vshll.u32 %v4199, 30
        %v4201 = vsub.s32 %v4197, %v4200
        %vm4202 = vcmp.lt.s32.totalorder %v4201, 0
        %v4203 = vsub.s32 0, %v4201
        %v4204 = vsel %vm4202, %v4203, %v4201
        %v4205 = vclz %v4204
        %v4206 = vsub.s32 %v4205, 2
        %vm4207 = vcmp.gt.s32.totalorder 0, %v4206
        %v4208 = vsel %vm4207, 0, %v4206
        %v4209 = vsub.s32 32, %v4208
        %v4210 = vshll.u32 %v4201, %v4208
        %v4211 = vshrl.u32 %v4193, %v4209
        %v4212 = vor.u32 %v4210, %v4211
        %v4213 = vsub.s32 4294967266, %v4208
        %v4214 = vadd.s32 %v4213, 127
        %v4215 = vshll.u32 %v4214, 23
        %v4216 = vor.u32 4788187, %v4215
        %v4217 = vand.u32 2147483647, %v4216
        %v4219 = vcvt.s32.f32 %v4212
        %v4220 = vmul.f32 %v4219, %v4217
        %v4221 = vxor.u32 %v4220, 2147483648
        %v4222 = vsel %vm4101, %v4221, %v4220
        %v4223 = vsub.s32 4, %v4199
        %v4224 = vsel %vm4101, %v4223, %v4199
        %v4225 = vsel %vm4100, %v3227, %v4222
        %v4226 = vsel %vm4100, 0, %v4224
        %v4227 = vmul.f32 %v4225, %v4225
        %v4228 = vmul.f32 %v4227, -0.001358992
        %v4229 = vadd.f32 %v4228, 0.041655596
        %v4230 = vmul.f32 %v4227, %v4229
        %v4231 = vadd.f32 %v4230, -0.4999988
        %v4232 = vmul.f32 %v4227, %v4231
        %v4233 = vadd.f32 1.0, %v4232
        %v4234 = vmul.f32 %v4225, %v4225
        %v4235 = vmul.f32 %v4234, -0.00019511016
        %v4236 = vadd.f32 %v4235, 0.008332121
        %v4237 = vmul.f32 %v4234, %v4236
        %v4238 = vadd.f32 %v4237, -0.16666654
        %v4239 = vmul.f32 %v4234, %v4238
        %v4240 = vadd.f32 %v4239, 1.0
        %v4241 = vmul.f32 %v4240, %v4225
        %vm4242 = vweird.f32 %v3227
        %v4243 = vadd.s32 %v4226, 3
        %v4244 = vand.u32 %v4243, 3
        %vm4245 = vcmp.lt.s32.totalorder %v4244, 2
        %vm4246 = vcmp.eq.s32.totalorder %v4244, 0
        %v4247 = vxor.u32 %v4241, 2147483648
        %v4248 = vsel %vm4246, %v4233, %v4247
        %vm4249 = vcmp.eq.s32.totalorder %v4244, 2
        %v4250 = vxor.u32 %v4233, 2147483648
        %v4251 = vsel %vm4249, %v4250, %v4241
        %v4252 = vsel %vm4245, %v4248, %v4251
        %v4253 = vsel %vm4242, nan, %v4252
        %v4254 = vand.u32 2147483647, %v3230
        %vm4255 = vcmp.le.f32.partialorder %v4254, 0.7853982
        %vm4256 = vcmp.lt.s32.totalorder %v3230, 0
        %v4257 = vand.u32 %v3230, 2139095040
        %v4258 = vshrl.u32 %v4257, 23
        %v4259 = vsub.s32 %v4258, 127
        %v4260 = vand.u32 2147483647, %v3230
        %v4261 = vand.u32 %v4260, 8388607
        %v4262 = vor.u32 %v4261, 8388608
        %v4263 = vsub.s32 0, %v4262
        %v4264 = vadd.s32 %v4259, 1
        %vm4265 = vcmp.gt.s32.totalorder %v4264, 0
        %v4266 = vsel %vm4265, %v4264, 0
        %v4267 = vshrl.u32 %v4266, 5
        %v4268 = vand.u32 %v4266, 31
        %v4269 = vsub.s32 32, %v4268
        %v4270 = vshrl.u32 683565275, %v4269
        %v4271 = vshll.u32 683565275, %v4268
        %v4272 = vshrl.u32 2475754826, %v4269
        %v4273 = vor.u32 %v4271, %v4272
        %v4274 = vshll.u32 2475754826, %v4268
        %v4275 = vshrl.u32 2131351028, %v4269
        %v4276 = vor.u32 %v4274, %v4275
        %v4277 = vshll.u32 2131351028, %v4268
        %v4278 = vshrl.u32 2102212464, %v4269
        %v4279 = vor.u32 %v4277, %v4278
        %v4280 = vshll.u32 2102212464, %v4268
        %v4281 = vshrl.u32 920167782, %v4269
        %v4282 = vor.u32 %v4280, %v4281
        %v4283 = vshll.u32 920167782, %v4268
        %v4284 = vshrl.u32 1326507024, %v4269
        %v4285 = vor.u32 %v4283, %v4284
        %vm4286 = vcmp.lt.s32.totalorder %v4267, 1
        %vm4287 = vcmp.lt.s32.totalorder %v4267, 2
        %vm4288 = vcmp.lt.s32.totalorder %v4267, 3
        %vm4289 = vcmp.lt.s32.totalorder %v4267, 4
        %v4290 = vsel %vm4286, %v4270, %v4273
        %v4291 = vsel %vm4289, %v4279, 2102212464
        %v4292 = vsel %vm4288, %v4276, %v4291
        %v4293 = vsel %vm4287, %v4290, %v4292
        %v4294 = vsel %vm4286, %v4273, %v4276
        %v4295 = vsel %vm4289, %v4282, 920167782
        %v4296 = vsel %vm4288, %v4279, %v4295
        %v4297 = vsel %vm4287, %v4294, %v4296
        %v4298 = vsel %vm4286, %v4276, %v4279
        %v4299 = vsel %vm4289, %v4285, 1326507024
        %v4300 = vsel %vm4288, %v4282, %v4299
        %v4301 = vsel %vm4287, %v4298, %v4300
        %v4302 = vshll.u32 %v4262, 8
        %v4303 = vand.u32 %v4302, 65535
        %v4304 = vshrl.u32 %v4302, 16
        %v4305 = vand.u32 %v4301, 65535
        %v4306 = vshrl.u32 %v4301, 16
        %v4307 = vmul.u32 %v4303, %v4305
        %v4308 = vmul.u32 %v4303, %v4306
        %v4309 = vmul.u32 %v4304, %v4305
        %v4310 = vmul.u32 %v4304, %v4306
        %v4311 = vshll.u32 %v4308, 16
        %v4312 = vshrl.u32 %v4308, 16
        %v4313 = vshll.u32 %v4309, 16
        %v4314 = vshrl.u32 %v4309, 16
        %vm4315 = vc.u32 %v4307, %v4311
        %v4316 = vsel %vm4315, 1, 0
        %v4317 = vadd.s32 %v4307, %v4311
        %v4318 = vadd.s32 %v4310, %v4316
        %vm4319 = vc.u32 %v4317, %v4313
        %v4320 = vsel %vm4319, 1, 0
        %v4321 = vadd.s32 %v4317, %v4313
        %v4322 = vadd.s32 %v4318, %v4320
        %v4323 = vadd.s32 %v4322, %v4312
        %v4324 = vadd.s32 %v4323, %v4314
        %v4325 = vand.u32 %v4302, 65535
        %v4326 = vshrl.u32 %v4302, 16
        %v4327 = vand.u32 %v4297, 65535
        %v4328 = vshrl.u32 %v4297, 16
        %v4329 = vmul.u32 %v4325, %v4327
        %v4330 = vmul.u32 %v4325, %v4328
        %v4331 = vmul.u32 %v4326, %v4327
        %v4332 = vmul.u32 %v4326, %v4328
        %v4333 = vshll.u32 %v4330, 16
        %v4334 = vshrl.u32 %v4330, 16
        %v4335 = vshll.u32 %v4331, 16
        %v4336 = vshrl.u32 %v4331, 16
        %vm4337 = vc.u32 %v4329, %v4333
        %v4338 = vsel %vm4337, 1, 0
        %v4339 = vadd.s32 %v4329, %v4333
        %v4340 = vadd.s32 %v4332, %v4338
        %vm4341 = vc.u32 %v4339, %v4335
        %v4342 = vsel %vm4341, 1, 0
        %v4343 = vadd.s32 %v4339, %v4335
        %v4344 = vadd.s32 %v4340, %v4342
        %v4345 = vadd.s32 %v4344, %v4334
        %v4346 = vadd.s32 %v4345, %v4336
        %v4347 = vmul.u32 %v4302, %v4293
        %v4348 = vadd.s32 %v4324, %v4343
        %vm4349 = vc.u32 %v4324, %v4343
        %v4350 = vadd.s32 %v4346, 1
        %v4351 = vsel %vm4349, %v4350, %v4346
        %v4352 = vadd.s32 %v4347, %v4351
        %v4353 = vadd.s32 %v4352, 536870912
        %v4354 = vshrl.u32 %v4353, 30
        %v4355 = vshll.u32 %v4354, 30
        %v4356 = vsub.s32 %v4352, %v4355
        %vm4357 = vcmp.lt.s32.totalorder %v4356, 0
        %v4358 = vsub.s32 0, %v4356
        %v4359 = vsel %vm4357, %v4358, %v4356
        %v4360 = vclz %v4359
        %v4361 = vsub.s32 %v4360, 2
        %vm4362 = vcmp.gt.s32.totalorder 0, %v4361
        %v4363 = vsel %vm4362, 0, %v4361
        %v4364 = vsub.s32 32, %v4363
        %v4365 = vshll.u32 %v4356, %v4363
        %v4366 = vshrl.u32 %v4348, %v4364
        %v4367 = vor.u32 %v4365, %v4366
        %v4368 = vsub.s32 4294967266, %v4363
        %v4369 = vadd.s32 %v4368, 127
        %v4370 = vshll.u32 %v4369, 23
        %v4371 = vor.u32 4788187, %v4370
        %v4372 = vand.u32 2147483647, %v4371
        %v4374 = vcvt.s32.f32 %v4367
        %v4375 = vmul.f32 %v4374, %v4372
        %v4376 = vxor.u32 %v4375, 2147483648
        %v4377 = vsel %vm4256, %v4376, %v4375
        %v4378 = vsub.s32 4, %v4354
        %v4379 = vsel %vm4256, %v4378, %v4354
        %v4380 = vsel %vm4255, %v3230, %v4377
        %v4381 = vsel %vm4255, 0, %v4379
        %v4382 = vmul.f32 %v4380, %v4380
        %v4383 = vmul.f32 %v4382, -0.001358992
        %v4384 = vadd.f32 %v4383, 0.041655596
        %v4385 = vmul.f32 %v4382, %v4384
        %v4386 = vadd.f32 %v4385, -0.4999988
        %v4387 = vmul.f32 %v4382, %v4386
        %v4388 = vadd.f32 1.0, %v4387
        %v4389 = vmul.f32 %v4380, %v4380
        %v4390 = vmul.f32 %v4389, -0.00019511016
        %v4391 = vadd.f32 %v4390, 0.008332121
        %v4392 = vmul.f32 %v4389, %v4391
        %v4393 = vadd.f32 %v4392, -0.16666654
        %v4394 = vmul.f32 %v4389, %v4393
        %v4395 = vadd.f32 %v4394, 1.0
        %v4396 = vmul.f32 %v4395, %v4380
        %vm4397 = vweird.f32 %v3230
        %v4398 = vadd.s32 %v4381, 3
        %v4399 = vand.u32 %v4398, 3
        %vm4400 = vcmp.lt.s32.totalorder %v4399, 2
        %vm4401 = vcmp.eq.s32.totalorder %v4399, 0
        %v4402 = vxor.u32 %v4396, 2147483648
        %v4403 = vsel %vm4401, %v4388, %v4402
        %vm4404 = vcmp.eq.s32.totalorder %v4399, 2
        %v4405 = vxor.u32 %v4388, 2147483648
        %v4406 = vsel %vm4404, %v4405, %v4396
        %v4407 = vsel %vm4400, %v4403, %v4406
        %v4408 = vsel %vm4397, nan, %v4407
        %v4409 = vand.u32 2147483647, %v3233
        %vm4410 = vcmp.le.f32.partialorder %v4409, 0.7853982
        %vm4411 = vcmp.lt.s32.totalorder %v3233, 0
        %v4412 = vand.u32 %v3233, 2139095040
        %v4413 = vshrl.u32 %v4412, 23
        %v4414 = vsub.s32 %v4413, 127
        %v4415 = vand.u32 2147483647, %v3233
        %v4416 = vand.u32 %v4415, 8388607
        %v4417 = vor.u32 %v4416, 8388608
        %v4418 = vsub.s32 0, %v4417
        %v4419 = vadd.s32 %v4414, 1
        %vm4420 = vcmp.gt.s32.totalorder %v4419, 0
        %v4421 = vsel %vm4420, %v4419, 0
        %v4422 = vshrl.u32 %v4421, 5
        %v4423 = vand.u32 %v4421, 31
        %v4424 = vsub.s32 32, %v4423
        %v4425 = vshrl.u32 683565275, %v4424
        %v4426 = vshll.u32 683565275, %v4423
        %v4427 = vshrl.u32 2475754826, %v4424
        %v4428 = vor.u32 %v4426, %v4427
        %v4429 = vshll.u32 2475754826, %v4423
        %v4430 = vshrl.u32 2131351028, %v4424
        %v4431 = vor.u32 %v4429, %v4430
        %v4432 = vshll.u32 2131351028, %v4423
        %v4433 = vshrl.u32 2102212464, %v4424
        %v4434 = vor.u32 %v4432, %v4433
        %v4435 = vshll.u32 2102212464, %v4423
        %v4436 = vshrl.u32 920167782, %v4424
        %v4437 = vor.u32 %v4435, %v4436
        %v4438 = vshll.u32 920167782, %v4423
        %v4439 = vshrl.u32 1326507024, %v4424
        %v4440 = vor.u32 %v4438, %v4439
        %vm4441 = vcmp.lt.s32.totalorder %v4422, 1
        %vm4442 = vcmp.lt.s32.totalorder %v4422, 2
        %vm4443 = vcmp.lt.s32.totalorder %v4422, 3
        %vm4444 = vcmp.lt.s32.totalorder %v4422, 4
        %v4445 = vsel %vm4441, %v4425, %v4428
        %v4446 = vsel %vm4444, %v4434, 2102212464
        %v4447 = vsel %vm4443, %v4431, %v4446
        %v4448 = vsel %vm4442, %v4445, %v4447
        %v4449 = vsel %vm4441, %v4428, %v4431
        %v4450 = vsel %vm4444, %v4437, 920167782
        %v4451 = vsel %vm4443, %v4434, %v4450
        %v4452 = vsel %vm4442, %v4449, %v4451
        %v4453 = vsel %vm4441, %v4431, %v4434
        %v4454 = vsel %vm4444, %v4440, 1326507024
        %v4455 = vsel %vm4443, %v4437, %v4454
        %v4456 = vsel %vm4442, %v4453, %v4455
        %v4457 = vshll.u32 %v4417, 8
        %v4458 = vand.u32 %v4457, 65535
        %v4459 = vshrl.u32 %v4457, 16
        %v4460 = vand.u32 %v4456, 65535
        %v4461 = vshrl.u32 %v4456, 16
        %v4462 = vmul.u32 %v4458, %v4460
        %v4463 = vmul.u32 %v4458, %v4461
        %v4464 = vmul.u32 %v4459, %v4460
        %v4465 = vmul.u32 %v4459, %v4461
        %v4466 = vshll.u32 %v4463, 16
        %v4467 = vshrl.u32 %v4463, 16
        %v4468 = vshll.u32 %v4464, 16
        %v4469 = vshrl.u32 %v4464, 16
        %vm4470 = vc.u32 %v4462, %v4466
        %v4471 = vsel %vm4470, 1, 0
        %v4472 = vadd.s32 %v4462, %v4466
        %v4473 = vadd.s32 %v4465, %v4471
        %vm4474 = vc.u32 %v4472, %v4468
        %v4475 = vsel %vm4474, 1, 0
        %v4476 = vadd.s32 %v4472, %v4468
        %v4477 = vadd.s32 %v4473, %v4475
        %v4478 = vadd.s32 %v4477, %v4467
        %v4479 = vadd.s32 %v4478, %v4469
        %v4480 = vand.u32 %v4457, 65535
        %v4481 = vshrl.u32 %v4457, 16
        %v4482 = vand.u32 %v4452, 65535
        %v4483 = vshrl.u32 %v4452, 16
        %v4484 = vmul.u32 %v4480, %v4482
        %v4485 = vmul.u32 %v4480, %v4483
        %v4486 = vmul.u32 %v4481, %v4482
        %v4487 = vmul.u32 %v4481, %v4483
        %v4488 = vshll.u32 %v4485, 16
        %v4489 = vshrl.u32 %v4485, 16
        %v4490 = vshll.u32 %v4486, 16
        %v4491 = vshrl.u32 %v4486, 16
        %vm4492 = vc.u32 %v4484, %v4488
        %v4493 = vsel %vm4492, 1, 0
        %v4494 = vadd.s32 %v4484, %v4488
        %v4495 = vadd.s32 %v4487, %v4493
        %vm4496 = vc.u32 %v4494, %v4490
        %v4497 = vsel %vm4496, 1, 0
        %v4498 = vadd.s32 %v4494, %v4490
        %v4499 = vadd.s32 %v4495, %v4497
        %v4500 = vadd.s32 %v4499, %v4489
        %v4501 = vadd.s32 %v4500, %v4491
        %v4502 = vmul.u32 %v4457, %v4448
        %v4503 = vadd.s32 %v4479, %v4498
        %vm4504 = vc.u32 %v4479, %v4498
        %v4505 = vadd.s32 %v4501, 1
        %v4506 = vsel %vm4504, %v4505, %v4501
        %v4507 = vadd.s32 %v4502, %v4506
        %v4508 = vadd.s32 %v4507, 536870912
        %v4509 = vshrl.u32 %v4508, 30
        %v4510 = vshll.u32 %v4509, 30
        %v4511 = vsub.s32 %v4507, %v4510
        %vm4512 = vcmp.lt.s32.totalorder %v4511, 0
        %v4513 = vsub.s32 0, %v4511
        %v4514 = vsel %vm4512, %v4513, %v4511
        %v4515 = vclz %v4514
        %v4516 = vsub.s32 %v4515, 2
        %vm4517 = vcmp.gt.s32.totalorder 0, %v4516
        %v4518 = vsel %vm4517, 0, %v4516
        %v4519 = vsub.s32 32, %v4518
        %v4520 = vshll.u32 %v4511, %v4518
        %v4521 = vshrl.u32 %v4503, %v4519
        %v4522 = vor.u32 %v4520, %v4521
        %v4523 = vsub.s32 4294967266, %v4518
        %v4524 = vadd.s32 %v4523, 127
        %v4525 = vshll.u32 %v4524, 23
        %v4526 = vor.u32 4788187, %v4525
        %v4527 = vand.u32 2147483647, %v4526
        %v4529 = vcvt.s32.f32 %v4522
        %v4530 = vmul.f32 %v4529, %v4527
        %v4531 = vxor.u32 %v4530, 2147483648
        %v4532 = vsel %vm4411, %v4531, %v4530
        %v4533 = vsub.s32 4, %v4509
        %v4534 = vsel %vm4411, %v4533, %v4509
        %v4535 = vsel %vm4410, %v3233, %v4532
        %v4536 = vsel %vm4410, 0, %v4534
        %v4537 = vmul.f32 %v4535, %v4535
        %v4538 = vmul.f32 %v4537, -0.001358992
        %v4539 = vadd.f32 %v4538, 0.041655596
        %v4540 = vmul.f32 %v4537, %v4539
        %v4541 = vadd.f32 %v4540, -0.4999988
        %v4542 = vmul.f32 %v4537, %v4541
        %v4543 = vadd.f32 1.0, %v4542
        %v4544 = vmul.f32 %v4535, %v4535
        %v4545 = vmul.f32 %v4544, -0.00019511016
        %v4546 = vadd.f32 %v4545, 0.008332121
        %v4547 = vmul.f32 %v4544, %v4546
        %v4548 = vadd.f32 %v4547, -0.16666654
        %v4549 = vmul.f32 %v4544, %v4548
        %v4550 = vadd.f32 %v4549, 1.0
        %v4551 = vmul.f32 %v4550, %v4535
        %vm4552 = vweird.f32 %v3233
        %v4553 = vadd.s32 %v4536, 3
        %v4554 = vand.u32 %v4553, 3
        %vm4555 = vcmp.lt.s32.totalorder %v4554, 2
        %vm4556 = vcmp.eq.s32.totalorder %v4554, 0
        %v4557 = vxor.u32 %v4551, 2147483648
        %v4558 = vsel %vm4556, %v4543, %v4557
        %vm4559 = vcmp.eq.s32.totalorder %v4554, 2
        %v4560 = vxor.u32 %v4543, 2147483648
        %v4561 = vsel %vm4559, %v4560, %v4551
        %v4562 = vsel %vm4555, %v4558, %v4561
        %v4563 = vsel %vm4552, nan, %v4562
        %v4564 = vand.u32 2147483647, %v3236
        %vm4565 = vcmp.le.f32.partialorder %v4564, 0.7853982
        %vm4566 = vcmp.lt.s32.totalorder %v3236, 0
        %v4567 = vand.u32 %v3236, 2139095040
        %v4568 = vshrl.u32 %v4567, 23
        %v4569 = vsub.s32 %v4568, 127
        %v4570 = vand.u32 2147483647, %v3236
        %v4571 = vand.u32 %v4570, 8388607
        %v4572 = vor.u32 %v4571, 8388608
        %v4573 = vsub.s32 0, %v4572
        %v4574 = vadd.s32 %v4569, 1
        %vm4575 = vcmp.gt.s32.totalorder %v4574, 0
        %v4576 = vsel %vm4575, %v4574, 0
        %v4577 = vshrl.u32 %v4576, 5
        %v4578 = vand.u32 %v4576, 31
        %v4579 = vsub.s32 32, %v4578
        %v4580 = vshrl.u32 683565275, %v4579
        %v4581 = vshll.u32 683565275, %v4578
        %v4582 = vshrl.u32 2475754826, %v4579
        %v4583 = vor.u32 %v4581, %v4582
        %v4584 = vshll.u32 2475754826, %v4578
        %v4585 = vshrl.u32 2131351028, %v4579
        %v4586 = vor.u32 %v4584, %v4585
        %v4587 = vshll.u32 2131351028, %v4578
        %v4588 = vshrl.u32 2102212464, %v4579
        %v4589 = vor.u32 %v4587, %v4588
        %v4590 = vshll.u32 2102212464, %v4578
        %v4591 = vshrl.u32 920167782, %v4579
        %v4592 = vor.u32 %v4590, %v4591
        %v4593 = vshll.u32 920167782, %v4578
        %v4594 = vshrl.u32 1326507024, %v4579
        %v4595 = vor.u32 %v4593, %v4594
        %vm4596 = vcmp.lt.s32.totalorder %v4577, 1
        %vm4597 = vcmp.lt.s32.totalorder %v4577, 2
        %vm4598 = vcmp.lt.s32.totalorder %v4577, 3
        %vm4599 = vcmp.lt.s32.totalorder %v4577, 4
        %v4600 = vsel %vm4596, %v4580, %v4583
        %v4601 = vsel %vm4599, %v4589, 2102212464
        %v4602 = vsel %vm4598, %v4586, %v4601
        %v4603 = vsel %vm4597, %v4600, %v4602
        %v4604 = vsel %vm4596, %v4583, %v4586
        %v4605 = vsel %vm4599, %v4592, 920167782
        %v4606 = vsel %vm4598, %v4589, %v4605
        %v4607 = vsel %vm4597, %v4604, %v4606
        %v4608 = vsel %vm4596, %v4586, %v4589
        %v4609 = vsel %vm4599, %v4595, 1326507024
        %v4610 = vsel %vm4598, %v4592, %v4609
        %v4611 = vsel %vm4597, %v4608, %v4610
        %v4612 = vshll.u32 %v4572, 8
        %v4613 = vand.u32 %v4612, 65535
        %v4614 = vshrl.u32 %v4612, 16
        %v4615 = vand.u32 %v4611, 65535
        %v4616 = vshrl.u32 %v4611, 16
        %v4617 = vmul.u32 %v4613, %v4615
        %v4618 = vmul.u32 %v4613, %v4616
        %v4619 = vmul.u32 %v4614, %v4615
        %v4620 = vmul.u32 %v4614, %v4616
        %v4621 = vshll.u32 %v4618, 16
        %v4622 = vshrl.u32 %v4618, 16
        %v4623 = vshll.u32 %v4619, 16
        %v4624 = vshrl.u32 %v4619, 16
        %vm4625 = vc.u32 %v4617, %v4621
        %v4626 = vsel %vm4625, 1, 0
        %v4627 = vadd.s32 %v4617, %v4621
        %v4628 = vadd.s32 %v4620, %v4626
        %vm4629 = vc.u32 %v4627, %v4623
        %v4630 = vsel %vm4629, 1, 0
        %v4631 = vadd.s32 %v4627, %v4623
        %v4632 = vadd.s32 %v4628, %v4630
        %v4633 = vadd.s32 %v4632, %v4622
        %v4634 = vadd.s32 %v4633, %v4624
        %v4635 = vand.u32 %v4612, 65535
        %v4636 = vshrl.u32 %v4612, 16
        %v4637 = vand.u32 %v4607, 65535
        %v4638 = vshrl.u32 %v4607, 16
        %v4639 = vmul.u32 %v4635, %v4637
        %v4640 = vmul.u32 %v4635, %v4638
        %v4641 = vmul.u32 %v4636, %v4637
        %v4642 = vmul.u32 %v4636, %v4638
        %v4643 = vshll.u32 %v4640, 16
        %v4644 = vshrl.u32 %v4640, 16
        %v4645 = vshll.u32 %v4641, 16
        %v4646 = vshrl.u32 %v4641, 16
        %vm4647 = vc.u32 %v4639, %v4643
        %v4648 = vsel %vm4647, 1, 0
        %v4649 = vadd.s32 %v4639, %v4643
        %v4650 = vadd.s32 %v4642, %v4648
        %vm4651 = vc.u32 %v4649, %v4645
        %v4652 = vsel %vm4651, 1, 0
        %v4653 = vadd.s32 %v4649, %v4645
        %v4654 = vadd.s32 %v4650, %v4652
        %v4655 = vadd.s32 %v4654, %v4644
        %v4656 = vadd.s32 %v4655, %v4646
        %v4657 = vmul.u32 %v4612, %v4603
        %v4658 = vadd.s32 %v4634, %v4653
        %vm4659 = vc.u32 %v4634, %v4653
        %v4660 = vadd.s32 %v4656, 1
        %v4661 = vsel %vm4659, %v4660, %v4656
        %v4662 = vadd.s32 %v4657, %v4661
        %v4663 = vadd.s32 %v4662, 536870912
        %v4664 = vshrl.u32 %v4663, 30
        %v4665 = vshll.u32 %v4664, 30
        %v4666 = vsub.s32 %v4662, %v4665
        %vm4667 = vcmp.lt.s32.totalorder %v4666, 0
        %v4668 = vsub.s32 0, %v4666
        %v4669 = vsel %vm4667, %v4668, %v4666
        %v4670 = vclz %v4669
        %v4671 = vsub.s32 %v4670, 2
        %vm4672 = vcmp.gt.s32.totalorder 0, %v4671
        %v4673 = vsel %vm4672, 0, %v4671
        %v4674 = vsub.s32 32, %v4673
        %v4675 = vshll.u32 %v4666, %v4673
        %v4676 = vshrl.u32 %v4658, %v4674
        %v4677 = vor.u32 %v4675, %v4676
        %v4678 = vsub.s32 4294967266, %v4673
        %v4679 = vadd.s32 %v4678, 127
        %v4680 = vshll.u32 %v4679, 23
        %v4681 = vor.u32 4788187, %v4680
        %v4682 = vand.u32 2147483647, %v4681
        %v4684 = vcvt.s32.f32 %v4677
        %v4685 = vmul.f32 %v4684, %v4682
        %v4686 = vxor.u32 %v4685, 2147483648
        %v4687 = vsel %vm4566, %v4686, %v4685
        %v4688 = vsub.s32 4, %v4664
        %v4689 = vsel %vm4566, %v4688, %v4664
        %v4690 = vsel %vm4565, %v3236, %v4687
        %v4691 = vsel %vm4565, 0, %v4689
        %v4692 = vmul.f32 %v4690, %v4690
        %v4693 = vmul.f32 %v4692, -0.001358992
        %v4694 = vadd.f32 %v4693, 0.041655596
        %v4695 = vmul.f32 %v4692, %v4694
        %v4696 = vadd.f32 %v4695, -0.4999988
        %v4697 = vmul.f32 %v4692, %v4696
        %v4698 = vadd.f32 1.0, %v4697
        %v4699 = vmul.f32 %v4690, %v4690
        %v4700 = vmul.f32 %v4699, -0.00019511016
        %v4701 = vadd.f32 %v4700, 0.008332121
        %v4702 = vmul.f32 %v4699, %v4701
        %v4703 = vadd.f32 %v4702, -0.16666654
        %v4704 = vmul.f32 %v4699, %v4703
        %v4705 = vadd.f32 %v4704, 1.0
        %v4706 = vmul.f32 %v4705, %v4690
        %vm4707 = vweird.f32 %v3236
        %v4708 = vadd.s32 %v4691, 3
        %v4709 = vand.u32 %v4708, 3
        %vm4710 = vcmp.lt.s32.totalorder %v4709, 2
        %vm4711 = vcmp.eq.s32.totalorder %v4709, 0
        %v4712 = vxor.u32 %v4706, 2147483648
        %v4713 = vsel %vm4711, %v4698, %v4712
        %vm4714 = vcmp.eq.s32.totalorder %v4709, 2
        %v4715 = vxor.u32 %v4698, 2147483648
        %v4716 = vsel %vm4714, %v4715, %v4706
        %v4717 = vsel %vm4710, %v4713, %v4716
        %v4718 = vsel %vm4707, nan, %v4717
        %v4719 = vand.u32 2147483647, %v3239
        %vm4720 = vcmp.le.f32.partialorder %v4719, 0.7853982
        %vm4721 = vcmp.lt.s32.totalorder %v3239, 0
        %v4722 = vand.u32 %v3239, 2139095040
        %v4723 = vshrl.u32 %v4722, 23
        %v4724 = vsub.s32 %v4723, 127
        %v4725 = vand.u32 2147483647, %v3239
        %v4726 = vand.u32 %v4725, 8388607
        %v4727 = vor.u32 %v4726, 8388608
        %v4728 = vsub.s32 0, %v4727
        %v4729 = vadd.s32 %v4724, 1
        %vm4730 = vcmp.gt.s32.totalorder %v4729, 0
        %v4731 = vsel %vm4730, %v4729, 0
        %v4732 = vshrl.u32 %v4731, 5
        %v4733 = vand.u32 %v4731, 31
        %v4734 = vsub.s32 32, %v4733
        %v4735 = vshrl.u32 683565275, %v4734
        %v4736 = vshll.u32 683565275, %v4733
        %v4737 = vshrl.u32 2475754826, %v4734
        %v4738 = vor.u32 %v4736, %v4737
        %v4739 = vshll.u32 2475754826, %v4733
        %v4740 = vshrl.u32 2131351028, %v4734
        %v4741 = vor.u32 %v4739, %v4740
        %v4742 = vshll.u32 2131351028, %v4733
        %v4743 = vshrl.u32 2102212464, %v4734
        %v4744 = vor.u32 %v4742, %v4743
        %v4745 = vshll.u32 2102212464, %v4733
        %v4746 = vshrl.u32 920167782, %v4734
        %v4747 = vor.u32 %v4745, %v4746
        %v4748 = vshll.u32 920167782, %v4733
        %v4749 = vshrl.u32 1326507024, %v4734
        %v4750 = vor.u32 %v4748, %v4749
        %vm4751 = vcmp.lt.s32.totalorder %v4732, 1
        %vm4752 = vcmp.lt.s32.totalorder %v4732, 2
        %vm4753 = vcmp.lt.s32.totalorder %v4732, 3
        %vm4754 = vcmp.lt.s32.totalorder %v4732, 4
        %v4755 = vsel %vm4751, %v4735, %v4738
        %v4756 = vsel %vm4754, %v4744, 2102212464
        %v4757 = vsel %vm4753, %v4741, %v4756
        %v4758 = vsel %vm4752, %v4755, %v4757
        %v4759 = vsel %vm4751, %v4738, %v4741
        %v4760 = vsel %vm4754, %v4747, 920167782
        %v4761 = vsel %vm4753, %v4744, %v4760
        %v4762 = vsel %vm4752, %v4759, %v4761
        %v4763 = vsel %vm4751, %v4741, %v4744
        %v4764 = vsel %vm4754, %v4750, 1326507024
        %v4765 = vsel %vm4753, %v4747, %v4764
        %v4766 = vsel %vm4752, %v4763, %v4765
        %v4767 = vshll.u32 %v4727, 8
        %v4768 = vand.u32 %v4767, 65535
        %v4769 = vshrl.u32 %v4767, 16
        %v4770 = vand.u32 %v4766, 65535
        %v4771 = vshrl.u32 %v4766, 16
        %v4772 = vmul.u32 %v4768, %v4770
        %v4773 = vmul.u32 %v4768, %v4771
        %v4774 = vmul.u32 %v4769, %v4770
        %v4775 = vmul.u32 %v4769, %v4771
        %v4776 = vshll.u32 %v4773, 16
        %v4777 = vshrl.u32 %v4773, 16
        %v4778 = vshll.u32 %v4774, 16
        %v4779 = vshrl.u32 %v4774, 16
        %vm4780 = vc.u32 %v4772, %v4776
        %v4781 = vsel %vm4780, 1, 0
        %v4782 = vadd.s32 %v4772, %v4776
        %v4783 = vadd.s32 %v4775, %v4781
        %vm4784 = vc.u32 %v4782, %v4778
        %v4785 = vsel %vm4784, 1, 0
        %v4786 = vadd.s32 %v4782, %v4778
        %v4787 = vadd.s32 %v4783, %v4785
        %v4788 = vadd.s32 %v4787, %v4777
        %v4789 = vadd.s32 %v4788, %v4779
        %v4790 = vand.u32 %v4767, 65535
        %v4791 = vshrl.u32 %v4767, 16
        %v4792 = vand.u32 %v4762, 65535
        %v4793 = vshrl.u32 %v4762, 16
        %v4794 = vmul.u32 %v4790, %v4792
        %v4795 = vmul.u32 %v4790, %v4793
        %v4796 = vmul.u32 %v4791, %v4792
        %v4797 = vmul.u32 %v4791, %v4793
        %v4798 = vshll.u32 %v4795, 16
        %v4799 = vshrl.u32 %v4795, 16
        %v4800 = vshll.u32 %v4796, 16
        %v4801 = vshrl.u32 %v4796, 16
        %vm4802 = vc.u32 %v4794, %v4798
        %v4803 = vsel %vm4802, 1, 0
        %v4804 = vadd.s32 %v4794, %v4798
        %v4805 = vadd.s32 %v4797, %v4803
        %vm4806 = vc.u32 %v4804, %v4800
        %v4807 = vsel %vm4806, 1, 0
        %v4808 = vadd.s32 %v4804, %v4800
        %v4809 = vadd.s32 %v4805, %v4807
        %v4810 = vadd.s32 %v4809, %v4799
        %v4811 = vadd.s32 %v4810, %v4801
        %v4812 = vmul.u32 %v4767, %v4758
        %v4813 = vadd.s32 %v4789, %v4808
        %vm4814 = vc.u32 %v4789, %v4808
        %v4815 = vadd.s32 %v4811, 1
        %v4816 = vsel %vm4814, %v4815, %v4811
        %v4817 = vadd.s32 %v4812, %v4816
        %v4818 = vadd.s32 %v4817, 536870912
        %v4819 = vshrl.u32 %v4818, 30
        %v4820 = vshll.u32 %v4819, 30
        %v4821 = vsub.s32 %v4817, %v4820
        %vm4822 = vcmp.lt.s32.totalorder %v4821, 0
        %v4823 = vsub.s32 0, %v4821
        %v4824 = vsel %vm4822, %v4823, %v4821
        %v4825 = vclz %v4824
        %v4826 = vsub.s32 %v4825, 2
        %vm4827 = vcmp.gt.s32.totalorder 0, %v4826
        %v4828 = vsel %vm4827, 0, %v4826
        %v4829 = vsub.s32 32, %v4828
        %v4830 = vshll.u32 %v4821, %v4828
        %v4831 = vshrl.u32 %v4813, %v4829
        %v4832 = vor.u32 %v4830, %v4831
        %v4833 = vsub.s32 4294967266, %v4828
        %v4834 = vadd.s32 %v4833, 127
        %v4835 = vshll.u32 %v4834, 23
        %v4836 = vor.u32 4788187, %v4835
        %v4837 = vand.u32 2147483647, %v4836
        %v4839 = vcvt.s32.f32 %v4832
        %v4840 = vmul.f32 %v4839, %v4837
        %v4841 = vxor.u32 %v4840, 2147483648
        %v4842 = vsel %vm4721, %v4841, %v4840
        %v4843 = vsub.s32 4, %v4819
        %v4844 = vsel %vm4721, %v4843, %v4819
        %v4845 = vsel %vm4720, %v3239, %v4842
        %v4846 = vsel %vm4720, 0, %v4844
        %v4847 = vmul.f32 %v4845, %v4845
        %v4848 = vmul.f32 %v4847, -0.001358992
        %v4849 = vadd.f32 %v4848, 0.041655596
        %v4850 = vmul.f32 %v4847, %v4849
        %v4851 = vadd.f32 %v4850, -0.4999988
        %v4852 = vmul.f32 %v4847, %v4851
        %v4853 = vadd.f32 1.0, %v4852
        %v4854 = vmul.f32 %v4845, %v4845
        %v4855 = vmul.f32 %v4854, -0.00019511016
        %v4856 = vadd.f32 %v4855, 0.008332121
        %v4857 = vmul.f32 %v4854, %v4856
        %v4858 = vadd.f32 %v4857, -0.16666654
        %v4859 = vmul.f32 %v4854, %v4858
        %v4860 = vadd.f32 %v4859, 1.0
        %v4861 = vmul.f32 %v4860, %v4845
        %vm4862 = vweird.f32 %v3239
        %v4863 = vadd.s32 %v4846, 3
        %v4864 = vand.u32 %v4863, 3
        %vm4865 = vcmp.lt.s32.totalorder %v4864, 2
        %vm4866 = vcmp.eq.s32.totalorder %v4864, 0
        %v4867 = vxor.u32 %v4861, 2147483648
        %v4868 = vsel %vm4866, %v4853, %v4867
        %vm4869 = vcmp.eq.s32.totalorder %v4864, 2
        %v4870 = vxor.u32 %v4853, 2147483648
        %v4871 = vsel %vm4869, %v4870, %v4861
        %v4872 = vsel %vm4865, %v4868, %v4871
        %v4873 = vsel %vm4862, nan, %v4872
        %v4874 = vand.u32 2147483647, %v3242
        %vm4875 = vcmp.le.f32.partialorder %v4874, 0.7853982
        %vm4876 = vcmp.lt.s32.totalorder %v3242, 0
        %v4877 = vand.u32 %v3242, 2139095040
        %v4878 = vshrl.u32 %v4877, 23
        %v4879 = vsub.s32 %v4878, 127
        %v4880 = vand.u32 2147483647, %v3242
        %v4881 = vand.u32 %v4880, 8388607
        %v4882 = vor.u32 %v4881, 8388608
        %v4883 = vsub.s32 0, %v4882
        %v4884 = vadd.s32 %v4879, 1
        %vm4885 = vcmp.gt.s32.totalorder %v4884, 0
        %v4886 = vsel %vm4885, %v4884, 0
        %v4887 = vshrl.u32 %v4886, 5
        %v4888 = vand.u32 %v4886, 31
        %v4889 = vsub.s32 32, %v4888
        %v4890 = vshrl.u32 683565275, %v4889
        %v4891 = vshll.u32 683565275, %v4888
        %v4892 = vshrl.u32 2475754826, %v4889
        %v4893 = vor.u32 %v4891, %v4892
        %v4894 = vshll.u32 2475754826, %v4888
        %v4895 = vshrl.u32 2131351028, %v4889
        %v4896 = vor.u32 %v4894, %v4895
        %v4897 = vshll.u32 2131351028, %v4888
        %v4898 = vshrl.u32 2102212464, %v4889
        %v4899 = vor.u32 %v4897, %v4898
        %v4900 = vshll.u32 2102212464, %v4888
        %v4901 = vshrl.u32 920167782, %v4889
        %v4902 = vor.u32 %v4900, %v4901
        %v4903 = vshll.u32 920167782, %v4888
        %v4904 = vshrl.u32 1326507024, %v4889
        %v4905 = vor.u32 %v4903, %v4904
        %vm4906 = vcmp.lt.s32.totalorder %v4887, 1
        %vm4907 = vcmp.lt.s32.totalorder %v4887, 2
        %vm4908 = vcmp.lt.s32.totalorder %v4887, 3
        %vm4909 = vcmp.lt.s32.totalorder %v4887, 4
        %v4910 = vsel %vm4906, %v4890, %v4893
        %v4911 = vsel %vm4909, %v4899, 2102212464
        %v4912 = vsel %vm4908, %v4896, %v4911
        %v4913 = vsel %vm4907, %v4910, %v4912
        %v4914 = vsel %vm4906, %v4893, %v4896
        %v4915 = vsel %vm4909, %v4902, 920167782
        %v4916 = vsel %vm4908, %v4899, %v4915
        %v4917 = vsel %vm4907, %v4914, %v4916
        %v4918 = vsel %vm4906, %v4896, %v4899
        %v4919 = vsel %vm4909, %v4905, 1326507024
        %v4920 = vsel %vm4908, %v4902, %v4919
        %v4921 = vsel %vm4907, %v4918, %v4920
        %v4922 = vshll.u32 %v4882, 8
        %v4923 = vand.u32 %v4922, 65535
        %v4924 = vshrl.u32 %v4922, 16
        %v4925 = vand.u32 %v4921, 65535
        %v4926 = vshrl.u32 %v4921, 16
        %v4927 = vmul.u32 %v4923, %v4925
        %v4928 = vmul.u32 %v4923, %v4926
        %v4929 = vmul.u32 %v4924, %v4925
        %v4930 = vmul.u32 %v4924, %v4926
        %v4931 = vshll.u32 %v4928, 16
        %v4932 = vshrl.u32 %v4928, 16
        %v4933 = vshll.u32 %v4929, 16
        %v4934 = vshrl.u32 %v4929, 16
        %vm4935 = vc.u32 %v4927, %v4931
        %v4936 = vsel %vm4935, 1, 0
        %v4937 = vadd.s32 %v4927, %v4931
        %v4938 = vadd.s32 %v4930, %v4936
        %vm4939 = vc.u32 %v4937, %v4933
        %v4940 = vsel %vm4939, 1, 0
        %v4941 = vadd.s32 %v4937, %v4933
        %v4942 = vadd.s32 %v4938, %v4940
        %v4943 = vadd.s32 %v4942, %v4932
        %v4944 = vadd.s32 %v4943, %v4934
        %v4945 = vand.u32 %v4922, 65535
        %v4946 = vshrl.u32 %v4922, 16
        %v4947 = vand.u32 %v4917, 65535
        %v4948 = vshrl.u32 %v4917, 16
        %v4949 = vmul.u32 %v4945, %v4947
        %v4950 = vmul.u32 %v4945, %v4948
        %v4951 = vmul.u32 %v4946, %v4947
        %v4952 = vmul.u32 %v4946, %v4948
        %v4953 = vshll.u32 %v4950, 16
        %v4954 = vshrl.u32 %v4950, 16
        %v4955 = vshll.u32 %v4951, 16
        %v4956 = vshrl.u32 %v4951, 16
        %vm4957 = vc.u32 %v4949, %v4953
        %v4958 = vsel %vm4957, 1, 0
        %v4959 = vadd.s32 %v4949, %v4953
        %v4960 = vadd.s32 %v4952, %v4958
        %vm4961 = vc.u32 %v4959, %v4955
        %v4962 = vsel %vm4961, 1, 0
        %v4963 = vadd.s32 %v4959, %v4955
        %v4964 = vadd.s32 %v4960, %v4962
        %v4965 = vadd.s32 %v4964, %v4954
        %v4966 = vadd.s32 %v4965, %v4956
        %v4967 = vmul.u32 %v4922, %v4913
        %v4968 = vadd.s32 %v4944, %v4963
        %vm4969 = vc.u32 %v4944, %v4963
        %v4970 = vadd.s32 %v4966, 1
        %v4971 = vsel %vm4969, %v4970, %v4966
        %v4972 = vadd.s32 %v4967, %v4971
        %v4973 = vadd.s32 %v4972, 536870912
        %v4974 = vshrl.u32 %v4973, 30
        %v4975 = vshll.u32 %v4974, 30
        %v4976 = vsub.s32 %v4972, %v4975
        %vm4977 = vcmp.lt.s32.totalorder %v4976, 0
        %v4978 = vsub.s32 0, %v4976
        %v4979 = vsel %vm4977, %v4978, %v4976
        %v4980 = vclz %v4979
        %v4981 = vsub.s32 %v4980, 2
        %vm4982 = vcmp.gt.s32.totalorder 0, %v4981
        %v4983 = vsel %vm4982, 0, %v4981
        %v4984 = vsub.s32 32, %v4983
        %v4985 = vshll.u32 %v4976, %v4983
        %v4986 = vshrl.u32 %v4968, %v4984
        %v4987 = vor.u32 %v4985, %v4986
        %v4988 = vsub.s32 4294967266, %v4983
        %v4989 = vadd.s32 %v4988, 127
        %v4990 = vshll.u32 %v4989, 23
        %v4991 = vor.u32 4788187, %v4990
        %v4992 = vand.u32 2147483647, %v4991
        %v4994 = vcvt.s32.f32 %v4987
        %v4995 = vmul.f32 %v4994, %v4992
        %v4996 = vxor.u32 %v4995, 2147483648
        %v4997 = vsel %vm4876, %v4996, %v4995
        %v4998 = vsub.s32 4, %v4974
        %v4999 = vsel %vm4876, %v4998, %v4974
        %v5000 = vsel %vm4875, %v3242, %v4997
        %v5001 = vsel %vm4875, 0, %v4999
        %v5002 = vmul.f32 %v5000, %v5000
        %v5003 = vmul.f32 %v5002, -0.001358992
        %v5004 = vadd.f32 %v5003, 0.041655596
        %v5005 = vmul.f32 %v5002, %v5004
        %v5006 = vadd.f32 %v5005, -0.4999988
        %v5007 = vmul.f32 %v5002, %v5006
        %v5008 = vadd.f32 1.0, %v5007
        %v5009 = vmul.f32 %v5000, %v5000
        %v5010 = vmul.f32 %v5009, -0.00019511016
        %v5011 = vadd.f32 %v5010, 0.008332121
        %v5012 = vmul.f32 %v5009, %v5011
        %v5013 = vadd.f32 %v5012, -0.16666654
        %v5014 = vmul.f32 %v5009, %v5013
        %v5015 = vadd.f32 %v5014, 1.0
        %v5016 = vmul.f32 %v5015, %v5000
        %vm5017 = vweird.f32 %v3242
        %v5018 = vadd.s32 %v5001, 3
        %v5019 = vand.u32 %v5018, 3
        %vm5020 = vcmp.lt.s32.totalorder %v5019, 2
        %vm5021 = vcmp.eq.s32.totalorder %v5019, 0
        %v5022 = vxor.u32 %v5016, 2147483648
        %v5023 = vsel %vm5021, %v5008, %v5022
        %vm5024 = vcmp.eq.s32.totalorder %v5019, 2
        %v5025 = vxor.u32 %v5008, 2147483648
        %v5026 = vsel %vm5024, %v5025, %v5016
        %v5027 = vsel %vm5020, %v5023, %v5026
        %v5028 = vsel %vm5017, nan, %v5027
        %v5029 = vand.u32 2147483647, %v3245
        %vm5030 = vcmp.le.f32.partialorder %v5029, 0.7853982
        %vm5031 = vcmp.lt.s32.totalorder %v3245, 0
        %v5032 = vand.u32 %v3245, 2139095040
        %v5033 = vshrl.u32 %v5032, 23
        %v5034 = vsub.s32 %v5033, 127
        %v5035 = vand.u32 2147483647, %v3245
        %v5036 = vand.u32 %v5035, 8388607
        %v5037 = vor.u32 %v5036, 8388608
        %v5038 = vsub.s32 0, %v5037
        %v5039 = vadd.s32 %v5034, 1
        %vm5040 = vcmp.gt.s32.totalorder %v5039, 0
        %v5041 = vsel %vm5040, %v5039, 0
        %v5042 = vshrl.u32 %v5041, 5
        %v5043 = vand.u32 %v5041, 31
        %v5044 = vsub.s32 32, %v5043
        %v5045 = vshrl.u32 683565275, %v5044
        %v5046 = vshll.u32 683565275, %v5043
        %v5047 = vshrl.u32 2475754826, %v5044
        %v5048 = vor.u32 %v5046, %v5047
        %v5049 = vshll.u32 2475754826, %v5043
        %v5050 = vshrl.u32 2131351028, %v5044
        %v5051 = vor.u32 %v5049, %v5050
        %v5052 = vshll.u32 2131351028, %v5043
        %v5053 = vshrl.u32 2102212464, %v5044
        %v5054 = vor.u32 %v5052, %v5053
        %v5055 = vshll.u32 2102212464, %v5043
        %v5056 = vshrl.u32 920167782, %v5044
        %v5057 = vor.u32 %v5055, %v5056
        %v5058 = vshll.u32 920167782, %v5043
        %v5059 = vshrl.u32 1326507024, %v5044
        %v5060 = vor.u32 %v5058, %v5059
        %vm5061 = vcmp.lt.s32.totalorder %v5042, 1
        %vm5062 = vcmp.lt.s32.totalorder %v5042, 2
        %vm5063 = vcmp.lt.s32.totalorder %v5042, 3
        %vm5064 = vcmp.lt.s32.totalorder %v5042, 4
        %v5065 = vsel %vm5061, %v5045, %v5048
        %v5066 = vsel %vm5064, %v5054, 2102212464
        %v5067 = vsel %vm5063, %v5051, %v5066
        %v5068 = vsel %vm5062, %v5065, %v5067
        %v5069 = vsel %vm5061, %v5048, %v5051
        %v5070 = vsel %vm5064, %v5057, 920167782
        %v5071 = vsel %vm5063, %v5054, %v5070
        %v5072 = vsel %vm5062, %v5069, %v5071
        %v5073 = vsel %vm5061, %v5051, %v5054
        %v5074 = vsel %vm5064, %v5060, 1326507024
        %v5075 = vsel %vm5063, %v5057, %v5074
        %v5076 = vsel %vm5062, %v5073, %v5075
        %v5077 = vshll.u32 %v5037, 8
        %v5078 = vand.u32 %v5077, 65535
        %v5079 = vshrl.u32 %v5077, 16
        %v5080 = vand.u32 %v5076, 65535
        %v5081 = vshrl.u32 %v5076, 16
        %v5082 = vmul.u32 %v5078, %v5080
        %v5083 = vmul.u32 %v5078, %v5081
        %v5084 = vmul.u32 %v5079, %v5080
        %v5085 = vmul.u32 %v5079, %v5081
        %v5086 = vshll.u32 %v5083, 16
        %v5087 = vshrl.u32 %v5083, 16
        %v5088 = vshll.u32 %v5084, 16
        %v5089 = vshrl.u32 %v5084, 16
        %vm5090 = vc.u32 %v5082, %v5086
        %v5091 = vsel %vm5090, 1, 0
        %v5092 = vadd.s32 %v5082, %v5086
        %v5093 = vadd.s32 %v5085, %v5091
        %vm5094 = vc.u32 %v5092, %v5088
        %v5095 = vsel %vm5094, 1, 0
        %v5096 = vadd.s32 %v5092, %v5088
        %v5097 = vadd.s32 %v5093, %v5095
        %v5098 = vadd.s32 %v5097, %v5087
        %v5099 = vadd.s32 %v5098, %v5089
        %v5100 = vand.u32 %v5077, 65535
        %v5101 = vshrl.u32 %v5077, 16
        %v5102 = vand.u32 %v5072, 65535
        %v5103 = vshrl.u32 %v5072, 16
        %v5104 = vmul.u32 %v5100, %v5102
        %v5105 = vmul.u32 %v5100, %v5103
        %v5106 = vmul.u32 %v5101, %v5102
        %v5107 = vmul.u32 %v5101, %v5103
        %v5108 = vshll.u32 %v5105, 16
        %v5109 = vshrl.u32 %v5105, 16
        %v5110 = vshll.u32 %v5106, 16
        %v5111 = vshrl.u32 %v5106, 16
        %vm5112 = vc.u32 %v5104, %v5108
        %v5113 = vsel %vm5112, 1, 0
        %v5114 = vadd.s32 %v5104, %v5108
        %v5115 = vadd.s32 %v5107, %v5113
        %vm5116 = vc.u32 %v5114, %v5110
        %v5117 = vsel %vm5116, 1, 0
        %v5118 = vadd.s32 %v5114, %v5110
        %v5119 = vadd.s32 %v5115, %v5117
        %v5120 = vadd.s32 %v5119, %v5109
        %v5121 = vadd.s32 %v5120, %v5111
        %v5122 = vmul.u32 %v5077, %v5068
        %v5123 = vadd.s32 %v5099, %v5118
        %vm5124 = vc.u32 %v5099, %v5118
        %v5125 = vadd.s32 %v5121, 1
        %v5126 = vsel %vm5124, %v5125, %v5121
        %v5127 = vadd.s32 %v5122, %v5126
        %v5128 = vadd.s32 %v5127, 536870912
        %v5129 = vshrl.u32 %v5128, 30
        %v5130 = vshll.u32 %v5129, 30
        %v5131 = vsub.s32 %v5127, %v5130
        %vm5132 = vcmp.lt.s32.totalorder %v5131, 0
        %v5133 = vsub.s32 0, %v5131
        %v5134 = vsel %vm5132, %v5133, %v5131
        %v5135 = vclz %v5134
        %v5136 = vsub.s32 %v5135, 2
        %vm5137 = vcmp.gt.s32.totalorder 0, %v5136
        %v5138 = vsel %vm5137, 0, %v5136
        %v5139 = vsub.s32 32, %v5138
        %v5140 = vshll.u32 %v5131, %v5138
        %v5141 = vshrl.u32 %v5123, %v5139
        %v5142 = vor.u32 %v5140, %v5141
        %v5143 = vsub.s32 4294967266, %v5138
        %v5144 = vadd.s32 %v5143, 127
        %v5145 = vshll.u32 %v5144, 23
        %v5146 = vor.u32 4788187, %v5145
        %v5147 = vand.u32 2147483647, %v5146
        %v5149 = vcvt.s32.f32 %v5142
        %v5150 = vmul.f32 %v5149, %v5147
        %v5151 = vxor.u32 %v5150, 2147483648
        %v5152 = vsel %vm5031, %v5151, %v5150
        %v5153 = vsub.s32 4, %v5129
        %v5154 = vsel %vm5031, %v5153, %v5129
        %v5155 = vsel %vm5030, %v3245, %v5152
        %v5156 = vsel %vm5030, 0, %v5154
        %v5157 = vmul.f32 %v5155, %v5155
        %v5158 = vmul.f32 %v5157, -0.001358992
        %v5159 = vadd.f32 %v5158, 0.041655596
        %v5160 = vmul.f32 %v5157, %v5159
        %v5161 = vadd.f32 %v5160, -0.4999988
        %v5162 = vmul.f32 %v5157, %v5161
        %v5163 = vadd.f32 1.0, %v5162
        %v5164 = vmul.f32 %v5155, %v5155
        %v5165 = vmul.f32 %v5164, -0.00019511016
        %v5166 = vadd.f32 %v5165, 0.008332121
        %v5167 = vmul.f32 %v5164, %v5166
        %v5168 = vadd.f32 %v5167, -0.16666654
        %v5169 = vmul.f32 %v5164, %v5168
        %v5170 = vadd.f32 %v5169, 1.0
        %v5171 = vmul.f32 %v5170, %v5155
        %vm5172 = vweird.f32 %v3245
        %v5173 = vadd.s32 %v5156, 3
        %v5174 = vand.u32 %v5173, 3
        %vm5175 = vcmp.lt.s32.totalorder %v5174, 2
        %vm5176 = vcmp.eq.s32.totalorder %v5174, 0
        %v5177 = vxor.u32 %v5171, 2147483648
        %v5178 = vsel %vm5176, %v5163, %v5177
        %vm5179 = vcmp.eq.s32.totalorder %v5174, 2
        %v5180 = vxor.u32 %v5163, 2147483648
        %v5181 = vsel %vm5179, %v5180, %v5171
        %v5182 = vsel %vm5175, %v5178, %v5181
        %v5183 = vsel %vm5172, nan, %v5182
        %v5184 = vand.u32 2147483647, %v3248
        %vm5185 = vcmp.le.f32.partialorder %v5184, 0.7853982
        %vm5186 = vcmp.lt.s32.totalorder %v3248, 0
        %v5187 = vand.u32 %v3248, 2139095040
        %v5188 = vshrl.u32 %v5187, 23
        %v5189 = vsub.s32 %v5188, 127
        %v5190 = vand.u32 2147483647, %v3248
        %v5191 = vand.u32 %v5190, 8388607
        %v5192 = vor.u32 %v5191, 8388608
        %v5193 = vsub.s32 0, %v5192
        %v5194 = vadd.s32 %v5189, 1
        %vm5195 = vcmp.gt.s32.totalorder %v5194, 0
        %v5196 = vsel %vm5195, %v5194, 0
        %v5197 = vshrl.u32 %v5196, 5
        %v5198 = vand.u32 %v5196, 31
        %v5199 = vsub.s32 32, %v5198
        %v5200 = vshrl.u32 683565275, %v5199
        %v5201 = vshll.u32 683565275, %v5198
        %v5202 = vshrl.u32 2475754826, %v5199
        %v5203 = vor.u32 %v5201, %v5202
        %v5204 = vshll.u32 2475754826, %v5198
        %v5205 = vshrl.u32 2131351028, %v5199
        %v5206 = vor.u32 %v5204, %v5205
        %v5207 = vshll.u32 2131351028, %v5198
        %v5208 = vshrl.u32 2102212464, %v5199
        %v5209 = vor.u32 %v5207, %v5208
        %v5210 = vshll.u32 2102212464, %v5198
        %v5211 = vshrl.u32 920167782, %v5199
        %v5212 = vor.u32 %v5210, %v5211
        %v5213 = vshll.u32 920167782, %v5198
        %v5214 = vshrl.u32 1326507024, %v5199
        %v5215 = vor.u32 %v5213, %v5214
        %vm5216 = vcmp.lt.s32.totalorder %v5197, 1
        %vm5217 = vcmp.lt.s32.totalorder %v5197, 2
        %vm5218 = vcmp.lt.s32.totalorder %v5197, 3
        %vm5219 = vcmp.lt.s32.totalorder %v5197, 4
        %v5220 = vsel %vm5216, %v5200, %v5203
        %v5221 = vsel %vm5219, %v5209, 2102212464
        %v5222 = vsel %vm5218, %v5206, %v5221
        %v5223 = vsel %vm5217, %v5220, %v5222
        %v5224 = vsel %vm5216, %v5203, %v5206
        %v5225 = vsel %vm5219, %v5212, 920167782
        %v5226 = vsel %vm5218, %v5209, %v5225
        %v5227 = vsel %vm5217, %v5224, %v5226
        %v5228 = vsel %vm5216, %v5206, %v5209
        %v5229 = vsel %vm5219, %v5215, 1326507024
        %v5230 = vsel %vm5218, %v5212, %v5229
        %v5231 = vsel %vm5217, %v5228, %v5230
        %v5232 = vshll.u32 %v5192, 8
        %v5233 = vand.u32 %v5232, 65535
        %v5234 = vshrl.u32 %v5232, 16
        %v5235 = vand.u32 %v5231, 65535
        %v5236 = vshrl.u32 %v5231, 16
        %v5237 = vmul.u32 %v5233, %v5235
        %v5238 = vmul.u32 %v5233, %v5236
        %v5239 = vmul.u32 %v5234, %v5235
        %v5240 = vmul.u32 %v5234, %v5236
        %v5241 = vshll.u32 %v5238, 16
        %v5242 = vshrl.u32 %v5238, 16
        %v5243 = vshll.u32 %v5239, 16
        %v5244 = vshrl.u32 %v5239, 16
        %vm5245 = vc.u32 %v5237, %v5241
        %v5246 = vsel %vm5245, 1, 0
        %v5247 = vadd.s32 %v5237, %v5241
        %v5248 = vadd.s32 %v5240, %v5246
        %vm5249 = vc.u32 %v5247, %v5243
        %v5250 = vsel %vm5249, 1, 0
        %v5251 = vadd.s32 %v5247, %v5243
        %v5252 = vadd.s32 %v5248, %v5250
        %v5253 = vadd.s32 %v5252, %v5242
        %v5254 = vadd.s32 %v5253, %v5244
        %v5255 = vand.u32 %v5232, 65535
        %v5256 = vshrl.u32 %v5232, 16
        %v5257 = vand.u32 %v5227, 65535
        %v5258 = vshrl.u32 %v5227, 16
        %v5259 = vmul.u32 %v5255, %v5257
        %v5260 = vmul.u32 %v5255, %v5258
        %v5261 = vmul.u32 %v5256, %v5257
        %v5262 = vmul.u32 %v5256, %v5258
        %v5263 = vshll.u32 %v5260, 16
        %v5264 = vshrl.u32 %v5260, 16
        %v5265 = vshll.u32 %v5261, 16
        %v5266 = vshrl.u32 %v5261, 16
        %vm5267 = vc.u32 %v5259, %v5263
        %v5268 = vsel %vm5267, 1, 0
        %v5269 = vadd.s32 %v5259, %v5263
        %v5270 = vadd.s32 %v5262, %v5268
        %vm5271 = vc.u32 %v5269, %v5265
        %v5272 = vsel %vm5271, 1, 0
        %v5273 = vadd.s32 %v5269, %v5265
        %v5274 = vadd.s32 %v5270, %v5272
        %v5275 = vadd.s32 %v5274, %v5264
        %v5276 = vadd.s32 %v5275, %v5266
        %v5277 = vmul.u32 %v5232, %v5223
        %v5278 = vadd.s32 %v5254, %v5273
        %vm5279 = vc.u32 %v5254, %v5273
        %v5280 = vadd.s32 %v5276, 1
        %v5281 = vsel %vm5279, %v5280, %v5276
        %v5282 = vadd.s32 %v5277, %v5281
        %v5283 = vadd.s32 %v5282, 536870912
        %v5284 = vshrl.u32 %v5283, 30
        %v5285 = vshll.u32 %v5284, 30
        %v5286 = vsub.s32 %v5282, %v5285
        %vm5287 = vcmp.lt.s32.totalorder %v5286, 0
        %v5288 = vsub.s32 0, %v5286
        %v5289 = vsel %vm5287, %v5288, %v5286
        %v5290 = vclz %v5289
        %v5291 = vsub.s32 %v5290, 2
        %vm5292 = vcmp.gt.s32.totalorder 0, %v5291
        %v5293 = vsel %vm5292, 0, %v5291
        %v5294 = vsub.s32 32, %v5293
        %v5295 = vshll.u32 %v5286, %v5293
        %v5296 = vshrl.u32 %v5278, %v5294
        %v5297 = vor.u32 %v5295, %v5296
        %v5298 = vsub.s32 4294967266, %v5293
        %v5299 = vadd.s32 %v5298, 127
        %v5300 = vshll.u32 %v5299, 23
        %v5301 = vor.u32 4788187, %v5300
        %v5302 = vand.u32 2147483647, %v5301
        %v5304 = vcvt.s32.f32 %v5297
        %v5305 = vmul.f32 %v5304, %v5302
        %v5306 = vxor.u32 %v5305, 2147483648
        %v5307 = vsel %vm5186, %v5306, %v5305
        %v5308 = vsub.s32 4, %v5284
        %v5309 = vsel %vm5186, %v5308, %v5284
        %v5310 = vsel %vm5185, %v3248, %v5307
        %v5311 = vsel %vm5185, 0, %v5309
        %v5312 = vmul.f32 %v5310, %v5310
        %v5313 = vmul.f32 %v5312, -0.001358992
        %v5314 = vadd.f32 %v5313, 0.041655596
        %v5315 = vmul.f32 %v5312, %v5314
        %v5316 = vadd.f32 %v5315, -0.4999988
        %v5317 = vmul.f32 %v5312, %v5316
        %v5318 = vadd.f32 1.0, %v5317
        %v5319 = vmul.f32 %v5310, %v5310
        %v5320 = vmul.f32 %v5319, -0.00019511016
        %v5321 = vadd.f32 %v5320, 0.008332121
        %v5322 = vmul.f32 %v5319, %v5321
        %v5323 = vadd.f32 %v5322, -0.16666654
        %v5324 = vmul.f32 %v5319, %v5323
        %v5325 = vadd.f32 %v5324, 1.0
        %v5326 = vmul.f32 %v5325, %v5310
        %vm5327 = vweird.f32 %v3248
        %v5328 = vadd.s32 %v5311, 3
        %v5329 = vand.u32 %v5328, 3
        %vm5330 = vcmp.lt.s32.totalorder %v5329, 2
        %vm5331 = vcmp.eq.s32.totalorder %v5329, 0
        %v5332 = vxor.u32 %v5326, 2147483648
        %v5333 = vsel %vm5331, %v5318, %v5332
        %vm5334 = vcmp.eq.s32.totalorder %v5329, 2
        %v5335 = vxor.u32 %v5318, 2147483648
        %v5336 = vsel %vm5334, %v5335, %v5326
        %v5337 = vsel %vm5330, %v5333, %v5336
        %v5338 = vsel %vm5327, nan, %v5337
        %v5339 = vand.u32 2147483647, %v3251
        %vm5340 = vcmp.le.f32.partialorder %v5339, 0.7853982
        %vm5341 = vcmp.lt.s32.totalorder %v3251, 0
        %v5342 = vand.u32 %v3251, 2139095040
        %v5343 = vshrl.u32 %v5342, 23
        %v5344 = vsub.s32 %v5343, 127
        %v5345 = vand.u32 2147483647, %v3251
        %v5346 = vand.u32 %v5345, 8388607
        %v5347 = vor.u32 %v5346, 8388608
        %v5348 = vsub.s32 0, %v5347
        %v5349 = vadd.s32 %v5344, 1
        %vm5350 = vcmp.gt.s32.totalorder %v5349, 0
        %v5351 = vsel %vm5350, %v5349, 0
        %v5352 = vshrl.u32 %v5351, 5
        %v5353 = vand.u32 %v5351, 31
        %v5354 = vsub.s32 32, %v5353
        %v5355 = vshrl.u32 683565275, %v5354
        %v5356 = vshll.u32 683565275, %v5353
        %v5357 = vshrl.u32 2475754826, %v5354
        %v5358 = vor.u32 %v5356, %v5357
        %v5359 = vshll.u32 2475754826, %v5353
        %v5360 = vshrl.u32 2131351028, %v5354
        %v5361 = vor.u32 %v5359, %v5360
        %v5362 = vshll.u32 2131351028, %v5353
        %v5363 = vshrl.u32 2102212464, %v5354
        %v5364 = vor.u32 %v5362, %v5363
        %v5365 = vshll.u32 2102212464, %v5353
        %v5366 = vshrl.u32 920167782, %v5354
        %v5367 = vor.u32 %v5365, %v5366
        %v5368 = vshll.u32 920167782, %v5353
        %v5369 = vshrl.u32 1326507024, %v5354
        %v5370 = vor.u32 %v5368, %v5369
        %vm5371 = vcmp.lt.s32.totalorder %v5352, 1
        %vm5372 = vcmp.lt.s32.totalorder %v5352, 2
        %vm5373 = vcmp.lt.s32.totalorder %v5352, 3
        %vm5374 = vcmp.lt.s32.totalorder %v5352, 4
        %v5375 = vsel %vm5371, %v5355, %v5358
        %v5376 = vsel %vm5374, %v5364, 2102212464
        %v5377 = vsel %vm5373, %v5361, %v5376
        %v5378 = vsel %vm5372, %v5375, %v5377
        %v5379 = vsel %vm5371, %v5358, %v5361
        %v5380 = vsel %vm5374, %v5367, 920167782
        %v5381 = vsel %vm5373, %v5364, %v5380
        %v5382 = vsel %vm5372, %v5379, %v5381
        %v5383 = vsel %vm5371, %v5361, %v5364
        %v5384 = vsel %vm5374, %v5370, 1326507024
        %v5385 = vsel %vm5373, %v5367, %v5384
        %v5386 = vsel %vm5372, %v5383, %v5385
        %v5387 = vshll.u32 %v5347, 8
        %v5388 = vand.u32 %v5387, 65535
        %v5389 = vshrl.u32 %v5387, 16
        %v5390 = vand.u32 %v5386, 65535
        %v5391 = vshrl.u32 %v5386, 16
        %v5392 = vmul.u32 %v5388, %v5390
        %v5393 = vmul.u32 %v5388, %v5391
        %v5394 = vmul.u32 %v5389, %v5390
        %v5395 = vmul.u32 %v5389, %v5391
        %v5396 = vshll.u32 %v5393, 16
        %v5397 = vshrl.u32 %v5393, 16
        %v5398 = vshll.u32 %v5394, 16
        %v5399 = vshrl.u32 %v5394, 16
        %vm5400 = vc.u32 %v5392, %v5396
        %v5401 = vsel %vm5400, 1, 0
        %v5402 = vadd.s32 %v5392, %v5396
        %v5403 = vadd.s32 %v5395, %v5401
        %vm5404 = vc.u32 %v5402, %v5398
        %v5405 = vsel %vm5404, 1, 0
        %v5406 = vadd.s32 %v5402, %v5398
        %v5407 = vadd.s32 %v5403, %v5405
        %v5408 = vadd.s32 %v5407, %v5397
        %v5409 = vadd.s32 %v5408, %v5399
        %v5410 = vand.u32 %v5387, 65535
        %v5411 = vshrl.u32 %v5387, 16
        %v5412 = vand.u32 %v5382, 65535
        %v5413 = vshrl.u32 %v5382, 16
        %v5414 = vmul.u32 %v5410, %v5412
        %v5415 = vmul.u32 %v5410, %v5413
        %v5416 = vmul.u32 %v5411, %v5412
        %v5417 = vmul.u32 %v5411, %v5413
        %v5418 = vshll.u32 %v5415, 16
        %v5419 = vshrl.u32 %v5415, 16
        %v5420 = vshll.u32 %v5416, 16
        %v5421 = vshrl.u32 %v5416, 16
        %vm5422 = vc.u32 %v5414, %v5418
        %v5423 = vsel %vm5422, 1, 0
        %v5424 = vadd.s32 %v5414, %v5418
        %v5425 = vadd.s32 %v5417, %v5423
        %vm5426 = vc.u32 %v5424, %v5420
        %v5427 = vsel %vm5426, 1, 0
        %v5428 = vadd.s32 %v5424, %v5420
        %v5429 = vadd.s32 %v5425, %v5427
        %v5430 = vadd.s32 %v5429, %v5419
        %v5431 = vadd.s32 %v5430, %v5421
        %v5432 = vmul.u32 %v5387, %v5378
        %v5433 = vadd.s32 %v5409, %v5428
        %vm5434 = vc.u32 %v5409, %v5428
        %v5435 = vadd.s32 %v5431, 1
        %v5436 = vsel %vm5434, %v5435, %v5431
        %v5437 = vadd.s32 %v5432, %v5436
        %v5438 = vadd.s32 %v5437, 536870912
        %v5439 = vshrl.u32 %v5438, 30
        %v5440 = vshll.u32 %v5439, 30
        %v5441 = vsub.s32 %v5437, %v5440
        %vm5442 = vcmp.lt.s32.totalorder %v5441, 0
        %v5443 = vsub.s32 0, %v5441
        %v5444 = vsel %vm5442, %v5443, %v5441
        %v5445 = vclz %v5444
        %v5446 = vsub.s32 %v5445, 2
        %vm5447 = vcmp.gt.s32.totalorder 0, %v5446
        %v5448 = vsel %vm5447, 0, %v5446
        %v5449 = vsub.s32 32, %v5448
        %v5450 = vshll.u32 %v5441, %v5448
        %v5451 = vshrl.u32 %v5433, %v5449
        %v5452 = vor.u32 %v5450, %v5451
        %v5453 = vsub.s32 4294967266, %v5448
        %v5454 = vadd.s32 %v5453, 127
        %v5455 = vshll.u32 %v5454, 23
        %v5456 = vor.u32 4788187, %v5455
        %v5457 = vand.u32 2147483647, %v5456
        %v5459 = vcvt.s32.f32 %v5452
        %v5460 = vmul.f32 %v5459, %v5457
        %v5461 = vxor.u32 %v5460, 2147483648
        %v5462 = vsel %vm5341, %v5461, %v5460
        %v5463 = vsub.s32 4, %v5439
        %v5464 = vsel %vm5341, %v5463, %v5439
        %v5465 = vsel %vm5340, %v3251, %v5462
        %v5466 = vsel %vm5340, 0, %v5464
        %v5467 = vmul.f32 %v5465, %v5465
        %v5468 = vmul.f32 %v5467, -0.001358992
        %v5469 = vadd.f32 %v5468, 0.041655596
        %v5470 = vmul.f32 %v5467, %v5469
        %v5471 = vadd.f32 %v5470, -0.4999988
        %v5472 = vmul.f32 %v5467, %v5471
        %v5473 = vadd.f32 1.0, %v5472
        %v5474 = vmul.f32 %v5465, %v5465
        %v5475 = vmul.f32 %v5474, -0.00019511016
        %v5476 = vadd.f32 %v5475, 0.008332121
        %v5477 = vmul.f32 %v5474, %v5476
        %v5478 = vadd.f32 %v5477, -0.16666654
        %v5479 = vmul.f32 %v5474, %v5478
        %v5480 = vadd.f32 %v5479, 1.0
        %v5481 = vmul.f32 %v5480, %v5465
        %vm5482 = vweird.f32 %v3251
        %v5483 = vadd.s32 %v5466, 3
        %v5484 = vand.u32 %v5483, 3
        %vm5485 = vcmp.lt.s32.totalorder %v5484, 2
        %vm5486 = vcmp.eq.s32.totalorder %v5484, 0
        %v5487 = vxor.u32 %v5481, 2147483648
        %v5488 = vsel %vm5486, %v5473, %v5487
        %vm5489 = vcmp.eq.s32.totalorder %v5484, 2
        %v5490 = vxor.u32 %v5473, 2147483648
        %v5491 = vsel %vm5489, %v5490, %v5481
        %v5492 = vsel %vm5485, %v5488, %v5491
        %v5493 = vsel %vm5482, nan, %v5492
        %v5494 = vand.u32 2147483647, %v3254
        %vm5495 = vcmp.le.f32.partialorder %v5494, 0.7853982
        %vm5496 = vcmp.lt.s32.totalorder %v3254, 0
        %v5497 = vand.u32 %v3254, 2139095040
        %v5498 = vshrl.u32 %v5497, 23
        %v5499 = vsub.s32 %v5498, 127
        %v5500 = vand.u32 2147483647, %v3254
        %v5501 = vand.u32 %v5500, 8388607
        %v5502 = vor.u32 %v5501, 8388608
        %v5503 = vsub.s32 0, %v5502
        %v5504 = vadd.s32 %v5499, 1
        %vm5505 = vcmp.gt.s32.totalorder %v5504, 0
        %v5506 = vsel %vm5505, %v5504, 0
        %v5507 = vshrl.u32 %v5506, 5
        %v5508 = vand.u32 %v5506, 31
        %v5509 = vsub.s32 32, %v5508
        %v5510 = vshrl.u32 683565275, %v5509
        %v5511 = vshll.u32 683565275, %v5508
        %v5512 = vshrl.u32 2475754826, %v5509
        %v5513 = vor.u32 %v5511, %v5512
        %v5514 = vshll.u32 2475754826, %v5508
        %v5515 = vshrl.u32 2131351028, %v5509
        %v5516 = vor.u32 %v5514, %v5515
        %v5517 = vshll.u32 2131351028, %v5508
        %v5518 = vshrl.u32 2102212464, %v5509
        %v5519 = vor.u32 %v5517, %v5518
        %v5520 = vshll.u32 2102212464, %v5508
        %v5521 = vshrl.u32 920167782, %v5509
        %v5522 = vor.u32 %v5520, %v5521
        %v5523 = vshll.u32 920167782, %v5508
        %v5524 = vshrl.u32 1326507024, %v5509
        %v5525 = vor.u32 %v5523, %v5524
        %vm5526 = vcmp.lt.s32.totalorder %v5507, 1
        %vm5527 = vcmp.lt.s32.totalorder %v5507, 2
        %vm5528 = vcmp.lt.s32.totalorder %v5507, 3
        %vm5529 = vcmp.lt.s32.totalorder %v5507, 4
        %v5530 = vsel %vm5526, %v5510, %v5513
        %v5531 = vsel %vm5529, %v5519, 2102212464
        %v5532 = vsel %vm5528, %v5516, %v5531
        %v5533 = vsel %vm5527, %v5530, %v5532
        %v5534 = vsel %vm5526, %v5513, %v5516
        %v5535 = vsel %vm5529, %v5522, 920167782
        %v5536 = vsel %vm5528, %v5519, %v5535
        %v5537 = vsel %vm5527, %v5534, %v5536
        %v5538 = vsel %vm5526, %v5516, %v5519
        %v5539 = vsel %vm5529, %v5525, 1326507024
        %v5540 = vsel %vm5528, %v5522, %v5539
        %v5541 = vsel %vm5527, %v5538, %v5540
        %v5542 = vshll.u32 %v5502, 8
        %v5543 = vand.u32 %v5542, 65535
        %v5544 = vshrl.u32 %v5542, 16
        %v5545 = vand.u32 %v5541, 65535
        %v5546 = vshrl.u32 %v5541, 16
        %v5547 = vmul.u32 %v5543, %v5545
        %v5548 = vmul.u32 %v5543, %v5546
        %v5549 = vmul.u32 %v5544, %v5545
        %v5550 = vmul.u32 %v5544, %v5546
        %v5551 = vshll.u32 %v5548, 16
        %v5552 = vshrl.u32 %v5548, 16
        %v5553 = vshll.u32 %v5549, 16
        %v5554 = vshrl.u32 %v5549, 16
        %vm5555 = vc.u32 %v5547, %v5551
        %v5556 = vsel %vm5555, 1, 0
        %v5557 = vadd.s32 %v5547, %v5551
        %v5558 = vadd.s32 %v5550, %v5556
        %vm5559 = vc.u32 %v5557, %v5553
        %v5560 = vsel %vm5559, 1, 0
        %v5561 = vadd.s32 %v5557, %v5553
        %v5562 = vadd.s32 %v5558, %v5560
        %v5563 = vadd.s32 %v5562, %v5552
        %v5564 = vadd.s32 %v5563, %v5554
        %v5565 = vand.u32 %v5542, 65535
        %v5566 = vshrl.u32 %v5542, 16
        %v5567 = vand.u32 %v5537, 65535
        %v5568 = vshrl.u32 %v5537, 16
        %v5569 = vmul.u32 %v5565, %v5567
        %v5570 = vmul.u32 %v5565, %v5568
        %v5571 = vmul.u32 %v5566, %v5567
        %v5572 = vmul.u32 %v5566, %v5568
        %v5573 = vshll.u32 %v5570, 16
        %v5574 = vshrl.u32 %v5570, 16
        %v5575 = vshll.u32 %v5571, 16
        %v5576 = vshrl.u32 %v5571, 16
        %vm5577 = vc.u32 %v5569, %v5573
        %v5578 = vsel %vm5577, 1, 0
        %v5579 = vadd.s32 %v5569, %v5573
        %v5580 = vadd.s32 %v5572, %v5578
        %vm5581 = vc.u32 %v5579, %v5575
        %v5582 = vsel %vm5581, 1, 0
        %v5583 = vadd.s32 %v5579, %v5575
        %v5584 = vadd.s32 %v5580, %v5582
        %v5585 = vadd.s32 %v5584, %v5574
        %v5586 = vadd.s32 %v5585, %v5576
        %v5587 = vmul.u32 %v5542, %v5533
        %v5588 = vadd.s32 %v5564, %v5583
        %vm5589 = vc.u32 %v5564, %v5583
        %v5590 = vadd.s32 %v5586, 1
        %v5591 = vsel %vm5589, %v5590, %v5586
        %v5592 = vadd.s32 %v5587, %v5591
        %v5593 = vadd.s32 %v5592, 536870912
        %v5594 = vshrl.u32 %v5593, 30
        %v5595 = vshll.u32 %v5594, 30
        %v5596 = vsub.s32 %v5592, %v5595
        %vm5597 = vcmp.lt.s32.totalorder %v5596, 0
        %v5598 = vsub.s32 0, %v5596
        %v5599 = vsel %vm5597, %v5598, %v5596
        %v5600 = vclz %v5599
        %v5601 = vsub.s32 %v5600, 2
        %vm5602 = vcmp.gt.s32.totalorder 0, %v5601
        %v5603 = vsel %vm5602, 0, %v5601
        %v5604 = vsub.s32 32, %v5603
        %v5605 = vshll.u32 %v5596, %v5603
        %v5606 = vshrl.u32 %v5588, %v5604
        %v5607 = vor.u32 %v5605, %v5606
        %v5608 = vsub.s32 4294967266, %v5603
        %v5609 = vadd.s32 %v5608, 127
        %v5610 = vshll.u32 %v5609, 23
        %v5611 = vor.u32 4788187, %v5610
        %v5612 = vand.u32 2147483647, %v5611
        %v5614 = vcvt.s32.f32 %v5607
        %v5615 = vmul.f32 %v5614, %v5612
        %v5616 = vxor.u32 %v5615, 2147483648
        %v5617 = vsel %vm5496, %v5616, %v5615
        %v5618 = vsub.s32 4, %v5594
        %v5619 = vsel %vm5496, %v5618, %v5594
        %v5620 = vsel %vm5495, %v3254, %v5617
        %v5621 = vsel %vm5495, 0, %v5619
        %v5622 = vmul.f32 %v5620, %v5620
        %v5623 = vmul.f32 %v5622, -0.001358992
        %v5624 = vadd.f32 %v5623, 0.041655596
        %v5625 = vmul.f32 %v5622, %v5624
        %v5626 = vadd.f32 %v5625, -0.4999988
        %v5627 = vmul.f32 %v5622, %v5626
        %v5628 = vadd.f32 1.0, %v5627
        %v5629 = vmul.f32 %v5620, %v5620
        %v5630 = vmul.f32 %v5629, -0.00019511016
        %v5631 = vadd.f32 %v5630, 0.008332121
        %v5632 = vmul.f32 %v5629, %v5631
        %v5633 = vadd.f32 %v5632, -0.16666654
        %v5634 = vmul.f32 %v5629, %v5633
        %v5635 = vadd.f32 %v5634, 1.0
        %v5636 = vmul.f32 %v5635, %v5620
        %vm5637 = vweird.f32 %v3254
        %v5638 = vadd.s32 %v5621, 3
        %v5639 = vand.u32 %v5638, 3
        %vm5640 = vcmp.lt.s32.totalorder %v5639, 2
        %vm5641 = vcmp.eq.s32.totalorder %v5639, 0
        %v5642 = vxor.u32 %v5636, 2147483648
        %v5643 = vsel %vm5641, %v5628, %v5642
        %vm5644 = vcmp.eq.s32.totalorder %v5639, 2
        %v5645 = vxor.u32 %v5628, 2147483648
        %v5646 = vsel %vm5644, %v5645, %v5636
        %v5647 = vsel %vm5640, %v5643, %v5646
        %v5648 = vsel %vm5637, nan, %v5647
        %v5649 = vand.u32 2147483647, %v3257
        %vm5650 = vcmp.le.f32.partialorder %v5649, 0.7853982
        %vm5651 = vcmp.lt.s32.totalorder %v3257, 0
        %v5652 = vand.u32 %v3257, 2139095040
        %v5653 = vshrl.u32 %v5652, 23
        %v5654 = vsub.s32 %v5653, 127
        %v5655 = vand.u32 2147483647, %v3257
        %v5656 = vand.u32 %v5655, 8388607
        %v5657 = vor.u32 %v5656, 8388608
        %v5658 = vsub.s32 0, %v5657
        %v5659 = vadd.s32 %v5654, 1
        %vm5660 = vcmp.gt.s32.totalorder %v5659, 0
        %v5661 = vsel %vm5660, %v5659, 0
        %v5662 = vshrl.u32 %v5661, 5
        %v5663 = vand.u32 %v5661, 31
        %v5664 = vsub.s32 32, %v5663
        %v5665 = vshrl.u32 683565275, %v5664
        %v5666 = vshll.u32 683565275, %v5663
        %v5667 = vshrl.u32 2475754826, %v5664
        %v5668 = vor.u32 %v5666, %v5667
        %v5669 = vshll.u32 2475754826, %v5663
        %v5670 = vshrl.u32 2131351028, %v5664
        %v5671 = vor.u32 %v5669, %v5670
        %v5672 = vshll.u32 2131351028, %v5663
        %v5673 = vshrl.u32 2102212464, %v5664
        %v5674 = vor.u32 %v5672, %v5673
        %v5675 = vshll.u32 2102212464, %v5663
        %v5676 = vshrl.u32 920167782, %v5664
        %v5677 = vor.u32 %v5675, %v5676
        %v5678 = vshll.u32 920167782, %v5663
        %v5679 = vshrl.u32 1326507024, %v5664
        %v5680 = vor.u32 %v5678, %v5679
        %vm5681 = vcmp.lt.s32.totalorder %v5662, 1
        %vm5682 = vcmp.lt.s32.totalorder %v5662, 2
        %vm5683 = vcmp.lt.s32.totalorder %v5662, 3
        %vm5684 = vcmp.lt.s32.totalorder %v5662, 4
        %v5685 = vsel %vm5681, %v5665, %v5668
        %v5686 = vsel %vm5684, %v5674, 2102212464
        %v5687 = vsel %vm5683, %v5671, %v5686
        %v5688 = vsel %vm5682, %v5685, %v5687
        %v5689 = vsel %vm5681, %v5668, %v5671
        %v5690 = vsel %vm5684, %v5677, 920167782
        %v5691 = vsel %vm5683, %v5674, %v5690
        %v5692 = vsel %vm5682, %v5689, %v5691
        %v5693 = vsel %vm5681, %v5671, %v5674
        %v5694 = vsel %vm5684, %v5680, 1326507024
        %v5695 = vsel %vm5683, %v5677, %v5694
        %v5696 = vsel %vm5682, %v5693, %v5695
        %v5697 = vshll.u32 %v5657, 8
        %v5698 = vand.u32 %v5697, 65535
        %v5699 = vshrl.u32 %v5697, 16
        %v5700 = vand.u32 %v5696, 65535
        %v5701 = vshrl.u32 %v5696, 16
        %v5702 = vmul.u32 %v5698, %v5700
        %v5703 = vmul.u32 %v5698, %v5701
        %v5704 = vmul.u32 %v5699, %v5700
        %v5705 = vmul.u32 %v5699, %v5701
        %v5706 = vshll.u32 %v5703, 16
        %v5707 = vshrl.u32 %v5703, 16
        %v5708 = vshll.u32 %v5704, 16
        %v5709 = vshrl.u32 %v5704, 16
        %vm5710 = vc.u32 %v5702, %v5706
        %v5711 = vsel %vm5710, 1, 0
        %v5712 = vadd.s32 %v5702, %v5706
        %v5713 = vadd.s32 %v5705, %v5711
        %vm5714 = vc.u32 %v5712, %v5708
        %v5715 = vsel %vm5714, 1, 0
        %v5716 = vadd.s32 %v5712, %v5708
        %v5717 = vadd.s32 %v5713, %v5715
        %v5718 = vadd.s32 %v5717, %v5707
        %v5719 = vadd.s32 %v5718, %v5709
        %v5720 = vand.u32 %v5697, 65535
        %v5721 = vshrl.u32 %v5697, 16
        %v5722 = vand.u32 %v5692, 65535
        %v5723 = vshrl.u32 %v5692, 16
        %v5724 = vmul.u32 %v5720, %v5722
        %v5725 = vmul.u32 %v5720, %v5723
        %v5726 = vmul.u32 %v5721, %v5722
        %v5727 = vmul.u32 %v5721, %v5723
        %v5728 = vshll.u32 %v5725, 16
        %v5729 = vshrl.u32 %v5725, 16
        %v5730 = vshll.u32 %v5726, 16
        %v5731 = vshrl.u32 %v5726, 16
        %vm5732 = vc.u32 %v5724, %v5728
        %v5733 = vsel %vm5732, 1, 0
        %v5734 = vadd.s32 %v5724, %v5728
        %v5735 = vadd.s32 %v5727, %v5733
        %vm5736 = vc.u32 %v5734, %v5730
        %v5737 = vsel %vm5736, 1, 0
        %v5738 = vadd.s32 %v5734, %v5730
        %v5739 = vadd.s32 %v5735, %v5737
        %v5740 = vadd.s32 %v5739, %v5729
        %v5741 = vadd.s32 %v5740, %v5731
        %v5742 = vmul.u32 %v5697, %v5688
        %v5743 = vadd.s32 %v5719, %v5738
        %vm5744 = vc.u32 %v5719, %v5738
        %v5745 = vadd.s32 %v5741, 1
        %v5746 = vsel %vm5744, %v5745, %v5741
        %v5747 = vadd.s32 %v5742, %v5746
        %v5748 = vadd.s32 %v5747, 536870912
        %v5749 = vshrl.u32 %v5748, 30
        %v5750 = vshll.u32 %v5749, 30
        %v5751 = vsub.s32 %v5747, %v5750
        %vm5752 = vcmp.lt.s32.totalorder %v5751, 0
        %v5753 = vsub.s32 0, %v5751
        %v5754 = vsel %vm5752, %v5753, %v5751
        %v5755 = vclz %v5754
        %v5756 = vsub.s32 %v5755, 2
        %vm5757 = vcmp.gt.s32.totalorder 0, %v5756
        %v5758 = vsel %vm5757, 0, %v5756
        %v5759 = vsub.s32 32, %v5758
        %v5760 = vshll.u32 %v5751, %v5758
        %v5761 = vshrl.u32 %v5743, %v5759
        %v5762 = vor.u32 %v5760, %v5761
        %v5763 = vsub.s32 4294967266, %v5758
        %v5764 = vadd.s32 %v5763, 127
        %v5765 = vshll.u32 %v5764, 23
        %v5766 = vor.u32 4788187, %v5765
        %v5767 = vand.u32 2147483647, %v5766
        %v5769 = vcvt.s32.f32 %v5762
        %v5770 = vmul.f32 %v5769, %v5767
        %v5771 = vxor.u32 %v5770, 2147483648
        %v5772 = vsel %vm5651, %v5771, %v5770
        %v5773 = vsub.s32 4, %v5749
        %v5774 = vsel %vm5651, %v5773, %v5749
        %v5775 = vsel %vm5650, %v3257, %v5772
        %v5776 = vsel %vm5650, 0, %v5774
        %v5777 = vmul.f32 %v5775, %v5775
        %v5778 = vmul.f32 %v5777, -0.001358992
        %v5779 = vadd.f32 %v5778, 0.041655596
        %v5780 = vmul.f32 %v5777, %v5779
        %v5781 = vadd.f32 %v5780, -0.4999988
        %v5782 = vmul.f32 %v5777, %v5781
        %v5783 = vadd.f32 1.0, %v5782
        %v5784 = vmul.f32 %v5775, %v5775
        %v5785 = vmul.f32 %v5784, -0.00019511016
        %v5786 = vadd.f32 %v5785, 0.008332121
        %v5787 = vmul.f32 %v5784, %v5786
        %v5788 = vadd.f32 %v5787, -0.16666654
        %v5789 = vmul.f32 %v5784, %v5788
        %v5790 = vadd.f32 %v5789, 1.0
        %v5791 = vmul.f32 %v5790, %v5775
        %vm5792 = vweird.f32 %v3257
        %v5793 = vadd.s32 %v5776, 3
        %v5794 = vand.u32 %v5793, 3
        %vm5795 = vcmp.lt.s32.totalorder %v5794, 2
        %vm5796 = vcmp.eq.s32.totalorder %v5794, 0
        %v5797 = vxor.u32 %v5791, 2147483648
        %v5798 = vsel %vm5796, %v5783, %v5797
        %vm5799 = vcmp.eq.s32.totalorder %v5794, 2
        %v5800 = vxor.u32 %v5783, 2147483648
        %v5801 = vsel %vm5799, %v5800, %v5791
        %v5802 = vsel %vm5795, %v5798, %v5801
        %v5803 = vsel %vm5792, nan, %v5802
        %v5804 = vmul.f32 %v3277, %v3277
        %v5805 = vmul.f32 %v3280, %v3280
        %v5806 = vmul.f32 %v3283, %v3283
        %v5807 = vmul.f32 %v3286, %v3286
        %v5808 = vmul.f32 %v3289, %v3289
        %v5809 = vmul.f32 %v3292, %v3292
        %v5810 = vmul.f32 %v3295, %v3295
        %v5811 = vmul.f32 %v3298, %v3298
        %v5812 = vmul.f32 %v3301, %v3301
        %v5813 = vmul.f32 %v3304, %v3304
        %v5814 = vmul.f32 %v3307, %v3307
        %v5815 = vmul.f32 %v3310, %v3310
        %v5816 = vmul.f32 %v3313, %v3313
        %v5817 = vmul.f32 %v3316, %v3316
        %v5818 = vmul.f32 %v3319, %v3319
        %v5819 = vmul.f32 %v3322, %v3322
        %v5820 = vsub.f32 0.0, %v5804
        %v5821 = vsub.f32 0.0, %v5805
        %v5822 = vsub.f32 0.0, %v5806
        %v5823 = vsub.f32 0.0, %v5807
        %v5824 = vsub.f32 0.0, %v5808
        %v5825 = vsub.f32 0.0, %v5809
        %v5826 = vsub.f32 0.0, %v5810
        %v5827 = vsub.f32 0.0, %v5811
        %v5828 = vsub.f32 0.0, %v5812
        %v5829 = vsub.f32 0.0, %v5813
        %v5830 = vsub.f32 0.0, %v5814
        %v5831 = vsub.f32 0.0, %v5815
        %v5832 = vsub.f32 0.0, %v5816
        %v5833 = vsub.f32 0.0, %v5817
        %v5834 = vsub.f32 0.0, %v5818
        %v5835 = vsub.f32 0.0, %v5819
        %v5836 = vpow.pop %v5820
        %v5837 = vpow.pop %v5821
        %v5838 = vpow.pop %v5822
        %v5839 = vpow.pop %v5823
        %v5840 = vpow.pop %v5824
        %v5841 = vpow.pop %v5825
        %v5842 = vpow.pop %v5826
        %v5843 = vpow.pop %v5827
        %v5844 = vpow.pop %v5828
        %v5845 = vpow.pop %v5829
        %v5846 = vpow.pop %v5830
        %v5847 = vpow.pop %v5831
        %v5848 = vpow.pop %v5832
        %v5849 = vpow.pop %v5833
        %v5850 = vpow.pop %v5834
        %v5851 = vpow.pop %v5835
        %v5852 = vmul.f32 %v3478, %v5836
        %v5853 = vmul.f32 %v3633, %v5837
        %v5854 = vmul.f32 %v3788, %v5838
        %v5855 = vmul.f32 %v3943, %v5839
        %v5856 = vmul.f32 %v4098, %v5840
        %v5857 = vmul.f32 %v4253, %v5841
        %v5858 = vmul.f32 %v4408, %v5842
        %v5859 = vmul.f32 %v4563, %v5843
        %v5860 = vmul.f32 %v4718, %v5844
        %v5861 = vmul.f32 %v4873, %v5845
        %v5862 = vmul.f32 %v5028, %v5846
        %v5863 = vmul.f32 %v5183, %v5847
        %v5864 = vmul.f32 %v5338, %v5848
        %v5865 = vmul.f32 %v5493, %v5849
        %v5866 = vmul.f32 %v5648, %v5850
        %v5867 = vmul.f32 %v5803, %v5851
        %v5868 = vld [vmem:[%s5] sm:$0xff]
        %v5869 = vld [vmem:[%s5 + $0x8] sm:$0xff]
        %v5870 = vld [vmem:[%s5 + $0x10] sm:$0xff]
        %v5871 = vld [vmem:[%s5 + $0x18] sm:$0xff]
        %v5872 = vld [vmem:[%s5 + $0x20] sm:$0xff]
        %v5873 = vld [vmem:[%s5 + $0x28] sm:$0xff]
        %v5874 = vld [vmem:[%s5 + $0x30] sm:$0xff]
        %v5875 = vld [vmem:[%s5 + $0x38] sm:$0xff]
        %v5876 = vld [vmem:[%s5 + $0x40] sm:$0xff]
        %v5877 = vld [vmem:[%s5 + $0x48] sm:$0xff]
        %v5878 = vld [vmem:[%s5 + $0x50] sm:$0xff]
        %v5879 = vld [vmem:[%s5 + $0x58] sm:$0xff]
        %v5880 = vld [vmem:[%s5 + $0x60] sm:$0xff]
        %v5881 = vld [vmem:[%s5 + $0x68] sm:$0xff]
        %v5882 = vld [vmem:[%s5 + $0x70] sm:$0xff]
        %v5883 = vld [vmem:[%s5 + $0x78] sm:$0xff]
        %v5884 = vld [vmem:[%s5 + $0x80] sm:$0xff]
        %v5885 = vld [vmem:[%s5 + $0x88] sm:$0xff]
        %v5886 = vld [vmem:[%s5 + $0x90] sm:$0xff]
        %v5887 = vld [vmem:[%s5 + $0x98] sm:$0xff]
        %v5888 = vld [vmem:[%s5 + $0xa0] sm:$0xff]
        %v5889 = vld [vmem:[%s5 + $0xa8] sm:$0xff]
        %v5890 = vld [vmem:[%s5 + $0xb0] sm:$0xff]
        %v5891 = vld [vmem:[%s5 + $0xb8] sm:$0xff]
        %v5892 = vld [vmem:[%s5 + $0xc0] sm:$0xff]
        %v5893 = vld [vmem:[%s5 + $0xc8] sm:$0xff]
        %v5894 = vld [vmem:[%s5 + $0xd0] sm:$0xff]
        %v5895 = vld [vmem:[%s5 + $0xd8] sm:$0xff]
        %v5896 = vld [vmem:[%s5 + $0xe0] sm:$0xff]
        %v5897 = vld [vmem:[%s5 + $0xe8] sm:$0xff]
        %v5898 = vld [vmem:[%s5 + $0xf0] sm:$0xff]
        %v5899 = vld [vmem:[%s5 + $0xf8] sm:$0xff]
        %v5900 = vld [vmem:[%s6] sm:$0x3]
        %v5902 = vperm.slane %v5900, 0
        %v5903 = vperm.slane %v5900, 1
        %5906 = vmatpush.msra.mxu0 %v5898
        %5907 = vmatpush.msra.mxu0 %v5896
        %5908 = vmatpush.msra.mxu0 %v5894
        %5909 = vmatpush.msra.mxu0 %v5892
        %5910 = vmatpush.msra.mxu0 %v5890
        %5911 = vmatpush.msra.mxu0 %v5888
        %5912 = vmatpush.msra.mxu0 %v5886
        %5913 = vmatpush.msra.mxu0 %v5884
        %5914 = vmatpush.msra.mxu0 %v5882
        %5915 = vmatpush.msra.mxu0 %v5880
        %5916 = vmatpush.msra.mxu0 %v5878
        %5917 = vmatpush.msra.mxu0 %v5876
        %5918 = vmatpush.msra.mxu0 %v5874
        %5919 = vmatpush.msra.mxu0 %v5872
        %5920 = vmatpush.msra.mxu0 %v5870
        %5921 = vmatpush.msra.mxu0 %v5868
        %5922 = vmatmul.f32.gmra.mxu0 %v5852
        %v5923 = vpop.f32.mrf.mxu0
        %v5924 = vadd.f32 %v5902, %v5923
        %5925 = vmatmul.f32.gmra.mxu0 %v5853
        %v5926 = vpop.f32.mrf.mxu0
        %v5927 = vadd.f32 %v5902, %v5926
        %5928 = vmatmul.f32.gmra.mxu0 %v5854
        %v5929 = vpop.f32.mrf.mxu0
        %v5930 = vadd.f32 %v5902, %v5929
        %5931 = vmatmul.f32.gmra.mxu0 %v5855
        %v5932 = vpop.f32.mrf.mxu0
        %v5933 = vadd.f32 %v5902, %v5932
        %5934 = vmatmul.f32.gmra.mxu0 %v5856
        %v5935 = vpop.f32.mrf.mxu0
        %v5936 = vadd.f32 %v5902, %v5935
        %5937 = vmatmul.f32.gmra.mxu0 %v5857
        %v5938 = vpop.f32.mrf.mxu0
        %v5939 = vadd.f32 %v5902, %v5938
        %5940 = vmatmul.f32.gmra.mxu0 %v5858
        %v5941 = vpop.f32.mrf.mxu0
        %v5942 = vadd.f32 %v5902, %v5941
        %5943 = vmatmul.f32.gmra.mxu0 %v5859
        %v5944 = vpop.f32.mrf.mxu0
        %v5945 = vadd.f32 %v5902, %v5944
        %5946 = vmatmul.f32.gmra.mxu0 %v5860
        %v5947 = vpop.f32.mrf.mxu0
        %v5948 = vadd.f32 %v5902, %v5947
        %5949 = vmatmul.f32.gmra.mxu0 %v5861
        %v5950 = vpop.f32.mrf.mxu0
        %v5951 = vadd.f32 %v5902, %v5950
        %5952 = vmatmul.f32.gmra.mxu0 %v5862
        %v5953 = vpop.f32.mrf.mxu0
        %v5954 = vadd.f32 %v5902, %v5953
        %5955 = vmatmul.f32.gmra.mxu0 %v5863
        %v5956 = vpop.f32.mrf.mxu0
        %v5957 = vadd.f32 %v5902, %v5956
        %5958 = vmatmul.f32.gmra.mxu0 %v5864
        %v5959 = vpop.f32.mrf.mxu0
        %v5960 = vadd.f32 %v5902, %v5959
        %5961 = vmatmul.f32.gmra.mxu0 %v5865
        %v5962 = vpop.f32.mrf.mxu0
        %v5963 = vadd.f32 %v5902, %v5962
        %5964 = vmatmul.f32.gmra.mxu0 %v5866
        %v5965 = vpop.f32.mrf.mxu0
        %v5966 = vadd.f32 %v5902, %v5965
        %5967 = vmatmul.f32.gmra.mxu0 %v5867
        %v5968 = vpop.f32.mrf.mxu0
        %v5969 = vadd.f32 %v5902, %v5968
        %5970 = vdwg.mxu0
        %5971 = vmatpush.msra.mxu0 %v5899
        %5972 = vmatpush.msra.mxu0 %v5897
        %5973 = vmatpush.msra.mxu0 %v5895
        %5974 = vmatpush.msra.mxu0 %v5893
        %5975 = vmatpush.msra.mxu0 %v5891
        %5976 = vmatpush.msra.mxu0 %v5889
        %5977 = vmatpush.msra.mxu0 %v5887
        %5978 = vmatpush.msra.mxu0 %v5885
        %5979 = vmatpush.msra.mxu0 %v5883
        %5980 = vmatpush.msra.mxu0 %v5881
        %5981 = vmatpush.msra.mxu0 %v5879
        %5982 = vmatpush.msra.mxu0 %v5877
        %5983 = vmatpush.msra.mxu0 %v5875
        %5984 = vmatpush.msra.mxu0 %v5873
        %5985 = vmatpush.msra.mxu0 %v5871
        %5986 = vmatpush.msra.mxu0 %v5869
        %5987 = vmatmul.f32.gmra.mxu0 %v5852
        %v5988 = vpop.f32.mrf.mxu0
        %v5989 = vadd.f32 %v5903, %v5988
        %5990 = vmatmul.f32.gmra.mxu0 %v5853
        %v5991 = vpop.f32.mrf.mxu0
        %v5992 = vadd.f32 %v5903, %v5991
        %5993 = vmatmul.f32.gmra.mxu0 %v5854
        %v5994 = vpop.f32.mrf.mxu0
        %v5995 = vadd.f32 %v5903, %v5994
        %5996 = vmatmul.f32.gmra.mxu0 %v5855
        %v5997 = vpop.f32.mrf.mxu0
        %v5998 = vadd.f32 %v5903, %v5997
        %5999 = vmatmul.f32.gmra.mxu0 %v5856
        %v6000 = vpop.f32.mrf.mxu0
        %v6001 = vadd.f32 %v5903, %v6000
        %6002 = vmatmul.f32.gmra.mxu0 %v5857
        %v6003 = vpop.f32.mrf.mxu0
        %v6004 = vadd.f32 %v5903, %v6003
        %6005 = vmatmul.f32.gmra.mxu0 %v5858
        %v6006 = vpop.f32.mrf.mxu0
        %v6007 = vadd.f32 %v5903, %v6006
        %6008 = vmatmul.f32.gmra.mxu0 %v5859
        %v6009 = vpop.f32.mrf.mxu0
        %v6010 = vadd.f32 %v5903, %v6009
        %6011 = vmatmul.f32.gmra.mxu0 %v5860
        %v6012 = vpop.f32.mrf.mxu0
        %v6013 = vadd.f32 %v5903, %v6012
        %6014 = vmatmul.f32.gmra.mxu0 %v5861
        %v6015 = vpop.f32.mrf.mxu0
        %v6016 = vadd.f32 %v5903, %v6015
        %6017 = vmatmul.f32.gmra.mxu0 %v5862
        %v6018 = vpop.f32.mrf.mxu0
        %v6019 = vadd.f32 %v5903, %v6018
        %6020 = vmatmul.f32.gmra.mxu0 %v5863
        %v6021 = vpop.f32.mrf.mxu0
        %v6022 = vadd.f32 %v5903, %v6021
        %6023 = vmatmul.f32.gmra.mxu0 %v5864
        %v6024 = vpop.f32.mrf.mxu0
        %v6025 = vadd.f32 %v5903, %v6024
        %6026 = vmatmul.f32.gmra.mxu0 %v5865
        %v6027 = vpop.f32.mrf.mxu0
        %v6028 = vadd.f32 %v5903, %v6027
        %6029 = vmatmul.f32.gmra.mxu0 %v5866
        %v6030 = vpop.f32.mrf.mxu0
        %v6031 = vadd.f32 %v5903, %v6030
        %6032 = vmatmul.f32.gmra.mxu0 %v5867
        %v6033 = vpop.f32.mrf.mxu0
        %v6034 = vadd.f32 %v5903, %v6033
        %6035 = vdwg.mxu0
        %v6036 = vand.u32 2147483647, %v5924
        %vm6037 = vcmp.le.f32.partialorder %v6036, 0.7853982
        %vm6038 = vcmp.lt.s32.totalorder %v5924, 0
        %v6039 = vand.u32 %v5924, 2139095040
        %v6040 = vshrl.u32 %v6039, 23
        %v6041 = vsub.s32 %v6040, 127
        %v6042 = vand.u32 2147483647, %v5924
        %v6043 = vand.u32 %v6042, 8388607
        %v6044 = vor.u32 %v6043, 8388608
        %v6045 = vsub.s32 0, %v6044
        %v6046 = vadd.s32 %v6041, 1
        %vm6047 = vcmp.gt.s32.totalorder %v6046, 0
        %v6048 = vsel %vm6047, %v6046, 0
        %v6049 = vshrl.u32 %v6048, 5
        %v6050 = vand.u32 %v6048, 31
        %v6051 = vsub.s32 32, %v6050
        %v6052 = vshrl.u32 683565275, %v6051
        %v6053 = vshll.u32 683565275, %v6050
        %v6054 = vshrl.u32 2475754826, %v6051
        %v6055 = vor.u32 %v6053, %v6054
        %v6056 = vshll.u32 2475754826, %v6050
        %v6057 = vshrl.u32 2131351028, %v6051
        %v6058 = vor.u32 %v6056, %v6057
        %v6059 = vshll.u32 2131351028, %v6050
        %v6060 = vshrl.u32 2102212464, %v6051
        %v6061 = vor.u32 %v6059, %v6060
        %v6062 = vshll.u32 2102212464, %v6050
        %v6063 = vshrl.u32 920167782, %v6051
        %v6064 = vor.u32 %v6062, %v6063
        %v6065 = vshll.u32 920167782, %v6050
        %v6066 = vshrl.u32 1326507024, %v6051
        %v6067 = vor.u32 %v6065, %v6066
        %vm6068 = vcmp.lt.s32.totalorder %v6049, 1
        %vm6069 = vcmp.lt.s32.totalorder %v6049, 2
        %vm6070 = vcmp.lt.s32.totalorder %v6049, 3
        %vm6071 = vcmp.lt.s32.totalorder %v6049, 4
        %v6072 = vsel %vm6068, %v6052, %v6055
        %v6073 = vsel %vm6071, %v6061, 2102212464
        %v6074 = vsel %vm6070, %v6058, %v6073
        %v6075 = vsel %vm6069, %v6072, %v6074
        %v6076 = vsel %vm6068, %v6055, %v6058
        %v6077 = vsel %vm6071, %v6064, 920167782
        %v6078 = vsel %vm6070, %v6061, %v6077
        %v6079 = vsel %vm6069, %v6076, %v6078
        %v6080 = vsel %vm6068, %v6058, %v6061
        %v6081 = vsel %vm6071, %v6067, 1326507024
        %v6082 = vsel %vm6070, %v6064, %v6081
        %v6083 = vsel %vm6069, %v6080, %v6082
        %v6084 = vshll.u32 %v6044, 8
        %v6085 = vand.u32 %v6084, 65535
        %v6086 = vshrl.u32 %v6084, 16
        %v6087 = vand.u32 %v6083, 65535
        %v6088 = vshrl.u32 %v6083, 16
        %v6089 = vmul.u32 %v6085, %v6087
        %v6090 = vmul.u32 %v6085, %v6088
        %v6091 = vmul.u32 %v6086, %v6087
        %v6092 = vmul.u32 %v6086, %v6088
        %v6093 = vshll.u32 %v6090, 16
        %v6094 = vshrl.u32 %v6090, 16
        %v6095 = vshll.u32 %v6091, 16
        %v6096 = vshrl.u32 %v6091, 16
        %vm6097 = vc.u32 %v6089, %v6093
        %v6098 = vsel %vm6097, 1, 0
        %v6099 = vadd.s32 %v6089, %v6093
        %v6100 = vadd.s32 %v6092, %v6098
        %vm6101 = vc.u32 %v6099, %v6095
        %v6102 = vsel %vm6101, 1, 0
        %v6103 = vadd.s32 %v6099, %v6095
        %v6104 = vadd.s32 %v6100, %v6102
        %v6105 = vadd.s32 %v6104, %v6094
        %v6106 = vadd.s32 %v6105, %v6096
        %v6107 = vand.u32 %v6084, 65535
        %v6108 = vshrl.u32 %v6084, 16
        %v6109 = vand.u32 %v6079, 65535
        %v6110 = vshrl.u32 %v6079, 16
        %v6111 = vmul.u32 %v6107, %v6109
        %v6112 = vmul.u32 %v6107, %v6110
        %v6113 = vmul.u32 %v6108, %v6109
        %v6114 = vmul.u32 %v6108, %v6110
        %v6115 = vshll.u32 %v6112, 16
        %v6116 = vshrl.u32 %v6112, 16
        %v6117 = vshll.u32 %v6113, 16
        %v6118 = vshrl.u32 %v6113, 16
        %vm6119 = vc.u32 %v6111, %v6115
        %v6120 = vsel %vm6119, 1, 0
        %v6121 = vadd.s32 %v6111, %v6115
        %v6122 = vadd.s32 %v6114, %v6120
        %vm6123 = vc.u32 %v6121, %v6117
        %v6124 = vsel %vm6123, 1, 0
        %v6125 = vadd.s32 %v6121, %v6117
        %v6126 = vadd.s32 %v6122, %v6124
        %v6127 = vadd.s32 %v6126, %v6116
        %v6128 = vadd.s32 %v6127, %v6118
        %v6129 = vmul.u32 %v6084, %v6075
        %v6130 = vadd.s32 %v6106, %v6125
        %vm6131 = vc.u32 %v6106, %v6125
        %v6132 = vadd.s32 %v6128, 1
        %v6133 = vsel %vm6131, %v6132, %v6128
        %v6134 = vadd.s32 %v6129, %v6133
        %v6135 = vadd.s32 %v6134, 536870912
        %v6136 = vshrl.u32 %v6135, 30
        %v6137 = vshll.u32 %v6136, 30
        %v6138 = vsub.s32 %v6134, %v6137
        %vm6139 = vcmp.lt.s32.totalorder %v6138, 0
        %v6140 = vsub.s32 0, %v6138
        %v6141 = vsel %vm6139, %v6140, %v6138
        %v6142 = vclz %v6141
        %v6143 = vsub.s32 %v6142, 2
        %vm6144 = vcmp.gt.s32.totalorder 0, %v6143
        %v6145 = vsel %vm6144, 0, %v6143
        %v6146 = vsub.s32 32, %v6145
        %v6147 = vshll.u32 %v6138, %v6145
        %v6148 = vshrl.u32 %v6130, %v6146
        %v6149 = vor.u32 %v6147, %v6148
        %v6150 = vsub.s32 4294967266, %v6145
        %v6151 = vadd.s32 %v6150, 127
        %v6152 = vshll.u32 %v6151, 23
        %v6153 = vor.u32 4788187, %v6152
        %v6154 = vand.u32 2147483647, %v6153
        %v6156 = vcvt.s32.f32 %v6149
        %v6157 = vmul.f32 %v6156, %v6154
        %v6158 = vxor.u32 %v6157, 2147483648
        %v6159 = vsel %vm6038, %v6158, %v6157
        %v6160 = vsub.s32 4, %v6136
        %v6161 = vsel %vm6038, %v6160, %v6136
        %v6162 = vsel %vm6037, %v5924, %v6159
        %v6163 = vsel %vm6037, 0, %v6161
        %v6164 = vmul.f32 %v6162, %v6162
        %v6165 = vmul.f32 %v6164, -0.001358992
        %v6166 = vadd.f32 %v6165, 0.041655596
        %v6167 = vmul.f32 %v6164, %v6166
        %v6168 = vadd.f32 %v6167, -0.4999988
        %v6169 = vmul.f32 %v6164, %v6168
        %v6170 = vadd.f32 1.0, %v6169
        %v6171 = vmul.f32 %v6162, %v6162
        %v6172 = vmul.f32 %v6171, -0.00019511016
        %v6173 = vadd.f32 %v6172, 0.008332121
        %v6174 = vmul.f32 %v6171, %v6173
        %v6175 = vadd.f32 %v6174, -0.16666654
        %v6176 = vmul.f32 %v6171, %v6175
        %v6177 = vadd.f32 %v6176, 1.0
        %v6178 = vmul.f32 %v6177, %v6162
        %vm6179 = vweird.f32 %v5924
        %v6180 = vadd.s32 %v6163, 3
        %v6181 = vand.u32 %v6180, 3
        %vm6182 = vcmp.lt.s32.totalorder %v6181, 2
        %vm6183 = vcmp.eq.s32.totalorder %v6181, 0
        %v6184 = vxor.u32 %v6178, 2147483648
        %v6185 = vsel %vm6183, %v6170, %v6184
        %vm6186 = vcmp.eq.s32.totalorder %v6181, 2
        %v6187 = vxor.u32 %v6170, 2147483648
        %v6188 = vsel %vm6186, %v6187, %v6178
        %v6189 = vsel %vm6182, %v6185, %v6188
        %v6190 = vsel %vm6179, nan, %v6189
        %v6191 = vand.u32 2147483647, %v5927
        %vm6192 = vcmp.le.f32.partialorder %v6191, 0.7853982
        %vm6193 = vcmp.lt.s32.totalorder %v5927, 0
        %v6194 = vand.u32 %v5927, 2139095040
        %v6195 = vshrl.u32 %v6194, 23
        %v6196 = vsub.s32 %v6195, 127
        %v6197 = vand.u32 2147483647, %v5927
        %v6198 = vand.u32 %v6197, 8388607
        %v6199 = vor.u32 %v6198, 8388608
        %v6200 = vsub.s32 0, %v6199
        %v6201 = vadd.s32 %v6196, 1
        %vm6202 = vcmp.gt.s32.totalorder %v6201, 0
        %v6203 = vsel %vm6202, %v6201, 0
        %v6204 = vshrl.u32 %v6203, 5
        %v6205 = vand.u32 %v6203, 31
        %v6206 = vsub.s32 32, %v6205
        %v6207 = vshrl.u32 683565275, %v6206
        %v6208 = vshll.u32 683565275, %v6205
        %v6209 = vshrl.u32 2475754826, %v6206
        %v6210 = vor.u32 %v6208, %v6209
        %v6211 = vshll.u32 2475754826, %v6205
        %v6212 = vshrl.u32 2131351028, %v6206
        %v6213 = vor.u32 %v6211, %v6212
        %v6214 = vshll.u32 2131351028, %v6205
        %v6215 = vshrl.u32 2102212464, %v6206
        %v6216 = vor.u32 %v6214, %v6215
        %v6217 = vshll.u32 2102212464, %v6205
        %v6218 = vshrl.u32 920167782, %v6206
        %v6219 = vor.u32 %v6217, %v6218
        %v6220 = vshll.u32 920167782, %v6205
        %v6221 = vshrl.u32 1326507024, %v6206
        %v6222 = vor.u32 %v6220, %v6221
        %vm6223 = vcmp.lt.s32.totalorder %v6204, 1
        %vm6224 = vcmp.lt.s32.totalorder %v6204, 2
        %vm6225 = vcmp.lt.s32.totalorder %v6204, 3
        %vm6226 = vcmp.lt.s32.totalorder %v6204, 4
        %v6227 = vsel %vm6223, %v6207, %v6210
        %v6228 = vsel %vm6226, %v6216, 2102212464
        %v6229 = vsel %vm6225, %v6213, %v6228
        %v6230 = vsel %vm6224, %v6227, %v6229
        %v6231 = vsel %vm6223, %v6210, %v6213
        %v6232 = vsel %vm6226, %v6219, 920167782
        %v6233 = vsel %vm6225, %v6216, %v6232
        %v6234 = vsel %vm6224, %v6231, %v6233
        %v6235 = vsel %vm6223, %v6213, %v6216
        %v6236 = vsel %vm6226, %v6222, 1326507024
        %v6237 = vsel %vm6225, %v6219, %v6236
        %v6238 = vsel %vm6224, %v6235, %v6237
        %v6239 = vshll.u32 %v6199, 8
        %v6240 = vand.u32 %v6239, 65535
        %v6241 = vshrl.u32 %v6239, 16
        %v6242 = vand.u32 %v6238, 65535
        %v6243 = vshrl.u32 %v6238, 16
        %v6244 = vmul.u32 %v6240, %v6242
        %v6245 = vmul.u32 %v6240, %v6243
        %v6246 = vmul.u32 %v6241, %v6242
        %v6247 = vmul.u32 %v6241, %v6243
        %v6248 = vshll.u32 %v6245, 16
        %v6249 = vshrl.u32 %v6245, 16
        %v6250 = vshll.u32 %v6246, 16
        %v6251 = vshrl.u32 %v6246, 16
        %vm6252 = vc.u32 %v6244, %v6248
        %v6253 = vsel %vm6252, 1, 0
        %v6254 = vadd.s32 %v6244, %v6248
        %v6255 = vadd.s32 %v6247, %v6253
        %vm6256 = vc.u32 %v6254, %v6250
        %v6257 = vsel %vm6256, 1, 0
        %v6258 = vadd.s32 %v6254, %v6250
        %v6259 = vadd.s32 %v6255, %v6257
        %v6260 = vadd.s32 %v6259, %v6249
        %v6261 = vadd.s32 %v6260, %v6251
        %v6262 = vand.u32 %v6239, 65535
        %v6263 = vshrl.u32 %v6239, 16
        %v6264 = vand.u32 %v6234, 65535
        %v6265 = vshrl.u32 %v6234, 16
        %v6266 = vmul.u32 %v6262, %v6264
        %v6267 = vmul.u32 %v6262, %v6265
        %v6268 = vmul.u32 %v6263, %v6264
        %v6269 = vmul.u32 %v6263, %v6265
        %v6270 = vshll.u32 %v6267, 16
        %v6271 = vshrl.u32 %v6267, 16
        %v6272 = vshll.u32 %v6268, 16
        %v6273 = vshrl.u32 %v6268, 16
        %vm6274 = vc.u32 %v6266, %v6270
        %v6275 = vsel %vm6274, 1, 0
        %v6276 = vadd.s32 %v6266, %v6270
        %v6277 = vadd.s32 %v6269, %v6275
        %vm6278 = vc.u32 %v6276, %v6272
        %v6279 = vsel %vm6278, 1, 0
        %v6280 = vadd.s32 %v6276, %v6272
        %v6281 = vadd.s32 %v6277, %v6279
        %v6282 = vadd.s32 %v6281, %v6271
        %v6283 = vadd.s32 %v6282, %v6273
        %v6284 = vmul.u32 %v6239, %v6230
        %v6285 = vadd.s32 %v6261, %v6280
        %vm6286 = vc.u32 %v6261, %v6280
        %v6287 = vadd.s32 %v6283, 1
        %v6288 = vsel %vm6286, %v6287, %v6283
        %v6289 = vadd.s32 %v6284, %v6288
        %v6290 = vadd.s32 %v6289, 536870912
        %v6291 = vshrl.u32 %v6290, 30
        %v6292 = vshll.u32 %v6291, 30
        %v6293 = vsub.s32 %v6289, %v6292
        %vm6294 = vcmp.lt.s32.totalorder %v6293, 0
        %v6295 = vsub.s32 0, %v6293
        %v6296 = vsel %vm6294, %v6295, %v6293
        %v6297 = vclz %v6296
        %v6298 = vsub.s32 %v6297, 2
        %vm6299 = vcmp.gt.s32.totalorder 0, %v6298
        %v6300 = vsel %vm6299, 0, %v6298
        %v6301 = vsub.s32 32, %v6300
        %v6302 = vshll.u32 %v6293, %v6300
        %v6303 = vshrl.u32 %v6285, %v6301
        %v6304 = vor.u32 %v6302, %v6303
        %v6305 = vsub.s32 4294967266, %v6300
        %v6306 = vadd.s32 %v6305, 127
        %v6307 = vshll.u32 %v6306, 23
        %v6308 = vor.u32 4788187, %v6307
        %v6309 = vand.u32 2147483647, %v6308
        %v6311 = vcvt.s32.f32 %v6304
        %v6312 = vmul.f32 %v6311, %v6309
        %v6313 = vxor.u32 %v6312, 2147483648
        %v6314 = vsel %vm6193, %v6313, %v6312
        %v6315 = vsub.s32 4, %v6291
        %v6316 = vsel %vm6193, %v6315, %v6291
        %v6317 = vsel %vm6192, %v5927, %v6314
        %v6318 = vsel %vm6192, 0, %v6316
        %v6319 = vmul.f32 %v6317, %v6317
        %v6320 = vmul.f32 %v6319, -0.001358992
        %v6321 = vadd.f32 %v6320, 0.041655596
        %v6322 = vmul.f32 %v6319, %v6321
        %v6323 = vadd.f32 %v6322, -0.4999988
        %v6324 = vmul.f32 %v6319, %v6323
        %v6325 = vadd.f32 1.0, %v6324
        %v6326 = vmul.f32 %v6317, %v6317
        %v6327 = vmul.f32 %v6326, -0.00019511016
        %v6328 = vadd.f32 %v6327, 0.008332121
        %v6329 = vmul.f32 %v6326, %v6328
        %v6330 = vadd.f32 %v6329, -0.16666654
        %v6331 = vmul.f32 %v6326, %v6330
        %v6332 = vadd.f32 %v6331, 1.0
        %v6333 = vmul.f32 %v6332, %v6317
        %vm6334 = vweird.f32 %v5927
        %v6335 = vadd.s32 %v6318, 3
        %v6336 = vand.u32 %v6335, 3
        %vm6337 = vcmp.lt.s32.totalorder %v6336, 2
        %vm6338 = vcmp.eq.s32.totalorder %v6336, 0
        %v6339 = vxor.u32 %v6333, 2147483648
        %v6340 = vsel %vm6338, %v6325, %v6339
        %vm6341 = vcmp.eq.s32.totalorder %v6336, 2
        %v6342 = vxor.u32 %v6325, 2147483648
        %v6343 = vsel %vm6341, %v6342, %v6333
        %v6344 = vsel %vm6337, %v6340, %v6343
        %v6345 = vsel %vm6334, nan, %v6344
        %v6346 = vand.u32 2147483647, %v5930
        %vm6347 = vcmp.le.f32.partialorder %v6346, 0.7853982
        %vm6348 = vcmp.lt.s32.totalorder %v5930, 0
        %v6349 = vand.u32 %v5930, 2139095040
        %v6350 = vshrl.u32 %v6349, 23
        %v6351 = vsub.s32 %v6350, 127
        %v6352 = vand.u32 2147483647, %v5930
        %v6353 = vand.u32 %v6352, 8388607
        %v6354 = vor.u32 %v6353, 8388608
        %v6355 = vsub.s32 0, %v6354
        %v6356 = vadd.s32 %v6351, 1
        %vm6357 = vcmp.gt.s32.totalorder %v6356, 0
        %v6358 = vsel %vm6357, %v6356, 0
        %v6359 = vshrl.u32 %v6358, 5
        %v6360 = vand.u32 %v6358, 31
        %v6361 = vsub.s32 32, %v6360
        %v6362 = vshrl.u32 683565275, %v6361
        %v6363 = vshll.u32 683565275, %v6360
        %v6364 = vshrl.u32 2475754826, %v6361
        %v6365 = vor.u32 %v6363, %v6364
        %v6366 = vshll.u32 2475754826, %v6360
        %v6367 = vshrl.u32 2131351028, %v6361
        %v6368 = vor.u32 %v6366, %v6367
        %v6369 = vshll.u32 2131351028, %v6360
        %v6370 = vshrl.u32 2102212464, %v6361
        %v6371 = vor.u32 %v6369, %v6370
        %v6372 = vshll.u32 2102212464, %v6360
        %v6373 = vshrl.u32 920167782, %v6361
        %v6374 = vor.u32 %v6372, %v6373
        %v6375 = vshll.u32 920167782, %v6360
        %v6376 = vshrl.u32 1326507024, %v6361
        %v6377 = vor.u32 %v6375, %v6376
        %vm6378 = vcmp.lt.s32.totalorder %v6359, 1
        %vm6379 = vcmp.lt.s32.totalorder %v6359, 2
        %vm6380 = vcmp.lt.s32.totalorder %v6359, 3
        %vm6381 = vcmp.lt.s32.totalorder %v6359, 4
        %v6382 = vsel %vm6378, %v6362, %v6365
        %v6383 = vsel %vm6381, %v6371, 2102212464
        %v6384 = vsel %vm6380, %v6368, %v6383
        %v6385 = vsel %vm6379, %v6382, %v6384
        %v6386 = vsel %vm6378, %v6365, %v6368
        %v6387 = vsel %vm6381, %v6374, 920167782
        %v6388 = vsel %vm6380, %v6371, %v6387
        %v6389 = vsel %vm6379, %v6386, %v6388
        %v6390 = vsel %vm6378, %v6368, %v6371
        %v6391 = vsel %vm6381, %v6377, 1326507024
        %v6392 = vsel %vm6380, %v6374, %v6391
        %v6393 = vsel %vm6379, %v6390, %v6392
        %v6394 = vshll.u32 %v6354, 8
        %v6395 = vand.u32 %v6394, 65535
        %v6396 = vshrl.u32 %v6394, 16
        %v6397 = vand.u32 %v6393, 65535
        %v6398 = vshrl.u32 %v6393, 16
        %v6399 = vmul.u32 %v6395, %v6397
        %v6400 = vmul.u32 %v6395, %v6398
        %v6401 = vmul.u32 %v6396, %v6397
        %v6402 = vmul.u32 %v6396, %v6398
        %v6403 = vshll.u32 %v6400, 16
        %v6404 = vshrl.u32 %v6400, 16
        %v6405 = vshll.u32 %v6401, 16
        %v6406 = vshrl.u32 %v6401, 16
        %vm6407 = vc.u32 %v6399, %v6403
        %v6408 = vsel %vm6407, 1, 0
        %v6409 = vadd.s32 %v6399, %v6403
        %v6410 = vadd.s32 %v6402, %v6408
        %vm6411 = vc.u32 %v6409, %v6405
        %v6412 = vsel %vm6411, 1, 0
        %v6413 = vadd.s32 %v6409, %v6405
        %v6414 = vadd.s32 %v6410, %v6412
        %v6415 = vadd.s32 %v6414, %v6404
        %v6416 = vadd.s32 %v6415, %v6406
        %v6417 = vand.u32 %v6394, 65535
        %v6418 = vshrl.u32 %v6394, 16
        %v6419 = vand.u32 %v6389, 65535
        %v6420 = vshrl.u32 %v6389, 16
        %v6421 = vmul.u32 %v6417, %v6419
        %v6422 = vmul.u32 %v6417, %v6420
        %v6423 = vmul.u32 %v6418, %v6419
        %v6424 = vmul.u32 %v6418, %v6420
        %v6425 = vshll.u32 %v6422, 16
        %v6426 = vshrl.u32 %v6422, 16
        %v6427 = vshll.u32 %v6423, 16
        %v6428 = vshrl.u32 %v6423, 16
        %vm6429 = vc.u32 %v6421, %v6425
        %v6430 = vsel %vm6429, 1, 0
        %v6431 = vadd.s32 %v6421, %v6425
        %v6432 = vadd.s32 %v6424, %v6430
        %vm6433 = vc.u32 %v6431, %v6427
        %v6434 = vsel %vm6433, 1, 0
        %v6435 = vadd.s32 %v6431, %v6427
        %v6436 = vadd.s32 %v6432, %v6434
        %v6437 = vadd.s32 %v6436, %v6426
        %v6438 = vadd.s32 %v6437, %v6428
        %v6439 = vmul.u32 %v6394, %v6385
        %v6440 = vadd.s32 %v6416, %v6435
        %vm6441 = vc.u32 %v6416, %v6435
        %v6442 = vadd.s32 %v6438, 1
        %v6443 = vsel %vm6441, %v6442, %v6438
        %v6444 = vadd.s32 %v6439, %v6443
        %v6445 = vadd.s32 %v6444, 536870912
        %v6446 = vshrl.u32 %v6445, 30
        %v6447 = vshll.u32 %v6446, 30
        %v6448 = vsub.s32 %v6444, %v6447
        %vm6449 = vcmp.lt.s32.totalorder %v6448, 0
        %v6450 = vsub.s32 0, %v6448
        %v6451 = vsel %vm6449, %v6450, %v6448
        %v6452 = vclz %v6451
        %v6453 = vsub.s32 %v6452, 2
        %vm6454 = vcmp.gt.s32.totalorder 0, %v6453
        %v6455 = vsel %vm6454, 0, %v6453
        %v6456 = vsub.s32 32, %v6455
        %v6457 = vshll.u32 %v6448, %v6455
        %v6458 = vshrl.u32 %v6440, %v6456
        %v6459 = vor.u32 %v6457, %v6458
        %v6460 = vsub.s32 4294967266, %v6455
        %v6461 = vadd.s32 %v6460, 127
        %v6462 = vshll.u32 %v6461, 23
        %v6463 = vor.u32 4788187, %v6462
        %v6464 = vand.u32 2147483647, %v6463
        %v6466 = vcvt.s32.f32 %v6459
        %v6467 = vmul.f32 %v6466, %v6464
        %v6468 = vxor.u32 %v6467, 2147483648
        %v6469 = vsel %vm6348, %v6468, %v6467
        %v6470 = vsub.s32 4, %v6446
        %v6471 = vsel %vm6348, %v6470, %v6446
        %v6472 = vsel %vm6347, %v5930, %v6469
        %v6473 = vsel %vm6347, 0, %v6471
        %v6474 = vmul.f32 %v6472, %v6472
        %v6475 = vmul.f32 %v6474, -0.001358992
        %v6476 = vadd.f32 %v6475, 0.041655596
        %v6477 = vmul.f32 %v6474, %v6476
        %v6478 = vadd.f32 %v6477, -0.4999988
        %v6479 = vmul.f32 %v6474, %v6478
        %v6480 = vadd.f32 1.0, %v6479
        %v6481 = vmul.f32 %v6472, %v6472
        %v6482 = vmul.f32 %v6481, -0.00019511016
        %v6483 = vadd.f32 %v6482, 0.008332121
        %v6484 = vmul.f32 %v6481, %v6483
        %v6485 = vadd.f32 %v6484, -0.16666654
        %v6486 = vmul.f32 %v6481, %v6485
        %v6487 = vadd.f32 %v6486, 1.0
        %v6488 = vmul.f32 %v6487, %v6472
        %vm6489 = vweird.f32 %v5930
        %v6490 = vadd.s32 %v6473, 3
        %v6491 = vand.u32 %v6490, 3
        %vm6492 = vcmp.lt.s32.totalorder %v6491, 2
        %vm6493 = vcmp.eq.s32.totalorder %v6491, 0
        %v6494 = vxor.u32 %v6488, 2147483648
        %v6495 = vsel %vm6493, %v6480, %v6494
        %vm6496 = vcmp.eq.s32.totalorder %v6491, 2
        %v6497 = vxor.u32 %v6480, 2147483648
        %v6498 = vsel %vm6496, %v6497, %v6488
        %v6499 = vsel %vm6492, %v6495, %v6498
        %v6500 = vsel %vm6489, nan, %v6499
        %v6501 = vand.u32 2147483647, %v5933
        %vm6502 = vcmp.le.f32.partialorder %v6501, 0.7853982
        %vm6503 = vcmp.lt.s32.totalorder %v5933, 0
        %v6504 = vand.u32 %v5933, 2139095040
        %v6505 = vshrl.u32 %v6504, 23
        %v6506 = vsub.s32 %v6505, 127
        %v6507 = vand.u32 2147483647, %v5933
        %v6508 = vand.u32 %v6507, 8388607
        %v6509 = vor.u32 %v6508, 8388608
        %v6510 = vsub.s32 0, %v6509
        %v6511 = vadd.s32 %v6506, 1
        %vm6512 = vcmp.gt.s32.totalorder %v6511, 0
        %v6513 = vsel %vm6512, %v6511, 0
        %v6514 = vshrl.u32 %v6513, 5
        %v6515 = vand.u32 %v6513, 31
        %v6516 = vsub.s32 32, %v6515
        %v6517 = vshrl.u32 683565275, %v6516
        %v6518 = vshll.u32 683565275, %v6515
        %v6519 = vshrl.u32 2475754826, %v6516
        %v6520 = vor.u32 %v6518, %v6519
        %v6521 = vshll.u32 2475754826, %v6515
        %v6522 = vshrl.u32 2131351028, %v6516
        %v6523 = vor.u32 %v6521, %v6522
        %v6524 = vshll.u32 2131351028, %v6515
        %v6525 = vshrl.u32 2102212464, %v6516
        %v6526 = vor.u32 %v6524, %v6525
        %v6527 = vshll.u32 2102212464, %v6515
        %v6528 = vshrl.u32 920167782, %v6516
        %v6529 = vor.u32 %v6527, %v6528
        %v6530 = vshll.u32 920167782, %v6515
        %v6531 = vshrl.u32 1326507024, %v6516
        %v6532 = vor.u32 %v6530, %v6531
        %vm6533 = vcmp.lt.s32.totalorder %v6514, 1
        %vm6534 = vcmp.lt.s32.totalorder %v6514, 2
        %vm6535 = vcmp.lt.s32.totalorder %v6514, 3
        %vm6536 = vcmp.lt.s32.totalorder %v6514, 4
        %v6537 = vsel %vm6533, %v6517, %v6520
        %v6538 = vsel %vm6536, %v6526, 2102212464
        %v6539 = vsel %vm6535, %v6523, %v6538
        %v6540 = vsel %vm6534, %v6537, %v6539
        %v6541 = vsel %vm6533, %v6520, %v6523
        %v6542 = vsel %vm6536, %v6529, 920167782
        %v6543 = vsel %vm6535, %v6526, %v6542
        %v6544 = vsel %vm6534, %v6541, %v6543
        %v6545 = vsel %vm6533, %v6523, %v6526
        %v6546 = vsel %vm6536, %v6532, 1326507024
        %v6547 = vsel %vm6535, %v6529, %v6546
        %v6548 = vsel %vm6534, %v6545, %v6547
        %v6549 = vshll.u32 %v6509, 8
        %v6550 = vand.u32 %v6549, 65535
        %v6551 = vshrl.u32 %v6549, 16
        %v6552 = vand.u32 %v6548, 65535
        %v6553 = vshrl.u32 %v6548, 16
        %v6554 = vmul.u32 %v6550, %v6552
        %v6555 = vmul.u32 %v6550, %v6553
        %v6556 = vmul.u32 %v6551, %v6552
        %v6557 = vmul.u32 %v6551, %v6553
        %v6558 = vshll.u32 %v6555, 16
        %v6559 = vshrl.u32 %v6555, 16
        %v6560 = vshll.u32 %v6556, 16
        %v6561 = vshrl.u32 %v6556, 16
        %vm6562 = vc.u32 %v6554, %v6558
        %v6563 = vsel %vm6562, 1, 0
        %v6564 = vadd.s32 %v6554, %v6558
        %v6565 = vadd.s32 %v6557, %v6563
        %vm6566 = vc.u32 %v6564, %v6560
        %v6567 = vsel %vm6566, 1, 0
        %v6568 = vadd.s32 %v6564, %v6560
        %v6569 = vadd.s32 %v6565, %v6567
        %v6570 = vadd.s32 %v6569, %v6559
        %v6571 = vadd.s32 %v6570, %v6561
        %v6572 = vand.u32 %v6549, 65535
        %v6573 = vshrl.u32 %v6549, 16
        %v6574 = vand.u32 %v6544, 65535
        %v6575 = vshrl.u32 %v6544, 16
        %v6576 = vmul.u32 %v6572, %v6574
        %v6577 = vmul.u32 %v6572, %v6575
        %v6578 = vmul.u32 %v6573, %v6574
        %v6579 = vmul.u32 %v6573, %v6575
        %v6580 = vshll.u32 %v6577, 16
        %v6581 = vshrl.u32 %v6577, 16
        %v6582 = vshll.u32 %v6578, 16
        %v6583 = vshrl.u32 %v6578, 16
        %vm6584 = vc.u32 %v6576, %v6580
        %v6585 = vsel %vm6584, 1, 0
        %v6586 = vadd.s32 %v6576, %v6580
        %v6587 = vadd.s32 %v6579, %v6585
        %vm6588 = vc.u32 %v6586, %v6582
        %v6589 = vsel %vm6588, 1, 0
        %v6590 = vadd.s32 %v6586, %v6582
        %v6591 = vadd.s32 %v6587, %v6589
        %v6592 = vadd.s32 %v6591, %v6581
        %v6593 = vadd.s32 %v6592, %v6583
        %v6594 = vmul.u32 %v6549, %v6540
        %v6595 = vadd.s32 %v6571, %v6590
        %vm6596 = vc.u32 %v6571, %v6590
        %v6597 = vadd.s32 %v6593, 1
        %v6598 = vsel %vm6596, %v6597, %v6593
        %v6599 = vadd.s32 %v6594, %v6598
        %v6600 = vadd.s32 %v6599, 536870912
        %v6601 = vshrl.u32 %v6600, 30
        %v6602 = vshll.u32 %v6601, 30
        %v6603 = vsub.s32 %v6599, %v6602
        %vm6604 = vcmp.lt.s32.totalorder %v6603, 0
        %v6605 = vsub.s32 0, %v6603
        %v6606 = vsel %vm6604, %v6605, %v6603
        %v6607 = vclz %v6606
        %v6608 = vsub.s32 %v6607, 2
        %vm6609 = vcmp.gt.s32.totalorder 0, %v6608
        %v6610 = vsel %vm6609, 0, %v6608
        %v6611 = vsub.s32 32, %v6610
        %v6612 = vshll.u32 %v6603, %v6610
        %v6613 = vshrl.u32 %v6595, %v6611
        %v6614 = vor.u32 %v6612, %v6613
        %v6615 = vsub.s32 4294967266, %v6610
        %v6616 = vadd.s32 %v6615, 127
        %v6617 = vshll.u32 %v6616, 23
        %v6618 = vor.u32 4788187, %v6617
        %v6619 = vand.u32 2147483647, %v6618
        %v6621 = vcvt.s32.f32 %v6614
        %v6622 = vmul.f32 %v6621, %v6619
        %v6623 = vxor.u32 %v6622, 2147483648
        %v6624 = vsel %vm6503, %v6623, %v6622
        %v6625 = vsub.s32 4, %v6601
        %v6626 = vsel %vm6503, %v6625, %v6601
        %v6627 = vsel %vm6502, %v5933, %v6624
        %v6628 = vsel %vm6502, 0, %v6626
        %v6629 = vmul.f32 %v6627, %v6627
        %v6630 = vmul.f32 %v6629, -0.001358992
        %v6631 = vadd.f32 %v6630, 0.041655596
        %v6632 = vmul.f32 %v6629, %v6631
        %v6633 = vadd.f32 %v6632, -0.4999988
        %v6634 = vmul.f32 %v6629, %v6633
        %v6635 = vadd.f32 1.0, %v6634
        %v6636 = vmul.f32 %v6627, %v6627
        %v6637 = vmul.f32 %v6636, -0.00019511016
        %v6638 = vadd.f32 %v6637, 0.008332121
        %v6639 = vmul.f32 %v6636, %v6638
        %v6640 = vadd.f32 %v6639, -0.16666654
        %v6641 = vmul.f32 %v6636, %v6640
        %v6642 = vadd.f32 %v6641, 1.0
        %v6643 = vmul.f32 %v6642, %v6627
        %vm6644 = vweird.f32 %v5933
        %v6645 = vadd.s32 %v6628, 3
        %v6646 = vand.u32 %v6645, 3
        %vm6647 = vcmp.lt.s32.totalorder %v6646, 2
        %vm6648 = vcmp.eq.s32.totalorder %v6646, 0
        %v6649 = vxor.u32 %v6643, 2147483648
        %v6650 = vsel %vm6648, %v6635, %v6649
        %vm6651 = vcmp.eq.s32.totalorder %v6646, 2
        %v6652 = vxor.u32 %v6635, 2147483648
        %v6653 = vsel %vm6651, %v6652, %v6643
        %v6654 = vsel %vm6647, %v6650, %v6653
        %v6655 = vsel %vm6644, nan, %v6654
        %v6656 = vand.u32 2147483647, %v5936
        %vm6657 = vcmp.le.f32.partialorder %v6656, 0.7853982
        %vm6658 = vcmp.lt.s32.totalorder %v5936, 0
        %v6659 = vand.u32 %v5936, 2139095040
        %v6660 = vshrl.u32 %v6659, 23
        %v6661 = vsub.s32 %v6660, 127
        %v6662 = vand.u32 2147483647, %v5936
        %v6663 = vand.u32 %v6662, 8388607
        %v6664 = vor.u32 %v6663, 8388608
        %v6665 = vsub.s32 0, %v6664
        %v6666 = vadd.s32 %v6661, 1
        %vm6667 = vcmp.gt.s32.totalorder %v6666, 0
        %v6668 = vsel %vm6667, %v6666, 0
        %v6669 = vshrl.u32 %v6668, 5
        %v6670 = vand.u32 %v6668, 31
        %v6671 = vsub.s32 32, %v6670
        %v6672 = vshrl.u32 683565275, %v6671
        %v6673 = vshll.u32 683565275, %v6670
        %v6674 = vshrl.u32 2475754826, %v6671
        %v6675 = vor.u32 %v6673, %v6674
        %v6676 = vshll.u32 2475754826, %v6670
        %v6677 = vshrl.u32 2131351028, %v6671
        %v6678 = vor.u32 %v6676, %v6677
        %v6679 = vshll.u32 2131351028, %v6670
        %v6680 = vshrl.u32 2102212464, %v6671
        %v6681 = vor.u32 %v6679, %v6680
        %v6682 = vshll.u32 2102212464, %v6670
        %v6683 = vshrl.u32 920167782, %v6671
        %v6684 = vor.u32 %v6682, %v6683
        %v6685 = vshll.u32 920167782, %v6670
        %v6686 = vshrl.u32 1326507024, %v6671
        %v6687 = vor.u32 %v6685, %v6686
        %vm6688 = vcmp.lt.s32.totalorder %v6669, 1
        %vm6689 = vcmp.lt.s32.totalorder %v6669, 2
        %vm6690 = vcmp.lt.s32.totalorder %v6669, 3
        %vm6691 = vcmp.lt.s32.totalorder %v6669, 4
        %v6692 = vsel %vm6688, %v6672, %v6675
        %v6693 = vsel %vm6691, %v6681, 2102212464
        %v6694 = vsel %vm6690, %v6678, %v6693
        %v6695 = vsel %vm6689, %v6692, %v6694
        %v6696 = vsel %vm6688, %v6675, %v6678
        %v6697 = vsel %vm6691, %v6684, 920167782
        %v6698 = vsel %vm6690, %v6681, %v6697
        %v6699 = vsel %vm6689, %v6696, %v6698
        %v6700 = vsel %vm6688, %v6678, %v6681
        %v6701 = vsel %vm6691, %v6687, 1326507024
        %v6702 = vsel %vm6690, %v6684, %v6701
        %v6703 = vsel %vm6689, %v6700, %v6702
        %v6704 = vshll.u32 %v6664, 8
        %v6705 = vand.u32 %v6704, 65535
        %v6706 = vshrl.u32 %v6704, 16
        %v6707 = vand.u32 %v6703, 65535
        %v6708 = vshrl.u32 %v6703, 16
        %v6709 = vmul.u32 %v6705, %v6707
        %v6710 = vmul.u32 %v6705, %v6708
        %v6711 = vmul.u32 %v6706, %v6707
        %v6712 = vmul.u32 %v6706, %v6708
        %v6713 = vshll.u32 %v6710, 16
        %v6714 = vshrl.u32 %v6710, 16
        %v6715 = vshll.u32 %v6711, 16
        %v6716 = vshrl.u32 %v6711, 16
        %vm6717 = vc.u32 %v6709, %v6713
        %v6718 = vsel %vm6717, 1, 0
        %v6719 = vadd.s32 %v6709, %v6713
        %v6720 = vadd.s32 %v6712, %v6718
        %vm6721 = vc.u32 %v6719, %v6715
        %v6722 = vsel %vm6721, 1, 0
        %v6723 = vadd.s32 %v6719, %v6715
        %v6724 = vadd.s32 %v6720, %v6722
        %v6725 = vadd.s32 %v6724, %v6714
        %v6726 = vadd.s32 %v6725, %v6716
        %v6727 = vand.u32 %v6704, 65535
        %v6728 = vshrl.u32 %v6704, 16
        %v6729 = vand.u32 %v6699, 65535
        %v6730 = vshrl.u32 %v6699, 16
        %v6731 = vmul.u32 %v6727, %v6729
        %v6732 = vmul.u32 %v6727, %v6730
        %v6733 = vmul.u32 %v6728, %v6729
        %v6734 = vmul.u32 %v6728, %v6730
        %v6735 = vshll.u32 %v6732, 16
        %v6736 = vshrl.u32 %v6732, 16
        %v6737 = vshll.u32 %v6733, 16
        %v6738 = vshrl.u32 %v6733, 16
        %vm6739 = vc.u32 %v6731, %v6735
        %v6740 = vsel %vm6739, 1, 0
        %v6741 = vadd.s32 %v6731, %v6735
        %v6742 = vadd.s32 %v6734, %v6740
        %vm6743 = vc.u32 %v6741, %v6737
        %v6744 = vsel %vm6743, 1, 0
        %v6745 = vadd.s32 %v6741, %v6737
        %v6746 = vadd.s32 %v6742, %v6744
        %v6747 = vadd.s32 %v6746, %v6736
        %v6748 = vadd.s32 %v6747, %v6738
        %v6749 = vmul.u32 %v6704, %v6695
        %v6750 = vadd.s32 %v6726, %v6745
        %vm6751 = vc.u32 %v6726, %v6745
        %v6752 = vadd.s32 %v6748, 1
        %v6753 = vsel %vm6751, %v6752, %v6748
        %v6754 = vadd.s32 %v6749, %v6753
        %v6755 = vadd.s32 %v6754, 536870912
        %v6756 = vshrl.u32 %v6755, 30
        %v6757 = vshll.u32 %v6756, 30
        %v6758 = vsub.s32 %v6754, %v6757
        %vm6759 = vcmp.lt.s32.totalorder %v6758, 0
        %v6760 = vsub.s32 0, %v6758
        %v6761 = vsel %vm6759, %v6760, %v6758
        %v6762 = vclz %v6761
        %v6763 = vsub.s32 %v6762, 2
        %vm6764 = vcmp.gt.s32.totalorder 0, %v6763
        %v6765 = vsel %vm6764, 0, %v6763
        %v6766 = vsub.s32 32, %v6765
        %v6767 = vshll.u32 %v6758, %v6765
        %v6768 = vshrl.u32 %v6750, %v6766
        %v6769 = vor.u32 %v6767, %v6768
        %v6770 = vsub.s32 4294967266, %v6765
        %v6771 = vadd.s32 %v6770, 127
        %v6772 = vshll.u32 %v6771, 23
        %v6773 = vor.u32 4788187, %v6772
        %v6774 = vand.u32 2147483647, %v6773
        %v6776 = vcvt.s32.f32 %v6769
        %v6777 = vmul.f32 %v6776, %v6774
        %v6778 = vxor.u32 %v6777, 2147483648
        %v6779 = vsel %vm6658, %v6778, %v6777
        %v6780 = vsub.s32 4, %v6756
        %v6781 = vsel %vm6658, %v6780, %v6756
        %v6782 = vsel %vm6657, %v5936, %v6779
        %v6783 = vsel %vm6657, 0, %v6781
        %v6784 = vmul.f32 %v6782, %v6782
        %v6785 = vmul.f32 %v6784, -0.001358992
        %v6786 = vadd.f32 %v6785, 0.041655596
        %v6787 = vmul.f32 %v6784, %v6786
        %v6788 = vadd.f32 %v6787, -0.4999988
        %v6789 = vmul.f32 %v6784, %v6788
        %v6790 = vadd.f32 1.0, %v6789
        %v6791 = vmul.f32 %v6782, %v6782
        %v6792 = vmul.f32 %v6791, -0.00019511016
        %v6793 = vadd.f32 %v6792, 0.008332121
        %v6794 = vmul.f32 %v6791, %v6793
        %v6795 = vadd.f32 %v6794, -0.16666654
        %v6796 = vmul.f32 %v6791, %v6795
        %v6797 = vadd.f32 %v6796, 1.0
        %v6798 = vmul.f32 %v6797, %v6782
        %vm6799 = vweird.f32 %v5936
        %v6800 = vadd.s32 %v6783, 3
        %v6801 = vand.u32 %v6800, 3
        %vm6802 = vcmp.lt.s32.totalorder %v6801, 2
        %vm6803 = vcmp.eq.s32.totalorder %v6801, 0
        %v6804 = vxor.u32 %v6798, 2147483648
        %v6805 = vsel %vm6803, %v6790, %v6804
        %vm6806 = vcmp.eq.s32.totalorder %v6801, 2
        %v6807 = vxor.u32 %v6790, 2147483648
        %v6808 = vsel %vm6806, %v6807, %v6798
        %v6809 = vsel %vm6802, %v6805, %v6808
        %v6810 = vsel %vm6799, nan, %v6809
        %v6811 = vand.u32 2147483647, %v5939
        %vm6812 = vcmp.le.f32.partialorder %v6811, 0.7853982
        %vm6813 = vcmp.lt.s32.totalorder %v5939, 0
        %v6814 = vand.u32 %v5939, 2139095040
        %v6815 = vshrl.u32 %v6814, 23
        %v6816 = vsub.s32 %v6815, 127
        %v6817 = vand.u32 2147483647, %v5939
        %v6818 = vand.u32 %v6817, 8388607
        %v6819 = vor.u32 %v6818, 8388608
        %v6820 = vsub.s32 0, %v6819
        %v6821 = vadd.s32 %v6816, 1
        %vm6822 = vcmp.gt.s32.totalorder %v6821, 0
        %v6823 = vsel %vm6822, %v6821, 0
        %v6824 = vshrl.u32 %v6823, 5
        %v6825 = vand.u32 %v6823, 31
        %v6826 = vsub.s32 32, %v6825
        %v6827 = vshrl.u32 683565275, %v6826
        %v6828 = vshll.u32 683565275, %v6825
        %v6829 = vshrl.u32 2475754826, %v6826
        %v6830 = vor.u32 %v6828, %v6829
        %v6831 = vshll.u32 2475754826, %v6825
        %v6832 = vshrl.u32 2131351028, %v6826
        %v6833 = vor.u32 %v6831, %v6832
        %v6834 = vshll.u32 2131351028, %v6825
        %v6835 = vshrl.u32 2102212464, %v6826
        %v6836 = vor.u32 %v6834, %v6835
        %v6837 = vshll.u32 2102212464, %v6825
        %v6838 = vshrl.u32 920167782, %v6826
        %v6839 = vor.u32 %v6837, %v6838
        %v6840 = vshll.u32 920167782, %v6825
        %v6841 = vshrl.u32 1326507024, %v6826
        %v6842 = vor.u32 %v6840, %v6841
        %vm6843 = vcmp.lt.s32.totalorder %v6824, 1
        %vm6844 = vcmp.lt.s32.totalorder %v6824, 2
        %vm6845 = vcmp.lt.s32.totalorder %v6824, 3
        %vm6846 = vcmp.lt.s32.totalorder %v6824, 4
        %v6847 = vsel %vm6843, %v6827, %v6830
        %v6848 = vsel %vm6846, %v6836, 2102212464
        %v6849 = vsel %vm6845, %v6833, %v6848
        %v6850 = vsel %vm6844, %v6847, %v6849
        %v6851 = vsel %vm6843, %v6830, %v6833
        %v6852 = vsel %vm6846, %v6839, 920167782
        %v6853 = vsel %vm6845, %v6836, %v6852
        %v6854 = vsel %vm6844, %v6851, %v6853
        %v6855 = vsel %vm6843, %v6833, %v6836
        %v6856 = vsel %vm6846, %v6842, 1326507024
        %v6857 = vsel %vm6845, %v6839, %v6856
        %v6858 = vsel %vm6844, %v6855, %v6857
        %v6859 = vshll.u32 %v6819, 8
        %v6860 = vand.u32 %v6859, 65535
        %v6861 = vshrl.u32 %v6859, 16
        %v6862 = vand.u32 %v6858, 65535
        %v6863 = vshrl.u32 %v6858, 16
        %v6864 = vmul.u32 %v6860, %v6862
        %v6865 = vmul.u32 %v6860, %v6863
        %v6866 = vmul.u32 %v6861, %v6862
        %v6867 = vmul.u32 %v6861, %v6863
        %v6868 = vshll.u32 %v6865, 16
        %v6869 = vshrl.u32 %v6865, 16
        %v6870 = vshll.u32 %v6866, 16
        %v6871 = vshrl.u32 %v6866, 16
        %vm6872 = vc.u32 %v6864, %v6868
        %v6873 = vsel %vm6872, 1, 0
        %v6874 = vadd.s32 %v6864, %v6868
        %v6875 = vadd.s32 %v6867, %v6873
        %vm6876 = vc.u32 %v6874, %v6870
        %v6877 = vsel %vm6876, 1, 0
        %v6878 = vadd.s32 %v6874, %v6870
        %v6879 = vadd.s32 %v6875, %v6877
        %v6880 = vadd.s32 %v6879, %v6869
        %v6881 = vadd.s32 %v6880, %v6871
        %v6882 = vand.u32 %v6859, 65535
        %v6883 = vshrl.u32 %v6859, 16
        %v6884 = vand.u32 %v6854, 65535
        %v6885 = vshrl.u32 %v6854, 16
        %v6886 = vmul.u32 %v6882, %v6884
        %v6887 = vmul.u32 %v6882, %v6885
        %v6888 = vmul.u32 %v6883, %v6884
        %v6889 = vmul.u32 %v6883, %v6885
        %v6890 = vshll.u32 %v6887, 16
        %v6891 = vshrl.u32 %v6887, 16
        %v6892 = vshll.u32 %v6888, 16
        %v6893 = vshrl.u32 %v6888, 16
        %vm6894 = vc.u32 %v6886, %v6890
        %v6895 = vsel %vm6894, 1, 0
        %v6896 = vadd.s32 %v6886, %v6890
        %v6897 = vadd.s32 %v6889, %v6895
        %vm6898 = vc.u32 %v6896, %v6892
        %v6899 = vsel %vm6898, 1, 0
        %v6900 = vadd.s32 %v6896, %v6892
        %v6901 = vadd.s32 %v6897, %v6899
        %v6902 = vadd.s32 %v6901, %v6891
        %v6903 = vadd.s32 %v6902, %v6893
        %v6904 = vmul.u32 %v6859, %v6850
        %v6905 = vadd.s32 %v6881, %v6900
        %vm6906 = vc.u32 %v6881, %v6900
        %v6907 = vadd.s32 %v6903, 1
        %v6908 = vsel %vm6906, %v6907, %v6903
        %v6909 = vadd.s32 %v6904, %v6908
        %v6910 = vadd.s32 %v6909, 536870912
        %v6911 = vshrl.u32 %v6910, 30
        %v6912 = vshll.u32 %v6911, 30
        %v6913 = vsub.s32 %v6909, %v6912
        %vm6914 = vcmp.lt.s32.totalorder %v6913, 0
        %v6915 = vsub.s32 0, %v6913
        %v6916 = vsel %vm6914, %v6915, %v6913
        %v6917 = vclz %v6916
        %v6918 = vsub.s32 %v6917, 2
        %vm6919 = vcmp.gt.s32.totalorder 0, %v6918
        %v6920 = vsel %vm6919, 0, %v6918
        %v6921 = vsub.s32 32, %v6920
        %v6922 = vshll.u32 %v6913, %v6920
        %v6923 = vshrl.u32 %v6905, %v6921
        %v6924 = vor.u32 %v6922, %v6923
        %v6925 = vsub.s32 4294967266, %v6920
        %v6926 = vadd.s32 %v6925, 127
        %v6927 = vshll.u32 %v6926, 23
        %v6928 = vor.u32 4788187, %v6927
        %v6929 = vand.u32 2147483647, %v6928
        %v6931 = vcvt.s32.f32 %v6924
        %v6932 = vmul.f32 %v6931, %v6929
        %v6933 = vxor.u32 %v6932, 2147483648
        %v6934 = vsel %vm6813, %v6933, %v6932
        %v6935 = vsub.s32 4, %v6911
        %v6936 = vsel %vm6813, %v6935, %v6911
        %v6937 = vsel %vm6812, %v5939, %v6934
        %v6938 = vsel %vm6812, 0, %v6936
        %v6939 = vmul.f32 %v6937, %v6937
        %v6940 = vmul.f32 %v6939, -0.001358992
        %v6941 = vadd.f32 %v6940, 0.041655596
        %v6942 = vmul.f32 %v6939, %v6941
        %v6943 = vadd.f32 %v6942, -0.4999988
        %v6944 = vmul.f32 %v6939, %v6943
        %v6945 = vadd.f32 1.0, %v6944
        %v6946 = vmul.f32 %v6937, %v6937
        %v6947 = vmul.f32 %v6946, -0.00019511016
        %v6948 = vadd.f32 %v6947, 0.008332121
        %v6949 = vmul.f32 %v6946, %v6948
        %v6950 = vadd.f32 %v6949, -0.16666654
        %v6951 = vmul.f32 %v6946, %v6950
        %v6952 = vadd.f32 %v6951, 1.0
        %v6953 = vmul.f32 %v6952, %v6937
        %vm6954 = vweird.f32 %v5939
        %v6955 = vadd.s32 %v6938, 3
        %v6956 = vand.u32 %v6955, 3
        %vm6957 = vcmp.lt.s32.totalorder %v6956, 2
        %vm6958 = vcmp.eq.s32.totalorder %v6956, 0
        %v6959 = vxor.u32 %v6953, 2147483648
        %v6960 = vsel %vm6958, %v6945, %v6959
        %vm6961 = vcmp.eq.s32.totalorder %v6956, 2
        %v6962 = vxor.u32 %v6945, 2147483648
        %v6963 = vsel %vm6961, %v6962, %v6953
        %v6964 = vsel %vm6957, %v6960, %v6963
        %v6965 = vsel %vm6954, nan, %v6964
        %v6966 = vand.u32 2147483647, %v5942
        %vm6967 = vcmp.le.f32.partialorder %v6966, 0.7853982
        %vm6968 = vcmp.lt.s32.totalorder %v5942, 0
        %v6969 = vand.u32 %v5942, 2139095040
        %v6970 = vshrl.u32 %v6969, 23
        %v6971 = vsub.s32 %v6970, 127
        %v6972 = vand.u32 2147483647, %v5942
        %v6973 = vand.u32 %v6972, 8388607
        %v6974 = vor.u32 %v6973, 8388608
        %v6975 = vsub.s32 0, %v6974
        %v6976 = vadd.s32 %v6971, 1
        %vm6977 = vcmp.gt.s32.totalorder %v6976, 0
        %v6978 = vsel %vm6977, %v6976, 0
        %v6979 = vshrl.u32 %v6978, 5
        %v6980 = vand.u32 %v6978, 31
        %v6981 = vsub.s32 32, %v6980
        %v6982 = vshrl.u32 683565275, %v6981
        %v6983 = vshll.u32 683565275, %v6980
        %v6984 = vshrl.u32 2475754826, %v6981
        %v6985 = vor.u32 %v6983, %v6984
        %v6986 = vshll.u32 2475754826, %v6980
        %v6987 = vshrl.u32 2131351028, %v6981
        %v6988 = vor.u32 %v6986, %v6987
        %v6989 = vshll.u32 2131351028, %v6980
        %v6990 = vshrl.u32 2102212464, %v6981
        %v6991 = vor.u32 %v6989, %v6990
        %v6992 = vshll.u32 2102212464, %v6980
        %v6993 = vshrl.u32 920167782, %v6981
        %v6994 = vor.u32 %v6992, %v6993
        %v6995 = vshll.u32 920167782, %v6980
        %v6996 = vshrl.u32 1326507024, %v6981
        %v6997 = vor.u32 %v6995, %v6996
        %vm6998 = vcmp.lt.s32.totalorder %v6979, 1
        %vm6999 = vcmp.lt.s32.totalorder %v6979, 2
        %vm7000 = vcmp.lt.s32.totalorder %v6979, 3
        %vm7001 = vcmp.lt.s32.totalorder %v6979, 4
        %v7002 = vsel %vm6998, %v6982, %v6985
        %v7003 = vsel %vm7001, %v6991, 2102212464
        %v7004 = vsel %vm7000, %v6988, %v7003
        %v7005 = vsel %vm6999, %v7002, %v7004
        %v7006 = vsel %vm6998, %v6985, %v6988
        %v7007 = vsel %vm7001, %v6994, 920167782
        %v7008 = vsel %vm7000, %v6991, %v7007
        %v7009 = vsel %vm6999, %v7006, %v7008
        %v7010 = vsel %vm6998, %v6988, %v6991
        %v7011 = vsel %vm7001, %v6997, 1326507024
        %v7012 = vsel %vm7000, %v6994, %v7011
        %v7013 = vsel %vm6999, %v7010, %v7012
        %v7014 = vshll.u32 %v6974, 8
        %v7015 = vand.u32 %v7014, 65535
        %v7016 = vshrl.u32 %v7014, 16
        %v7017 = vand.u32 %v7013, 65535
        %v7018 = vshrl.u32 %v7013, 16
        %v7019 = vmul.u32 %v7015, %v7017
        %v7020 = vmul.u32 %v7015, %v7018
        %v7021 = vmul.u32 %v7016, %v7017
        %v7022 = vmul.u32 %v7016, %v7018
        %v7023 = vshll.u32 %v7020, 16
        %v7024 = vshrl.u32 %v7020, 16
        %v7025 = vshll.u32 %v7021, 16
        %v7026 = vshrl.u32 %v7021, 16
        %vm7027 = vc.u32 %v7019, %v7023
        %v7028 = vsel %vm7027, 1, 0
        %v7029 = vadd.s32 %v7019, %v7023
        %v7030 = vadd.s32 %v7022, %v7028
        %vm7031 = vc.u32 %v7029, %v7025
        %v7032 = vsel %vm7031, 1, 0
        %v7033 = vadd.s32 %v7029, %v7025
        %v7034 = vadd.s32 %v7030, %v7032
        %v7035 = vadd.s32 %v7034, %v7024
        %v7036 = vadd.s32 %v7035, %v7026
        %v7037 = vand.u32 %v7014, 65535
        %v7038 = vshrl.u32 %v7014, 16
        %v7039 = vand.u32 %v7009, 65535
        %v7040 = vshrl.u32 %v7009, 16
        %v7041 = vmul.u32 %v7037, %v7039
        %v7042 = vmul.u32 %v7037, %v7040
        %v7043 = vmul.u32 %v7038, %v7039
        %v7044 = vmul.u32 %v7038, %v7040
        %v7045 = vshll.u32 %v7042, 16
        %v7046 = vshrl.u32 %v7042, 16
        %v7047 = vshll.u32 %v7043, 16
        %v7048 = vshrl.u32 %v7043, 16
        %vm7049 = vc.u32 %v7041, %v7045
        %v7050 = vsel %vm7049, 1, 0
        %v7051 = vadd.s32 %v7041, %v7045
        %v7052 = vadd.s32 %v7044, %v7050
        %vm7053 = vc.u32 %v7051, %v7047
        %v7054 = vsel %vm7053, 1, 0
        %v7055 = vadd.s32 %v7051, %v7047
        %v7056 = vadd.s32 %v7052, %v7054
        %v7057 = vadd.s32 %v7056, %v7046
        %v7058 = vadd.s32 %v7057, %v7048
        %v7059 = vmul.u32 %v7014, %v7005
        %v7060 = vadd.s32 %v7036, %v7055
        %vm7061 = vc.u32 %v7036, %v7055
        %v7062 = vadd.s32 %v7058, 1
        %v7063 = vsel %vm7061, %v7062, %v7058
        %v7064 = vadd.s32 %v7059, %v7063
        %v7065 = vadd.s32 %v7064, 536870912
        %v7066 = vshrl.u32 %v7065, 30
        %v7067 = vshll.u32 %v7066, 30
        %v7068 = vsub.s32 %v7064, %v7067
        %vm7069 = vcmp.lt.s32.totalorder %v7068, 0
        %v7070 = vsub.s32 0, %v7068
        %v7071 = vsel %vm7069, %v7070, %v7068
        %v7072 = vclz %v7071
        %v7073 = vsub.s32 %v7072, 2
        %vm7074 = vcmp.gt.s32.totalorder 0, %v7073
        %v7075 = vsel %vm7074, 0, %v7073
        %v7076 = vsub.s32 32, %v7075
        %v7077 = vshll.u32 %v7068, %v7075
        %v7078 = vshrl.u32 %v7060, %v7076
        %v7079 = vor.u32 %v7077, %v7078
        %v7080 = vsub.s32 4294967266, %v7075
        %v7081 = vadd.s32 %v7080, 127
        %v7082 = vshll.u32 %v7081, 23
        %v7083 = vor.u32 4788187, %v7082
        %v7084 = vand.u32 2147483647, %v7083
        %v7086 = vcvt.s32.f32 %v7079
        %v7087 = vmul.f32 %v7086, %v7084
        %v7088 = vxor.u32 %v7087, 2147483648
        %v7089 = vsel %vm6968, %v7088, %v7087
        %v7090 = vsub.s32 4, %v7066
        %v7091 = vsel %vm6968, %v7090, %v7066
        %v7092 = vsel %vm6967, %v5942, %v7089
        %v7093 = vsel %vm6967, 0, %v7091
        %v7094 = vmul.f32 %v7092, %v7092
        %v7095 = vmul.f32 %v7094, -0.001358992
        %v7096 = vadd.f32 %v7095, 0.041655596
        %v7097 = vmul.f32 %v7094, %v7096
        %v7098 = vadd.f32 %v7097, -0.4999988
        %v7099 = vmul.f32 %v7094, %v7098
        %v7100 = vadd.f32 1.0, %v7099
        %v7101 = vmul.f32 %v7092, %v7092
        %v7102 = vmul.f32 %v7101, -0.00019511016
        %v7103 = vadd.f32 %v7102, 0.008332121
        %v7104 = vmul.f32 %v7101, %v7103
        %v7105 = vadd.f32 %v7104, -0.16666654
        %v7106 = vmul.f32 %v7101, %v7105
        %v7107 = vadd.f32 %v7106, 1.0
        %v7108 = vmul.f32 %v7107, %v7092
        %vm7109 = vweird.f32 %v5942
        %v7110 = vadd.s32 %v7093, 3
        %v7111 = vand.u32 %v7110, 3
        %vm7112 = vcmp.lt.s32.totalorder %v7111, 2
        %vm7113 = vcmp.eq.s32.totalorder %v7111, 0
        %v7114 = vxor.u32 %v7108, 2147483648
        %v7115 = vsel %vm7113, %v7100, %v7114
        %vm7116 = vcmp.eq.s32.totalorder %v7111, 2
        %v7117 = vxor.u32 %v7100, 2147483648
        %v7118 = vsel %vm7116, %v7117, %v7108
        %v7119 = vsel %vm7112, %v7115, %v7118
        %v7120 = vsel %vm7109, nan, %v7119
        %v7121 = vand.u32 2147483647, %v5945
        %vm7122 = vcmp.le.f32.partialorder %v7121, 0.7853982
        %vm7123 = vcmp.lt.s32.totalorder %v5945, 0
        %v7124 = vand.u32 %v5945, 2139095040
        %v7125 = vshrl.u32 %v7124, 23
        %v7126 = vsub.s32 %v7125, 127
        %v7127 = vand.u32 2147483647, %v5945
        %v7128 = vand.u32 %v7127, 8388607
        %v7129 = vor.u32 %v7128, 8388608
        %v7130 = vsub.s32 0, %v7129
        %v7131 = vadd.s32 %v7126, 1
        %vm7132 = vcmp.gt.s32.totalorder %v7131, 0
        %v7133 = vsel %vm7132, %v7131, 0
        %v7134 = vshrl.u32 %v7133, 5
        %v7135 = vand.u32 %v7133, 31
        %v7136 = vsub.s32 32, %v7135
        %v7137 = vshrl.u32 683565275, %v7136
        %v7138 = vshll.u32 683565275, %v7135
        %v7139 = vshrl.u32 2475754826, %v7136
        %v7140 = vor.u32 %v7138, %v7139
        %v7141 = vshll.u32 2475754826, %v7135
        %v7142 = vshrl.u32 2131351028, %v7136
        %v7143 = vor.u32 %v7141, %v7142
        %v7144 = vshll.u32 2131351028, %v7135
        %v7145 = vshrl.u32 2102212464, %v7136
        %v7146 = vor.u32 %v7144, %v7145
        %v7147 = vshll.u32 2102212464, %v7135
        %v7148 = vshrl.u32 920167782, %v7136
        %v7149 = vor.u32 %v7147, %v7148
        %v7150 = vshll.u32 920167782, %v7135
        %v7151 = vshrl.u32 1326507024, %v7136
        %v7152 = vor.u32 %v7150, %v7151
        %vm7153 = vcmp.lt.s32.totalorder %v7134, 1
        %vm7154 = vcmp.lt.s32.totalorder %v7134, 2
        %vm7155 = vcmp.lt.s32.totalorder %v7134, 3
        %vm7156 = vcmp.lt.s32.totalorder %v7134, 4
        %v7157 = vsel %vm7153, %v7137, %v7140
        %v7158 = vsel %vm7156, %v7146, 2102212464
        %v7159 = vsel %vm7155, %v7143, %v7158
        %v7160 = vsel %vm7154, %v7157, %v7159
        %v7161 = vsel %vm7153, %v7140, %v7143
        %v7162 = vsel %vm7156, %v7149, 920167782
        %v7163 = vsel %vm7155, %v7146, %v7162
        %v7164 = vsel %vm7154, %v7161, %v7163
        %v7165 = vsel %vm7153, %v7143, %v7146
        %v7166 = vsel %vm7156, %v7152, 1326507024
        %v7167 = vsel %vm7155, %v7149, %v7166
        %v7168 = vsel %vm7154, %v7165, %v7167
        %v7169 = vshll.u32 %v7129, 8
        %v7170 = vand.u32 %v7169, 65535
        %v7171 = vshrl.u32 %v7169, 16
        %v7172 = vand.u32 %v7168, 65535
        %v7173 = vshrl.u32 %v7168, 16
        %v7174 = vmul.u32 %v7170, %v7172
        %v7175 = vmul.u32 %v7170, %v7173
        %v7176 = vmul.u32 %v7171, %v7172
        %v7177 = vmul.u32 %v7171, %v7173
        %v7178 = vshll.u32 %v7175, 16
        %v7179 = vshrl.u32 %v7175, 16
        %v7180 = vshll.u32 %v7176, 16
        %v7181 = vshrl.u32 %v7176, 16
        %vm7182 = vc.u32 %v7174, %v7178
        %v7183 = vsel %vm7182, 1, 0
        %v7184 = vadd.s32 %v7174, %v7178
        %v7185 = vadd.s32 %v7177, %v7183
        %vm7186 = vc.u32 %v7184, %v7180
        %v7187 = vsel %vm7186, 1, 0
        %v7188 = vadd.s32 %v7184, %v7180
        %v7189 = vadd.s32 %v7185, %v7187
        %v7190 = vadd.s32 %v7189, %v7179
        %v7191 = vadd.s32 %v7190, %v7181
        %v7192 = vand.u32 %v7169, 65535
        %v7193 = vshrl.u32 %v7169, 16
        %v7194 = vand.u32 %v7164, 65535
        %v7195 = vshrl.u32 %v7164, 16
        %v7196 = vmul.u32 %v7192, %v7194
        %v7197 = vmul.u32 %v7192, %v7195
        %v7198 = vmul.u32 %v7193, %v7194
        %v7199 = vmul.u32 %v7193, %v7195
        %v7200 = vshll.u32 %v7197, 16
        %v7201 = vshrl.u32 %v7197, 16
        %v7202 = vshll.u32 %v7198, 16
        %v7203 = vshrl.u32 %v7198, 16
        %vm7204 = vc.u32 %v7196, %v7200
        %v7205 = vsel %vm7204, 1, 0
        %v7206 = vadd.s32 %v7196, %v7200
        %v7207 = vadd.s32 %v7199, %v7205
        %vm7208 = vc.u32 %v7206, %v7202
        %v7209 = vsel %vm7208, 1, 0
        %v7210 = vadd.s32 %v7206, %v7202
        %v7211 = vadd.s32 %v7207, %v7209
        %v7212 = vadd.s32 %v7211, %v7201
        %v7213 = vadd.s32 %v7212, %v7203
        %v7214 = vmul.u32 %v7169, %v7160
        %v7215 = vadd.s32 %v7191, %v7210
        %vm7216 = vc.u32 %v7191, %v7210
        %v7217 = vadd.s32 %v7213, 1
        %v7218 = vsel %vm7216, %v7217, %v7213
        %v7219 = vadd.s32 %v7214, %v7218
        %v7220 = vadd.s32 %v7219, 536870912
        %v7221 = vshrl.u32 %v7220, 30
        %v7222 = vshll.u32 %v7221, 30
        %v7223 = vsub.s32 %v7219, %v7222
        %vm7224 = vcmp.lt.s32.totalorder %v7223, 0
        %v7225 = vsub.s32 0, %v7223
        %v7226 = vsel %vm7224, %v7225, %v7223
        %v7227 = vclz %v7226
        %v7228 = vsub.s32 %v7227, 2
        %vm7229 = vcmp.gt.s32.totalorder 0, %v7228
        %v7230 = vsel %vm7229, 0, %v7228
        %v7231 = vsub.s32 32, %v7230
        %v7232 = vshll.u32 %v7223, %v7230
        %v7233 = vshrl.u32 %v7215, %v7231
        %v7234 = vor.u32 %v7232, %v7233
        %v7235 = vsub.s32 4294967266, %v7230
        %v7236 = vadd.s32 %v7235, 127
        %v7237 = vshll.u32 %v7236, 23
        %v7238 = vor.u32 4788187, %v7237
        %v7239 = vand.u32 2147483647, %v7238
        %v7241 = vcvt.s32.f32 %v7234
        %v7242 = vmul.f32 %v7241, %v7239
        %v7243 = vxor.u32 %v7242, 2147483648
        %v7244 = vsel %vm7123, %v7243, %v7242
        %v7245 = vsub.s32 4, %v7221
        %v7246 = vsel %vm7123, %v7245, %v7221
        %v7247 = vsel %vm7122, %v5945, %v7244
        %v7248 = vsel %vm7122, 0, %v7246
        %v7249 = vmul.f32 %v7247, %v7247
        %v7250 = vmul.f32 %v7249, -0.001358992
        %v7251 = vadd.f32 %v7250, 0.041655596
        %v7252 = vmul.f32 %v7249, %v7251
        %v7253 = vadd.f32 %v7252, -0.4999988
        %v7254 = vmul.f32 %v7249, %v7253
        %v7255 = vadd.f32 1.0, %v7254
        %v7256 = vmul.f32 %v7247, %v7247
        %v7257 = vmul.f32 %v7256, -0.00019511016
        %v7258 = vadd.f32 %v7257, 0.008332121
        %v7259 = vmul.f32 %v7256, %v7258
        %v7260 = vadd.f32 %v7259, -0.16666654
        %v7261 = vmul.f32 %v7256, %v7260
        %v7262 = vadd.f32 %v7261, 1.0
        %v7263 = vmul.f32 %v7262, %v7247
        %vm7264 = vweird.f32 %v5945
        %v7265 = vadd.s32 %v7248, 3
        %v7266 = vand.u32 %v7265, 3
        %vm7267 = vcmp.lt.s32.totalorder %v7266, 2
        %vm7268 = vcmp.eq.s32.totalorder %v7266, 0
        %v7269 = vxor.u32 %v7263, 2147483648
        %v7270 = vsel %vm7268, %v7255, %v7269
        %vm7271 = vcmp.eq.s32.totalorder %v7266, 2
        %v7272 = vxor.u32 %v7255, 2147483648
        %v7273 = vsel %vm7271, %v7272, %v7263
        %v7274 = vsel %vm7267, %v7270, %v7273
        %v7275 = vsel %vm7264, nan, %v7274
        %v7276 = vand.u32 2147483647, %v5948
        %vm7277 = vcmp.le.f32.partialorder %v7276, 0.7853982
        %vm7278 = vcmp.lt.s32.totalorder %v5948, 0
        %v7279 = vand.u32 %v5948, 2139095040
        %v7280 = vshrl.u32 %v7279, 23
        %v7281 = vsub.s32 %v7280, 127
        %v7282 = vand.u32 2147483647, %v5948
        %v7283 = vand.u32 %v7282, 8388607
        %v7284 = vor.u32 %v7283, 8388608
        %v7285 = vsub.s32 0, %v7284
        %v7286 = vadd.s32 %v7281, 1
        %vm7287 = vcmp.gt.s32.totalorder %v7286, 0
        %v7288 = vsel %vm7287, %v7286, 0
        %v7289 = vshrl.u32 %v7288, 5
        %v7290 = vand.u32 %v7288, 31
        %v7291 = vsub.s32 32, %v7290
        %v7292 = vshrl.u32 683565275, %v7291
        %v7293 = vshll.u32 683565275, %v7290
        %v7294 = vshrl.u32 2475754826, %v7291
        %v7295 = vor.u32 %v7293, %v7294
        %v7296 = vshll.u32 2475754826, %v7290
        %v7297 = vshrl.u32 2131351028, %v7291
        %v7298 = vor.u32 %v7296, %v7297
        %v7299 = vshll.u32 2131351028, %v7290
        %v7300 = vshrl.u32 2102212464, %v7291
        %v7301 = vor.u32 %v7299, %v7300
        %v7302 = vshll.u32 2102212464, %v7290
        %v7303 = vshrl.u32 920167782, %v7291
        %v7304 = vor.u32 %v7302, %v7303
        %v7305 = vshll.u32 920167782, %v7290
        %v7306 = vshrl.u32 1326507024, %v7291
        %v7307 = vor.u32 %v7305, %v7306
        %vm7308 = vcmp.lt.s32.totalorder %v7289, 1
        %vm7309 = vcmp.lt.s32.totalorder %v7289, 2
        %vm7310 = vcmp.lt.s32.totalorder %v7289, 3
        %vm7311 = vcmp.lt.s32.totalorder %v7289, 4
        %v7312 = vsel %vm7308, %v7292, %v7295
        %v7313 = vsel %vm7311, %v7301, 2102212464
        %v7314 = vsel %vm7310, %v7298, %v7313
        %v7315 = vsel %vm7309, %v7312, %v7314
        %v7316 = vsel %vm7308, %v7295, %v7298
        %v7317 = vsel %vm7311, %v7304, 920167782
        %v7318 = vsel %vm7310, %v7301, %v7317
        %v7319 = vsel %vm7309, %v7316, %v7318
        %v7320 = vsel %vm7308, %v7298, %v7301
        %v7321 = vsel %vm7311, %v7307, 1326507024
        %v7322 = vsel %vm7310, %v7304, %v7321
        %v7323 = vsel %vm7309, %v7320, %v7322
        %v7324 = vshll.u32 %v7284, 8
        %v7325 = vand.u32 %v7324, 65535
        %v7326 = vshrl.u32 %v7324, 16
        %v7327 = vand.u32 %v7323, 65535
        %v7328 = vshrl.u32 %v7323, 16
        %v7329 = vmul.u32 %v7325, %v7327
        %v7330 = vmul.u32 %v7325, %v7328
        %v7331 = vmul.u32 %v7326, %v7327
        %v7332 = vmul.u32 %v7326, %v7328
        %v7333 = vshll.u32 %v7330, 16
        %v7334 = vshrl.u32 %v7330, 16
        %v7335 = vshll.u32 %v7331, 16
        %v7336 = vshrl.u32 %v7331, 16
        %vm7337 = vc.u32 %v7329, %v7333
        %v7338 = vsel %vm7337, 1, 0
        %v7339 = vadd.s32 %v7329, %v7333
        %v7340 = vadd.s32 %v7332, %v7338
        %vm7341 = vc.u32 %v7339, %v7335
        %v7342 = vsel %vm7341, 1, 0
        %v7343 = vadd.s32 %v7339, %v7335
        %v7344 = vadd.s32 %v7340, %v7342
        %v7345 = vadd.s32 %v7344, %v7334
        %v7346 = vadd.s32 %v7345, %v7336
        %v7347 = vand.u32 %v7324, 65535
        %v7348 = vshrl.u32 %v7324, 16
        %v7349 = vand.u32 %v7319, 65535
        %v7350 = vshrl.u32 %v7319, 16
        %v7351 = vmul.u32 %v7347, %v7349
        %v7352 = vmul.u32 %v7347, %v7350
        %v7353 = vmul.u32 %v7348, %v7349
        %v7354 = vmul.u32 %v7348, %v7350
        %v7355 = vshll.u32 %v7352, 16
        %v7356 = vshrl.u32 %v7352, 16
        %v7357 = vshll.u32 %v7353, 16
        %v7358 = vshrl.u32 %v7353, 16
        %vm7359 = vc.u32 %v7351, %v7355
        %v7360 = vsel %vm7359, 1, 0
        %v7361 = vadd.s32 %v7351, %v7355
        %v7362 = vadd.s32 %v7354, %v7360
        %vm7363 = vc.u32 %v7361, %v7357
        %v7364 = vsel %vm7363, 1, 0
        %v7365 = vadd.s32 %v7361, %v7357
        %v7366 = vadd.s32 %v7362, %v7364
        %v7367 = vadd.s32 %v7366, %v7356
        %v7368 = vadd.s32 %v7367, %v7358
        %v7369 = vmul.u32 %v7324, %v7315
        %v7370 = vadd.s32 %v7346, %v7365
        %vm7371 = vc.u32 %v7346, %v7365
        %v7372 = vadd.s32 %v7368, 1
        %v7373 = vsel %vm7371, %v7372, %v7368
        %v7374 = vadd.s32 %v7369, %v7373
        %v7375 = vadd.s32 %v7374, 536870912
        %v7376 = vshrl.u32 %v7375, 30
        %v7377 = vshll.u32 %v7376, 30
        %v7378 = vsub.s32 %v7374, %v7377
        %vm7379 = vcmp.lt.s32.totalorder %v7378, 0
        %v7380 = vsub.s32 0, %v7378
        %v7381 = vsel %vm7379, %v7380, %v7378
        %v7382 = vclz %v7381
        %v7383 = vsub.s32 %v7382, 2
        %vm7384 = vcmp.gt.s32.totalorder 0, %v7383
        %v7385 = vsel %vm7384, 0, %v7383
        %v7386 = vsub.s32 32, %v7385
        %v7387 = vshll.u32 %v7378, %v7385
        %v7388 = vshrl.u32 %v7370, %v7386
        %v7389 = vor.u32 %v7387, %v7388
        %v7390 = vsub.s32 4294967266, %v7385
        %v7391 = vadd.s32 %v7390, 127
        %v7392 = vshll.u32 %v7391, 23
        %v7393 = vor.u32 4788187, %v7392
        %v7394 = vand.u32 2147483647, %v7393
        %v7396 = vcvt.s32.f32 %v7389
        %v7397 = vmul.f32 %v7396, %v7394
        %v7398 = vxor.u32 %v7397, 2147483648
        %v7399 = vsel %vm7278, %v7398, %v7397
        %v7400 = vsub.s32 4, %v7376
        %v7401 = vsel %vm7278, %v7400, %v7376
        %v7402 = vsel %vm7277, %v5948, %v7399
        %v7403 = vsel %vm7277, 0, %v7401
        %v7404 = vmul.f32 %v7402, %v7402
        %v7405 = vmul.f32 %v7404, -0.001358992
        %v7406 = vadd.f32 %v7405, 0.041655596
        %v7407 = vmul.f32 %v7404, %v7406
        %v7408 = vadd.f32 %v7407, -0.4999988
        %v7409 = vmul.f32 %v7404, %v7408
        %v7410 = vadd.f32 1.0, %v7409
        %v7411 = vmul.f32 %v7402, %v7402
        %v7412 = vmul.f32 %v7411, -0.00019511016
        %v7413 = vadd.f32 %v7412, 0.008332121
        %v7414 = vmul.f32 %v7411, %v7413
        %v7415 = vadd.f32 %v7414, -0.16666654
        %v7416 = vmul.f32 %v7411, %v7415
        %v7417 = vadd.f32 %v7416, 1.0
        %v7418 = vmul.f32 %v7417, %v7402
        %vm7419 = vweird.f32 %v5948
        %v7420 = vadd.s32 %v7403, 3
        %v7421 = vand.u32 %v7420, 3
        %vm7422 = vcmp.lt.s32.totalorder %v7421, 2
        %vm7423 = vcmp.eq.s32.totalorder %v7421, 0
        %v7424 = vxor.u32 %v7418, 2147483648
        %v7425 = vsel %vm7423, %v7410, %v7424
        %vm7426 = vcmp.eq.s32.totalorder %v7421, 2
        %v7427 = vxor.u32 %v7410, 2147483648
        %v7428 = vsel %vm7426, %v7427, %v7418
        %v7429 = vsel %vm7422, %v7425, %v7428
        %v7430 = vsel %vm7419, nan, %v7429
        %v7431 = vand.u32 2147483647, %v5951
        %vm7432 = vcmp.le.f32.partialorder %v7431, 0.7853982
        %vm7433 = vcmp.lt.s32.totalorder %v5951, 0
        %v7434 = vand.u32 %v5951, 2139095040
        %v7435 = vshrl.u32 %v7434, 23
        %v7436 = vsub.s32 %v7435, 127
        %v7437 = vand.u32 2147483647, %v5951
        %v7438 = vand.u32 %v7437, 8388607
        %v7439 = vor.u32 %v7438, 8388608
        %v7440 = vsub.s32 0, %v7439
        %v7441 = vadd.s32 %v7436, 1
        %vm7442 = vcmp.gt.s32.totalorder %v7441, 0
        %v7443 = vsel %vm7442, %v7441, 0
        %v7444 = vshrl.u32 %v7443, 5
        %v7445 = vand.u32 %v7443, 31
        %v7446 = vsub.s32 32, %v7445
        %v7447 = vshrl.u32 683565275, %v7446
        %v7448 = vshll.u32 683565275, %v7445
        %v7449 = vshrl.u32 2475754826, %v7446
        %v7450 = vor.u32 %v7448, %v7449
        %v7451 = vshll.u32 2475754826, %v7445
        %v7452 = vshrl.u32 2131351028, %v7446
        %v7453 = vor.u32 %v7451, %v7452
        %v7454 = vshll.u32 2131351028, %v7445
        %v7455 = vshrl.u32 2102212464, %v7446
        %v7456 = vor.u32 %v7454, %v7455
        %v7457 = vshll.u32 2102212464, %v7445
        %v7458 = vshrl.u32 920167782, %v7446
        %v7459 = vor.u32 %v7457, %v7458
        %v7460 = vshll.u32 920167782, %v7445
        %v7461 = vshrl.u32 1326507024, %v7446
        %v7462 = vor.u32 %v7460, %v7461
        %vm7463 = vcmp.lt.s32.totalorder %v7444, 1
        %vm7464 = vcmp.lt.s32.totalorder %v7444, 2
        %vm7465 = vcmp.lt.s32.totalorder %v7444, 3
        %vm7466 = vcmp.lt.s32.totalorder %v7444, 4
        %v7467 = vsel %vm7463, %v7447, %v7450
        %v7468 = vsel %vm7466, %v7456, 2102212464
        %v7469 = vsel %vm7465, %v7453, %v7468
        %v7470 = vsel %vm7464, %v7467, %v7469
        %v7471 = vsel %vm7463, %v7450, %v7453
        %v7472 = vsel %vm7466, %v7459, 920167782
        %v7473 = vsel %vm7465, %v7456, %v7472
        %v7474 = vsel %vm7464, %v7471, %v7473
        %v7475 = vsel %vm7463, %v7453, %v7456
        %v7476 = vsel %vm7466, %v7462, 1326507024
        %v7477 = vsel %vm7465, %v7459, %v7476
        %v7478 = vsel %vm7464, %v7475, %v7477
        %v7479 = vshll.u32 %v7439, 8
        %v7480 = vand.u32 %v7479, 65535
        %v7481 = vshrl.u32 %v7479, 16
        %v7482 = vand.u32 %v7478, 65535
        %v7483 = vshrl.u32 %v7478, 16
        %v7484 = vmul.u32 %v7480, %v7482
        %v7485 = vmul.u32 %v7480, %v7483
        %v7486 = vmul.u32 %v7481, %v7482
        %v7487 = vmul.u32 %v7481, %v7483
        %v7488 = vshll.u32 %v7485, 16
        %v7489 = vshrl.u32 %v7485, 16
        %v7490 = vshll.u32 %v7486, 16
        %v7491 = vshrl.u32 %v7486, 16
        %vm7492 = vc.u32 %v7484, %v7488
        %v7493 = vsel %vm7492, 1, 0
        %v7494 = vadd.s32 %v7484, %v7488
        %v7495 = vadd.s32 %v7487, %v7493
        %vm7496 = vc.u32 %v7494, %v7490
        %v7497 = vsel %vm7496, 1, 0
        %v7498 = vadd.s32 %v7494, %v7490
        %v7499 = vadd.s32 %v7495, %v7497
        %v7500 = vadd.s32 %v7499, %v7489
        %v7501 = vadd.s32 %v7500, %v7491
        %v7502 = vand.u32 %v7479, 65535
        %v7503 = vshrl.u32 %v7479, 16
        %v7504 = vand.u32 %v7474, 65535
        %v7505 = vshrl.u32 %v7474, 16
        %v7506 = vmul.u32 %v7502, %v7504
        %v7507 = vmul.u32 %v7502, %v7505
        %v7508 = vmul.u32 %v7503, %v7504
        %v7509 = vmul.u32 %v7503, %v7505
        %v7510 = vshll.u32 %v7507, 16
        %v7511 = vshrl.u32 %v7507, 16
        %v7512 = vshll.u32 %v7508, 16
        %v7513 = vshrl.u32 %v7508, 16
        %vm7514 = vc.u32 %v7506, %v7510
        %v7515 = vsel %vm7514, 1, 0
        %v7516 = vadd.s32 %v7506, %v7510
        %v7517 = vadd.s32 %v7509, %v7515
        %vm7518 = vc.u32 %v7516, %v7512
        %v7519 = vsel %vm7518, 1, 0
        %v7520 = vadd.s32 %v7516, %v7512
        %v7521 = vadd.s32 %v7517, %v7519
        %v7522 = vadd.s32 %v7521, %v7511
        %v7523 = vadd.s32 %v7522, %v7513
        %v7524 = vmul.u32 %v7479, %v7470
        %v7525 = vadd.s32 %v7501, %v7520
        %vm7526 = vc.u32 %v7501, %v7520
        %v7527 = vadd.s32 %v7523, 1
        %v7528 = vsel %vm7526, %v7527, %v7523
        %v7529 = vadd.s32 %v7524, %v7528
        %v7530 = vadd.s32 %v7529, 536870912
        %v7531 = vshrl.u32 %v7530, 30
        %v7532 = vshll.u32 %v7531, 30
        %v7533 = vsub.s32 %v7529, %v7532
        %vm7534 = vcmp.lt.s32.totalorder %v7533, 0
        %v7535 = vsub.s32 0, %v7533
        %v7536 = vsel %vm7534, %v7535, %v7533
        %v7537 = vclz %v7536
        %v7538 = vsub.s32 %v7537, 2
        %vm7539 = vcmp.gt.s32.totalorder 0, %v7538
        %v7540 = vsel %vm7539, 0, %v7538
        %v7541 = vsub.s32 32, %v7540
        %v7542 = vshll.u32 %v7533, %v7540
        %v7543 = vshrl.u32 %v7525, %v7541
        %v7544 = vor.u32 %v7542, %v7543
        %v7545 = vsub.s32 4294967266, %v7540
        %v7546 = vadd.s32 %v7545, 127
        %v7547 = vshll.u32 %v7546, 23
        %v7548 = vor.u32 4788187, %v7547
        %v7549 = vand.u32 2147483647, %v7548
        %v7551 = vcvt.s32.f32 %v7544
        %v7552 = vmul.f32 %v7551, %v7549
        %v7553 = vxor.u32 %v7552, 2147483648
        %v7554 = vsel %vm7433, %v7553, %v7552
        %v7555 = vsub.s32 4, %v7531
        %v7556 = vsel %vm7433, %v7555, %v7531
        %v7557 = vsel %vm7432, %v5951, %v7554
        %v7558 = vsel %vm7432, 0, %v7556
        %v7559 = vmul.f32 %v7557, %v7557
        %v7560 = vmul.f32 %v7559, -0.001358992
        %v7561 = vadd.f32 %v7560, 0.041655596
        %v7562 = vmul.f32 %v7559, %v7561
        %v7563 = vadd.f32 %v7562, -0.4999988
        %v7564 = vmul.f32 %v7559, %v7563
        %v7565 = vadd.f32 1.0, %v7564
        %v7566 = vmul.f32 %v7557, %v7557
        %v7567 = vmul.f32 %v7566, -0.00019511016
        %v7568 = vadd.f32 %v7567, 0.008332121
        %v7569 = vmul.f32 %v7566, %v7568
        %v7570 = vadd.f32 %v7569, -0.16666654
        %v7571 = vmul.f32 %v7566, %v7570
        %v7572 = vadd.f32 %v7571, 1.0
        %v7573 = vmul.f32 %v7572, %v7557
        %vm7574 = vweird.f32 %v5951
        %v7575 = vadd.s32 %v7558, 3
        %v7576 = vand.u32 %v7575, 3
        %vm7577 = vcmp.lt.s32.totalorder %v7576, 2
        %vm7578 = vcmp.eq.s32.totalorder %v7576, 0
        %v7579 = vxor.u32 %v7573, 2147483648
        %v7580 = vsel %vm7578, %v7565, %v7579
        %vm7581 = vcmp.eq.s32.totalorder %v7576, 2
        %v7582 = vxor.u32 %v7565, 2147483648
        %v7583 = vsel %vm7581, %v7582, %v7573
        %v7584 = vsel %vm7577, %v7580, %v7583
        %v7585 = vsel %vm7574, nan, %v7584
        %v7586 = vand.u32 2147483647, %v5954
        %vm7587 = vcmp.le.f32.partialorder %v7586, 0.7853982
        %vm7588 = vcmp.lt.s32.totalorder %v5954, 0
        %v7589 = vand.u32 %v5954, 2139095040
        %v7590 = vshrl.u32 %v7589, 23
        %v7591 = vsub.s32 %v7590, 127
        %v7592 = vand.u32 2147483647, %v5954
        %v7593 = vand.u32 %v7592, 8388607
        %v7594 = vor.u32 %v7593, 8388608
        %v7595 = vsub.s32 0, %v7594
        %v7596 = vadd.s32 %v7591, 1
        %vm7597 = vcmp.gt.s32.totalorder %v7596, 0
        %v7598 = vsel %vm7597, %v7596, 0
        %v7599 = vshrl.u32 %v7598, 5
        %v7600 = vand.u32 %v7598, 31
        %v7601 = vsub.s32 32, %v7600
        %v7602 = vshrl.u32 683565275, %v7601
        %v7603 = vshll.u32 683565275, %v7600
        %v7604 = vshrl.u32 2475754826, %v7601
        %v7605 = vor.u32 %v7603, %v7604
        %v7606 = vshll.u32 2475754826, %v7600
        %v7607 = vshrl.u32 2131351028, %v7601
        %v7608 = vor.u32 %v7606, %v7607
        %v7609 = vshll.u32 2131351028, %v7600
        %v7610 = vshrl.u32 2102212464, %v7601
        %v7611 = vor.u32 %v7609, %v7610
        %v7612 = vshll.u32 2102212464, %v7600
        %v7613 = vshrl.u32 920167782, %v7601
        %v7614 = vor.u32 %v7612, %v7613
        %v7615 = vshll.u32 920167782, %v7600
        %v7616 = vshrl.u32 1326507024, %v7601
        %v7617 = vor.u32 %v7615, %v7616
        %vm7618 = vcmp.lt.s32.totalorder %v7599, 1
        %vm7619 = vcmp.lt.s32.totalorder %v7599, 2
        %vm7620 = vcmp.lt.s32.totalorder %v7599, 3
        %vm7621 = vcmp.lt.s32.totalorder %v7599, 4
        %v7622 = vsel %vm7618, %v7602, %v7605
        %v7623 = vsel %vm7621, %v7611, 2102212464
        %v7624 = vsel %vm7620, %v7608, %v7623
        %v7625 = vsel %vm7619, %v7622, %v7624
        %v7626 = vsel %vm7618, %v7605, %v7608
        %v7627 = vsel %vm7621, %v7614, 920167782
        %v7628 = vsel %vm7620, %v7611, %v7627
        %v7629 = vsel %vm7619, %v7626, %v7628
        %v7630 = vsel %vm7618, %v7608, %v7611
        %v7631 = vsel %vm7621, %v7617, 1326507024
        %v7632 = vsel %vm7620, %v7614, %v7631
        %v7633 = vsel %vm7619, %v7630, %v7632
        %v7634 = vshll.u32 %v7594, 8
        %v7635 = vand.u32 %v7634, 65535
        %v7636 = vshrl.u32 %v7634, 16
        %v7637 = vand.u32 %v7633, 65535
        %v7638 = vshrl.u32 %v7633, 16
        %v7639 = vmul.u32 %v7635, %v7637
        %v7640 = vmul.u32 %v7635, %v7638
        %v7641 = vmul.u32 %v7636, %v7637
        %v7642 = vmul.u32 %v7636, %v7638
        %v7643 = vshll.u32 %v7640, 16
        %v7644 = vshrl.u32 %v7640, 16
        %v7645 = vshll.u32 %v7641, 16
        %v7646 = vshrl.u32 %v7641, 16
        %vm7647 = vc.u32 %v7639, %v7643
        %v7648 = vsel %vm7647, 1, 0
        %v7649 = vadd.s32 %v7639, %v7643
        %v7650 = vadd.s32 %v7642, %v7648
        %vm7651 = vc.u32 %v7649, %v7645
        %v7652 = vsel %vm7651, 1, 0
        %v7653 = vadd.s32 %v7649, %v7645
        %v7654 = vadd.s32 %v7650, %v7652
        %v7655 = vadd.s32 %v7654, %v7644
        %v7656 = vadd.s32 %v7655, %v7646
        %v7657 = vand.u32 %v7634, 65535
        %v7658 = vshrl.u32 %v7634, 16
        %v7659 = vand.u32 %v7629, 65535
        %v7660 = vshrl.u32 %v7629, 16
        %v7661 = vmul.u32 %v7657, %v7659
        %v7662 = vmul.u32 %v7657, %v7660
        %v7663 = vmul.u32 %v7658, %v7659
        %v7664 = vmul.u32 %v7658, %v7660
        %v7665 = vshll.u32 %v7662, 16
        %v7666 = vshrl.u32 %v7662, 16
        %v7667 = vshll.u32 %v7663, 16
        %v7668 = vshrl.u32 %v7663, 16
        %vm7669 = vc.u32 %v7661, %v7665
        %v7670 = vsel %vm7669, 1, 0
        %v7671 = vadd.s32 %v7661, %v7665
        %v7672 = vadd.s32 %v7664, %v7670
        %vm7673 = vc.u32 %v7671, %v7667
        %v7674 = vsel %vm7673, 1, 0
        %v7675 = vadd.s32 %v7671, %v7667
        %v7676 = vadd.s32 %v7672, %v7674
        %v7677 = vadd.s32 %v7676, %v7666
        %v7678 = vadd.s32 %v7677, %v7668
        %v7679 = vmul.u32 %v7634, %v7625
        %v7680 = vadd.s32 %v7656, %v7675
        %vm7681 = vc.u32 %v7656, %v7675
        %v7682 = vadd.s32 %v7678, 1
        %v7683 = vsel %vm7681, %v7682, %v7678
        %v7684 = vadd.s32 %v7679, %v7683
        %v7685 = vadd.s32 %v7684, 536870912
        %v7686 = vshrl.u32 %v7685, 30
        %v7687 = vshll.u32 %v7686, 30
        %v7688 = vsub.s32 %v7684, %v7687
        %vm7689 = vcmp.lt.s32.totalorder %v7688, 0
        %v7690 = vsub.s32 0, %v7688
        %v7691 = vsel %vm7689, %v7690, %v7688
        %v7692 = vclz %v7691
        %v7693 = vsub.s32 %v7692, 2
        %vm7694 = vcmp.gt.s32.totalorder 0, %v7693
        %v7695 = vsel %vm7694, 0, %v7693
        %v7696 = vsub.s32 32, %v7695
        %v7697 = vshll.u32 %v7688, %v7695
        %v7698 = vshrl.u32 %v7680, %v7696
        %v7699 = vor.u32 %v7697, %v7698
        %v7700 = vsub.s32 4294967266, %v7695
        %v7701 = vadd.s32 %v7700, 127
        %v7702 = vshll.u32 %v7701, 23
        %v7703 = vor.u32 4788187, %v7702
        %v7704 = vand.u32 2147483647, %v7703
        %v7706 = vcvt.s32.f32 %v7699
        %v7707 = vmul.f32 %v7706, %v7704
        %v7708 = vxor.u32 %v7707, 2147483648
        %v7709 = vsel %vm7588, %v7708, %v7707
        %v7710 = vsub.s32 4, %v7686
        %v7711 = vsel %vm7588, %v7710, %v7686
        %v7712 = vsel %vm7587, %v5954, %v7709
        %v7713 = vsel %vm7587, 0, %v7711
        %v7714 = vmul.f32 %v7712, %v7712
        %v7715 = vmul.f32 %v7714, -0.001358992
        %v7716 = vadd.f32 %v7715, 0.041655596
        %v7717 = vmul.f32 %v7714, %v7716
        %v7718 = vadd.f32 %v7717, -0.4999988
        %v7719 = vmul.f32 %v7714, %v7718
        %v7720 = vadd.f32 1.0, %v7719
        %v7721 = vmul.f32 %v7712, %v7712
        %v7722 = vmul.f32 %v7721, -0.00019511016
        %v7723 = vadd.f32 %v7722, 0.008332121
        %v7724 = vmul.f32 %v7721, %v7723
        %v7725 = vadd.f32 %v7724, -0.16666654
        %v7726 = vmul.f32 %v7721, %v7725
        %v7727 = vadd.f32 %v7726, 1.0
        %v7728 = vmul.f32 %v7727, %v7712
        %vm7729 = vweird.f32 %v5954
        %v7730 = vadd.s32 %v7713, 3
        %v7731 = vand.u32 %v7730, 3
        %vm7732 = vcmp.lt.s32.totalorder %v7731, 2
        %vm7733 = vcmp.eq.s32.totalorder %v7731, 0
        %v7734 = vxor.u32 %v7728, 2147483648
        %v7735 = vsel %vm7733, %v7720, %v7734
        %vm7736 = vcmp.eq.s32.totalorder %v7731, 2
        %v7737 = vxor.u32 %v7720, 2147483648
        %v7738 = vsel %vm7736, %v7737, %v7728
        %v7739 = vsel %vm7732, %v7735, %v7738
        %v7740 = vsel %vm7729, nan, %v7739
        %v7741 = vand.u32 2147483647, %v5957
        %vm7742 = vcmp.le.f32.partialorder %v7741, 0.7853982
        %vm7743 = vcmp.lt.s32.totalorder %v5957, 0
        %v7744 = vand.u32 %v5957, 2139095040
        %v7745 = vshrl.u32 %v7744, 23
        %v7746 = vsub.s32 %v7745, 127
        %v7747 = vand.u32 2147483647, %v5957
        %v7748 = vand.u32 %v7747, 8388607
        %v7749 = vor.u32 %v7748, 8388608
        %v7750 = vsub.s32 0, %v7749
        %v7751 = vadd.s32 %v7746, 1
        %vm7752 = vcmp.gt.s32.totalorder %v7751, 0
        %v7753 = vsel %vm7752, %v7751, 0
        %v7754 = vshrl.u32 %v7753, 5
        %v7755 = vand.u32 %v7753, 31
        %v7756 = vsub.s32 32, %v7755
        %v7757 = vshrl.u32 683565275, %v7756
        %v7758 = vshll.u32 683565275, %v7755
        %v7759 = vshrl.u32 2475754826, %v7756
        %v7760 = vor.u32 %v7758, %v7759
        %v7761 = vshll.u32 2475754826, %v7755
        %v7762 = vshrl.u32 2131351028, %v7756
        %v7763 = vor.u32 %v7761, %v7762
        %v7764 = vshll.u32 2131351028, %v7755
        %v7765 = vshrl.u32 2102212464, %v7756
        %v7766 = vor.u32 %v7764, %v7765
        %v7767 = vshll.u32 2102212464, %v7755
        %v7768 = vshrl.u32 920167782, %v7756
        %v7769 = vor.u32 %v7767, %v7768
        %v7770 = vshll.u32 920167782, %v7755
        %v7771 = vshrl.u32 1326507024, %v7756
        %v7772 = vor.u32 %v7770, %v7771
        %vm7773 = vcmp.lt.s32.totalorder %v7754, 1
        %vm7774 = vcmp.lt.s32.totalorder %v7754, 2
        %vm7775 = vcmp.lt.s32.totalorder %v7754, 3
        %vm7776 = vcmp.lt.s32.totalorder %v7754, 4
        %v7777 = vsel %vm7773, %v7757, %v7760
        %v7778 = vsel %vm7776, %v7766, 2102212464
        %v7779 = vsel %vm7775, %v7763, %v7778
        %v7780 = vsel %vm7774, %v7777, %v7779
        %v7781 = vsel %vm7773, %v7760, %v7763
        %v7782 = vsel %vm7776, %v7769, 920167782
        %v7783 = vsel %vm7775, %v7766, %v7782
        %v7784 = vsel %vm7774, %v7781, %v7783
        %v7785 = vsel %vm7773, %v7763, %v7766
        %v7786 = vsel %vm7776, %v7772, 1326507024
        %v7787 = vsel %vm7775, %v7769, %v7786
        %v7788 = vsel %vm7774, %v7785, %v7787
        %v7789 = vshll.u32 %v7749, 8
        %v7790 = vand.u32 %v7789, 65535
        %v7791 = vshrl.u32 %v7789, 16
        %v7792 = vand.u32 %v7788, 65535
        %v7793 = vshrl.u32 %v7788, 16
        %v7794 = vmul.u32 %v7790, %v7792
        %v7795 = vmul.u32 %v7790, %v7793
        %v7796 = vmul.u32 %v7791, %v7792
        %v7797 = vmul.u32 %v7791, %v7793
        %v7798 = vshll.u32 %v7795, 16
        %v7799 = vshrl.u32 %v7795, 16
        %v7800 = vshll.u32 %v7796, 16
        %v7801 = vshrl.u32 %v7796, 16
        %vm7802 = vc.u32 %v7794, %v7798
        %v7803 = vsel %vm7802, 1, 0
        %v7804 = vadd.s32 %v7794, %v7798
        %v7805 = vadd.s32 %v7797, %v7803
        %vm7806 = vc.u32 %v7804, %v7800
        %v7807 = vsel %vm7806, 1, 0
        %v7808 = vadd.s32 %v7804, %v7800
        %v7809 = vadd.s32 %v7805, %v7807
        %v7810 = vadd.s32 %v7809, %v7799
        %v7811 = vadd.s32 %v7810, %v7801
        %v7812 = vand.u32 %v7789, 65535
        %v7813 = vshrl.u32 %v7789, 16
        %v7814 = vand.u32 %v7784, 65535
        %v7815 = vshrl.u32 %v7784, 16
        %v7816 = vmul.u32 %v7812, %v7814
        %v7817 = vmul.u32 %v7812, %v7815
        %v7818 = vmul.u32 %v7813, %v7814
        %v7819 = vmul.u32 %v7813, %v7815
        %v7820 = vshll.u32 %v7817, 16
        %v7821 = vshrl.u32 %v7817, 16
        %v7822 = vshll.u32 %v7818, 16
        %v7823 = vshrl.u32 %v7818, 16
        %vm7824 = vc.u32 %v7816, %v7820
        %v7825 = vsel %vm7824, 1, 0
        %v7826 = vadd.s32 %v7816, %v7820
        %v7827 = vadd.s32 %v7819, %v7825
        %vm7828 = vc.u32 %v7826, %v7822
        %v7829 = vsel %vm7828, 1, 0
        %v7830 = vadd.s32 %v7826, %v7822
        %v7831 = vadd.s32 %v7827, %v7829
        %v7832 = vadd.s32 %v7831, %v7821
        %v7833 = vadd.s32 %v7832, %v7823
        %v7834 = vmul.u32 %v7789, %v7780
        %v7835 = vadd.s32 %v7811, %v7830
        %vm7836 = vc.u32 %v7811, %v7830
        %v7837 = vadd.s32 %v7833, 1
        %v7838 = vsel %vm7836, %v7837, %v7833
        %v7839 = vadd.s32 %v7834, %v7838
        %v7840 = vadd.s32 %v7839, 536870912
        %v7841 = vshrl.u32 %v7840, 30
        %v7842 = vshll.u32 %v7841, 30
        %v7843 = vsub.s32 %v7839, %v7842
        %vm7844 = vcmp.lt.s32.totalorder %v7843, 0
        %v7845 = vsub.s32 0, %v7843
        %v7846 = vsel %vm7844, %v7845, %v7843
        %v7847 = vclz %v7846
        %v7848 = vsub.s32 %v7847, 2
        %vm7849 = vcmp.gt.s32.totalorder 0, %v7848
        %v7850 = vsel %vm7849, 0, %v7848
        %v7851 = vsub.s32 32, %v7850
        %v7852 = vshll.u32 %v7843, %v7850
        %v7853 = vshrl.u32 %v7835, %v7851
        %v7854 = vor.u32 %v7852, %v7853
        %v7855 = vsub.s32 4294967266, %v7850
        %v7856 = vadd.s32 %v7855, 127
        %v7857 = vshll.u32 %v7856, 23
        %v7858 = vor.u32 4788187, %v7857
        %v7859 = vand.u32 2147483647, %v7858
        %v7861 = vcvt.s32.f32 %v7854
        %v7862 = vmul.f32 %v7861, %v7859
        %v7863 = vxor.u32 %v7862, 2147483648
        %v7864 = vsel %vm7743, %v7863, %v7862
        %v7865 = vsub.s32 4, %v7841
        %v7866 = vsel %vm7743, %v7865, %v7841
        %v7867 = vsel %vm7742, %v5957, %v7864
        %v7868 = vsel %vm7742, 0, %v7866
        %v7869 = vmul.f32 %v7867, %v7867
        %v7870 = vmul.f32 %v7869, -0.001358992
        %v7871 = vadd.f32 %v7870, 0.041655596
        %v7872 = vmul.f32 %v7869, %v7871
        %v7873 = vadd.f32 %v7872, -0.4999988
        %v7874 = vmul.f32 %v7869, %v7873
        %v7875 = vadd.f32 1.0, %v7874
        %v7876 = vmul.f32 %v7867, %v7867
        %v7877 = vmul.f32 %v7876, -0.00019511016
        %v7878 = vadd.f32 %v7877, 0.008332121
        %v7879 = vmul.f32 %v7876, %v7878
        %v7880 = vadd.f32 %v7879, -0.16666654
        %v7881 = vmul.f32 %v7876, %v7880
        %v7882 = vadd.f32 %v7881, 1.0
        %v7883 = vmul.f32 %v7882, %v7867
        %vm7884 = vweird.f32 %v5957
        %v7885 = vadd.s32 %v7868, 3
        %v7886 = vand.u32 %v7885, 3
        %vm7887 = vcmp.lt.s32.totalorder %v7886, 2
        %vm7888 = vcmp.eq.s32.totalorder %v7886, 0
        %v7889 = vxor.u32 %v7883, 2147483648
        %v7890 = vsel %vm7888, %v7875, %v7889
        %vm7891 = vcmp.eq.s32.totalorder %v7886, 2
        %v7892 = vxor.u32 %v7875, 2147483648
        %v7893 = vsel %vm7891, %v7892, %v7883
        %v7894 = vsel %vm7887, %v7890, %v7893
        %v7895 = vsel %vm7884, nan, %v7894
        %v7896 = vand.u32 2147483647, %v5960
        %vm7897 = vcmp.le.f32.partialorder %v7896, 0.7853982
        %vm7898 = vcmp.lt.s32.totalorder %v5960, 0
        %v7899 = vand.u32 %v5960, 2139095040
        %v7900 = vshrl.u32 %v7899, 23
        %v7901 = vsub.s32 %v7900, 127
        %v7902 = vand.u32 2147483647, %v5960
        %v7903 = vand.u32 %v7902, 8388607
        %v7904 = vor.u32 %v7903, 8388608
        %v7905 = vsub.s32 0, %v7904
        %v7906 = vadd.s32 %v7901, 1
        %vm7907 = vcmp.gt.s32.totalorder %v7906, 0
        %v7908 = vsel %vm7907, %v7906, 0
        %v7909 = vshrl.u32 %v7908, 5
        %v7910 = vand.u32 %v7908, 31
        %v7911 = vsub.s32 32, %v7910
        %v7912 = vshrl.u32 683565275, %v7911
        %v7913 = vshll.u32 683565275, %v7910
        %v7914 = vshrl.u32 2475754826, %v7911
        %v7915 = vor.u32 %v7913, %v7914
        %v7916 = vshll.u32 2475754826, %v7910
        %v7917 = vshrl.u32 2131351028, %v7911
        %v7918 = vor.u32 %v7916, %v7917
        %v7919 = vshll.u32 2131351028, %v7910
        %v7920 = vshrl.u32 2102212464, %v7911
        %v7921 = vor.u32 %v7919, %v7920
        %v7922 = vshll.u32 2102212464, %v7910
        %v7923 = vshrl.u32 920167782, %v7911
        %v7924 = vor.u32 %v7922, %v7923
        %v7925 = vshll.u32 920167782, %v7910
        %v7926 = vshrl.u32 1326507024, %v7911
        %v7927 = vor.u32 %v7925, %v7926
        %vm7928 = vcmp.lt.s32.totalorder %v7909, 1
        %vm7929 = vcmp.lt.s32.totalorder %v7909, 2
        %vm7930 = vcmp.lt.s32.totalorder %v7909, 3
        %vm7931 = vcmp.lt.s32.totalorder %v7909, 4
        %v7932 = vsel %vm7928, %v7912, %v7915
        %v7933 = vsel %vm7931, %v7921, 2102212464
        %v7934 = vsel %vm7930, %v7918, %v7933
        %v7935 = vsel %vm7929, %v7932, %v7934
        %v7936 = vsel %vm7928, %v7915, %v7918
        %v7937 = vsel %vm7931, %v7924, 920167782
        %v7938 = vsel %vm7930, %v7921, %v7937
        %v7939 = vsel %vm7929, %v7936, %v7938
        %v7940 = vsel %vm7928, %v7918, %v7921
        %v7941 = vsel %vm7931, %v7927, 1326507024
        %v7942 = vsel %vm7930, %v7924, %v7941
        %v7943 = vsel %vm7929, %v7940, %v7942
        %v7944 = vshll.u32 %v7904, 8
        %v7945 = vand.u32 %v7944, 65535
        %v7946 = vshrl.u32 %v7944, 16
        %v7947 = vand.u32 %v7943, 65535
        %v7948 = vshrl.u32 %v7943, 16
        %v7949 = vmul.u32 %v7945, %v7947
        %v7950 = vmul.u32 %v7945, %v7948
        %v7951 = vmul.u32 %v7946, %v7947
        %v7952 = vmul.u32 %v7946, %v7948
        %v7953 = vshll.u32 %v7950, 16
        %v7954 = vshrl.u32 %v7950, 16
        %v7955 = vshll.u32 %v7951, 16
        %v7956 = vshrl.u32 %v7951, 16
        %vm7957 = vc.u32 %v7949, %v7953
        %v7958 = vsel %vm7957, 1, 0
        %v7959 = vadd.s32 %v7949, %v7953
        %v7960 = vadd.s32 %v7952, %v7958
        %vm7961 = vc.u32 %v7959, %v7955
        %v7962 = vsel %vm7961, 1, 0
        %v7963 = vadd.s32 %v7959, %v7955
        %v7964 = vadd.s32 %v7960, %v7962
        %v7965 = vadd.s32 %v7964, %v7954
        %v7966 = vadd.s32 %v7965, %v7956
        %v7967 = vand.u32 %v7944, 65535
        %v7968 = vshrl.u32 %v7944, 16
        %v7969 = vand.u32 %v7939, 65535
        %v7970 = vshrl.u32 %v7939, 16
        %v7971 = vmul.u32 %v7967, %v7969
        %v7972 = vmul.u32 %v7967, %v7970
        %v7973 = vmul.u32 %v7968, %v7969
        %v7974 = vmul.u32 %v7968, %v7970
        %v7975 = vshll.u32 %v7972, 16
        %v7976 = vshrl.u32 %v7972, 16
        %v7977 = vshll.u32 %v7973, 16
        %v7978 = vshrl.u32 %v7973, 16
        %vm7979 = vc.u32 %v7971, %v7975
        %v7980 = vsel %vm7979, 1, 0
        %v7981 = vadd.s32 %v7971, %v7975
        %v7982 = vadd.s32 %v7974, %v7980
        %vm7983 = vc.u32 %v7981, %v7977
        %v7984 = vsel %vm7983, 1, 0
        %v7985 = vadd.s32 %v7981, %v7977
        %v7986 = vadd.s32 %v7982, %v7984
        %v7987 = vadd.s32 %v7986, %v7976
        %v7988 = vadd.s32 %v7987, %v7978
        %v7989 = vmul.u32 %v7944, %v7935
        %v7990 = vadd.s32 %v7966, %v7985
        %vm7991 = vc.u32 %v7966, %v7985
        %v7992 = vadd.s32 %v7988, 1
        %v7993 = vsel %vm7991, %v7992, %v7988
        %v7994 = vadd.s32 %v7989, %v7993
        %v7995 = vadd.s32 %v7994, 536870912
        %v7996 = vshrl.u32 %v7995, 30
        %v7997 = vshll.u32 %v7996, 30
        %v7998 = vsub.s32 %v7994, %v7997
        %vm7999 = vcmp.lt.s32.totalorder %v7998, 0
        %v8000 = vsub.s32 0, %v7998
        %v8001 = vsel %vm7999, %v8000, %v7998
        %v8002 = vclz %v8001
        %v8003 = vsub.s32 %v8002, 2
        %vm8004 = vcmp.gt.s32.totalorder 0, %v8003
        %v8005 = vsel %vm8004, 0, %v8003
        %v8006 = vsub.s32 32, %v8005
        %v8007 = vshll.u32 %v7998, %v8005
        %v8008 = vshrl.u32 %v7990, %v8006
        %v8009 = vor.u32 %v8007, %v8008
        %v8010 = vsub.s32 4294967266, %v8005
        %v8011 = vadd.s32 %v8010, 127
        %v8012 = vshll.u32 %v8011, 23
        %v8013 = vor.u32 4788187, %v8012
        %v8014 = vand.u32 2147483647, %v8013
        %v8016 = vcvt.s32.f32 %v8009
        %v8017 = vmul.f32 %v8016, %v8014
        %v8018 = vxor.u32 %v8017, 2147483648
        %v8019 = vsel %vm7898, %v8018, %v8017
        %v8020 = vsub.s32 4, %v7996
        %v8021 = vsel %vm7898, %v8020, %v7996
        %v8022 = vsel %vm7897, %v5960, %v8019
        %v8023 = vsel %vm7897, 0, %v8021
        %v8024 = vmul.f32 %v8022, %v8022
        %v8025 = vmul.f32 %v8024, -0.001358992
        %v8026 = vadd.f32 %v8025, 0.041655596
        %v8027 = vmul.f32 %v8024, %v8026
        %v8028 = vadd.f32 %v8027, -0.4999988
        %v8029 = vmul.f32 %v8024, %v8028
        %v8030 = vadd.f32 1.0, %v8029
        %v8031 = vmul.f32 %v8022, %v8022
        %v8032 = vmul.f32 %v8031, -0.00019511016
        %v8033 = vadd.f32 %v8032, 0.008332121
        %v8034 = vmul.f32 %v8031, %v8033
        %v8035 = vadd.f32 %v8034, -0.16666654
        %v8036 = vmul.f32 %v8031, %v8035
        %v8037 = vadd.f32 %v8036, 1.0
        %v8038 = vmul.f32 %v8037, %v8022
        %vm8039 = vweird.f32 %v5960
        %v8040 = vadd.s32 %v8023, 3
        %v8041 = vand.u32 %v8040, 3
        %vm8042 = vcmp.lt.s32.totalorder %v8041, 2
        %vm8043 = vcmp.eq.s32.totalorder %v8041, 0
        %v8044 = vxor.u32 %v8038, 2147483648
        %v8045 = vsel %vm8043, %v8030, %v8044
        %vm8046 = vcmp.eq.s32.totalorder %v8041, 2
        %v8047 = vxor.u32 %v8030, 2147483648
        %v8048 = vsel %vm8046, %v8047, %v8038
        %v8049 = vsel %vm8042, %v8045, %v8048
        %v8050 = vsel %vm8039, nan, %v8049
        %v8051 = vand.u32 2147483647, %v5963
        %vm8052 = vcmp.le.f32.partialorder %v8051, 0.7853982
        %vm8053 = vcmp.lt.s32.totalorder %v5963, 0
        %v8054 = vand.u32 %v5963, 2139095040
        %v8055 = vshrl.u32 %v8054, 23
        %v8056 = vsub.s32 %v8055, 127
        %v8057 = vand.u32 2147483647, %v5963
        %v8058 = vand.u32 %v8057, 8388607
        %v8059 = vor.u32 %v8058, 8388608
        %v8060 = vsub.s32 0, %v8059
        %v8061 = vadd.s32 %v8056, 1
        %vm8062 = vcmp.gt.s32.totalorder %v8061, 0
        %v8063 = vsel %vm8062, %v8061, 0
        %v8064 = vshrl.u32 %v8063, 5
        %v8065 = vand.u32 %v8063, 31
        %v8066 = vsub.s32 32, %v8065
        %v8067 = vshrl.u32 683565275, %v8066
        %v8068 = vshll.u32 683565275, %v8065
        %v8069 = vshrl.u32 2475754826, %v8066
        %v8070 = vor.u32 %v8068, %v8069
        %v8071 = vshll.u32 2475754826, %v8065
        %v8072 = vshrl.u32 2131351028, %v8066
        %v8073 = vor.u32 %v8071, %v8072
        %v8074 = vshll.u32 2131351028, %v8065
        %v8075 = vshrl.u32 2102212464, %v8066
        %v8076 = vor.u32 %v8074, %v8075
        %v8077 = vshll.u32 2102212464, %v8065
        %v8078 = vshrl.u32 920167782, %v8066
        %v8079 = vor.u32 %v8077, %v8078
        %v8080 = vshll.u32 920167782, %v8065
        %v8081 = vshrl.u32 1326507024, %v8066
        %v8082 = vor.u32 %v8080, %v8081
        %vm8083 = vcmp.lt.s32.totalorder %v8064, 1
        %vm8084 = vcmp.lt.s32.totalorder %v8064, 2
        %vm8085 = vcmp.lt.s32.totalorder %v8064, 3
        %vm8086 = vcmp.lt.s32.totalorder %v8064, 4
        %v8087 = vsel %vm8083, %v8067, %v8070
        %v8088 = vsel %vm8086, %v8076, 2102212464
        %v8089 = vsel %vm8085, %v8073, %v8088
        %v8090 = vsel %vm8084, %v8087, %v8089
        %v8091 = vsel %vm8083, %v8070, %v8073
        %v8092 = vsel %vm8086, %v8079, 920167782
        %v8093 = vsel %vm8085, %v8076, %v8092
        %v8094 = vsel %vm8084, %v8091, %v8093
        %v8095 = vsel %vm8083, %v8073, %v8076
        %v8096 = vsel %vm8086, %v8082, 1326507024
        %v8097 = vsel %vm8085, %v8079, %v8096
        %v8098 = vsel %vm8084, %v8095, %v8097
        %v8099 = vshll.u32 %v8059, 8
        %v8100 = vand.u32 %v8099, 65535
        %v8101 = vshrl.u32 %v8099, 16
        %v8102 = vand.u32 %v8098, 65535
        %v8103 = vshrl.u32 %v8098, 16
        %v8104 = vmul.u32 %v8100, %v8102
        %v8105 = vmul.u32 %v8100, %v8103
        %v8106 = vmul.u32 %v8101, %v8102
        %v8107 = vmul.u32 %v8101, %v8103
        %v8108 = vshll.u32 %v8105, 16
        %v8109 = vshrl.u32 %v8105, 16
        %v8110 = vshll.u32 %v8106, 16
        %v8111 = vshrl.u32 %v8106, 16
        %vm8112 = vc.u32 %v8104, %v8108
        %v8113 = vsel %vm8112, 1, 0
        %v8114 = vadd.s32 %v8104, %v8108
        %v8115 = vadd.s32 %v8107, %v8113
        %vm8116 = vc.u32 %v8114, %v8110
        %v8117 = vsel %vm8116, 1, 0
        %v8118 = vadd.s32 %v8114, %v8110
        %v8119 = vadd.s32 %v8115, %v8117
        %v8120 = vadd.s32 %v8119, %v8109
        %v8121 = vadd.s32 %v8120, %v8111
        %v8122 = vand.u32 %v8099, 65535
        %v8123 = vshrl.u32 %v8099, 16
        %v8124 = vand.u32 %v8094, 65535
        %v8125 = vshrl.u32 %v8094, 16
        %v8126 = vmul.u32 %v8122, %v8124
        %v8127 = vmul.u32 %v8122, %v8125
        %v8128 = vmul.u32 %v8123, %v8124
        %v8129 = vmul.u32 %v8123, %v8125
        %v8130 = vshll.u32 %v8127, 16
        %v8131 = vshrl.u32 %v8127, 16
        %v8132 = vshll.u32 %v8128, 16
        %v8133 = vshrl.u32 %v8128, 16
        %vm8134 = vc.u32 %v8126, %v8130
        %v8135 = vsel %vm8134, 1, 0
        %v8136 = vadd.s32 %v8126, %v8130
        %v8137 = vadd.s32 %v8129, %v8135
        %vm8138 = vc.u32 %v8136, %v8132
        %v8139 = vsel %vm8138, 1, 0
        %v8140 = vadd.s32 %v8136, %v8132
        %v8141 = vadd.s32 %v8137, %v8139
        %v8142 = vadd.s32 %v8141, %v8131
        %v8143 = vadd.s32 %v8142, %v8133
        %v8144 = vmul.u32 %v8099, %v8090
        %v8145 = vadd.s32 %v8121, %v8140
        %vm8146 = vc.u32 %v8121, %v8140
        %v8147 = vadd.s32 %v8143, 1
        %v8148 = vsel %vm8146, %v8147, %v8143
        %v8149 = vadd.s32 %v8144, %v8148
        %v8150 = vadd.s32 %v8149, 536870912
        %v8151 = vshrl.u32 %v8150, 30
        %v8152 = vshll.u32 %v8151, 30
        %v8153 = vsub.s32 %v8149, %v8152
        %vm8154 = vcmp.lt.s32.totalorder %v8153, 0
        %v8155 = vsub.s32 0, %v8153
        %v8156 = vsel %vm8154, %v8155, %v8153
        %v8157 = vclz %v8156
        %v8158 = vsub.s32 %v8157, 2
        %vm8159 = vcmp.gt.s32.totalorder 0, %v8158
        %v8160 = vsel %vm8159, 0, %v8158
        %v8161 = vsub.s32 32, %v8160
        %v8162 = vshll.u32 %v8153, %v8160
        %v8163 = vshrl.u32 %v8145, %v8161
        %v8164 = vor.u32 %v8162, %v8163
        %v8165 = vsub.s32 4294967266, %v8160
        %v8166 = vadd.s32 %v8165, 127
        %v8167 = vshll.u32 %v8166, 23
        %v8168 = vor.u32 4788187, %v8167
        %v8169 = vand.u32 2147483647, %v8168
        %v8171 = vcvt.s32.f32 %v8164
        %v8172 = vmul.f32 %v8171, %v8169
        %v8173 = vxor.u32 %v8172, 2147483648
        %v8174 = vsel %vm8053, %v8173, %v8172
        %v8175 = vsub.s32 4, %v8151
        %v8176 = vsel %vm8053, %v8175, %v8151
        %v8177 = vsel %vm8052, %v5963, %v8174
        %v8178 = vsel %vm8052, 0, %v8176
        %v8179 = vmul.f32 %v8177, %v8177
        %v8180 = vmul.f32 %v8179, -0.001358992
        %v8181 = vadd.f32 %v8180, 0.041655596
        %v8182 = vmul.f32 %v8179, %v8181
        %v8183 = vadd.f32 %v8182, -0.4999988
        %v8184 = vmul.f32 %v8179, %v8183
        %v8185 = vadd.f32 1.0, %v8184
        %v8186 = vmul.f32 %v8177, %v8177
        %v8187 = vmul.f32 %v8186, -0.00019511016
        %v8188 = vadd.f32 %v8187, 0.008332121
        %v8189 = vmul.f32 %v8186, %v8188
        %v8190 = vadd.f32 %v8189, -0.16666654
        %v8191 = vmul.f32 %v8186, %v8190
        %v8192 = vadd.f32 %v8191, 1.0
        %v8193 = vmul.f32 %v8192, %v8177
        %vm8194 = vweird.f32 %v5963
        %v8195 = vadd.s32 %v8178, 3
        %v8196 = vand.u32 %v8195, 3
        %vm8197 = vcmp.lt.s32.totalorder %v8196, 2
        %vm8198 = vcmp.eq.s32.totalorder %v8196, 0
        %v8199 = vxor.u32 %v8193, 2147483648
        %v8200 = vsel %vm8198, %v8185, %v8199
        %vm8201 = vcmp.eq.s32.totalorder %v8196, 2
        %v8202 = vxor.u32 %v8185, 2147483648
        %v8203 = vsel %vm8201, %v8202, %v8193
        %v8204 = vsel %vm8197, %v8200, %v8203
        %v8205 = vsel %vm8194, nan, %v8204
        %v8206 = vand.u32 2147483647, %v5966
        %vm8207 = vcmp.le.f32.partialorder %v8206, 0.7853982
        %vm8208 = vcmp.lt.s32.totalorder %v5966, 0
        %v8209 = vand.u32 %v5966, 2139095040
        %v8210 = vshrl.u32 %v8209, 23
        %v8211 = vsub.s32 %v8210, 127
        %v8212 = vand.u32 2147483647, %v5966
        %v8213 = vand.u32 %v8212, 8388607
        %v8214 = vor.u32 %v8213, 8388608
        %v8215 = vsub.s32 0, %v8214
        %v8216 = vadd.s32 %v8211, 1
        %vm8217 = vcmp.gt.s32.totalorder %v8216, 0
        %v8218 = vsel %vm8217, %v8216, 0
        %v8219 = vshrl.u32 %v8218, 5
        %v8220 = vand.u32 %v8218, 31
        %v8221 = vsub.s32 32, %v8220
        %v8222 = vshrl.u32 683565275, %v8221
        %v8223 = vshll.u32 683565275, %v8220
        %v8224 = vshrl.u32 2475754826, %v8221
        %v8225 = vor.u32 %v8223, %v8224
        %v8226 = vshll.u32 2475754826, %v8220
        %v8227 = vshrl.u32 2131351028, %v8221
        %v8228 = vor.u32 %v8226, %v8227
        %v8229 = vshll.u32 2131351028, %v8220
        %v8230 = vshrl.u32 2102212464, %v8221
        %v8231 = vor.u32 %v8229, %v8230
        %v8232 = vshll.u32 2102212464, %v8220
        %v8233 = vshrl.u32 920167782, %v8221
        %v8234 = vor.u32 %v8232, %v8233
        %v8235 = vshll.u32 920167782, %v8220
        %v8236 = vshrl.u32 1326507024, %v8221
        %v8237 = vor.u32 %v8235, %v8236
        %vm8238 = vcmp.lt.s32.totalorder %v8219, 1
        %vm8239 = vcmp.lt.s32.totalorder %v8219, 2
        %vm8240 = vcmp.lt.s32.totalorder %v8219, 3
        %vm8241 = vcmp.lt.s32.totalorder %v8219, 4
        %v8242 = vsel %vm8238, %v8222, %v8225
        %v8243 = vsel %vm8241, %v8231, 2102212464
        %v8244 = vsel %vm8240, %v8228, %v8243
        %v8245 = vsel %vm8239, %v8242, %v8244
        %v8246 = vsel %vm8238, %v8225, %v8228
        %v8247 = vsel %vm8241, %v8234, 920167782
        %v8248 = vsel %vm8240, %v8231, %v8247
        %v8249 = vsel %vm8239, %v8246, %v8248
        %v8250 = vsel %vm8238, %v8228, %v8231
        %v8251 = vsel %vm8241, %v8237, 1326507024
        %v8252 = vsel %vm8240, %v8234, %v8251
        %v8253 = vsel %vm8239, %v8250, %v8252
        %v8254 = vshll.u32 %v8214, 8
        %v8255 = vand.u32 %v8254, 65535
        %v8256 = vshrl.u32 %v8254, 16
        %v8257 = vand.u32 %v8253, 65535
        %v8258 = vshrl.u32 %v8253, 16
        %v8259 = vmul.u32 %v8255, %v8257
        %v8260 = vmul.u32 %v8255, %v8258
        %v8261 = vmul.u32 %v8256, %v8257
        %v8262 = vmul.u32 %v8256, %v8258
        %v8263 = vshll.u32 %v8260, 16
        %v8264 = vshrl.u32 %v8260, 16
        %v8265 = vshll.u32 %v8261, 16
        %v8266 = vshrl.u32 %v8261, 16
        %vm8267 = vc.u32 %v8259, %v8263
        %v8268 = vsel %vm8267, 1, 0
        %v8269 = vadd.s32 %v8259, %v8263
        %v8270 = vadd.s32 %v8262, %v8268
        %vm8271 = vc.u32 %v8269, %v8265
        %v8272 = vsel %vm8271, 1, 0
        %v8273 = vadd.s32 %v8269, %v8265
        %v8274 = vadd.s32 %v8270, %v8272
        %v8275 = vadd.s32 %v8274, %v8264
        %v8276 = vadd.s32 %v8275, %v8266
        %v8277 = vand.u32 %v8254, 65535
        %v8278 = vshrl.u32 %v8254, 16
        %v8279 = vand.u32 %v8249, 65535
        %v8280 = vshrl.u32 %v8249, 16
        %v8281 = vmul.u32 %v8277, %v8279
        %v8282 = vmul.u32 %v8277, %v8280
        %v8283 = vmul.u32 %v8278, %v8279
        %v8284 = vmul.u32 %v8278, %v8280
        %v8285 = vshll.u32 %v8282, 16
        %v8286 = vshrl.u32 %v8282, 16
        %v8287 = vshll.u32 %v8283, 16
        %v8288 = vshrl.u32 %v8283, 16
        %vm8289 = vc.u32 %v8281, %v8285
        %v8290 = vsel %vm8289, 1, 0
        %v8291 = vadd.s32 %v8281, %v8285
        %v8292 = vadd.s32 %v8284, %v8290
        %vm8293 = vc.u32 %v8291, %v8287
        %v8294 = vsel %vm8293, 1, 0
        %v8295 = vadd.s32 %v8291, %v8287
        %v8296 = vadd.s32 %v8292, %v8294
        %v8297 = vadd.s32 %v8296, %v8286
        %v8298 = vadd.s32 %v8297, %v8288
        %v8299 = vmul.u32 %v8254, %v8245
        %v8300 = vadd.s32 %v8276, %v8295
        %vm8301 = vc.u32 %v8276, %v8295
        %v8302 = vadd.s32 %v8298, 1
        %v8303 = vsel %vm8301, %v8302, %v8298
        %v8304 = vadd.s32 %v8299, %v8303
        %v8305 = vadd.s32 %v8304, 536870912
        %v8306 = vshrl.u32 %v8305, 30
        %v8307 = vshll.u32 %v8306, 30
        %v8308 = vsub.s32 %v8304, %v8307
        %vm8309 = vcmp.lt.s32.totalorder %v8308, 0
        %v8310 = vsub.s32 0, %v8308
        %v8311 = vsel %vm8309, %v8310, %v8308
        %v8312 = vclz %v8311
        %v8313 = vsub.s32 %v8312, 2
        %vm8314 = vcmp.gt.s32.totalorder 0, %v8313
        %v8315 = vsel %vm8314, 0, %v8313
        %v8316 = vsub.s32 32, %v8315
        %v8317 = vshll.u32 %v8308, %v8315
        %v8318 = vshrl.u32 %v8300, %v8316
        %v8319 = vor.u32 %v8317, %v8318
        %v8320 = vsub.s32 4294967266, %v8315
        %v8321 = vadd.s32 %v8320, 127
        %v8322 = vshll.u32 %v8321, 23
        %v8323 = vor.u32 4788187, %v8322
        %v8324 = vand.u32 2147483647, %v8323
        %v8326 = vcvt.s32.f32 %v8319
        %v8327 = vmul.f32 %v8326, %v8324
        %v8328 = vxor.u32 %v8327, 2147483648
        %v8329 = vsel %vm8208, %v8328, %v8327
        %v8330 = vsub.s32 4, %v8306
        %v8331 = vsel %vm8208, %v8330, %v8306
        %v8332 = vsel %vm8207, %v5966, %v8329
        %v8333 = vsel %vm8207, 0, %v8331
        %v8334 = vmul.f32 %v8332, %v8332
        %v8335 = vmul.f32 %v8334, -0.001358992
        %v8336 = vadd.f32 %v8335, 0.041655596
        %v8337 = vmul.f32 %v8334, %v8336
        %v8338 = vadd.f32 %v8337, -0.4999988
        %v8339 = vmul.f32 %v8334, %v8338
        %v8340 = vadd.f32 1.0, %v8339
        %v8341 = vmul.f32 %v8332, %v8332
        %v8342 = vmul.f32 %v8341, -0.00019511016
        %v8343 = vadd.f32 %v8342, 0.008332121
        %v8344 = vmul.f32 %v8341, %v8343
        %v8345 = vadd.f32 %v8344, -0.16666654
        %v8346 = vmul.f32 %v8341, %v8345
        %v8347 = vadd.f32 %v8346, 1.0
        %v8348 = vmul.f32 %v8347, %v8332
        %vm8349 = vweird.f32 %v5966
        %v8350 = vadd.s32 %v8333, 3
        %v8351 = vand.u32 %v8350, 3
        %vm8352 = vcmp.lt.s32.totalorder %v8351, 2
        %vm8353 = vcmp.eq.s32.totalorder %v8351, 0
        %v8354 = vxor.u32 %v8348, 2147483648
        %v8355 = vsel %vm8353, %v8340, %v8354
        %vm8356 = vcmp.eq.s32.totalorder %v8351, 2
        %v8357 = vxor.u32 %v8340, 2147483648
        %v8358 = vsel %vm8356, %v8357, %v8348
        %v8359 = vsel %vm8352, %v8355, %v8358
        %v8360 = vsel %vm8349, nan, %v8359
        %v8361 = vand.u32 2147483647, %v5969
        %vm8362 = vcmp.le.f32.partialorder %v8361, 0.7853982
        %vm8363 = vcmp.lt.s32.totalorder %v5969, 0
        %v8364 = vand.u32 %v5969, 2139095040
        %v8365 = vshrl.u32 %v8364, 23
        %v8366 = vsub.s32 %v8365, 127
        %v8367 = vand.u32 2147483647, %v5969
        %v8368 = vand.u32 %v8367, 8388607
        %v8369 = vor.u32 %v8368, 8388608
        %v8370 = vsub.s32 0, %v8369
        %v8371 = vadd.s32 %v8366, 1
        %vm8372 = vcmp.gt.s32.totalorder %v8371, 0
        %v8373 = vsel %vm8372, %v8371, 0
        %v8374 = vshrl.u32 %v8373, 5
        %v8375 = vand.u32 %v8373, 31
        %v8376 = vsub.s32 32, %v8375
        %v8377 = vshrl.u32 683565275, %v8376
        %v8378 = vshll.u32 683565275, %v8375
        %v8379 = vshrl.u32 2475754826, %v8376
        %v8380 = vor.u32 %v8378, %v8379
        %v8381 = vshll.u32 2475754826, %v8375
        %v8382 = vshrl.u32 2131351028, %v8376
        %v8383 = vor.u32 %v8381, %v8382
        %v8384 = vshll.u32 2131351028, %v8375
        %v8385 = vshrl.u32 2102212464, %v8376
        %v8386 = vor.u32 %v8384, %v8385
        %v8387 = vshll.u32 2102212464, %v8375
        %v8388 = vshrl.u32 920167782, %v8376
        %v8389 = vor.u32 %v8387, %v8388
        %v8390 = vshll.u32 920167782, %v8375
        %v8391 = vshrl.u32 1326507024, %v8376
        %v8392 = vor.u32 %v8390, %v8391
        %vm8393 = vcmp.lt.s32.totalorder %v8374, 1
        %vm8394 = vcmp.lt.s32.totalorder %v8374, 2
        %vm8395 = vcmp.lt.s32.totalorder %v8374, 3
        %vm8396 = vcmp.lt.s32.totalorder %v8374, 4
        %v8397 = vsel %vm8393, %v8377, %v8380
        %v8398 = vsel %vm8396, %v8386, 2102212464
        %v8399 = vsel %vm8395, %v8383, %v8398
        %v8400 = vsel %vm8394, %v8397, %v8399
        %v8401 = vsel %vm8393, %v8380, %v8383
        %v8402 = vsel %vm8396, %v8389, 920167782
        %v8403 = vsel %vm8395, %v8386, %v8402
        %v8404 = vsel %vm8394, %v8401, %v8403
        %v8405 = vsel %vm8393, %v8383, %v8386
        %v8406 = vsel %vm8396, %v8392, 1326507024
        %v8407 = vsel %vm8395, %v8389, %v8406
        %v8408 = vsel %vm8394, %v8405, %v8407
        %v8409 = vshll.u32 %v8369, 8
        %v8410 = vand.u32 %v8409, 65535
        %v8411 = vshrl.u32 %v8409, 16
        %v8412 = vand.u32 %v8408, 65535
        %v8413 = vshrl.u32 %v8408, 16
        %v8414 = vmul.u32 %v8410, %v8412
        %v8415 = vmul.u32 %v8410, %v8413
        %v8416 = vmul.u32 %v8411, %v8412
        %v8417 = vmul.u32 %v8411, %v8413
        %v8418 = vshll.u32 %v8415, 16
        %v8419 = vshrl.u32 %v8415, 16
        %v8420 = vshll.u32 %v8416, 16
        %v8421 = vshrl.u32 %v8416, 16
        %vm8422 = vc.u32 %v8414, %v8418
        %v8423 = vsel %vm8422, 1, 0
        %v8424 = vadd.s32 %v8414, %v8418
        %v8425 = vadd.s32 %v8417, %v8423
        %vm8426 = vc.u32 %v8424, %v8420
        %v8427 = vsel %vm8426, 1, 0
        %v8428 = vadd.s32 %v8424, %v8420
        %v8429 = vadd.s32 %v8425, %v8427
        %v8430 = vadd.s32 %v8429, %v8419
        %v8431 = vadd.s32 %v8430, %v8421
        %v8432 = vand.u32 %v8409, 65535
        %v8433 = vshrl.u32 %v8409, 16
        %v8434 = vand.u32 %v8404, 65535
        %v8435 = vshrl.u32 %v8404, 16
        %v8436 = vmul.u32 %v8432, %v8434
        %v8437 = vmul.u32 %v8432, %v8435
        %v8438 = vmul.u32 %v8433, %v8434
        %v8439 = vmul.u32 %v8433, %v8435
        %v8440 = vshll.u32 %v8437, 16
        %v8441 = vshrl.u32 %v8437, 16
        %v8442 = vshll.u32 %v8438, 16
        %v8443 = vshrl.u32 %v8438, 16
        %vm8444 = vc.u32 %v8436, %v8440
        %v8445 = vsel %vm8444, 1, 0
        %v8446 = vadd.s32 %v8436, %v8440
        %v8447 = vadd.s32 %v8439, %v8445
        %vm8448 = vc.u32 %v8446, %v8442
        %v8449 = vsel %vm8448, 1, 0
        %v8450 = vadd.s32 %v8446, %v8442
        %v8451 = vadd.s32 %v8447, %v8449
        %v8452 = vadd.s32 %v8451, %v8441
        %v8453 = vadd.s32 %v8452, %v8443
        %v8454 = vmul.u32 %v8409, %v8400
        %v8455 = vadd.s32 %v8431, %v8450
        %vm8456 = vc.u32 %v8431, %v8450
        %v8457 = vadd.s32 %v8453, 1
        %v8458 = vsel %vm8456, %v8457, %v8453
        %v8459 = vadd.s32 %v8454, %v8458
        %v8460 = vadd.s32 %v8459, 536870912
        %v8461 = vshrl.u32 %v8460, 30
        %v8462 = vshll.u32 %v8461, 30
        %v8463 = vsub.s32 %v8459, %v8462
        %vm8464 = vcmp.lt.s32.totalorder %v8463, 0
        %v8465 = vsub.s32 0, %v8463
        %v8466 = vsel %vm8464, %v8465, %v8463
        %v8467 = vclz %v8466
        %v8468 = vsub.s32 %v8467, 2
        %vm8469 = vcmp.gt.s32.totalorder 0, %v8468
        %v8470 = vsel %vm8469, 0, %v8468
        %v8471 = vsub.s32 32, %v8470
        %v8472 = vshll.u32 %v8463, %v8470
        %v8473 = vshrl.u32 %v8455, %v8471
        %v8474 = vor.u32 %v8472, %v8473
        %v8475 = vsub.s32 4294967266, %v8470
        %v8476 = vadd.s32 %v8475, 127
        %v8477 = vshll.u32 %v8476, 23
        %v8478 = vor.u32 4788187, %v8477
        %v8479 = vand.u32 2147483647, %v8478
        %v8481 = vcvt.s32.f32 %v8474
        %v8482 = vmul.f32 %v8481, %v8479
        %v8483 = vxor.u32 %v8482, 2147483648
        %v8484 = vsel %vm8363, %v8483, %v8482
        %v8485 = vsub.s32 4, %v8461
        %v8486 = vsel %vm8363, %v8485, %v8461
        %v8487 = vsel %vm8362, %v5969, %v8484
        %v8488 = vsel %vm8362, 0, %v8486
        %v8489 = vmul.f32 %v8487, %v8487
        %v8490 = vmul.f32 %v8489, -0.001358992
        %v8491 = vadd.f32 %v8490, 0.041655596
        %v8492 = vmul.f32 %v8489, %v8491
        %v8493 = vadd.f32 %v8492, -0.4999988
        %v8494 = vmul.f32 %v8489, %v8493
        %v8495 = vadd.f32 1.0, %v8494
        %v8496 = vmul.f32 %v8487, %v8487
        %v8497 = vmul.f32 %v8496, -0.00019511016
        %v8498 = vadd.f32 %v8497, 0.008332121
        %v8499 = vmul.f32 %v8496, %v8498
        %v8500 = vadd.f32 %v8499, -0.16666654
        %v8501 = vmul.f32 %v8496, %v8500
        %v8502 = vadd.f32 %v8501, 1.0
        %v8503 = vmul.f32 %v8502, %v8487
        %vm8504 = vweird.f32 %v5969
        %v8505 = vadd.s32 %v8488, 3
        %v8506 = vand.u32 %v8505, 3
        %vm8507 = vcmp.lt.s32.totalorder %v8506, 2
        %vm8508 = vcmp.eq.s32.totalorder %v8506, 0
        %v8509 = vxor.u32 %v8503, 2147483648
        %v8510 = vsel %vm8508, %v8495, %v8509
        %vm8511 = vcmp.eq.s32.totalorder %v8506, 2
        %v8512 = vxor.u32 %v8495, 2147483648
        %v8513 = vsel %vm8511, %v8512, %v8503
        %v8514 = vsel %vm8507, %v8510, %v8513
        %v8515 = vsel %vm8504, nan, %v8514
        %v8516 = vmul.f32 %v5989, %v5989
        %v8517 = vmul.f32 %v5992, %v5992
        %v8518 = vmul.f32 %v5995, %v5995
        %v8519 = vmul.f32 %v5998, %v5998
        %v8520 = vmul.f32 %v6001, %v6001
        %v8521 = vmul.f32 %v6004, %v6004
        %v8522 = vmul.f32 %v6007, %v6007
        %v8523 = vmul.f32 %v6010, %v6010
        %v8524 = vmul.f32 %v6013, %v6013
        %v8525 = vmul.f32 %v6016, %v6016
        %v8526 = vmul.f32 %v6019, %v6019
        %v8527 = vmul.f32 %v6022, %v6022
        %v8528 = vmul.f32 %v6025, %v6025
        %v8529 = vmul.f32 %v6028, %v6028
        %v8530 = vmul.f32 %v6031, %v6031
        %v8531 = vmul.f32 %v6034, %v6034
        %v8532 = vsub.f32 0.0, %v8516
        %v8533 = vsub.f32 0.0, %v8517
        %v8534 = vsub.f32 0.0, %v8518
        %v8535 = vsub.f32 0.0, %v8519
        %v8536 = vsub.f32 0.0, %v8520
        %v8537 = vsub.f32 0.0, %v8521
        %v8538 = vsub.f32 0.0, %v8522
        %v8539 = vsub.f32 0.0, %v8523
        %v8540 = vsub.f32 0.0, %v8524
        %v8541 = vsub.f32 0.0, %v8525
        %v8542 = vsub.f32 0.0, %v8526
        %v8543 = vsub.f32 0.0, %v8527
        %v8544 = vsub.f32 0.0, %v8528
        %v8545 = vsub.f32 0.0, %v8529
        %v8546 = vsub.f32 0.0, %v8530
        %v8547 = vsub.f32 0.0, %v8531
        %v8548 = vpow.pop %v8532
        %v8549 = vpow.pop %v8533
        %v8550 = vpow.pop %v8534
        %v8551 = vpow.pop %v8535
        %v8552 = vpow.pop %v8536
        %v8553 = vpow.pop %v8537
        %v8554 = vpow.pop %v8538
        %v8555 = vpow.pop %v8539
        %v8556 = vpow.pop %v8540
        %v8557 = vpow.pop %v8541
        %v8558 = vpow.pop %v8542
        %v8559 = vpow.pop %v8543
        %v8560 = vpow.pop %v8544
        %v8561 = vpow.pop %v8545
        %v8562 = vpow.pop %v8546
        %v8563 = vpow.pop %v8547
        %v8564 = vmul.f32 %v6190, %v8548
        %v8565 = vmul.f32 %v6345, %v8549
        %v8566 = vmul.f32 %v6500, %v8550
        %v8567 = vmul.f32 %v6655, %v8551
        %v8568 = vmul.f32 %v6810, %v8552
        %v8569 = vmul.f32 %v6965, %v8553
        %v8570 = vmul.f32 %v7120, %v8554
        %v8571 = vmul.f32 %v7275, %v8555
        %v8572 = vmul.f32 %v7430, %v8556
        %v8573 = vmul.f32 %v7585, %v8557
        %v8574 = vmul.f32 %v7740, %v8558
        %v8575 = vmul.f32 %v7895, %v8559
        %v8576 = vmul.f32 %v8050, %v8560
        %v8577 = vmul.f32 %v8205, %v8561
        %v8578 = vmul.f32 %v8360, %v8562
        %v8579 = vmul.f32 %v8515, %v8563
        %8580 = vst [vmem:[%s284] sm:$0xff] %v8564
        %8581 = vst [vmem:[%s284 + $0x8] sm:$0xff] %v8565
        %8582 = vst [vmem:[%s284 + $0x10] sm:$0xff] %v8566
        %8583 = vst [vmem:[%s284 + $0x18] sm:$0xff] %v8567
        %8584 = vst [vmem:[%s284 + $0x20] sm:$0xff] %v8568
        %8585 = vst [vmem:[%s284 + $0x28] sm:$0xff] %v8569
        %8586 = vst [vmem:[%s284 + $0x30] sm:$0xff] %v8570
        %8587 = vst [vmem:[%s284 + $0x38] sm:$0xff] %v8571
        %8588 = vst [vmem:[%s284 + $0x40] sm:$0xff] %v8572
        %8589 = vst [vmem:[%s284 + $0x48] sm:$0xff] %v8573
        %8590 = vst [vmem:[%s284 + $0x50] sm:$0xff] %v8574
        %8591 = vst [vmem:[%s284 + $0x58] sm:$0xff] %v8575
        %8592 = vst [vmem:[%s284 + $0x60] sm:$0xff] %v8576
        %8593 = vst [vmem:[%s284 + $0x68] sm:$0xff] %v8577
        %8594 = vst [vmem:[%s284 + $0x70] sm:$0xff] %v8578
        %8595 = vst [vmem:[%s284 + $0x78] sm:$0xff] %v8579
        %s8596 = sand.u32 %s181, 1
        %s8597 = scalar_lea.sflag [#allocation3], %s8596
        %s8598 = sand.u32 %s181, 1
        %s8599 = smul.addr %s8598, 128
        %s8600 = scalar_lea.vmem [#allocation2], %s8599
        // Predicated region
        $region49: #{wire_forward.1} parent=47 // pred_check
          %p8601 = pneg %p191
        $region50: #{wire_forward.1} parent=47 // pred_check_branch
          %8603 = sbr.rel (%p8601) target = $region52
        $region51: #{wire_forward.1} parent=47 // pred_region
          %s8604 = smul.u32 16, %s21
          %s8605 = ssub.s32 125, %s8604
          %p8606 = scmp.lt.s32.totalorder %s8605, 16
          %s8607 = scalar_select %p8606, %s8605, 16
          %s8608 = smul.u32 8, %s8607
          %s8609 = ssub.s32 128, %s8608
          %s8610 = sshll.u32 %s8609, 4
          %8611 = vsyncadd %s8597, %s8610
          %p8612 = scmp.ne.s32.totalorder 0, %s8608
          %s8613 = smul.addr %s8604, 8
          %s8614 = scalar_lea.hbm %s7, %s8613
          %s8615 = smul.u32 8, %s8607
          %s8616 = sshll.u32 %s8600, 4
          %s8617 = int_to_ptr.vmem [resolvable:$true] %s8616
          %s8618 = sshll.u32 %s8614, 4
          %s8619 = int_to_ptr.hbm [resolvable:$true] %s8618
          %s8620 = sshll.u32 %s8615, 4
          %8624 = dma.vmem_to_hbm [thread:$0]  (%p8612), %s8617, %s8620, %s8619, %s8597, 128, 128, 8
        $region52: #{wire_forward.1} parent=47 // pred_fallthru
          _
      $region48: #{wire_forward.1} parent=5 // pred_fallthru
        _
      %p8625 = scmp.le.s32.totalorder 2, %s16
      // Predicated region
      $region53: #{wire_forward.1} parent=5 // pred_check
        %p8626 = pneg %p8625
      $region54: #{wire_forward.1} parent=5 // pred_check_branch
        %8628 = sbr.rel (%p8626) target = $region56
      $region55: #{wire_forward.1} parent=5 // pred_region
        %s8629 = ssub.s32 %s16, 2
        // Predicated region
        $region57: #{wire_forward.1} parent=55 // pred_check
          %p8630 = pneg %p197
        $region58: #{wire_forward.1} parent=55 // pred_check_branch
          %8632 = sbr.rel (%p8630) target = $region60
        $region59: #{wire_forward.1} parent=55 // pred_region
          %s8633 = sand.u32 %s182, 1
          %s8634 = scalar_lea.sflag [#allocation3], %s8633
          %s8635 = sand.u32 %s182, 1
          %s8636 = smul.addr %s8635, 128
          %s8637 = scalar_lea.vmem [#allocation2], %s8636
          %8639 = dma.done %s8634, 2048
        $region60: #{wire_forward.1} parent=55 // pred_fallthru
          _
      $region56: #{wire_forward.1} parent=5 // pred_fallthru
        _
    $region6: #{wire_forward.1} parent=1 // loop_footer
      %s20 = sadd.s32 1, %s16
    $region7: #{wire_forward.1} parent=1 // loop_footer_branch
      %15 = sbr.rel target = $region3
    $region8: #{wire_forward.1} parent=1 // loop_exit
      _
    %8640 = vsyncpa [#allocation3], 1
    %s8641 = scalar_lea.sflag [#allocation3], 1
    %8642 = vsyncpa %s8641, 1

</llo_original>
